<compile_context>
chip_gen: v7x
topology: tpu7x:2x2x1
jax: 0.10.0
libtpu: 0.0.40
codegen_flags: <defaults>
</compile_context>

<pallas_src>
import functools

import jax
import jax.numpy as jnp
from jax.experimental import pallas as pl
from jax.experimental.pallas import tpu as pltpu


_INV_SQRT2 = 0.7071067811865476


# ----------------------------- budget / tiling -----------------------------

def _round_up(n, m):
    return ((n + m - 1) // m) * m


def _vmem_budget():
    """(scoped VMEM limit, byte budget for double-buffered tiles), per chip gen."""
    cap = 64 * 1024 * 1024            # conservative default: v7x per-TC VMEM
    try:
        info_cap = int(pltpu.get_tpu_info().vmem_capacity_bytes)
        if info_cap > 0:
            cap = info_cap
    except Exception:
        pass                          # off-TPU / interpret: keep conservative default
    limit = max((cap * 3) // 4, 32 * 1024 * 1024)   # 48 MiB on v7x, 96 MiB on v5e/v6e
    budget = (limit * 3) // 4                       # headroom for scratch / Mosaic internals
    return limit, budget


def _mode_tiling(M, Ci, Co, B, budget):
    """Mode-block size from a VMEM byte budget (double-buffered wr/wi bf16 +
    xr/xi f32 + or/oi f32 per retained mode)."""
    per_mode = 2 * (2 * Ci * Co * 2        # wr + wi blocks (bf16)
                    + 2 * B * Ci * 4       # xr + xi blocks (f32)
                    + 2 * B * Co * 4)      # or + oi blocks (f32)
    mblk = max(8, min(1024, (budget // per_mode) // 8 * 8))
    if mblk >= M:
        # Split the mode axis in two when possible: >=2 "parallel" blocks keeps
        # both v7x TensorCores busy (harmless on single-TC v5e/v6e).
        mblk = _round_up(pl.cdiv(M, 2), 8) if M > 8 else _round_up(M, 8)
    Mp = _round_up(M, mblk)
    return mblk, Mp


def _pixel_tiling(HW, Ci, Co, budget, target=2048):
    """Lane-dense pixel tile (multiple of 128) and the padded pixel extent."""
    per_pix = 2 * (Ci * 4 + 2 * Co * 4)    # x + x_fno + out, f32, double-buffered
    cap = max(128, (budget // per_pix) // 128 * 128)
    tpix = min(target, cap, _round_up(HW, 128))
    HWp = _round_up(HW, tpix)              # pad instead of one giant fallback block
    return tpix, HWp


# ----------------------------- Pallas kernels -----------------------------

def _modes_kernel(xr_ref, xi_ref, wr_ref, wi_ref, or_ref, oi_ref):
    # Per retained Fourier mode m (the dot_general batch axis), complex channel
    # mixing  out[m] = x[m] @ (wr[m] + i*wi[m])  as 4 real MXU matmuls and 2
    # VPU add/subs.  Only wr/wi are streamed from HBM (bf16); f32 accumulation.
    xr = xr_ref[...]                              # (MBLK, B, Ci) f32
    xi = xi_ref[...]
    wr = wr_ref[...].astype(jnp.float32)          # (MBLK, Ci, Co) bf16 -> f32
    wi = wi_ref[...].astype(jnp.float32)
    dn = (((2,), (1,)), ((0,), (0,)))             # contract channels, batch over modes
    rr = jax.lax.dot_general(xr, wr, dn, preferred_element_type=jnp.float32)
    ii = jax.lax.dot_general(xi, wi, dn, preferred_element_type=jnp.float32)
    ri = jax.lax.dot_general(xr, wi, dn, preferred_element_type=jnp.float32)
    ir = jax.lax.dot_general(xi, wr, dn, preferred_element_type=jnp.float32)
    or_ref[...] = rr - ii                          # (MBLK, B, Co)
    oi_ref[...] = ri + ir


def _erf(z):
    # Abramowitz & Stegun 7.1.26 rational erf (max abs err 1.5e-7): exp on the
    # EUP + a handful of VPU FMAs.  Keeps the module's exact (erf-based) GELU
    # fused in-kernel without relying on a lax.erf Mosaic lowering.
    a = jnp.abs(z)
    t = 1.0 / (1.0 + 0.3275911 * a)
    poly = t * (0.254829592 + t * (-0.284496736 + t * (1.421413741
               + t * (-1.453152027 + t * 1.061405429))))
    e = 1.0 - poly * jnp.exp(-a * a)
    return jnp.where(z >= 0, e, -e)


def _fused_combine_kernel(x_ref, fno_ref, w_ref, b_ref, o_ref, *, apply_act):
    # One pass per (batch, pixel-tile):
    #   skip = W_skip @ x_tile              (1x1 'linear' skip conv, MXU)
    #   y    = x_fno_tile + skip + bias[c]  (VPU; bias (Co,1) broadcasts over lanes)
    #   y    = GELU(y)                      (exact erf GELU)   iff apply_act
    x = x_ref[0]                                                        # (Ci, TPIX)
    skip = jnp.dot(w_ref[...], x, preferred_element_type=jnp.float32)   # (Co, TPIX)
    y = fno_ref[0] + skip + b_ref[...]
    if apply_act:
        y = 0.5 * y * (1.0 + _erf(y * _INV_SQRT2))
    o_ref[0] = y


# ----------------------------- wrappers (glue) -----------------------------

def spectral_conv_modes(xr, xi, wr_blk, wi_blk, mblk, vmem_limit):
    """Per-mode complex channel mixing via batched MXU matmuls.

    xr, xi:           (B, Ci, M) retained-mode real/imag parts (f32).
    wr_blk, wi_blk:   (Mp, Ci, Co) pre-packed bf16 weights (Mp = padded modes).
    returns:          ((B, Co, M), (B, Co, M)) real/imag outputs (f32)."""
    B, Ci, M = xr.shape
    Mp, _, Co = wr_blk.shape
    nblk = Mp // mblk

    def prep(a):                      # small retained-mode tensor only
        a = jnp.transpose(a, (2, 0, 1))                       # (M, B, Ci)
        return jnp.pad(a, ((0, Mp - M), (0, 0), (0, 0)))      # (Mp, B, Ci)

    out_r, out_i = pl.pallas_call(
        _modes_kernel,
        out_shape=(jax.ShapeDtypeStruct((Mp, B, Co), jnp.float32),
                   jax.ShapeDtypeStruct((Mp, B, Co), jnp.float32)),
        grid=(nblk,),
        in_specs=[
            pl.BlockSpec((mblk, B, Ci), lambda m: (m, 0, 0)),
            pl.BlockSpec((mblk, B, Ci), lambda m: (m, 0, 0)),
            pl.BlockSpec((mblk, Ci, Co), lambda m: (m, 0, 0)),
            pl.BlockSpec((mblk, Ci, Co), lambda m: (m, 0, 0)),
        ],
        out_specs=(
            pl.BlockSpec((mblk, B, Co), lambda m: (m, 0, 0)),
            pl.BlockSpec((mblk, B, Co), lambda m: (m, 0, 0)),
        ),
        compiler_params=pltpu.CompilerParams(
            dimension_semantics=("parallel",),
            vmem_limit_bytes=vmem_limit,
        ),
    )(prep(xr), prep(xi), wr_blk, wi_blk)

    # TODO(synk): these transposes act only on the small retained-mode tensor;
    # they could be folded into the kernel (XLU transpose of the output tile)
    # but are kept in XLA for lowering robustness.
    out_r = jnp.transpose(out_r[:M], (1, 2, 0))               # (B, Co, M)
    out_i = jnp.transpose(out_i[:M], (1, 2, 0))
    return out_r, out_i


def spectral_conv(x, wr_blk, wi_blk, mh, mwh, mblk, vmem_limit):
    """SpectralConv forward (dense weights, fft_norm='forward'); bias is added
    later in the fused combine kernel.

    The retained low-frequency rows are sliced from (and scattered back into)
    the UNSHIFTED rfftn layout — equivalent to the module's
    fftshift -> centre slice -> ifftshift, without the two full-spectrum copies."""
    B, Ci, H, W = x.shape
    Co = wr_blk.shape[2]
    Wf = W // 2 + 1
    M = mh * mwh

    x_ft = jnp.fft.rfftn(x, axes=(-2, -1), norm="forward")

    r0 = (H - mh) // 2                # module slices shifted rows [r0, r0+mh)
    n_neg = H // 2 - r0               # -> unshifted rows [H-n_neg, H) then [0, n_pos)
    n_pos = mh - n_neg
    x_m = jnp.concatenate(
        [x_ft[:, :, H - n_neg:, :mwh], x_ft[:, :, :n_pos, :mwh]], axis=2)   # (B,Ci,mh,mwh)

    xr = jnp.real(x_m).astype(jnp.float32).reshape(B, Ci, M)
    xi = jnp.imag(x_m).astype(jnp.float32).reshape(B, Ci, M)
    o_r, o_i = spectral_conv_modes(xr, xi, wr_blk, wi_blk, mblk, vmem_limit)

    out_m = (o_r + 1j * o_i).reshape(B, Co, mh, mwh).astype(jnp.complex64)
    out_ft = jnp.zeros((B, Co, H, Wf), dtype=jnp.complex64)
    out_ft = out_ft.at[:, :, H - n_neg:, :mwh].set(out_m[:, :, :n_neg])
    out_ft = out_ft.at[:, :, :n_pos, :mwh].set(out_m[:, :, n_neg:])
    return jnp.fft.irfftn(out_ft, s=(H, W), axes=(-2, -1), norm="forward")


def fused_skip_bias_act(x, x_fno, skip_w, bias, apply_act, budget, vmem_limit):
    """x_fno + fno_skip(x) + spectral bias (+ exact GELU) in one tiled pass."""
    B, Ci, H, W = x.shape
    Co = skip_w.shape[0]
    HW = H * W
    tpix, HWp = _pixel_tiling(HW, Ci, Co, budget)

    xf = x.reshape(B, Ci, HW)
    ff = x_fno.reshape(B, Co, HW)
    if HWp != HW:                      # pad pixel axis to a whole number of tiles
        xf = jnp.pad(xf, ((0, 0), (0, 0), (0, HWp - HW)))
        ff = jnp.pad(ff, ((0, 0), (0, 0), (0, HWp - HW)))

    out = pl.pallas_call(
        functools.partial(_fused_combine_kernel, apply_act=bool(apply_act)),
        out_shape=jax.ShapeDtypeStruct((B, Co, HWp), jnp.float32),
        grid=(B, HWp // tpix),
        in_specs=[
            pl.BlockSpec((1, Ci, tpix), lambda b, p: (b, 0, p)),   # x (natural layout)
            pl.BlockSpec((1, Co, tpix), lambda b, p: (b, 0, p)),   # x_fno
            pl.BlockSpec((Co, Ci), lambda b, p: (0, 0)),           # skip weight (resident)
            pl.BlockSpec((Co, 1), lambda b, p: (0, 0)),            # spectral-conv bias
        ],
        out_specs=pl.BlockSpec((1, Co, tpix), lambda b, p: (b, 0, p)),
        compiler_params=pltpu.CompilerParams(
            dimension_semantics=("parallel", "parallel"),
            vmem_limit_bytes=vmem_limit,
        ),
    )(xf, ff, skip_w, bias.reshape(Co, 1))

    return out[:, :, :HW].reshape(B, Co, H, W)


def fno_blocks_forward(x, params, index):
    """FNOBlocks.forward_with_postactivation with defaults:
    use_mlp=False, norm=None, stabilizer=None, output_scaling_factor=None."""
    n_layers = params["n_layers"]
    mh, mw = params["n_modes"]
    mwh = mw // 2 + 1

    # convs(x): SpectralConv (its per-channel bias is folded into the fused pass).
    x_fno = spectral_conv(x, params["spec_wr_blk"][index], params["spec_wi_blk"][index],
                          mh, mwh, params["mblk"], params["vmem_limit"])

    # fno_skips[index](x) + x_fno + bias (+ GELU iff index < n_layers-1), fused.
    # convs.transform(...) is the identity here (no output scaling / reshaping).
    apply_act = index < n_layers - 1
    return fused_skip_bias_act(x, x_fno, params["skip_w"][index],
                               params["spec_bias"][index], apply_act,
                               params["budget"], params["vmem_limit"])


# ----------------------------- parameters -----------------------------

def init_params(key, in_channels, out_channels, n_modes, n_layers, batch_hint=32):
    mh, mw = n_modes
    mwh = mw // 2 + 1                  # SpectralConv keeps n_modes[-1]//2 + 1 on last dim
    M = mh * mwh

    vmem_limit, budget = _vmem_budget()
    # batch_hint: largest batch the pre-padded mode tiling is budgeted for.
    mblk, Mp = _mode_tiling(M, in_channels, out_channels, max(int(batch_hint), 8), budget)

    k0, k1, k2, k3 = jax.random.split(key, 4)
    init_std = (2.0 / (in_channels + out_channels)) ** 0.5
    spec_wr = jax.random.normal(
        k1, (n_layers, in_channels, out_channels, mh, mwh), jnp.float32) * init_std
    spec_wi = jax.random.normal(
        k2, (n_layers, in_channels, out_channels, mh, mwh), jnp.float32) * init_std
    # Round once to bf16 so the kernel (bf16 weight stream) and the f32
    # reference use numerically identical weight values.
    spec_wr = spec_wr.astype(jnp.bfloat16).astype(jnp.float32)
    spec_wi = spec_wi.astype(jnp.bfloat16).astype(jnp.float32)

    def pack(w):   # (Ci, Co, mh, mwh) -> (Mp, Ci, Co) bf16, padded over modes
        w = w.reshape(in_channels, out_channels, M)
        w = jnp.transpose(w, (2, 0, 1))
        w = jnp.pad(w, ((0, Mp - M), (0, 0), (0, 0)))
        return w.astype(jnp.bfloat16)

    wr_blk = jnp.stack([pack(spec_wr[l]) for l in range(n_layers)])
    wi_blk = jnp.stack([pack(spec_wi[l]) for l in range(n_layers)])

    return {
        "n_layers": n_layers,
        "n_modes": tuple(n_modes),
        "mblk": mblk,
        "vmem_limit": vmem_limit,
        "budget": budget,
        # 'linear' skip: Conv weight (out, in), bias=False
        "skip_w": jax.random.normal(
            k0, (n_layers, out_channels, in_channels), jnp.float32)
        * (1.0 / in_channels ** 0.5),
        # SpectralConv dense complex weights (bf16-rounded; used by the reference)
        "spec_wr": spec_wr,
        "spec_wi": spec_wi,
        # Pre-packed, mode-padded bf16 weights for the MXU kernel (out of hot path)
        "spec_wr_blk": wr_blk,
        "spec_wi_blk": wi_blk,
        # SpectralConv bias (n_layers, out_channels), broadcast over spatial dims
        "spec_bias": jax.random.normal(
            k3, (n_layers, out_channels), jnp.float32) * init_std,
    }


# ----------------------------- pure-JAX reference -----------------------------

def fno_block_reference(x, params, index):
    """Pure-JAX reference of the same forward pass (faithful to the module,
    including the fftshift/ifftshift path) — numerical sanity check."""
    B, Ci, H, W = x.shape
    w = params["skip_w"][index]
    Co = w.shape[0]
    mh, mw = params["n_modes"]
    mwh = mw // 2 + 1
    Wf = W // 2 + 1

    x_skip = jnp.einsum("oi,bihw->bohw", w, x)

    wc = params["spec_wr"][index] + 1j * params["spec_wi"][index]
    x_ft = jnp.fft.rfftn(x, axes=(-2, -1), norm="forward")
    x_ft = jnp.fft.fftshift(x_ft, axes=(-2,))
    r0 = (H - mh) // 2
    x_m = x_ft[:, :, r0:r0 + mh, :mwh]
    out_m = jnp.einsum("bixy,ioxy->boxy", x_m, wc)
    out_ft = jnp.zeros((B, Co, H, Wf), jnp.complex64)
    out_ft = out_ft.at[:, :, r0:r0 + mh, :mwh].set(out_m)
    out_ft = jnp.fft.ifftshift(out_ft, axes=(-2,))
    x_fno = jnp.fft.irfftn(out_ft, s=(H, W), axes=(-2, -1), norm="forward")

    y = x_fno + params["spec_bias"][index].reshape(1, Co, 1, 1) + x_skip
    if index < params["n_layers"] - 1:
        y = jax.nn.gelu(y, approximate=False)
    return y


# ----------------------------- demo -----------------------------

if __name__ == "__main__":
    B, C, H, W = 2, 4, 16, 16
    n_modes = (8, 8)
    n_layers = 2

    key = jax.random.PRNGKey(0)
    kx, kp = jax.random.split(key)
    x = jax.random.normal(kx, (B, C, H, W), jnp.float32)
    params = init_params(kp, C, C, n_modes, n_layers, batch_hint=B)

    y = x
    y_ref = x
    for idx in range(n_layers):        # apply the sequence of Fourier layers
        y = fno_blocks_forward(y, params, idx)
        y_ref = fno_block_reference(y_ref, params, idx)
    y = jax.block_until_ready(y)
    y_ref = jax.block_until_ready(y_ref)

    assert y.shape == (B, C, H, W) and y.dtype == jnp.float32
    assert bool(jnp.all(jnp.isfinite(y)))
    # Kernel and reference share identical (bf16-rounded) spectral weights, so
    # the remaining delta is MXU default-precision matmul rounding plus the
    # 1.5e-7 erf approximation — 2e-2 cleanly separates that from real bugs.
    err = float(jnp.max(jnp.abs(y - y_ref)))
    assert bool(jnp.allclose(y, y_ref, rtol=2e-2, atol=2e-2)), err
    print("KERNEL_OK")
</pallas_src>

<mosaic_0001>
module attributes {stable_mosaic.version = 11 : i64} {
  func.func @_modes_kernel(%arg0: i32, %arg1: memref<24x2x4xf32, #tpu.memory_space<vmem>>, %arg2: memref<24x2x4xf32, #tpu.memory_space<vmem>>, %arg3: memref<24x4x4xbf16, #tpu.memory_space<vmem>>, %arg4: memref<24x4x4xbf16, #tpu.memory_space<vmem>>, %arg5: memref<24x2x4xf32, #tpu.memory_space<vmem>>, %arg6: memref<24x2x4xf32, #tpu.memory_space<vmem>>) attributes {dimension_semantics = [#tpu.dimension_semantics<parallel>], iteration_bounds = array<i64: 2>, scalar_prefetch = 0 : i64, scratch_operands = 0 : i64, tpu.core_type = #tpu.core_type<tc>, window_params = [{transform_indices = @transform_0, window_bounds = array<i64: 24, 2, 4>}, {transform_indices = @transform_1, window_bounds = array<i64: 24, 2, 4>}, {transform_indices = @transform_2, window_bounds = array<i64: 24, 4, 4>}, {transform_indices = @transform_3, window_bounds = array<i64: 24, 4, 4>}, {transform_indices = @transform_4, window_bounds = array<i64: 24, 2, 4>}, {transform_indices = @transform_5, window_bounds = array<i64: 24, 2, 4>}]} {
    %c0 = arith.constant 0 : index
    %c0_0 = arith.constant 0 : index
    %c0_1 = arith.constant 0 : index
    %0 = vector.load %arg1[%c0, %c0_0, %c0_1] : memref<24x2x4xf32, #tpu.memory_space<vmem>>, vector<24x2x4xf32>
    %c0_2 = arith.constant 0 : index
    %c0_3 = arith.constant 0 : index
    %c0_4 = arith.constant 0 : index
    %1 = vector.load %arg2[%c0_2, %c0_3, %c0_4] : memref<24x2x4xf32, #tpu.memory_space<vmem>>, vector<24x2x4xf32>
    %c0_5 = arith.constant 0 : index
    %c0_6 = arith.constant 0 : index
    %c0_7 = arith.constant 0 : index
    %2 = vector.load %arg3[%c0_5, %c0_6, %c0_7] : memref<24x4x4xbf16, #tpu.memory_space<vmem>>, vector<24x4x4xbf16>
    %3 = arith.extf %2 : vector<24x4x4xbf16> to vector<24x4x4xf32>
    %c0_8 = arith.constant 0 : index
    %c0_9 = arith.constant 0 : index
    %c0_10 = arith.constant 0 : index
    %4 = vector.load %arg4[%c0_8, %c0_9, %c0_10] : memref<24x4x4xbf16, #tpu.memory_space<vmem>>, vector<24x4x4xbf16>
    %5 = arith.extf %4 : vector<24x4x4xbf16> to vector<24x4x4xf32>
    %cst = arith.constant dense<0.000000e+00> : vector<24x2x4xf32>
    %6 = tpu.matmul %0, %3, %cst {dimension_numbers = #tpu.dot_dimension_numbers<[2], [1], [1], [2], [0, 0, 0, 1, 1, 2], [0], [0]>} : vector<24x2x4xf32>, vector<24x4x4xf32>, vector<24x2x4xf32> -> vector<24x2x4xf32>
    %cst_11 = arith.constant dense<0.000000e+00> : vector<24x2x4xf32>
    %7 = tpu.matmul %1, %5, %cst_11 {dimension_numbers = #tpu.dot_dimension_numbers<[2], [1], [1], [2], [0, 0, 0, 1, 1, 2], [0], [0]>} : vector<24x2x4xf32>, vector<24x4x4xf32>, vector<24x2x4xf32> -> vector<24x2x4xf32>
    %cst_12 = arith.constant dense<0.000000e+00> : vector<24x2x4xf32>
    %8 = tpu.matmul %0, %5, %cst_12 {dimension_numbers = #tpu.dot_dimension_numbers<[2], [1], [1], [2], [0, 0, 0, 1, 1, 2], [0], [0]>} : vector<24x2x4xf32>, vector<24x4x4xf32>, vector<24x2x4xf32> -> vector<24x2x4xf32>
    %cst_13 = arith.constant dense<0.000000e+00> : vector<24x2x4xf32>
    %9 = tpu.matmul %1, %3, %cst_13 {dimension_numbers = #tpu.dot_dimension_numbers<[2], [1], [1], [2], [0, 0, 0, 1, 1, 2], [0], [0]>} : vector<24x2x4xf32>, vector<24x4x4xf32>, vector<24x2x4xf32> -> vector<24x2x4xf32>
    %10 = arith.subf %6, %7 : vector<24x2x4xf32>
    %c0_14 = arith.constant 0 : index
    %c0_15 = arith.constant 0 : index
    %c0_16 = arith.constant 0 : index
    %11 = vector.load %arg5[%c0_14, %c0_15, %c0_16] : memref<24x2x4xf32, #tpu.memory_space<vmem>>, vector<24x2x4xf32>
    tpu.vector_store %arg5[%c0_14, %c0_15, %c0_16], %10 {strides = array<i32>} : memref<24x2x4xf32, #tpu.memory_space<vmem>>, vector<24x2x4xf32>,
    %12 = arith.addf %8, %9 : vector<24x2x4xf32>
    %c0_17 = arith.constant 0 : index
    %c0_18 = arith.constant 0 : index
    %c0_19 = arith.constant 0 : index
    %13 = vector.load %arg6[%c0_17, %c0_18, %c0_19] : memref<24x2x4xf32, #tpu.memory_space<vmem>>, vector<24x2x4xf32>
    tpu.vector_store %arg6[%c0_17, %c0_18, %c0_19], %12 {strides = array<i32>} : memref<24x2x4xf32, #tpu.memory_space<vmem>>, vector<24x2x4xf32>,
    return
  }
  func.func @transform_0(%arg0: i32) -> (i32, i32, i32) {
    %c0_i32 = arith.constant 0 : i32
    %c0_i32_0 = arith.constant 0 : i32
    %c0_i32_1 = arith.constant 0 : i32
    return %arg0, %c0_i32, %c0_i32_0 : i32, i32, i32
  }
  func.func @transform_1(%arg0: i32) -> (i32, i32, i32) {
    %c0_i32 = arith.constant 0 : i32
    %c0_i32_0 = arith.constant 0 : i32
    %c0_i32_1 = arith.constant 0 : i32
    return %arg0, %c0_i32, %c0_i32_0 : i32, i32, i32
  }
  func.func @transform_2(%arg0: i32) -> (i32, i32, i32) {
    %c0_i32 = arith.constant 0 : i32
    %c0_i32_0 = arith.constant 0 : i32
    %c0_i32_1 = arith.constant 0 : i32
    return %arg0, %c0_i32, %c0_i32_0 : i32, i32, i32
  }
  func.func @transform_3(%arg0: i32) -> (i32, i32, i32) {
    %c0_i32 = arith.constant 0 : i32
    %c0_i32_0 = arith.constant 0 : i32
    %c0_i32_1 = arith.constant 0 : i32
    return %arg0, %c0_i32, %c0_i32_0 : i32, i32, i32
  }
  func.func @transform_4(%arg0: i32) -> (i32, i32, i32) {
    %c0_i32 = arith.constant 0 : i32
    %c0_i32_0 = arith.constant 0 : i32
    %c0_i32_1 = arith.constant 0 : i32
    return %arg0, %c0_i32, %c0_i32_0 : i32, i32, i32
  }
  func.func @transform_5(%arg0: i32) -> (i32, i32, i32) {
    %c0_i32 = arith.constant 0 : i32
    %c0_i32_0 = arith.constant 0 : i32
    %c0_i32_1 = arith.constant 0 : i32
    return %arg0, %c0_i32, %c0_i32_0 : i32, i32, i32
  }
}

</mosaic_0001>

<llo_original>
// kernel: tpu_custom_call.1
$region0: #{tpu_custom_call.1}
  #allocation0 [shape = 'u32[]', space=smem, size = 0x4, offset = 0x4, fixed_abs, tag = 'smem constant byte address 0x4 - core index']
  #allocation1 [shape = 'u32[144,128]{1,0:T(1,128)}', space=vmem, size = 0x12000, scoped, tag = 'internal scratch']
  %s0 = inlined_call_operand.vmem [shape: f32[48,2,4], index: 0, kind: input, shape index: {}]
  %s1 = inlined_call_operand.vmem [shape: f32[48,2,4], index: 1, kind: input, shape index: {}]
  %s2 = inlined_call_operand.vmem [shape: bf16[48,4,4], index: 2, kind: input, shape index: {}]
  %s3 = inlined_call_operand.vmem [shape: bf16[48,4,4], index: 3, kind: input, shape index: {}]
  %s4 = inlined_call_operand.vmem [shape: f32[48,2,4], index: 4, kind: output, shape index: {0}]
  %s5 = inlined_call_operand.vmem [shape: f32[48,2,4], index: 5, kind: output, shape index: {1}]
  %6 = xla_tuple %s4, %s5
  %s7 = sld [smem:[#allocation0]]
  $region57: #{tpu_custom_call.1} parent=0
    _
  %s9 = ssub.s32 1, %s7
  %s10 = scalar_select 0, %s9, %s7
  loop: start=0, step=1, limit=4
  $region2: #{tpu_custom_call.1} parent=0 // loop_pre_header
    _
  $region3: #{tpu_custom_call.1} parent=0 // loop_header
    %s12 = sphi 0, %s16
    %p13 = scmp.ge.s32.totalorder %s12, 4
    %s22 = sphi 0, %s24
    %s25 = sphi 0, %s22
    %s26 = sphi 0, %s25
    %s42 = sphi 0, %s26
    %s48 = sphi 0, %s50
    %s51 = sphi 0, %s48
    %s52 = sphi 0, %s51
    %s68 = sphi 0, %s52
    %s74 = sphi 0, %s76
    %s77 = sphi 0, %s74
    %s78 = sphi 0, %s77
    %s94 = sphi 0, %s78
    %s100 = sphi 0, %s102
    %s103 = sphi 0, %s100
    %s104 = sphi 0, %s103
    %s120 = sphi 0, %s104
    %s126 = sphi 0, %s128
    %s129 = sphi 0, %s126
    %s130 = sphi 0, %s129
    %s146 = sphi 0, %s130
    %s152 = sphi 0, %s154
    %s155 = sphi 0, %s152
    %s156 = sphi 0, %s155
    %s172 = sphi 0, %s156
  $region4: #{tpu_custom_call.1} parent=0 // loop_header_branch
    %15 = sbr.rel (%p13) target = $region8
  $region5: #{tpu_custom_call.1} parent=0 // loop_body
    %s17 = ssub.s32 %s12, 1
    %s18 = ssub.s32 %s12, 2
    %s19 = sadd.s32 %s12, 1
    %s20 = ssub.s32 %s12, %s19
    %p21 = scmp.eq.s32.totalorder %s20, 0
    %s23 = sadd.s32 %s22, 1
    %s24 = scalar_select %p21, %s22, %s23
    %p27 = pneg %p21
    %p28 = scmp.eq.s32.totalorder %s12, 1
    %p29 = por %p27, %p28
    %p30 = scmp.ne.s32.totalorder %s22, %s25
    %p31 = scmp.eq.s32.totalorder %s12, 0
    %p32 = por %p30, %p31
    %p33 = scmp.ne.s32.totalorder %s22, %s25
    %p34 = scmp.eq.s32.totalorder %s17, 1
    %p35 = por %p33, %p34
    %p36 = scmp.ne.s32.totalorder %s25, %s26
    %p37 = scmp.eq.s32.totalorder %s17, 0
    %p38 = por %p36, %p37
    %p39 = scmp.ne.s32.totalorder %s25, %s26
    %p40 = scmp.eq.s32.totalorder %s18, 1
    %p41 = por %p39, %p40
    %p43 = scmp.ne.s32.totalorder %s26, %s42
    %p44 = scmp.eq.s32.totalorder %s18, 0
    %p45 = por %p43, %p44
    %s46 = ssub.s32 %s12, %s19
    %p47 = scmp.eq.s32.totalorder %s46, 0
    %s49 = sadd.s32 %s48, 1
    %s50 = scalar_select %p47, %s48, %s49
    %p53 = pneg %p47
    %p54 = scmp.eq.s32.totalorder %s12, 1
    %p55 = por %p53, %p54
    %p56 = scmp.ne.s32.totalorder %s48, %s51
    %p57 = scmp.eq.s32.totalorder %s12, 0
    %p58 = por %p56, %p57
    %p59 = scmp.ne.s32.totalorder %s48, %s51
    %p60 = scmp.eq.s32.totalorder %s17, 1
    %p61 = por %p59, %p60
    %p62 = scmp.ne.s32.totalorder %s51, %s52
    %p63 = scmp.eq.s32.totalorder %s17, 0
    %p64 = por %p62, %p63
    %p65 = scmp.ne.s32.totalorder %s51, %s52
    %p66 = scmp.eq.s32.totalorder %s18, 1
    %p67 = por %p65, %p66
    %p69 = scmp.ne.s32.totalorder %s52, %s68
    %p70 = scmp.eq.s32.totalorder %s18, 0
    %p71 = por %p69, %p70
    %s72 = ssub.s32 %s12, %s19
    %p73 = scmp.eq.s32.totalorder %s72, 0
    %s75 = sadd.s32 %s74, 1
    %s76 = scalar_select %p73, %s74, %s75
    %p79 = pneg %p73
    %p80 = scmp.eq.s32.totalorder %s12, 1
    %p81 = por %p79, %p80
    %p82 = scmp.ne.s32.totalorder %s74, %s77
    %p83 = scmp.eq.s32.totalorder %s12, 0
    %p84 = por %p82, %p83
    %p85 = scmp.ne.s32.totalorder %s74, %s77
    %p86 = scmp.eq.s32.totalorder %s17, 1
    %p87 = por %p85, %p86
    %p88 = scmp.ne.s32.totalorder %s77, %s78
    %p89 = scmp.eq.s32.totalorder %s17, 0
    %p90 = por %p88, %p89
    %p91 = scmp.ne.s32.totalorder %s77, %s78
    %p92 = scmp.eq.s32.totalorder %s18, 1
    %p93 = por %p91, %p92
    %p95 = scmp.ne.s32.totalorder %s78, %s94
    %p96 = scmp.eq.s32.totalorder %s18, 0
    %p97 = por %p95, %p96
    %s98 = ssub.s32 %s12, %s19
    %p99 = scmp.eq.s32.totalorder %s98, 0
    %s101 = sadd.s32 %s100, 1
    %s102 = scalar_select %p99, %s100, %s101
    %p105 = pneg %p99
    %p106 = scmp.eq.s32.totalorder %s12, 1
    %p107 = por %p105, %p106
    %p108 = scmp.ne.s32.totalorder %s100, %s103
    %p109 = scmp.eq.s32.totalorder %s12, 0
    %p110 = por %p108, %p109
    %p111 = scmp.ne.s32.totalorder %s100, %s103
    %p112 = scmp.eq.s32.totalorder %s17, 1
    %p113 = por %p111, %p112
    %p114 = scmp.ne.s32.totalorder %s103, %s104
    %p115 = scmp.eq.s32.totalorder %s17, 0
    %p116 = por %p114, %p115
    %p117 = scmp.ne.s32.totalorder %s103, %s104
    %p118 = scmp.eq.s32.totalorder %s18, 1
    %p119 = por %p117, %p118
    %p121 = scmp.ne.s32.totalorder %s104, %s120
    %p122 = scmp.eq.s32.totalorder %s18, 0
    %p123 = por %p121, %p122
    %s124 = ssub.s32 %s12, %s19
    %p125 = scmp.eq.s32.totalorder %s124, 0
    %s127 = sadd.s32 %s126, 1
    %s128 = scalar_select %p125, %s126, %s127
    %p131 = pneg %p125
    %p132 = scmp.eq.s32.totalorder %s12, 1
    %p133 = por %p131, %p132
    %p134 = scmp.ne.s32.totalorder %s126, %s129
    %p135 = scmp.eq.s32.totalorder %s12, 0
    %p136 = por %p134, %p135
    %p137 = scmp.ne.s32.totalorder %s126, %s129
    %p138 = scmp.eq.s32.totalorder %s17, 1
    %p139 = por %p137, %p138
    %p140 = scmp.ne.s32.totalorder %s129, %s130
    %p141 = scmp.eq.s32.totalorder %s17, 0
    %p142 = por %p140, %p141
    %p143 = scmp.ne.s32.totalorder %s129, %s130
    %p144 = scmp.eq.s32.totalorder %s18, 1
    %p145 = por %p143, %p144
    %p147 = scmp.ne.s32.totalorder %s130, %s146
    %p148 = scmp.eq.s32.totalorder %s18, 0
    %p149 = por %p147, %p148
    %s150 = ssub.s32 %s12, %s19
    %p151 = scmp.eq.s32.totalorder %s150, 0
    %s153 = sadd.s32 %s152, 1
    %s154 = scalar_select %p151, %s152, %s153
    %p157 = pneg %p151
    %p158 = scmp.eq.s32.totalorder %s12, 1
    %p159 = por %p157, %p158
    %p160 = scmp.ne.s32.totalorder %s152, %s155
    %p161 = scmp.eq.s32.totalorder %s12, 0
    %p162 = por %p160, %p161
    %p163 = scmp.ne.s32.totalorder %s152, %s155
    %p164 = scmp.eq.s32.totalorder %s17, 1
    %p165 = por %p163, %p164
    %p166 = scmp.ne.s32.totalorder %s155, %s156
    %p167 = scmp.eq.s32.totalorder %s17, 0
    %p168 = por %p166, %p167
    %p169 = scmp.ne.s32.totalorder %s155, %s156
    %p170 = scmp.eq.s32.totalorder %s18, 1
    %p171 = por %p169, %p170
    %p173 = scmp.ne.s32.totalorder %s156, %s172
    %p174 = scmp.eq.s32.totalorder %s18, 0
    %p175 = por %p173, %p174
    %p176 = scmp.le.s32.totalorder 1, %s12
    %p177 = scmp.lt.s32.totalorder %s12, 3
    %p178 = pnand %p176, %p177
    %p179 = pneg %p178
    // Predicated region
    $region9: #{tpu_custom_call.1} parent=5 // pred_check
      _
    $region10: #{tpu_custom_call.1} parent=5 // pred_check_branch
      %181 = sbr.rel (%p178) target = $region12
    $region11: #{tpu_custom_call.1} parent=5 // pred_region
      %s182 = ssub.s32 %s12, 1
    $region12: #{tpu_custom_call.1} parent=5 // pred_fallthru
      _
    %p183 = scmp.lt.s32.totalorder %s12, 2
    // Predicated region
    $region13: #{tpu_custom_call.1} parent=5 // pred_check
      %p184 = pneg %p183
    $region14: #{tpu_custom_call.1} parent=5 // pred_check_branch
      %186 = sbr.rel (%p184) target = $region16
    $region15: #{tpu_custom_call.1} parent=5 // pred_region
      // Predicated region
      $region17: #{tpu_custom_call.1} parent=15 // pred_check
        %p187 = pneg %p32
      $region18: #{tpu_custom_call.1} parent=15 // pred_check_branch
        %189 = sbr.rel (%p187) target = $region20
      $region19: #{tpu_custom_call.1} parent=15 // pred_region
        %s190 = smul.u32 24, %s12
        %p191 = scmp.lt.s32.totalorder %s190, 47
        %s192 = scalar_select %p191, %s190, 47
        %s193 = smul.addr %s192, 2
        %s194 = scalar_lea.vmem %s0, %s193
        %s195 = smul.u32 24, %s12
      $region20: #{tpu_custom_call.1} parent=15 // pred_fallthru
        _
      // Predicated region
      $region21: #{tpu_custom_call.1} parent=15 // pred_check
        %p196 = pneg %p58
      $region22: #{tpu_custom_call.1} parent=15 // pred_check_branch
        %198 = sbr.rel (%p196) target = $region24
      $region23: #{tpu_custom_call.1} parent=15 // pred_region
        %s199 = smul.u32 24, %s12
        %p200 = scmp.lt.s32.totalorder %s199, 47
        %s201 = scalar_select %p200, %s199, 47
        %s202 = smul.addr %s201, 2
        %s203 = scalar_lea.vmem %s1, %s202
        %s204 = smul.u32 24, %s12
      $region24: #{tpu_custom_call.1} parent=15 // pred_fallthru
        _
      // Predicated region
      $region25: #{tpu_custom_call.1} parent=15 // pred_check
        %p205 = pneg %p84
      $region26: #{tpu_custom_call.1} parent=15 // pred_check_branch
        %207 = sbr.rel (%p205) target = $region28
      $region27: #{tpu_custom_call.1} parent=15 // pred_region
        %s208 = smul.u32 24, %s12
        %p209 = scmp.lt.s32.totalorder %s208, 47
        %s210 = scalar_select %p209, %s208, 47
        %s211 = smul.addr %s210, 2
        %s212 = scalar_lea.vmem %s2, %s211
        %s213 = smul.u32 24, %s12
      $region28: #{tpu_custom_call.1} parent=15 // pred_fallthru
        _
      // Predicated region
      $region29: #{tpu_custom_call.1} parent=15 // pred_check
        %p214 = pneg %p110
      $region30: #{tpu_custom_call.1} parent=15 // pred_check_branch
        %216 = sbr.rel (%p214) target = $region32
      $region31: #{tpu_custom_call.1} parent=15 // pred_region
        %s217 = smul.u32 24, %s12
        %p218 = scmp.lt.s32.totalorder %s217, 47
        %s219 = scalar_select %p218, %s217, 47
        %s220 = smul.addr %s219, 2
        %s221 = scalar_lea.vmem %s3, %s220
        %s222 = smul.u32 24, %s12
      $region32: #{tpu_custom_call.1} parent=15 // pred_fallthru
        _
    $region16: #{tpu_custom_call.1} parent=5 // pred_fallthru
      _
    %p223 = scmp.le.s32.totalorder 1, %s12
    %p224 = scmp.lt.s32.totalorder %s12, 3
    %p225 = pnand %p223, %p224
    %p226 = pneg %p225
    // Predicated region
    $region33: #{tpu_custom_call.1} parent=5 // pred_check
      _
    $region34: #{tpu_custom_call.1} parent=5 // pred_check_branch
      %228 = sbr.rel (%p225) target = $region36
    $region35: #{tpu_custom_call.1} parent=5 // pred_region
      %s229 = ssub.s32 %s12, 1
      %s230 = smul.u32 24, %s17
      %p231 = scmp.lt.s32.totalorder %s230, 47
      %s232 = scalar_select %p231, %s230, 47
      %s233 = smul.addr %s232, 2
      %s234 = scalar_lea.vmem %s0, %s233
      %p235 = pneg %p38
      %p236 = pneg %p35
      %s237 = smul.u32 24, %s17
      %p238 = scmp.lt.s32.totalorder %s237, 47
      %s239 = scalar_select %p238, %s237, 47
      %s240 = smul.addr %s239, 2
      %s241 = scalar_lea.vmem %s1, %s240
      %p242 = pneg %p64
      %p243 = pneg %p61
      %s244 = smul.u32 24, %s17
      %p245 = scmp.lt.s32.totalorder %s244, 47
      %s246 = scalar_select %p245, %s244, 47
      %s247 = smul.addr %s246, 2
      %s248 = scalar_lea.vmem %s2, %s247
      %p249 = pneg %p90
      %p250 = pneg %p87
      %s251 = smul.u32 24, %s17
      %p252 = scmp.lt.s32.totalorder %s251, 47
      %s253 = scalar_select %p252, %s251, 47
      %s254 = smul.addr %s253, 2
      %s255 = scalar_lea.vmem %s3, %s254
      %p256 = pneg %p116
      %p257 = pneg %p113
      %p258 = pneg %p142
      %p259 = pneg %p139
      %s260 = smul.u32 24, %s17
      %p261 = scmp.lt.s32.totalorder %s260, 47
      %s262 = scalar_select %p261, %s260, 47
      %s263 = smul.addr %s262, 2
      %s264 = scalar_lea.vmem %s4, %s263
      %p265 = pneg %p168
      %p266 = pneg %p165
      %s267 = smul.u32 24, %s17
      %p268 = scmp.lt.s32.totalorder %s267, 47
      %s269 = scalar_select %p268, %s267, 47
      %s270 = smul.addr %s269, 2
      %s271 = scalar_lea.vmem %s5, %s270
      %s272 = smul.u32 24, %s17
      %p273 = scmp.lt.s32.totalorder %s272, 47
      %s274 = scalar_select %p273, %s272, 47
      %s275 = smul.addr %s274, 2
      %s276 = scalar_lea.vmem %s0, %s275
      %s277 = smul.u32 24, %s17
      %s278 = smul.u32 24, %s17
      %p279 = scmp.lt.s32.totalorder %s278, 47
      %s280 = scalar_select %p279, %s278, 47
      %s281 = smul.addr %s280, 2
      %s282 = scalar_lea.vmem %s1, %s281
      %s283 = smul.u32 24, %s17
      %s284 = smul.u32 24, %s17
      %p285 = scmp.lt.s32.totalorder %s284, 47
      %s286 = scalar_select %p285, %s284, 47
      %s287 = smul.addr %s286, 2
      %s288 = scalar_lea.vmem %s2, %s287
      %s289 = smul.u32 24, %s17
      %s290 = smul.u32 24, %s17
      %p291 = scmp.lt.s32.totalorder %s290, 47
      %s292 = scalar_select %p291, %s290, 47
      %s293 = smul.addr %s292, 2
      %s294 = scalar_lea.vmem %s3, %s293
      %s295 = smul.u32 24, %s17
      %s296 = smul.u32 24, %s17
      %p297 = scmp.lt.s32.totalorder %s296, 47
      %s298 = scalar_select %p297, %s296, 47
      %s299 = smul.addr %s298, 2
      %s300 = scalar_lea.vmem %s4, %s299
      %s301 = smul.u32 24, %s17
      %s302 = smul.u32 24, %s17
      %p303 = scmp.lt.s32.totalorder %s302, 47
      %s304 = scalar_select %p303, %s302, 47
      %s305 = smul.addr %s304, 2
      %s306 = scalar_lea.vmem %s5, %s305
      %s307 = smul.u32 24, %s17
      %v308 = vld [vmem:[%s276] sm:$0x3]
      %v309 = vld [vmem:[%s276 + $0x2] sm:$0x3]
      %v310 = vld [vmem:[%s276 + $0x4] sm:$0x3]
      %v311 = vld [vmem:[%s276 + $0x6] sm:$0x3]
      %v312 = vld [vmem:[%s276 + $0x8] sm:$0x3]
      %v313 = vld [vmem:[%s276 + $0xa] sm:$0x3]
      %v314 = vld [vmem:[%s276 + $0xc] sm:$0x3]
      %v315 = vld [vmem:[%s276 + $0xe] sm:$0x3]
      %v316 = vld [vmem:[%s276 + $0x10] sm:$0x3]
      %v317 = vld [vmem:[%s276 + $0x12] sm:$0x3]
      %v318 = vld [vmem:[%s276 + $0x14] sm:$0x3]
      %v319 = vld [vmem:[%s276 + $0x16] sm:$0x3]
      %v320 = vld [vmem:[%s276 + $0x18] sm:$0x3]
      %v321 = vld [vmem:[%s276 + $0x1a] sm:$0x3]
      %v322 = vld [vmem:[%s276 + $0x1c] sm:$0x3]
      %v323 = vld [vmem:[%s276 + $0x1e] sm:$0x3]
      %v324 = vld [vmem:[%s276 + $0x20] sm:$0x3]
      %v325 = vld [vmem:[%s276 + $0x22] sm:$0x3]
      %v326 = vld [vmem:[%s276 + $0x24] sm:$0x3]
      %v327 = vld [vmem:[%s276 + $0x26] sm:$0x3]
      %v328 = vld [vmem:[%s276 + $0x28] sm:$0x3]
      %v329 = vld [vmem:[%s276 + $0x2a] sm:$0x3]
      %v330 = vld [vmem:[%s276 + $0x2c] sm:$0x3]
      %v331 = vld [vmem:[%s276 + $0x2e] sm:$0x3]
      %v332 = vld [vmem:[%s282] sm:$0x3]
      %v333 = vld [vmem:[%s282 + $0x2] sm:$0x3]
      %v334 = vld [vmem:[%s282 + $0x4] sm:$0x3]
      %v335 = vld [vmem:[%s282 + $0x6] sm:$0x3]
      %v336 = vld [vmem:[%s282 + $0x8] sm:$0x3]
      %v337 = vld [vmem:[%s282 + $0xa] sm:$0x3]
      %v338 = vld [vmem:[%s282 + $0xc] sm:$0x3]
      %v339 = vld [vmem:[%s282 + $0xe] sm:$0x3]
      %v340 = vld [vmem:[%s282 + $0x10] sm:$0x3]
      %v341 = vld [vmem:[%s282 + $0x12] sm:$0x3]
      %v342 = vld [vmem:[%s282 + $0x14] sm:$0x3]
      %v343 = vld [vmem:[%s282 + $0x16] sm:$0x3]
      %v344 = vld [vmem:[%s282 + $0x18] sm:$0x3]
      %v345 = vld [vmem:[%s282 + $0x1a] sm:$0x3]
      %v346 = vld [vmem:[%s282 + $0x1c] sm:$0x3]
      %v347 = vld [vmem:[%s282 + $0x1e] sm:$0x3]
      %v348 = vld [vmem:[%s282 + $0x20] sm:$0x3]
      %v349 = vld [vmem:[%s282 + $0x22] sm:$0x3]
      %v350 = vld [vmem:[%s282 + $0x24] sm:$0x3]
      %v351 = vld [vmem:[%s282 + $0x26] sm:$0x3]
      %v352 = vld [vmem:[%s282 + $0x28] sm:$0x3]
      %v353 = vld [vmem:[%s282 + $0x2a] sm:$0x3]
      %v354 = vld [vmem:[%s282 + $0x2c] sm:$0x3]
      %v355 = vld [vmem:[%s282 + $0x2e] sm:$0x3]
      %v356 = vld [vmem:[%s288] sm:$0x3]
      %v357 = vld [vmem:[%s288 + $0x2] sm:$0x3]
      %v358 = vld [vmem:[%s288 + $0x4] sm:$0x3]
      %v359 = vld [vmem:[%s288 + $0x6] sm:$0x3]
      %v360 = vld [vmem:[%s288 + $0x8] sm:$0x3]
      %v361 = vld [vmem:[%s288 + $0xa] sm:$0x3]
      %v362 = vld [vmem:[%s288 + $0xc] sm:$0x3]
      %v363 = vld [vmem:[%s288 + $0xe] sm:$0x3]
      %v364 = vld [vmem:[%s288 + $0x10] sm:$0x3]
      %v365 = vld [vmem:[%s288 + $0x12] sm:$0x3]
      %v366 = vld [vmem:[%s288 + $0x14] sm:$0x3]
      %v367 = vld [vmem:[%s288 + $0x16] sm:$0x3]
      %v368 = vld [vmem:[%s288 + $0x18] sm:$0x3]
      %v369 = vld [vmem:[%s288 + $0x1a] sm:$0x3]
      %v370 = vld [vmem:[%s288 + $0x1c] sm:$0x3]
      %v371 = vld [vmem:[%s288 + $0x1e] sm:$0x3]
      %v372 = vld [vmem:[%s288 + $0x20] sm:$0x3]
      %v373 = vld [vmem:[%s288 + $0x22] sm:$0x3]
      %v374 = vld [vmem:[%s288 + $0x24] sm:$0x3]
      %v375 = vld [vmem:[%s288 + $0x26] sm:$0x3]
      %v376 = vld [vmem:[%s288 + $0x28] sm:$0x3]
      %v377 = vld [vmem:[%s288 + $0x2a] sm:$0x3]
      %v378 = vld [vmem:[%s288 + $0x2c] sm:$0x3]
      %v379 = vld [vmem:[%s288 + $0x2e] sm:$0x3]
      %v380 = vunpack.c.l.bf16 %v356
      %v381 = vunpack.c.l.bf16 %v357
      %v382 = vunpack.c.l.bf16 %v358
      %v383 = vunpack.c.l.bf16 %v359
      %v384 = vunpack.c.l.bf16 %v360
      %v385 = vunpack.c.l.bf16 %v361
      %v386 = vunpack.c.l.bf16 %v362
      %v387 = vunpack.c.l.bf16 %v363
      %v388 = vunpack.c.l.bf16 %v364
      %v389 = vunpack.c.l.bf16 %v365
      %v390 = vunpack.c.l.bf16 %v366
      %v391 = vunpack.c.l.bf16 %v367
      %v392 = vunpack.c.l.bf16 %v368
      %v393 = vunpack.c.l.bf16 %v369
      %v394 = vunpack.c.l.bf16 %v370
      %v395 = vunpack.c.l.bf16 %v371
      %v396 = vunpack.c.l.bf16 %v372
      %v397 = vunpack.c.l.bf16 %v373
      %v398 = vunpack.c.l.bf16 %v374
      %v399 = vunpack.c.l.bf16 %v375
      %v400 = vunpack.c.l.bf16 %v376
      %v401 = vunpack.c.l.bf16 %v377
      %v402 = vunpack.c.l.bf16 %v378
      %v403 = vunpack.c.l.bf16 %v379
      %v404 = vld [vmem:[%s294] sm:$0x3]
      %v405 = vld [vmem:[%s294 + $0x2] sm:$0x3]
      %v406 = vld [vmem:[%s294 + $0x4] sm:$0x3]
      %v407 = vld [vmem:[%s294 + $0x6] sm:$0x3]
      %v408 = vld [vmem:[%s294 + $0x8] sm:$0x3]
      %v409 = vld [vmem:[%s294 + $0xa] sm:$0x3]
      %v410 = vld [vmem:[%s294 + $0xc] sm:$0x3]
      %v411 = vld [vmem:[%s294 + $0xe] sm:$0x3]
      %v412 = vld [vmem:[%s294 + $0x10] sm:$0x3]
      %v413 = vld [vmem:[%s294 + $0x12] sm:$0x3]
      %v414 = vld [vmem:[%s294 + $0x14] sm:$0x3]
      %v415 = vld [vmem:[%s294 + $0x16] sm:$0x3]
      %v416 = vld [vmem:[%s294 + $0x18] sm:$0x3]
      %v417 = vld [vmem:[%s294 + $0x1a] sm:$0x3]
      %v418 = vld [vmem:[%s294 + $0x1c] sm:$0x3]
      %v419 = vld [vmem:[%s294 + $0x1e] sm:$0x3]
      %v420 = vld [vmem:[%s294 + $0x20] sm:$0x3]
      %v421 = vld [vmem:[%s294 + $0x22] sm:$0x3]
      %v422 = vld [vmem:[%s294 + $0x24] sm:$0x3]
      %v423 = vld [vmem:[%s294 + $0x26] sm:$0x3]
      %v424 = vld [vmem:[%s294 + $0x28] sm:$0x3]
      %v425 = vld [vmem:[%s294 + $0x2a] sm:$0x3]
      %v426 = vld [vmem:[%s294 + $0x2c] sm:$0x3]
      %v427 = vld [vmem:[%s294 + $0x2e] sm:$0x3]
      %v428 = vunpack.c.l.bf16 %v404
      %v429 = vunpack.c.l.bf16 %v405
      %v430 = vunpack.c.l.bf16 %v406
      %v431 = vunpack.c.l.bf16 %v407
      %v432 = vunpack.c.l.bf16 %v408
      %v433 = vunpack.c.l.bf16 %v409
      %v434 = vunpack.c.l.bf16 %v410
      %v435 = vunpack.c.l.bf16 %v411
      %v436 = vunpack.c.l.bf16 %v412
      %v437 = vunpack.c.l.bf16 %v413
      %v438 = vunpack.c.l.bf16 %v414
      %v439 = vunpack.c.l.bf16 %v415
      %v440 = vunpack.c.l.bf16 %v416
      %v441 = vunpack.c.l.bf16 %v417
      %v442 = vunpack.c.l.bf16 %v418
      %v443 = vunpack.c.l.bf16 %v419
      %v444 = vunpack.c.l.bf16 %v420
      %v445 = vunpack.c.l.bf16 %v421
      %v446 = vunpack.c.l.bf16 %v422
      %v447 = vunpack.c.l.bf16 %v423
      %v448 = vunpack.c.l.bf16 %v424
      %v449 = vunpack.c.l.bf16 %v425
      %v450 = vunpack.c.l.bf16 %v426
      %v451 = vunpack.c.l.bf16 %v427
      %vm452 = vcmask 31744
      %v454 = vsel %vm452, %v308, 0
      %vm456 = vcmask 1043456
      %v458 = vsel %vm456, %v380, 0
      %460 = vmatprep.subr.mxu0 0.0
      %461 = vmatpush1.msra.mxu0 %v458
      %462 = vmatprep.subr.mxu0 0.0
      %463 = vmatpush1.msra.mxu0 0.0
      %464 = vmatprep.subr.mxu0 0.0
      %465 = vmatpush1.msra.mxu0 0.0
      %466 = vmatprep.subr.mxu0 0.0
      %467 = vmatpush1.msra.mxu0 0.0
      %468 = vmatprep.subr.mxu0 0.0
      %469 = vmatpush1.msra.mxu0 0.0
      %470 = vmatprep.subr.mxu0 0.0
      %471 = vmatpush1.msra.mxu0 0.0
      %472 = vmatprep.subr.mxu0 0.0
      %473 = vmatpush1.msra.mxu0 0.0
      %474 = vmatprep.subr.mxu0 0.0
      %475 = vmatpush1.msra.mxu0 0.0
      %476 = vmatprep.subr.mxu0 0.0
      %477 = vmatpush1.msra.mxu0 0.0
      %478 = vmatprep.subr.mxu0 0.0
      %479 = vmatpush1.msra.mxu0 0.0
      %480 = vmatprep.subr.mxu0 0.0
      %481 = vmatpush1.msra.mxu0 0.0
      %482 = vmatprep.subr.mxu0 0.0
      %483 = vmatpush1.msra.mxu0 0.0
      %484 = vmatprep.subr.mxu0 0.0
      %485 = vmatpush1.msra.mxu0 0.0
      %486 = vmatprep.subr.mxu0 0.0
      %487 = vmatpush1.msra.mxu0 0.0
      %488 = vmatprep.subr.mxu0 0.0
      %489 = vmatpush1.msra.mxu0 0.0
      %490 = vmatprep.subr.mxu0 0.0
      %491 = vmatpush1.msra.mxu0 0.0
      %492 = vmatprep.subr.mxu0 0.0
      %493 = vmatpush1.msra.mxu0 0.0
      %494 = vmatprep.subr.mxu0 0.0
      %495 = vmatpush1.msra.mxu0 0.0
      %496 = vmatprep.subr.mxu0 0.0
      %497 = vmatpush1.msra.mxu0 0.0
      %498 = vmatprep.subr.mxu0 0.0
      %499 = vmatpush1.msra.mxu0 0.0
      %500 = vmatprep.subr.mxu0 0.0
      %501 = vmatpush1.msra.mxu0 0.0
      %502 = vmatprep.subr.mxu0 0.0
      %503 = vmatpush1.msra.mxu0 0.0
      %504 = vmatprep.subr.mxu0 0.0
      %505 = vmatpush1.msra.mxu0 0.0
      %506 = vmatprep.subr.mxu0 0.0
      %507 = vmatpush1.msra.mxu0 0.0
      %508 = vmatprep.subr.mxu0 0.0
      %509 = vmatpush1.msra.mxu0 0.0
      %510 = vmatprep.subr.mxu0 0.0
      %511 = vmatpush1.msra.mxu0 0.0
      %512 = vmatprep.subr.mxu0 0.0
      %513 = vmatpush1.msra.mxu0 0.0
      %514 = vmatprep.subr.mxu0 0.0
      %515 = vmatpush1.msra.mxu0 0.0
      %516 = vmatprep.subr.mxu0 0.0
      %517 = vmatpush1.msra.mxu0 0.0
      %518 = vmatprep.subr.mxu0 0.0
      %519 = vmatpush1.msra.mxu0 0.0
      %520 = vmatprep.subr.mxu0 0.0
      %521 = vmatpush1.msra.mxu0 0.0
      %522 = vmatprep.subr.mxu0 0.0
      %523 = vmatpush1.msra.mxu0 0.0
      %524 = vmatprep.mubr.f32.mxu0 0.0
      %525 = vmatmul.mubr.f32.gmra.mrb[0].mxu0 %v454
      %v526 = vpop.f32.mrb[0].mxu0
      %v527 = vadd.f32 0.0, %v526
      %v528 = vpop.f32.mrb[0].mxu0
      %529 = vdwg.mxu0
      %v531 = vsel %vm452, %v309, 0
      %v534 = vsel %vm456, %v381, 0
      %536 = vmatprep.subr.mxu0 0.0
      %537 = vmatpush1.msra.mxu0 %v534
      %538 = vmatprep.subr.mxu0 0.0
      %539 = vmatpush1.msra.mxu0 0.0
      %540 = vmatprep.subr.mxu0 0.0
      %541 = vmatpush1.msra.mxu0 0.0
      %542 = vmatprep.subr.mxu0 0.0
      %543 = vmatpush1.msra.mxu0 0.0
      %544 = vmatprep.subr.mxu0 0.0
      %545 = vmatpush1.msra.mxu0 0.0
      %546 = vmatprep.subr.mxu0 0.0
      %547 = vmatpush1.msra.mxu0 0.0
      %548 = vmatprep.subr.mxu0 0.0
      %549 = vmatpush1.msra.mxu0 0.0
      %550 = vmatprep.subr.mxu0 0.0
      %551 = vmatpush1.msra.mxu0 0.0
      %552 = vmatprep.subr.mxu0 0.0
      %553 = vmatpush1.msra.mxu0 0.0
      %554 = vmatprep.subr.mxu0 0.0
      %555 = vmatpush1.msra.mxu0 0.0
      %556 = vmatprep.subr.mxu0 0.0
      %557 = vmatpush1.msra.mxu0 0.0
      %558 = vmatprep.subr.mxu0 0.0
      %559 = vmatpush1.msra.mxu0 0.0
      %560 = vmatprep.subr.mxu0 0.0
      %561 = vmatpush1.msra.mxu0 0.0
      %562 = vmatprep.subr.mxu0 0.0
      %563 = vmatpush1.msra.mxu0 0.0
      %564 = vmatprep.subr.mxu0 0.0
      %565 = vmatpush1.msra.mxu0 0.0
      %566 = vmatprep.subr.mxu0 0.0
      %567 = vmatpush1.msra.mxu0 0.0
      %568 = vmatprep.subr.mxu0 0.0
      %569 = vmatpush1.msra.mxu0 0.0
      %570 = vmatprep.subr.mxu0 0.0
      %571 = vmatpush1.msra.mxu0 0.0
      %572 = vmatprep.subr.mxu0 0.0
      %573 = vmatpush1.msra.mxu0 0.0
      %574 = vmatprep.subr.mxu0 0.0
      %575 = vmatpush1.msra.mxu0 0.0
      %576 = vmatprep.subr.mxu0 0.0
      %577 = vmatpush1.msra.mxu0 0.0
      %578 = vmatprep.subr.mxu0 0.0
      %579 = vmatpush1.msra.mxu0 0.0
      %580 = vmatprep.subr.mxu0 0.0
      %581 = vmatpush1.msra.mxu0 0.0
      %582 = vmatprep.subr.mxu0 0.0
      %583 = vmatpush1.msra.mxu0 0.0
      %584 = vmatprep.subr.mxu0 0.0
      %585 = vmatpush1.msra.mxu0 0.0
      %586 = vmatprep.subr.mxu0 0.0
      %587 = vmatpush1.msra.mxu0 0.0
      %588 = vmatprep.subr.mxu0 0.0
      %589 = vmatpush1.msra.mxu0 0.0
      %590 = vmatprep.subr.mxu0 0.0
      %591 = vmatpush1.msra.mxu0 0.0
      %592 = vmatprep.subr.mxu0 0.0
      %593 = vmatpush1.msra.mxu0 0.0
      %594 = vmatprep.subr.mxu0 0.0
      %595 = vmatpush1.msra.mxu0 0.0
      %596 = vmatprep.subr.mxu0 0.0
      %597 = vmatpush1.msra.mxu0 0.0
      %598 = vmatprep.subr.mxu0 0.0
      %599 = vmatpush1.msra.mxu0 0.0
      %600 = vmatprep.mubr.f32.mxu0 0.0
      %601 = vmatmul.mubr.f32.gmra.mrb[0].mxu0 %v531
      %v602 = vpop.f32.mrb[0].mxu0
      %v603 = vadd.f32 0.0, %v602
      %v604 = vpop.f32.mrb[0].mxu0
      %605 = vdwg.mxu0
      %v607 = vsel %vm452, %v310, 0
      %v610 = vsel %vm456, %v382, 0
      %612 = vmatprep.subr.mxu0 0.0
      %613 = vmatpush1.msra.mxu0 %v610
      %614 = vmatprep.subr.mxu0 0.0
      %615 = vmatpush1.msra.mxu0 0.0
      %616 = vmatprep.subr.mxu0 0.0
      %617 = vmatpush1.msra.mxu0 0.0
      %618 = vmatprep.subr.mxu0 0.0
      %619 = vmatpush1.msra.mxu0 0.0
      %620 = vmatprep.subr.mxu0 0.0
      %621 = vmatpush1.msra.mxu0 0.0
      %622 = vmatprep.subr.mxu0 0.0
      %623 = vmatpush1.msra.mxu0 0.0
      %624 = vmatprep.subr.mxu0 0.0
      %625 = vmatpush1.msra.mxu0 0.0
      %626 = vmatprep.subr.mxu0 0.0
      %627 = vmatpush1.msra.mxu0 0.0
      %628 = vmatprep.subr.mxu0 0.0
      %629 = vmatpush1.msra.mxu0 0.0
      %630 = vmatprep.subr.mxu0 0.0
      %631 = vmatpush1.msra.mxu0 0.0
      %632 = vmatprep.subr.mxu0 0.0
      %633 = vmatpush1.msra.mxu0 0.0
      %634 = vmatprep.subr.mxu0 0.0
      %635 = vmatpush1.msra.mxu0 0.0
      %636 = vmatprep.subr.mxu0 0.0
      %637 = vmatpush1.msra.mxu0 0.0
      %638 = vmatprep.subr.mxu0 0.0
      %639 = vmatpush1.msra.mxu0 0.0
      %640 = vmatprep.subr.mxu0 0.0
      %641 = vmatpush1.msra.mxu0 0.0
      %642 = vmatprep.subr.mxu0 0.0
      %643 = vmatpush1.msra.mxu0 0.0
      %644 = vmatprep.subr.mxu0 0.0
      %645 = vmatpush1.msra.mxu0 0.0
      %646 = vmatprep.subr.mxu0 0.0
      %647 = vmatpush1.msra.mxu0 0.0
      %648 = vmatprep.subr.mxu0 0.0
      %649 = vmatpush1.msra.mxu0 0.0
      %650 = vmatprep.subr.mxu0 0.0
      %651 = vmatpush1.msra.mxu0 0.0
      %652 = vmatprep.subr.mxu0 0.0
      %653 = vmatpush1.msra.mxu0 0.0
      %654 = vmatprep.subr.mxu0 0.0
      %655 = vmatpush1.msra.mxu0 0.0
      %656 = vmatprep.subr.mxu0 0.0
      %657 = vmatpush1.msra.mxu0 0.0
      %658 = vmatprep.subr.mxu0 0.0
      %659 = vmatpush1.msra.mxu0 0.0
      %660 = vmatprep.subr.mxu0 0.0
      %661 = vmatpush1.msra.mxu0 0.0
      %662 = vmatprep.subr.mxu0 0.0
      %663 = vmatpush1.msra.mxu0 0.0
      %664 = vmatprep.subr.mxu0 0.0
      %665 = vmatpush1.msra.mxu0 0.0
      %666 = vmatprep.subr.mxu0 0.0
      %667 = vmatpush1.msra.mxu0 0.0
      %668 = vmatprep.subr.mxu0 0.0
      %669 = vmatpush1.msra.mxu0 0.0
      %670 = vmatprep.subr.mxu0 0.0
      %671 = vmatpush1.msra.mxu0 0.0
      %672 = vmatprep.subr.mxu0 0.0
      %673 = vmatpush1.msra.mxu0 0.0
      %674 = vmatprep.subr.mxu0 0.0
      %675 = vmatpush1.msra.mxu0 0.0
      %676 = vmatprep.mubr.f32.mxu0 0.0
      %677 = vmatmul.mubr.f32.gmra.mrb[0].mxu0 %v607
      %v678 = vpop.f32.mrb[0].mxu0
      %v679 = vadd.f32 0.0, %v678
      %v680 = vpop.f32.mrb[0].mxu0
      %681 = vdwg.mxu0
      %v683 = vsel %vm452, %v311, 0
      %v686 = vsel %vm456, %v383, 0
      %688 = vmatprep.subr.mxu0 0.0
      %689 = vmatpush1.msra.mxu0 %v686
      %690 = vmatprep.subr.mxu0 0.0
      %691 = vmatpush1.msra.mxu0 0.0
      %692 = vmatprep.subr.mxu0 0.0
      %693 = vmatpush1.msra.mxu0 0.0
      %694 = vmatprep.subr.mxu0 0.0
      %695 = vmatpush1.msra.mxu0 0.0
      %696 = vmatprep.subr.mxu0 0.0
      %697 = vmatpush1.msra.mxu0 0.0
      %698 = vmatprep.subr.mxu0 0.0
      %699 = vmatpush1.msra.mxu0 0.0
      %700 = vmatprep.subr.mxu0 0.0
      %701 = vmatpush1.msra.mxu0 0.0
      %702 = vmatprep.subr.mxu0 0.0
      %703 = vmatpush1.msra.mxu0 0.0
      %704 = vmatprep.subr.mxu0 0.0
      %705 = vmatpush1.msra.mxu0 0.0
      %706 = vmatprep.subr.mxu0 0.0
      %707 = vmatpush1.msra.mxu0 0.0
      %708 = vmatprep.subr.mxu0 0.0
      %709 = vmatpush1.msra.mxu0 0.0
      %710 = vmatprep.subr.mxu0 0.0
      %711 = vmatpush1.msra.mxu0 0.0
      %712 = vmatprep.subr.mxu0 0.0
      %713 = vmatpush1.msra.mxu0 0.0
      %714 = vmatprep.subr.mxu0 0.0
      %715 = vmatpush1.msra.mxu0 0.0
      %716 = vmatprep.subr.mxu0 0.0
      %717 = vmatpush1.msra.mxu0 0.0
      %718 = vmatprep.subr.mxu0 0.0
      %719 = vmatpush1.msra.mxu0 0.0
      %720 = vmatprep.subr.mxu0 0.0
      %721 = vmatpush1.msra.mxu0 0.0
      %722 = vmatprep.subr.mxu0 0.0
      %723 = vmatpush1.msra.mxu0 0.0
      %724 = vmatprep.subr.mxu0 0.0
      %725 = vmatpush1.msra.mxu0 0.0
      %726 = vmatprep.subr.mxu0 0.0
      %727 = vmatpush1.msra.mxu0 0.0
      %728 = vmatprep.subr.mxu0 0.0
      %729 = vmatpush1.msra.mxu0 0.0
      %730 = vmatprep.subr.mxu0 0.0
      %731 = vmatpush1.msra.mxu0 0.0
      %732 = vmatprep.subr.mxu0 0.0
      %733 = vmatpush1.msra.mxu0 0.0
      %734 = vmatprep.subr.mxu0 0.0
      %735 = vmatpush1.msra.mxu0 0.0
      %736 = vmatprep.subr.mxu0 0.0
      %737 = vmatpush1.msra.mxu0 0.0
      %738 = vmatprep.subr.mxu0 0.0
      %739 = vmatpush1.msra.mxu0 0.0
      %740 = vmatprep.subr.mxu0 0.0
      %741 = vmatpush1.msra.mxu0 0.0
      %742 = vmatprep.subr.mxu0 0.0
      %743 = vmatpush1.msra.mxu0 0.0
      %744 = vmatprep.subr.mxu0 0.0
      %745 = vmatpush1.msra.mxu0 0.0
      %746 = vmatprep.subr.mxu0 0.0
      %747 = vmatpush1.msra.mxu0 0.0
      %748 = vmatprep.subr.mxu0 0.0
      %749 = vmatpush1.msra.mxu0 0.0
      %750 = vmatprep.subr.mxu0 0.0
      %751 = vmatpush1.msra.mxu0 0.0
      %752 = vmatprep.mubr.f32.mxu0 0.0
      %753 = vmatmul.mubr.f32.gmra.mrb[0].mxu0 %v683
      %v754 = vpop.f32.mrb[0].mxu0
      %v755 = vadd.f32 0.0, %v754
      %v756 = vpop.f32.mrb[0].mxu0
      %757 = vdwg.mxu0
      %v759 = vsel %vm452, %v312, 0
      %v762 = vsel %vm456, %v384, 0
      %764 = vmatprep.subr.mxu0 0.0
      %765 = vmatpush1.msra.mxu0 %v762
      %766 = vmatprep.subr.mxu0 0.0
      %767 = vmatpush1.msra.mxu0 0.0
      %768 = vmatprep.subr.mxu0 0.0
      %769 = vmatpush1.msra.mxu0 0.0
      %770 = vmatprep.subr.mxu0 0.0
      %771 = vmatpush1.msra.mxu0 0.0
      %772 = vmatprep.subr.mxu0 0.0
      %773 = vmatpush1.msra.mxu0 0.0
      %774 = vmatprep.subr.mxu0 0.0
      %775 = vmatpush1.msra.mxu0 0.0
      %776 = vmatprep.subr.mxu0 0.0
      %777 = vmatpush1.msra.mxu0 0.0
      %778 = vmatprep.subr.mxu0 0.0
      %779 = vmatpush1.msra.mxu0 0.0
      %780 = vmatprep.subr.mxu0 0.0
      %781 = vmatpush1.msra.mxu0 0.0
      %782 = vmatprep.subr.mxu0 0.0
      %783 = vmatpush1.msra.mxu0 0.0
      %784 = vmatprep.subr.mxu0 0.0
      %785 = vmatpush1.msra.mxu0 0.0
      %786 = vmatprep.subr.mxu0 0.0
      %787 = vmatpush1.msra.mxu0 0.0
      %788 = vmatprep.subr.mxu0 0.0
      %789 = vmatpush1.msra.mxu0 0.0
      %790 = vmatprep.subr.mxu0 0.0
      %791 = vmatpush1.msra.mxu0 0.0
      %792 = vmatprep.subr.mxu0 0.0
      %793 = vmatpush1.msra.mxu0 0.0
      %794 = vmatprep.subr.mxu0 0.0
      %795 = vmatpush1.msra.mxu0 0.0
      %796 = vmatprep.subr.mxu0 0.0
      %797 = vmatpush1.msra.mxu0 0.0
      %798 = vmatprep.subr.mxu0 0.0
      %799 = vmatpush1.msra.mxu0 0.0
      %800 = vmatprep.subr.mxu0 0.0
      %801 = vmatpush1.msra.mxu0 0.0
      %802 = vmatprep.subr.mxu0 0.0
      %803 = vmatpush1.msra.mxu0 0.0
      %804 = vmatprep.subr.mxu0 0.0
      %805 = vmatpush1.msra.mxu0 0.0
      %806 = vmatprep.subr.mxu0 0.0
      %807 = vmatpush1.msra.mxu0 0.0
      %808 = vmatprep.subr.mxu0 0.0
      %809 = vmatpush1.msra.mxu0 0.0
      %810 = vmatprep.subr.mxu0 0.0
      %811 = vmatpush1.msra.mxu0 0.0
      %812 = vmatprep.subr.mxu0 0.0
      %813 = vmatpush1.msra.mxu0 0.0
      %814 = vmatprep.subr.mxu0 0.0
      %815 = vmatpush1.msra.mxu0 0.0
      %816 = vmatprep.subr.mxu0 0.0
      %817 = vmatpush1.msra.mxu0 0.0
      %818 = vmatprep.subr.mxu0 0.0
      %819 = vmatpush1.msra.mxu0 0.0
      %820 = vmatprep.subr.mxu0 0.0
      %821 = vmatpush1.msra.mxu0 0.0
      %822 = vmatprep.subr.mxu0 0.0
      %823 = vmatpush1.msra.mxu0 0.0
      %824 = vmatprep.subr.mxu0 0.0
      %825 = vmatpush1.msra.mxu0 0.0
      %826 = vmatprep.subr.mxu0 0.0
      %827 = vmatpush1.msra.mxu0 0.0
      %828 = vmatprep.mubr.f32.mxu0 0.0
      %829 = vmatmul.mubr.f32.gmra.mrb[0].mxu0 %v759
      %v830 = vpop.f32.mrb[0].mxu0
      %v831 = vadd.f32 0.0, %v830
      %v832 = vpop.f32.mrb[0].mxu0
      %833 = vdwg.mxu0
      %v835 = vsel %vm452, %v313, 0
      %v838 = vsel %vm456, %v385, 0
      %840 = vmatprep.subr.mxu0 0.0
      %841 = vmatpush1.msra.mxu0 %v838
      %842 = vmatprep.subr.mxu0 0.0
      %843 = vmatpush1.msra.mxu0 0.0
      %844 = vmatprep.subr.mxu0 0.0
      %845 = vmatpush1.msra.mxu0 0.0
      %846 = vmatprep.subr.mxu0 0.0
      %847 = vmatpush1.msra.mxu0 0.0
      %848 = vmatprep.subr.mxu0 0.0
      %849 = vmatpush1.msra.mxu0 0.0
      %850 = vmatprep.subr.mxu0 0.0
      %851 = vmatpush1.msra.mxu0 0.0
      %852 = vmatprep.subr.mxu0 0.0
      %853 = vmatpush1.msra.mxu0 0.0
      %854 = vmatprep.subr.mxu0 0.0
      %855 = vmatpush1.msra.mxu0 0.0
      %856 = vmatprep.subr.mxu0 0.0
      %857 = vmatpush1.msra.mxu0 0.0
      %858 = vmatprep.subr.mxu0 0.0
      %859 = vmatpush1.msra.mxu0 0.0
      %860 = vmatprep.subr.mxu0 0.0
      %861 = vmatpush1.msra.mxu0 0.0
      %862 = vmatprep.subr.mxu0 0.0
      %863 = vmatpush1.msra.mxu0 0.0
      %864 = vmatprep.subr.mxu0 0.0
      %865 = vmatpush1.msra.mxu0 0.0
      %866 = vmatprep.subr.mxu0 0.0
      %867 = vmatpush1.msra.mxu0 0.0
      %868 = vmatprep.subr.mxu0 0.0
      %869 = vmatpush1.msra.mxu0 0.0
      %870 = vmatprep.subr.mxu0 0.0
      %871 = vmatpush1.msra.mxu0 0.0
      %872 = vmatprep.subr.mxu0 0.0
      %873 = vmatpush1.msra.mxu0 0.0
      %874 = vmatprep.subr.mxu0 0.0
      %875 = vmatpush1.msra.mxu0 0.0
      %876 = vmatprep.subr.mxu0 0.0
      %877 = vmatpush1.msra.mxu0 0.0
      %878 = vmatprep.subr.mxu0 0.0
      %879 = vmatpush1.msra.mxu0 0.0
      %880 = vmatprep.subr.mxu0 0.0
      %881 = vmatpush1.msra.mxu0 0.0
      %882 = vmatprep.subr.mxu0 0.0
      %883 = vmatpush1.msra.mxu0 0.0
      %884 = vmatprep.subr.mxu0 0.0
      %885 = vmatpush1.msra.mxu0 0.0
      %886 = vmatprep.subr.mxu0 0.0
      %887 = vmatpush1.msra.mxu0 0.0
      %888 = vmatprep.subr.mxu0 0.0
      %889 = vmatpush1.msra.mxu0 0.0
      %890 = vmatprep.subr.mxu0 0.0
      %891 = vmatpush1.msra.mxu0 0.0
      %892 = vmatprep.subr.mxu0 0.0
      %893 = vmatpush1.msra.mxu0 0.0
      %894 = vmatprep.subr.mxu0 0.0
      %895 = vmatpush1.msra.mxu0 0.0
      %896 = vmatprep.subr.mxu0 0.0
      %897 = vmatpush1.msra.mxu0 0.0
      %898 = vmatprep.subr.mxu0 0.0
      %899 = vmatpush1.msra.mxu0 0.0
      %900 = vmatprep.subr.mxu0 0.0
      %901 = vmatpush1.msra.mxu0 0.0
      %902 = vmatprep.subr.mxu0 0.0
      %903 = vmatpush1.msra.mxu0 0.0
      %904 = vmatprep.mubr.f32.mxu0 0.0
      %905 = vmatmul.mubr.f32.gmra.mrb[0].mxu0 %v835
      %v906 = vpop.f32.mrb[0].mxu0
      %v907 = vadd.f32 0.0, %v906
      %v908 = vpop.f32.mrb[0].mxu0
      %909 = vdwg.mxu0
      %v911 = vsel %vm452, %v314, 0
      %v914 = vsel %vm456, %v386, 0
      %916 = vmatprep.subr.mxu0 0.0
      %917 = vmatpush1.msra.mxu0 %v914
      %918 = vmatprep.subr.mxu0 0.0
      %919 = vmatpush1.msra.mxu0 0.0
      %920 = vmatprep.subr.mxu0 0.0
      %921 = vmatpush1.msra.mxu0 0.0
      %922 = vmatprep.subr.mxu0 0.0
      %923 = vmatpush1.msra.mxu0 0.0
      %924 = vmatprep.subr.mxu0 0.0
      %925 = vmatpush1.msra.mxu0 0.0
      %926 = vmatprep.subr.mxu0 0.0
      %927 = vmatpush1.msra.mxu0 0.0
      %928 = vmatprep.subr.mxu0 0.0
      %929 = vmatpush1.msra.mxu0 0.0
      %930 = vmatprep.subr.mxu0 0.0
      %931 = vmatpush1.msra.mxu0 0.0
      %932 = vmatprep.subr.mxu0 0.0
      %933 = vmatpush1.msra.mxu0 0.0
      %934 = vmatprep.subr.mxu0 0.0
      %935 = vmatpush1.msra.mxu0 0.0
      %936 = vmatprep.subr.mxu0 0.0
      %937 = vmatpush1.msra.mxu0 0.0
      %938 = vmatprep.subr.mxu0 0.0
      %939 = vmatpush1.msra.mxu0 0.0
      %940 = vmatprep.subr.mxu0 0.0
      %941 = vmatpush1.msra.mxu0 0.0
      %942 = vmatprep.subr.mxu0 0.0
      %943 = vmatpush1.msra.mxu0 0.0
      %944 = vmatprep.subr.mxu0 0.0
      %945 = vmatpush1.msra.mxu0 0.0
      %946 = vmatprep.subr.mxu0 0.0
      %947 = vmatpush1.msra.mxu0 0.0
      %948 = vmatprep.subr.mxu0 0.0
      %949 = vmatpush1.msra.mxu0 0.0
      %950 = vmatprep.subr.mxu0 0.0
      %951 = vmatpush1.msra.mxu0 0.0
      %952 = vmatprep.subr.mxu0 0.0
      %953 = vmatpush1.msra.mxu0 0.0
      %954 = vmatprep.subr.mxu0 0.0
      %955 = vmatpush1.msra.mxu0 0.0
      %956 = vmatprep.subr.mxu0 0.0
      %957 = vmatpush1.msra.mxu0 0.0
      %958 = vmatprep.subr.mxu0 0.0
      %959 = vmatpush1.msra.mxu0 0.0
      %960 = vmatprep.subr.mxu0 0.0
      %961 = vmatpush1.msra.mxu0 0.0
      %962 = vmatprep.subr.mxu0 0.0
      %963 = vmatpush1.msra.mxu0 0.0
      %964 = vmatprep.subr.mxu0 0.0
      %965 = vmatpush1.msra.mxu0 0.0
      %966 = vmatprep.subr.mxu0 0.0
      %967 = vmatpush1.msra.mxu0 0.0
      %968 = vmatprep.subr.mxu0 0.0
      %969 = vmatpush1.msra.mxu0 0.0
      %970 = vmatprep.subr.mxu0 0.0
      %971 = vmatpush1.msra.mxu0 0.0
      %972 = vmatprep.subr.mxu0 0.0
      %973 = vmatpush1.msra.mxu0 0.0
      %974 = vmatprep.subr.mxu0 0.0
      %975 = vmatpush1.msra.mxu0 0.0
      %976 = vmatprep.subr.mxu0 0.0
      %977 = vmatpush1.msra.mxu0 0.0
      %978 = vmatprep.subr.mxu0 0.0
      %979 = vmatpush1.msra.mxu0 0.0
      %980 = vmatprep.mubr.f32.mxu0 0.0
      %981 = vmatmul.mubr.f32.gmra.mrb[0].mxu0 %v911
      %v982 = vpop.f32.mrb[0].mxu0
      %v983 = vadd.f32 0.0, %v982
      %v984 = vpop.f32.mrb[0].mxu0
      %985 = vdwg.mxu0
      %v987 = vsel %vm452, %v315, 0
      %v990 = vsel %vm456, %v387, 0
      %992 = vmatprep.subr.mxu0 0.0
      %993 = vmatpush1.msra.mxu0 %v990
      %994 = vmatprep.subr.mxu0 0.0
      %995 = vmatpush1.msra.mxu0 0.0
      %996 = vmatprep.subr.mxu0 0.0
      %997 = vmatpush1.msra.mxu0 0.0
      %998 = vmatprep.subr.mxu0 0.0
      %999 = vmatpush1.msra.mxu0 0.0
      %1000 = vmatprep.subr.mxu0 0.0
      %1001 = vmatpush1.msra.mxu0 0.0
      %1002 = vmatprep.subr.mxu0 0.0
      %1003 = vmatpush1.msra.mxu0 0.0
      %1004 = vmatprep.subr.mxu0 0.0
      %1005 = vmatpush1.msra.mxu0 0.0
      %1006 = vmatprep.subr.mxu0 0.0
      %1007 = vmatpush1.msra.mxu0 0.0
      %1008 = vmatprep.subr.mxu0 0.0
      %1009 = vmatpush1.msra.mxu0 0.0
      %1010 = vmatprep.subr.mxu0 0.0
      %1011 = vmatpush1.msra.mxu0 0.0
      %1012 = vmatprep.subr.mxu0 0.0
      %1013 = vmatpush1.msra.mxu0 0.0
      %1014 = vmatprep.subr.mxu0 0.0
      %1015 = vmatpush1.msra.mxu0 0.0
      %1016 = vmatprep.subr.mxu0 0.0
      %1017 = vmatpush1.msra.mxu0 0.0
      %1018 = vmatprep.subr.mxu0 0.0
      %1019 = vmatpush1.msra.mxu0 0.0
      %1020 = vmatprep.subr.mxu0 0.0
      %1021 = vmatpush1.msra.mxu0 0.0
      %1022 = vmatprep.subr.mxu0 0.0
      %1023 = vmatpush1.msra.mxu0 0.0
      %1024 = vmatprep.subr.mxu0 0.0
      %1025 = vmatpush1.msra.mxu0 0.0
      %1026 = vmatprep.subr.mxu0 0.0
      %1027 = vmatpush1.msra.mxu0 0.0
      %1028 = vmatprep.subr.mxu0 0.0
      %1029 = vmatpush1.msra.mxu0 0.0
      %1030 = vmatprep.subr.mxu0 0.0
      %1031 = vmatpush1.msra.mxu0 0.0
      %1032 = vmatprep.subr.mxu0 0.0
      %1033 = vmatpush1.msra.mxu0 0.0
      %1034 = vmatprep.subr.mxu0 0.0
      %1035 = vmatpush1.msra.mxu0 0.0
      %1036 = vmatprep.subr.mxu0 0.0
      %1037 = vmatpush1.msra.mxu0 0.0
      %1038 = vmatprep.subr.mxu0 0.0
      %1039 = vmatpush1.msra.mxu0 0.0
      %1040 = vmatprep.subr.mxu0 0.0
      %1041 = vmatpush1.msra.mxu0 0.0
      %1042 = vmatprep.subr.mxu0 0.0
      %1043 = vmatpush1.msra.mxu0 0.0
      %1044 = vmatprep.subr.mxu0 0.0
      %1045 = vmatpush1.msra.mxu0 0.0
      %1046 = vmatprep.subr.mxu0 0.0
      %1047 = vmatpush1.msra.mxu0 0.0
      %1048 = vmatprep.subr.mxu0 0.0
      %1049 = vmatpush1.msra.mxu0 0.0
      %1050 = vmatprep.subr.mxu0 0.0
      %1051 = vmatpush1.msra.mxu0 0.0
      %1052 = vmatprep.subr.mxu0 0.0
      %1053 = vmatpush1.msra.mxu0 0.0
      %1054 = vmatprep.subr.mxu0 0.0
      %1055 = vmatpush1.msra.mxu0 0.0
      %1056 = vmatprep.mubr.f32.mxu0 0.0
      %1057 = vmatmul.mubr.f32.gmra.mrb[0].mxu0 %v987
      %v1058 = vpop.f32.mrb[0].mxu0
      %v1059 = vadd.f32 0.0, %v1058
      %v1060 = vpop.f32.mrb[0].mxu0
      %1061 = vdwg.mxu0
      %v1063 = vsel %vm452, %v316, 0
      %v1066 = vsel %vm456, %v388, 0
      %1068 = vmatprep.subr.mxu0 0.0
      %1069 = vmatpush1.msra.mxu0 %v1066
      %1070 = vmatprep.subr.mxu0 0.0
      %1071 = vmatpush1.msra.mxu0 0.0
      %1072 = vmatprep.subr.mxu0 0.0
      %1073 = vmatpush1.msra.mxu0 0.0
      %1074 = vmatprep.subr.mxu0 0.0
      %1075 = vmatpush1.msra.mxu0 0.0
      %1076 = vmatprep.subr.mxu0 0.0
      %1077 = vmatpush1.msra.mxu0 0.0
      %1078 = vmatprep.subr.mxu0 0.0
      %1079 = vmatpush1.msra.mxu0 0.0
      %1080 = vmatprep.subr.mxu0 0.0
      %1081 = vmatpush1.msra.mxu0 0.0
      %1082 = vmatprep.subr.mxu0 0.0
      %1083 = vmatpush1.msra.mxu0 0.0
      %1084 = vmatprep.subr.mxu0 0.0
      %1085 = vmatpush1.msra.mxu0 0.0
      %1086 = vmatprep.subr.mxu0 0.0
      %1087 = vmatpush1.msra.mxu0 0.0
      %1088 = vmatprep.subr.mxu0 0.0
      %1089 = vmatpush1.msra.mxu0 0.0
      %1090 = vmatprep.subr.mxu0 0.0
      %1091 = vmatpush1.msra.mxu0 0.0
      %1092 = vmatprep.subr.mxu0 0.0
      %1093 = vmatpush1.msra.mxu0 0.0
      %1094 = vmatprep.subr.mxu0 0.0
      %1095 = vmatpush1.msra.mxu0 0.0
      %1096 = vmatprep.subr.mxu0 0.0
      %1097 = vmatpush1.msra.mxu0 0.0
      %1098 = vmatprep.subr.mxu0 0.0
      %1099 = vmatpush1.msra.mxu0 0.0
      %1100 = vmatprep.subr.mxu0 0.0
      %1101 = vmatpush1.msra.mxu0 0.0
      %1102 = vmatprep.subr.mxu0 0.0
      %1103 = vmatpush1.msra.mxu0 0.0
      %1104 = vmatprep.subr.mxu0 0.0
      %1105 = vmatpush1.msra.mxu0 0.0
      %1106 = vmatprep.subr.mxu0 0.0
      %1107 = vmatpush1.msra.mxu0 0.0
      %1108 = vmatprep.subr.mxu0 0.0
      %1109 = vmatpush1.msra.mxu0 0.0
      %1110 = vmatprep.subr.mxu0 0.0
      %1111 = vmatpush1.msra.mxu0 0.0
      %1112 = vmatprep.subr.mxu0 0.0
      %1113 = vmatpush1.msra.mxu0 0.0
      %1114 = vmatprep.subr.mxu0 0.0
      %1115 = vmatpush1.msra.mxu0 0.0
      %1116 = vmatprep.subr.mxu0 0.0
      %1117 = vmatpush1.msra.mxu0 0.0
      %1118 = vmatprep.subr.mxu0 0.0
      %1119 = vmatpush1.msra.mxu0 0.0
      %1120 = vmatprep.subr.mxu0 0.0
      %1121 = vmatpush1.msra.mxu0 0.0
      %1122 = vmatprep.subr.mxu0 0.0
      %1123 = vmatpush1.msra.mxu0 0.0
      %1124 = vmatprep.subr.mxu0 0.0
      %1125 = vmatpush1.msra.mxu0 0.0
      %1126 = vmatprep.subr.mxu0 0.0
      %1127 = vmatpush1.msra.mxu0 0.0
      %1128 = vmatprep.subr.mxu0 0.0
      %1129 = vmatpush1.msra.mxu0 0.0
      %1130 = vmatprep.subr.mxu0 0.0
      %1131 = vmatpush1.msra.mxu0 0.0
      %1132 = vmatprep.mubr.f32.mxu0 0.0
      %1133 = vmatmul.mubr.f32.gmra.mrb[0].mxu0 %v1063
      %v1134 = vpop.f32.mrb[0].mxu0
      %v1135 = vadd.f32 0.0, %v1134
      %v1136 = vpop.f32.mrb[0].mxu0
      %1137 = vdwg.mxu0
      %v1139 = vsel %vm452, %v317, 0
      %v1142 = vsel %vm456, %v389, 0
      %1144 = vmatprep.subr.mxu0 0.0
      %1145 = vmatpush1.msra.mxu0 %v1142
      %1146 = vmatprep.subr.mxu0 0.0
      %1147 = vmatpush1.msra.mxu0 0.0
      %1148 = vmatprep.subr.mxu0 0.0
      %1149 = vmatpush1.msra.mxu0 0.0
      %1150 = vmatprep.subr.mxu0 0.0
      %1151 = vmatpush1.msra.mxu0 0.0
      %1152 = vmatprep.subr.mxu0 0.0
      %1153 = vmatpush1.msra.mxu0 0.0
      %1154 = vmatprep.subr.mxu0 0.0
      %1155 = vmatpush1.msra.mxu0 0.0
      %1156 = vmatprep.subr.mxu0 0.0
      %1157 = vmatpush1.msra.mxu0 0.0
      %1158 = vmatprep.subr.mxu0 0.0
      %1159 = vmatpush1.msra.mxu0 0.0
      %1160 = vmatprep.subr.mxu0 0.0
      %1161 = vmatpush1.msra.mxu0 0.0
      %1162 = vmatprep.subr.mxu0 0.0
      %1163 = vmatpush1.msra.mxu0 0.0
      %1164 = vmatprep.subr.mxu0 0.0
      %1165 = vmatpush1.msra.mxu0 0.0
      %1166 = vmatprep.subr.mxu0 0.0
      %1167 = vmatpush1.msra.mxu0 0.0
      %1168 = vmatprep.subr.mxu0 0.0
      %1169 = vmatpush1.msra.mxu0 0.0
      %1170 = vmatprep.subr.mxu0 0.0
      %1171 = vmatpush1.msra.mxu0 0.0
      %1172 = vmatprep.subr.mxu0 0.0
      %1173 = vmatpush1.msra.mxu0 0.0
      %1174 = vmatprep.subr.mxu0 0.0
      %1175 = vmatpush1.msra.mxu0 0.0
      %1176 = vmatprep.subr.mxu0 0.0
      %1177 = vmatpush1.msra.mxu0 0.0
      %1178 = vmatprep.subr.mxu0 0.0
      %1179 = vmatpush1.msra.mxu0 0.0
      %1180 = vmatprep.subr.mxu0 0.0
      %1181 = vmatpush1.msra.mxu0 0.0
      %1182 = vmatprep.subr.mxu0 0.0
      %1183 = vmatpush1.msra.mxu0 0.0
      %1184 = vmatprep.subr.mxu0 0.0
      %1185 = vmatpush1.msra.mxu0 0.0
      %1186 = vmatprep.subr.mxu0 0.0
      %1187 = vmatpush1.msra.mxu0 0.0
      %1188 = vmatprep.subr.mxu0 0.0
      %1189 = vmatpush1.msra.mxu0 0.0
      %1190 = vmatprep.subr.mxu0 0.0
      %1191 = vmatpush1.msra.mxu0 0.0
      %1192 = vmatprep.subr.mxu0 0.0
      %1193 = vmatpush1.msra.mxu0 0.0
      %1194 = vmatprep.subr.mxu0 0.0
      %1195 = vmatpush1.msra.mxu0 0.0
      %1196 = vmatprep.subr.mxu0 0.0
      %1197 = vmatpush1.msra.mxu0 0.0
      %1198 = vmatprep.subr.mxu0 0.0
      %1199 = vmatpush1.msra.mxu0 0.0
      %1200 = vmatprep.subr.mxu0 0.0
      %1201 = vmatpush1.msra.mxu0 0.0
      %1202 = vmatprep.subr.mxu0 0.0
      %1203 = vmatpush1.msra.mxu0 0.0
      %1204 = vmatprep.subr.mxu0 0.0
      %1205 = vmatpush1.msra.mxu0 0.0
      %1206 = vmatprep.subr.mxu0 0.0
      %1207 = vmatpush1.msra.mxu0 0.0
      %1208 = vmatprep.mubr.f32.mxu0 0.0
      %1209 = vmatmul.mubr.f32.gmra.mrb[0].mxu0 %v1139
      %v1210 = vpop.f32.mrb[0].mxu0
      %v1211 = vadd.f32 0.0, %v1210
      %v1212 = vpop.f32.mrb[0].mxu0
      %1213 = vdwg.mxu0
      %v1215 = vsel %vm452, %v318, 0
      %v1218 = vsel %vm456, %v390, 0
      %1220 = vmatprep.subr.mxu0 0.0
      %1221 = vmatpush1.msra.mxu0 %v1218
      %1222 = vmatprep.subr.mxu0 0.0
      %1223 = vmatpush1.msra.mxu0 0.0
      %1224 = vmatprep.subr.mxu0 0.0
      %1225 = vmatpush1.msra.mxu0 0.0
      %1226 = vmatprep.subr.mxu0 0.0
      %1227 = vmatpush1.msra.mxu0 0.0
      %1228 = vmatprep.subr.mxu0 0.0
      %1229 = vmatpush1.msra.mxu0 0.0
      %1230 = vmatprep.subr.mxu0 0.0
      %1231 = vmatpush1.msra.mxu0 0.0
      %1232 = vmatprep.subr.mxu0 0.0
      %1233 = vmatpush1.msra.mxu0 0.0
      %1234 = vmatprep.subr.mxu0 0.0
      %1235 = vmatpush1.msra.mxu0 0.0
      %1236 = vmatprep.subr.mxu0 0.0
      %1237 = vmatpush1.msra.mxu0 0.0
      %1238 = vmatprep.subr.mxu0 0.0
      %1239 = vmatpush1.msra.mxu0 0.0
      %1240 = vmatprep.subr.mxu0 0.0
      %1241 = vmatpush1.msra.mxu0 0.0
      %1242 = vmatprep.subr.mxu0 0.0
      %1243 = vmatpush1.msra.mxu0 0.0
      %1244 = vmatprep.subr.mxu0 0.0
      %1245 = vmatpush1.msra.mxu0 0.0
      %1246 = vmatprep.subr.mxu0 0.0
      %1247 = vmatpush1.msra.mxu0 0.0
      %1248 = vmatprep.subr.mxu0 0.0
      %1249 = vmatpush1.msra.mxu0 0.0
      %1250 = vmatprep.subr.mxu0 0.0
      %1251 = vmatpush1.msra.mxu0 0.0
      %1252 = vmatprep.subr.mxu0 0.0
      %1253 = vmatpush1.msra.mxu0 0.0
      %1254 = vmatprep.subr.mxu0 0.0
      %1255 = vmatpush1.msra.mxu0 0.0
      %1256 = vmatprep.subr.mxu0 0.0
      %1257 = vmatpush1.msra.mxu0 0.0
      %1258 = vmatprep.subr.mxu0 0.0
      %1259 = vmatpush1.msra.mxu0 0.0
      %1260 = vmatprep.subr.mxu0 0.0
      %1261 = vmatpush1.msra.mxu0 0.0
      %1262 = vmatprep.subr.mxu0 0.0
      %1263 = vmatpush1.msra.mxu0 0.0
      %1264 = vmatprep.subr.mxu0 0.0
      %1265 = vmatpush1.msra.mxu0 0.0
      %1266 = vmatprep.subr.mxu0 0.0
      %1267 = vmatpush1.msra.mxu0 0.0
      %1268 = vmatprep.subr.mxu0 0.0
      %1269 = vmatpush1.msra.mxu0 0.0
      %1270 = vmatprep.subr.mxu0 0.0
      %1271 = vmatpush1.msra.mxu0 0.0
      %1272 = vmatprep.subr.mxu0 0.0
      %1273 = vmatpush1.msra.mxu0 0.0
      %1274 = vmatprep.subr.mxu0 0.0
      %1275 = vmatpush1.msra.mxu0 0.0
      %1276 = vmatprep.subr.mxu0 0.0
      %1277 = vmatpush1.msra.mxu0 0.0
      %1278 = vmatprep.subr.mxu0 0.0
      %1279 = vmatpush1.msra.mxu0 0.0
      %1280 = vmatprep.subr.mxu0 0.0
      %1281 = vmatpush1.msra.mxu0 0.0
      %1282 = vmatprep.subr.mxu0 0.0
      %1283 = vmatpush1.msra.mxu0 0.0
      %1284 = vmatprep.mubr.f32.mxu0 0.0
      %1285 = vmatmul.mubr.f32.gmra.mrb[0].mxu0 %v1215
      %v1286 = vpop.f32.mrb[0].mxu0
      %v1287 = vadd.f32 0.0, %v1286
      %v1288 = vpop.f32.mrb[0].mxu0
      %1289 = vdwg.mxu0
      %v1291 = vsel %vm452, %v319, 0
      %v1294 = vsel %vm456, %v391, 0
      %1296 = vmatprep.subr.mxu0 0.0
      %1297 = vmatpush1.msra.mxu0 %v1294
      %1298 = vmatprep.subr.mxu0 0.0
      %1299 = vmatpush1.msra.mxu0 0.0
      %1300 = vmatprep.subr.mxu0 0.0
      %1301 = vmatpush1.msra.mxu0 0.0
      %1302 = vmatprep.subr.mxu0 0.0
      %1303 = vmatpush1.msra.mxu0 0.0
      %1304 = vmatprep.subr.mxu0 0.0
      %1305 = vmatpush1.msra.mxu0 0.0
      %1306 = vmatprep.subr.mxu0 0.0
      %1307 = vmatpush1.msra.mxu0 0.0
      %1308 = vmatprep.subr.mxu0 0.0
      %1309 = vmatpush1.msra.mxu0 0.0
      %1310 = vmatprep.subr.mxu0 0.0
      %1311 = vmatpush1.msra.mxu0 0.0
      %1312 = vmatprep.subr.mxu0 0.0
      %1313 = vmatpush1.msra.mxu0 0.0
      %1314 = vmatprep.subr.mxu0 0.0
      %1315 = vmatpush1.msra.mxu0 0.0
      %1316 = vmatprep.subr.mxu0 0.0
      %1317 = vmatpush1.msra.mxu0 0.0
      %1318 = vmatprep.subr.mxu0 0.0
      %1319 = vmatpush1.msra.mxu0 0.0
      %1320 = vmatprep.subr.mxu0 0.0
      %1321 = vmatpush1.msra.mxu0 0.0
      %1322 = vmatprep.subr.mxu0 0.0
      %1323 = vmatpush1.msra.mxu0 0.0
      %1324 = vmatprep.subr.mxu0 0.0
      %1325 = vmatpush1.msra.mxu0 0.0
      %1326 = vmatprep.subr.mxu0 0.0
      %1327 = vmatpush1.msra.mxu0 0.0
      %1328 = vmatprep.subr.mxu0 0.0
      %1329 = vmatpush1.msra.mxu0 0.0
      %1330 = vmatprep.subr.mxu0 0.0
      %1331 = vmatpush1.msra.mxu0 0.0
      %1332 = vmatprep.subr.mxu0 0.0
      %1333 = vmatpush1.msra.mxu0 0.0
      %1334 = vmatprep.subr.mxu0 0.0
      %1335 = vmatpush1.msra.mxu0 0.0
      %1336 = vmatprep.subr.mxu0 0.0
      %1337 = vmatpush1.msra.mxu0 0.0
      %1338 = vmatprep.subr.mxu0 0.0
      %1339 = vmatpush1.msra.mxu0 0.0
      %1340 = vmatprep.subr.mxu0 0.0
      %1341 = vmatpush1.msra.mxu0 0.0
      %1342 = vmatprep.subr.mxu0 0.0
      %1343 = vmatpush1.msra.mxu0 0.0
      %1344 = vmatprep.subr.mxu0 0.0
      %1345 = vmatpush1.msra.mxu0 0.0
      %1346 = vmatprep.subr.mxu0 0.0
      %1347 = vmatpush1.msra.mxu0 0.0
      %1348 = vmatprep.subr.mxu0 0.0
      %1349 = vmatpush1.msra.mxu0 0.0
      %1350 = vmatprep.subr.mxu0 0.0
      %1351 = vmatpush1.msra.mxu0 0.0
      %1352 = vmatprep.subr.mxu0 0.0
      %1353 = vmatpush1.msra.mxu0 0.0
      %1354 = vmatprep.subr.mxu0 0.0
      %1355 = vmatpush1.msra.mxu0 0.0
      %1356 = vmatprep.subr.mxu0 0.0
      %1357 = vmatpush1.msra.mxu0 0.0
      %1358 = vmatprep.subr.mxu0 0.0
      %1359 = vmatpush1.msra.mxu0 0.0
      %1360 = vmatprep.mubr.f32.mxu0 0.0
      %1361 = vmatmul.mubr.f32.gmra.mrb[0].mxu0 %v1291
      %v1362 = vpop.f32.mrb[0].mxu0
      %v1363 = vadd.f32 0.0, %v1362
      %v1364 = vpop.f32.mrb[0].mxu0
      %1365 = vdwg.mxu0
      %v1367 = vsel %vm452, %v320, 0
      %v1370 = vsel %vm456, %v392, 0
      %1372 = vmatprep.subr.mxu0 0.0
      %1373 = vmatpush1.msra.mxu0 %v1370
      %1374 = vmatprep.subr.mxu0 0.0
      %1375 = vmatpush1.msra.mxu0 0.0
      %1376 = vmatprep.subr.mxu0 0.0
      %1377 = vmatpush1.msra.mxu0 0.0
      %1378 = vmatprep.subr.mxu0 0.0
      %1379 = vmatpush1.msra.mxu0 0.0
      %1380 = vmatprep.subr.mxu0 0.0
      %1381 = vmatpush1.msra.mxu0 0.0
      %1382 = vmatprep.subr.mxu0 0.0
      %1383 = vmatpush1.msra.mxu0 0.0
      %1384 = vmatprep.subr.mxu0 0.0
      %1385 = vmatpush1.msra.mxu0 0.0
      %1386 = vmatprep.subr.mxu0 0.0
      %1387 = vmatpush1.msra.mxu0 0.0
      %1388 = vmatprep.subr.mxu0 0.0
      %1389 = vmatpush1.msra.mxu0 0.0
      %1390 = vmatprep.subr.mxu0 0.0
      %1391 = vmatpush1.msra.mxu0 0.0
      %1392 = vmatprep.subr.mxu0 0.0
      %1393 = vmatpush1.msra.mxu0 0.0
      %1394 = vmatprep.subr.mxu0 0.0
      %1395 = vmatpush1.msra.mxu0 0.0
      %1396 = vmatprep.subr.mxu0 0.0
      %1397 = vmatpush1.msra.mxu0 0.0
      %1398 = vmatprep.subr.mxu0 0.0
      %1399 = vmatpush1.msra.mxu0 0.0
      %1400 = vmatprep.subr.mxu0 0.0
      %1401 = vmatpush1.msra.mxu0 0.0
      %1402 = vmatprep.subr.mxu0 0.0
      %1403 = vmatpush1.msra.mxu0 0.0
      %1404 = vmatprep.subr.mxu0 0.0
      %1405 = vmatpush1.msra.mxu0 0.0
      %1406 = vmatprep.subr.mxu0 0.0
      %1407 = vmatpush1.msra.mxu0 0.0
      %1408 = vmatprep.subr.mxu0 0.0
      %1409 = vmatpush1.msra.mxu0 0.0
      %1410 = vmatprep.subr.mxu0 0.0
      %1411 = vmatpush1.msra.mxu0 0.0
      %1412 = vmatprep.subr.mxu0 0.0
      %1413 = vmatpush1.msra.mxu0 0.0
      %1414 = vmatprep.subr.mxu0 0.0
      %1415 = vmatpush1.msra.mxu0 0.0
      %1416 = vmatprep.subr.mxu0 0.0
      %1417 = vmatpush1.msra.mxu0 0.0
      %1418 = vmatprep.subr.mxu0 0.0
      %1419 = vmatpush1.msra.mxu0 0.0
      %1420 = vmatprep.subr.mxu0 0.0
      %1421 = vmatpush1.msra.mxu0 0.0
      %1422 = vmatprep.subr.mxu0 0.0
      %1423 = vmatpush1.msra.mxu0 0.0
      %1424 = vmatprep.subr.mxu0 0.0
      %1425 = vmatpush1.msra.mxu0 0.0
      %1426 = vmatprep.subr.mxu0 0.0
      %1427 = vmatpush1.msra.mxu0 0.0
      %1428 = vmatprep.subr.mxu0 0.0
      %1429 = vmatpush1.msra.mxu0 0.0
      %1430 = vmatprep.subr.mxu0 0.0
      %1431 = vmatpush1.msra.mxu0 0.0
      %1432 = vmatprep.subr.mxu0 0.0
      %1433 = vmatpush1.msra.mxu0 0.0
      %1434 = vmatprep.subr.mxu0 0.0
      %1435 = vmatpush1.msra.mxu0 0.0
      %1436 = vmatprep.mubr.f32.mxu0 0.0
      %1437 = vmatmul.mubr.f32.gmra.mrb[0].mxu0 %v1367
      %v1438 = vpop.f32.mrb[0].mxu0
      %v1439 = vadd.f32 0.0, %v1438
      %v1440 = vpop.f32.mrb[0].mxu0
      %1441 = vdwg.mxu0
      %v1443 = vsel %vm452, %v321, 0
      %v1446 = vsel %vm456, %v393, 0
      %1448 = vmatprep.subr.mxu0 0.0
      %1449 = vmatpush1.msra.mxu0 %v1446
      %1450 = vmatprep.subr.mxu0 0.0
      %1451 = vmatpush1.msra.mxu0 0.0
      %1452 = vmatprep.subr.mxu0 0.0
      %1453 = vmatpush1.msra.mxu0 0.0
      %1454 = vmatprep.subr.mxu0 0.0
      %1455 = vmatpush1.msra.mxu0 0.0
      %1456 = vmatprep.subr.mxu0 0.0
      %1457 = vmatpush1.msra.mxu0 0.0
      %1458 = vmatprep.subr.mxu0 0.0
      %1459 = vmatpush1.msra.mxu0 0.0
      %1460 = vmatprep.subr.mxu0 0.0
      %1461 = vmatpush1.msra.mxu0 0.0
      %1462 = vmatprep.subr.mxu0 0.0
      %1463 = vmatpush1.msra.mxu0 0.0
      %1464 = vmatprep.subr.mxu0 0.0
      %1465 = vmatpush1.msra.mxu0 0.0
      %1466 = vmatprep.subr.mxu0 0.0
      %1467 = vmatpush1.msra.mxu0 0.0
      %1468 = vmatprep.subr.mxu0 0.0
      %1469 = vmatpush1.msra.mxu0 0.0
      %1470 = vmatprep.subr.mxu0 0.0
      %1471 = vmatpush1.msra.mxu0 0.0
      %1472 = vmatprep.subr.mxu0 0.0
      %1473 = vmatpush1.msra.mxu0 0.0
      %1474 = vmatprep.subr.mxu0 0.0
      %1475 = vmatpush1.msra.mxu0 0.0
      %1476 = vmatprep.subr.mxu0 0.0
      %1477 = vmatpush1.msra.mxu0 0.0
      %1478 = vmatprep.subr.mxu0 0.0
      %1479 = vmatpush1.msra.mxu0 0.0
      %1480 = vmatprep.subr.mxu0 0.0
      %1481 = vmatpush1.msra.mxu0 0.0
      %1482 = vmatprep.subr.mxu0 0.0
      %1483 = vmatpush1.msra.mxu0 0.0
      %1484 = vmatprep.subr.mxu0 0.0
      %1485 = vmatpush1.msra.mxu0 0.0
      %1486 = vmatprep.subr.mxu0 0.0
      %1487 = vmatpush1.msra.mxu0 0.0
      %1488 = vmatprep.subr.mxu0 0.0
      %1489 = vmatpush1.msra.mxu0 0.0
      %1490 = vmatprep.subr.mxu0 0.0
      %1491 = vmatpush1.msra.mxu0 0.0
      %1492 = vmatprep.subr.mxu0 0.0
      %1493 = vmatpush1.msra.mxu0 0.0
      %1494 = vmatprep.subr.mxu0 0.0
      %1495 = vmatpush1.msra.mxu0 0.0
      %1496 = vmatprep.subr.mxu0 0.0
      %1497 = vmatpush1.msra.mxu0 0.0
      %1498 = vmatprep.subr.mxu0 0.0
      %1499 = vmatpush1.msra.mxu0 0.0
      %1500 = vmatprep.subr.mxu0 0.0
      %1501 = vmatpush1.msra.mxu0 0.0
      %1502 = vmatprep.subr.mxu0 0.0
      %1503 = vmatpush1.msra.mxu0 0.0
      %1504 = vmatprep.subr.mxu0 0.0
      %1505 = vmatpush1.msra.mxu0 0.0
      %1506 = vmatprep.subr.mxu0 0.0
      %1507 = vmatpush1.msra.mxu0 0.0
      %1508 = vmatprep.subr.mxu0 0.0
      %1509 = vmatpush1.msra.mxu0 0.0
      %1510 = vmatprep.subr.mxu0 0.0
      %1511 = vmatpush1.msra.mxu0 0.0
      %1512 = vmatprep.mubr.f32.mxu0 0.0
      %1513 = vmatmul.mubr.f32.gmra.mrb[0].mxu0 %v1443
      %v1514 = vpop.f32.mrb[0].mxu0
      %v1515 = vadd.f32 0.0, %v1514
      %v1516 = vpop.f32.mrb[0].mxu0
      %1517 = vdwg.mxu0
      %v1519 = vsel %vm452, %v322, 0
      %v1522 = vsel %vm456, %v394, 0
      %1524 = vmatprep.subr.mxu0 0.0
      %1525 = vmatpush1.msra.mxu0 %v1522
      %1526 = vmatprep.subr.mxu0 0.0
      %1527 = vmatpush1.msra.mxu0 0.0
      %1528 = vmatprep.subr.mxu0 0.0
      %1529 = vmatpush1.msra.mxu0 0.0
      %1530 = vmatprep.subr.mxu0 0.0
      %1531 = vmatpush1.msra.mxu0 0.0
      %1532 = vmatprep.subr.mxu0 0.0
      %1533 = vmatpush1.msra.mxu0 0.0
      %1534 = vmatprep.subr.mxu0 0.0
      %1535 = vmatpush1.msra.mxu0 0.0
      %1536 = vmatprep.subr.mxu0 0.0
      %1537 = vmatpush1.msra.mxu0 0.0
      %1538 = vmatprep.subr.mxu0 0.0
      %1539 = vmatpush1.msra.mxu0 0.0
      %1540 = vmatprep.subr.mxu0 0.0
      %1541 = vmatpush1.msra.mxu0 0.0
      %1542 = vmatprep.subr.mxu0 0.0
      %1543 = vmatpush1.msra.mxu0 0.0
      %1544 = vmatprep.subr.mxu0 0.0
      %1545 = vmatpush1.msra.mxu0 0.0
      %1546 = vmatprep.subr.mxu0 0.0
      %1547 = vmatpush1.msra.mxu0 0.0
      %1548 = vmatprep.subr.mxu0 0.0
      %1549 = vmatpush1.msra.mxu0 0.0
      %1550 = vmatprep.subr.mxu0 0.0
      %1551 = vmatpush1.msra.mxu0 0.0
      %1552 = vmatprep.subr.mxu0 0.0
      %1553 = vmatpush1.msra.mxu0 0.0
      %1554 = vmatprep.subr.mxu0 0.0
      %1555 = vmatpush1.msra.mxu0 0.0
      %1556 = vmatprep.subr.mxu0 0.0
      %1557 = vmatpush1.msra.mxu0 0.0
      %1558 = vmatprep.subr.mxu0 0.0
      %1559 = vmatpush1.msra.mxu0 0.0
      %1560 = vmatprep.subr.mxu0 0.0
      %1561 = vmatpush1.msra.mxu0 0.0
      %1562 = vmatprep.subr.mxu0 0.0
      %1563 = vmatpush1.msra.mxu0 0.0
      %1564 = vmatprep.subr.mxu0 0.0
      %1565 = vmatpush1.msra.mxu0 0.0
      %1566 = vmatprep.subr.mxu0 0.0
      %1567 = vmatpush1.msra.mxu0 0.0
      %1568 = vmatprep.subr.mxu0 0.0
      %1569 = vmatpush1.msra.mxu0 0.0
      %1570 = vmatprep.subr.mxu0 0.0
      %1571 = vmatpush1.msra.mxu0 0.0
      %1572 = vmatprep.subr.mxu0 0.0
      %1573 = vmatpush1.msra.mxu0 0.0
      %1574 = vmatprep.subr.mxu0 0.0
      %1575 = vmatpush1.msra.mxu0 0.0
      %1576 = vmatprep.subr.mxu0 0.0
      %1577 = vmatpush1.msra.mxu0 0.0
      %1578 = vmatprep.subr.mxu0 0.0
      %1579 = vmatpush1.msra.mxu0 0.0
      %1580 = vmatprep.subr.mxu0 0.0
      %1581 = vmatpush1.msra.mxu0 0.0
      %1582 = vmatprep.subr.mxu0 0.0
      %1583 = vmatpush1.msra.mxu0 0.0
      %1584 = vmatprep.subr.mxu0 0.0
      %1585 = vmatpush1.msra.mxu0 0.0
      %1586 = vmatprep.subr.mxu0 0.0
      %1587 = vmatpush1.msra.mxu0 0.0
      %1588 = vmatprep.mubr.f32.mxu0 0.0
      %1589 = vmatmul.mubr.f32.gmra.mrb[0].mxu0 %v1519
      %v1590 = vpop.f32.mrb[0].mxu0
      %v1591 = vadd.f32 0.0, %v1590
      %v1592 = vpop.f32.mrb[0].mxu0
      %1593 = vdwg.mxu0
      %v1595 = vsel %vm452, %v323, 0
      %v1598 = vsel %vm456, %v395, 0
      %1600 = vmatprep.subr.mxu0 0.0
      %1601 = vmatpush1.msra.mxu0 %v1598
      %1602 = vmatprep.subr.mxu0 0.0
      %1603 = vmatpush1.msra.mxu0 0.0
      %1604 = vmatprep.subr.mxu0 0.0
      %1605 = vmatpush1.msra.mxu0 0.0
      %1606 = vmatprep.subr.mxu0 0.0
      %1607 = vmatpush1.msra.mxu0 0.0
      %1608 = vmatprep.subr.mxu0 0.0
      %1609 = vmatpush1.msra.mxu0 0.0
      %1610 = vmatprep.subr.mxu0 0.0
      %1611 = vmatpush1.msra.mxu0 0.0
      %1612 = vmatprep.subr.mxu0 0.0
      %1613 = vmatpush1.msra.mxu0 0.0
      %1614 = vmatprep.subr.mxu0 0.0
      %1615 = vmatpush1.msra.mxu0 0.0
      %1616 = vmatprep.subr.mxu0 0.0
      %1617 = vmatpush1.msra.mxu0 0.0
      %1618 = vmatprep.subr.mxu0 0.0
      %1619 = vmatpush1.msra.mxu0 0.0
      %1620 = vmatprep.subr.mxu0 0.0
      %1621 = vmatpush1.msra.mxu0 0.0
      %1622 = vmatprep.subr.mxu0 0.0
      %1623 = vmatpush1.msra.mxu0 0.0
      %1624 = vmatprep.subr.mxu0 0.0
      %1625 = vmatpush1.msra.mxu0 0.0
      %1626 = vmatprep.subr.mxu0 0.0
      %1627 = vmatpush1.msra.mxu0 0.0
      %1628 = vmatprep.subr.mxu0 0.0
      %1629 = vmatpush1.msra.mxu0 0.0
      %1630 = vmatprep.subr.mxu0 0.0
      %1631 = vmatpush1.msra.mxu0 0.0
      %1632 = vmatprep.subr.mxu0 0.0
      %1633 = vmatpush1.msra.mxu0 0.0
      %1634 = vmatprep.subr.mxu0 0.0
      %1635 = vmatpush1.msra.mxu0 0.0
      %1636 = vmatprep.subr.mxu0 0.0
      %1637 = vmatpush1.msra.mxu0 0.0
      %1638 = vmatprep.subr.mxu0 0.0
      %1639 = vmatpush1.msra.mxu0 0.0
      %1640 = vmatprep.subr.mxu0 0.0
      %1641 = vmatpush1.msra.mxu0 0.0
      %1642 = vmatprep.subr.mxu0 0.0
      %1643 = vmatpush1.msra.mxu0 0.0
      %1644 = vmatprep.subr.mxu0 0.0
      %1645 = vmatpush1.msra.mxu0 0.0
      %1646 = vmatprep.subr.mxu0 0.0
      %1647 = vmatpush1.msra.mxu0 0.0
      %1648 = vmatprep.subr.mxu0 0.0
      %1649 = vmatpush1.msra.mxu0 0.0
      %1650 = vmatprep.subr.mxu0 0.0
      %1651 = vmatpush1.msra.mxu0 0.0
      %1652 = vmatprep.subr.mxu0 0.0
      %1653 = vmatpush1.msra.mxu0 0.0
      %1654 = vmatprep.subr.mxu0 0.0
      %1655 = vmatpush1.msra.mxu0 0.0
      %1656 = vmatprep.subr.mxu0 0.0
      %1657 = vmatpush1.msra.mxu0 0.0
      %1658 = vmatprep.subr.mxu0 0.0
      %1659 = vmatpush1.msra.mxu0 0.0
      %1660 = vmatprep.subr.mxu0 0.0
      %1661 = vmatpush1.msra.mxu0 0.0
      %1662 = vmatprep.subr.mxu0 0.0
      %1663 = vmatpush1.msra.mxu0 0.0
      %1664 = vmatprep.mubr.f32.mxu0 0.0
      %1665 = vmatmul.mubr.f32.gmra.mrb[0].mxu0 %v1595
      %v1666 = vpop.f32.mrb[0].mxu0
      %v1667 = vadd.f32 0.0, %v1666
      %v1668 = vpop.f32.mrb[0].mxu0
      %1669 = vdwg.mxu0
      %v1671 = vsel %vm452, %v324, 0
      %v1674 = vsel %vm456, %v396, 0
      %1676 = vmatprep.subr.mxu0 0.0
      %1677 = vmatpush1.msra.mxu0 %v1674
      %1678 = vmatprep.subr.mxu0 0.0
      %1679 = vmatpush1.msra.mxu0 0.0
      %1680 = vmatprep.subr.mxu0 0.0
      %1681 = vmatpush1.msra.mxu0 0.0
      %1682 = vmatprep.subr.mxu0 0.0
      %1683 = vmatpush1.msra.mxu0 0.0
      %1684 = vmatprep.subr.mxu0 0.0
      %1685 = vmatpush1.msra.mxu0 0.0
      %1686 = vmatprep.subr.mxu0 0.0
      %1687 = vmatpush1.msra.mxu0 0.0
      %1688 = vmatprep.subr.mxu0 0.0
      %1689 = vmatpush1.msra.mxu0 0.0
      %1690 = vmatprep.subr.mxu0 0.0
      %1691 = vmatpush1.msra.mxu0 0.0
      %1692 = vmatprep.subr.mxu0 0.0
      %1693 = vmatpush1.msra.mxu0 0.0
      %1694 = vmatprep.subr.mxu0 0.0
      %1695 = vmatpush1.msra.mxu0 0.0
      %1696 = vmatprep.subr.mxu0 0.0
      %1697 = vmatpush1.msra.mxu0 0.0
      %1698 = vmatprep.subr.mxu0 0.0
      %1699 = vmatpush1.msra.mxu0 0.0
      %1700 = vmatprep.subr.mxu0 0.0
      %1701 = vmatpush1.msra.mxu0 0.0
      %1702 = vmatprep.subr.mxu0 0.0
      %1703 = vmatpush1.msra.mxu0 0.0
      %1704 = vmatprep.subr.mxu0 0.0
      %1705 = vmatpush1.msra.mxu0 0.0
      %1706 = vmatprep.subr.mxu0 0.0
      %1707 = vmatpush1.msra.mxu0 0.0
      %1708 = vmatprep.subr.mxu0 0.0
      %1709 = vmatpush1.msra.mxu0 0.0
      %1710 = vmatprep.subr.mxu0 0.0
      %1711 = vmatpush1.msra.mxu0 0.0
      %1712 = vmatprep.subr.mxu0 0.0
      %1713 = vmatpush1.msra.mxu0 0.0
      %1714 = vmatprep.subr.mxu0 0.0
      %1715 = vmatpush1.msra.mxu0 0.0
      %1716 = vmatprep.subr.mxu0 0.0
      %1717 = vmatpush1.msra.mxu0 0.0
      %1718 = vmatprep.subr.mxu0 0.0
      %1719 = vmatpush1.msra.mxu0 0.0
      %1720 = vmatprep.subr.mxu0 0.0
      %1721 = vmatpush1.msra.mxu0 0.0
      %1722 = vmatprep.subr.mxu0 0.0
      %1723 = vmatpush1.msra.mxu0 0.0
      %1724 = vmatprep.subr.mxu0 0.0
      %1725 = vmatpush1.msra.mxu0 0.0
      %1726 = vmatprep.subr.mxu0 0.0
      %1727 = vmatpush1.msra.mxu0 0.0
      %1728 = vmatprep.subr.mxu0 0.0
      %1729 = vmatpush1.msra.mxu0 0.0
      %1730 = vmatprep.subr.mxu0 0.0
      %1731 = vmatpush1.msra.mxu0 0.0
      %1732 = vmatprep.subr.mxu0 0.0
      %1733 = vmatpush1.msra.mxu0 0.0
      %1734 = vmatprep.subr.mxu0 0.0
      %1735 = vmatpush1.msra.mxu0 0.0
      %1736 = vmatprep.subr.mxu0 0.0
      %1737 = vmatpush1.msra.mxu0 0.0
      %1738 = vmatprep.subr.mxu0 0.0
      %1739 = vmatpush1.msra.mxu0 0.0
      %1740 = vmatprep.mubr.f32.mxu0 0.0
      %1741 = vmatmul.mubr.f32.gmra.mrb[0].mxu0 %v1671
      %v1742 = vpop.f32.mrb[0].mxu0
      %v1743 = vadd.f32 0.0, %v1742
      %v1744 = vpop.f32.mrb[0].mxu0
      %1745 = vdwg.mxu0
      %v1747 = vsel %vm452, %v325, 0
      %v1750 = vsel %vm456, %v397, 0
      %1752 = vmatprep.subr.mxu0 0.0
      %1753 = vmatpush1.msra.mxu0 %v1750
      %1754 = vmatprep.subr.mxu0 0.0
      %1755 = vmatpush1.msra.mxu0 0.0
      %1756 = vmatprep.subr.mxu0 0.0
      %1757 = vmatpush1.msra.mxu0 0.0
      %1758 = vmatprep.subr.mxu0 0.0
      %1759 = vmatpush1.msra.mxu0 0.0
      %1760 = vmatprep.subr.mxu0 0.0
      %1761 = vmatpush1.msra.mxu0 0.0
      %1762 = vmatprep.subr.mxu0 0.0
      %1763 = vmatpush1.msra.mxu0 0.0
      %1764 = vmatprep.subr.mxu0 0.0
      %1765 = vmatpush1.msra.mxu0 0.0
      %1766 = vmatprep.subr.mxu0 0.0
      %1767 = vmatpush1.msra.mxu0 0.0
      %1768 = vmatprep.subr.mxu0 0.0
      %1769 = vmatpush1.msra.mxu0 0.0
      %1770 = vmatprep.subr.mxu0 0.0
      %1771 = vmatpush1.msra.mxu0 0.0
      %1772 = vmatprep.subr.mxu0 0.0
      %1773 = vmatpush1.msra.mxu0 0.0
      %1774 = vmatprep.subr.mxu0 0.0
      %1775 = vmatpush1.msra.mxu0 0.0
      %1776 = vmatprep.subr.mxu0 0.0
      %1777 = vmatpush1.msra.mxu0 0.0
      %1778 = vmatprep.subr.mxu0 0.0
      %1779 = vmatpush1.msra.mxu0 0.0
      %1780 = vmatprep.subr.mxu0 0.0
      %1781 = vmatpush1.msra.mxu0 0.0
      %1782 = vmatprep.subr.mxu0 0.0
      %1783 = vmatpush1.msra.mxu0 0.0
      %1784 = vmatprep.subr.mxu0 0.0
      %1785 = vmatpush1.msra.mxu0 0.0
      %1786 = vmatprep.subr.mxu0 0.0
      %1787 = vmatpush1.msra.mxu0 0.0
      %1788 = vmatprep.subr.mxu0 0.0
      %1789 = vmatpush1.msra.mxu0 0.0
      %1790 = vmatprep.subr.mxu0 0.0
      %1791 = vmatpush1.msra.mxu0 0.0
      %1792 = vmatprep.subr.mxu0 0.0
      %1793 = vmatpush1.msra.mxu0 0.0
      %1794 = vmatprep.subr.mxu0 0.0
      %1795 = vmatpush1.msra.mxu0 0.0
      %1796 = vmatprep.subr.mxu0 0.0
      %1797 = vmatpush1.msra.mxu0 0.0
      %1798 = vmatprep.subr.mxu0 0.0
      %1799 = vmatpush1.msra.mxu0 0.0
      %1800 = vmatprep.subr.mxu0 0.0
      %1801 = vmatpush1.msra.mxu0 0.0
      %1802 = vmatprep.subr.mxu0 0.0
      %1803 = vmatpush1.msra.mxu0 0.0
      %1804 = vmatprep.subr.mxu0 0.0
      %1805 = vmatpush1.msra.mxu0 0.0
      %1806 = vmatprep.subr.mxu0 0.0
      %1807 = vmatpush1.msra.mxu0 0.0
      %1808 = vmatprep.subr.mxu0 0.0
      %1809 = vmatpush1.msra.mxu0 0.0
      %1810 = vmatprep.subr.mxu0 0.0
      %1811 = vmatpush1.msra.mxu0 0.0
      %1812 = vmatprep.subr.mxu0 0.0
      %1813 = vmatpush1.msra.mxu0 0.0
      %1814 = vmatprep.subr.mxu0 0.0
      %1815 = vmatpush1.msra.mxu0 0.0
      %1816 = vmatprep.mubr.f32.mxu0 0.0
      %1817 = vmatmul.mubr.f32.gmra.mrb[0].mxu0 %v1747
      %v1818 = vpop.f32.mrb[0].mxu0
      %v1819 = vadd.f32 0.0, %v1818
      %v1820 = vpop.f32.mrb[0].mxu0
      %1821 = vdwg.mxu0
      %v1823 = vsel %vm452, %v326, 0
      %v1826 = vsel %vm456, %v398, 0
      %1828 = vmatprep.subr.mxu0 0.0
      %1829 = vmatpush1.msra.mxu0 %v1826
      %1830 = vmatprep.subr.mxu0 0.0
      %1831 = vmatpush1.msra.mxu0 0.0
      %1832 = vmatprep.subr.mxu0 0.0
      %1833 = vmatpush1.msra.mxu0 0.0
      %1834 = vmatprep.subr.mxu0 0.0
      %1835 = vmatpush1.msra.mxu0 0.0
      %1836 = vmatprep.subr.mxu0 0.0
      %1837 = vmatpush1.msra.mxu0 0.0
      %1838 = vmatprep.subr.mxu0 0.0
      %1839 = vmatpush1.msra.mxu0 0.0
      %1840 = vmatprep.subr.mxu0 0.0
      %1841 = vmatpush1.msra.mxu0 0.0
      %1842 = vmatprep.subr.mxu0 0.0
      %1843 = vmatpush1.msra.mxu0 0.0
      %1844 = vmatprep.subr.mxu0 0.0
      %1845 = vmatpush1.msra.mxu0 0.0
      %1846 = vmatprep.subr.mxu0 0.0
      %1847 = vmatpush1.msra.mxu0 0.0
      %1848 = vmatprep.subr.mxu0 0.0
      %1849 = vmatpush1.msra.mxu0 0.0
      %1850 = vmatprep.subr.mxu0 0.0
      %1851 = vmatpush1.msra.mxu0 0.0
      %1852 = vmatprep.subr.mxu0 0.0
      %1853 = vmatpush1.msra.mxu0 0.0
      %1854 = vmatprep.subr.mxu0 0.0
      %1855 = vmatpush1.msra.mxu0 0.0
      %1856 = vmatprep.subr.mxu0 0.0
      %1857 = vmatpush1.msra.mxu0 0.0
      %1858 = vmatprep.subr.mxu0 0.0
      %1859 = vmatpush1.msra.mxu0 0.0
      %1860 = vmatprep.subr.mxu0 0.0
      %1861 = vmatpush1.msra.mxu0 0.0
      %1862 = vmatprep.subr.mxu0 0.0
      %1863 = vmatpush1.msra.mxu0 0.0
      %1864 = vmatprep.subr.mxu0 0.0
      %1865 = vmatpush1.msra.mxu0 0.0
      %1866 = vmatprep.subr.mxu0 0.0
      %1867 = vmatpush1.msra.mxu0 0.0
      %1868 = vmatprep.subr.mxu0 0.0
      %1869 = vmatpush1.msra.mxu0 0.0
      %1870 = vmatprep.subr.mxu0 0.0
      %1871 = vmatpush1.msra.mxu0 0.0
      %1872 = vmatprep.subr.mxu0 0.0
      %1873 = vmatpush1.msra.mxu0 0.0
      %1874 = vmatprep.subr.mxu0 0.0
      %1875 = vmatpush1.msra.mxu0 0.0
      %1876 = vmatprep.subr.mxu0 0.0
      %1877 = vmatpush1.msra.mxu0 0.0
      %1878 = vmatprep.subr.mxu0 0.0
      %1879 = vmatpush1.msra.mxu0 0.0
      %1880 = vmatprep.subr.mxu0 0.0
      %1881 = vmatpush1.msra.mxu0 0.0
      %1882 = vmatprep.subr.mxu0 0.0
      %1883 = vmatpush1.msra.mxu0 0.0
      %1884 = vmatprep.subr.mxu0 0.0
      %1885 = vmatpush1.msra.mxu0 0.0
      %1886 = vmatprep.subr.mxu0 0.0
      %1887 = vmatpush1.msra.mxu0 0.0
      %1888 = vmatprep.subr.mxu0 0.0
      %1889 = vmatpush1.msra.mxu0 0.0
      %1890 = vmatprep.subr.mxu0 0.0
      %1891 = vmatpush1.msra.mxu0 0.0
      %1892 = vmatprep.mubr.f32.mxu0 0.0
      %1893 = vmatmul.mubr.f32.gmra.mrb[0].mxu0 %v1823
      %v1894 = vpop.f32.mrb[0].mxu0
      %v1895 = vadd.f32 0.0, %v1894
      %v1896 = vpop.f32.mrb[0].mxu0
      %1897 = vdwg.mxu0
      %v1899 = vsel %vm452, %v327, 0
      %v1902 = vsel %vm456, %v399, 0
      %1904 = vmatprep.subr.mxu0 0.0
      %1905 = vmatpush1.msra.mxu0 %v1902
      %1906 = vmatprep.subr.mxu0 0.0
      %1907 = vmatpush1.msra.mxu0 0.0
      %1908 = vmatprep.subr.mxu0 0.0
      %1909 = vmatpush1.msra.mxu0 0.0
      %1910 = vmatprep.subr.mxu0 0.0
      %1911 = vmatpush1.msra.mxu0 0.0
      %1912 = vmatprep.subr.mxu0 0.0
      %1913 = vmatpush1.msra.mxu0 0.0
      %1914 = vmatprep.subr.mxu0 0.0
      %1915 = vmatpush1.msra.mxu0 0.0
      %1916 = vmatprep.subr.mxu0 0.0
      %1917 = vmatpush1.msra.mxu0 0.0
      %1918 = vmatprep.subr.mxu0 0.0
      %1919 = vmatpush1.msra.mxu0 0.0
      %1920 = vmatprep.subr.mxu0 0.0
      %1921 = vmatpush1.msra.mxu0 0.0
      %1922 = vmatprep.subr.mxu0 0.0
      %1923 = vmatpush1.msra.mxu0 0.0
      %1924 = vmatprep.subr.mxu0 0.0
      %1925 = vmatpush1.msra.mxu0 0.0
      %1926 = vmatprep.subr.mxu0 0.0
      %1927 = vmatpush1.msra.mxu0 0.0
      %1928 = vmatprep.subr.mxu0 0.0
      %1929 = vmatpush1.msra.mxu0 0.0
      %1930 = vmatprep.subr.mxu0 0.0
      %1931 = vmatpush1.msra.mxu0 0.0
      %1932 = vmatprep.subr.mxu0 0.0
      %1933 = vmatpush1.msra.mxu0 0.0
      %1934 = vmatprep.subr.mxu0 0.0
      %1935 = vmatpush1.msra.mxu0 0.0
      %1936 = vmatprep.subr.mxu0 0.0
      %1937 = vmatpush1.msra.mxu0 0.0
      %1938 = vmatprep.subr.mxu0 0.0
      %1939 = vmatpush1.msra.mxu0 0.0
      %1940 = vmatprep.subr.mxu0 0.0
      %1941 = vmatpush1.msra.mxu0 0.0
      %1942 = vmatprep.subr.mxu0 0.0
      %1943 = vmatpush1.msra.mxu0 0.0
      %1944 = vmatprep.subr.mxu0 0.0
      %1945 = vmatpush1.msra.mxu0 0.0
      %1946 = vmatprep.subr.mxu0 0.0
      %1947 = vmatpush1.msra.mxu0 0.0
      %1948 = vmatprep.subr.mxu0 0.0
      %1949 = vmatpush1.msra.mxu0 0.0
      %1950 = vmatprep.subr.mxu0 0.0
      %1951 = vmatpush1.msra.mxu0 0.0
      %1952 = vmatprep.subr.mxu0 0.0
      %1953 = vmatpush1.msra.mxu0 0.0
      %1954 = vmatprep.subr.mxu0 0.0
      %1955 = vmatpush1.msra.mxu0 0.0
      %1956 = vmatprep.subr.mxu0 0.0
      %1957 = vmatpush1.msra.mxu0 0.0
      %1958 = vmatprep.subr.mxu0 0.0
      %1959 = vmatpush1.msra.mxu0 0.0
      %1960 = vmatprep.subr.mxu0 0.0
      %1961 = vmatpush1.msra.mxu0 0.0
      %1962 = vmatprep.subr.mxu0 0.0
      %1963 = vmatpush1.msra.mxu0 0.0
      %1964 = vmatprep.subr.mxu0 0.0
      %1965 = vmatpush1.msra.mxu0 0.0
      %1966 = vmatprep.subr.mxu0 0.0
      %1967 = vmatpush1.msra.mxu0 0.0
      %1968 = vmatprep.mubr.f32.mxu0 0.0
      %1969 = vmatmul.mubr.f32.gmra.mrb[0].mxu0 %v1899
      %v1970 = vpop.f32.mrb[0].mxu0
      %v1971 = vadd.f32 0.0, %v1970
      %v1972 = vpop.f32.mrb[0].mxu0
      %1973 = vdwg.mxu0
      %v1975 = vsel %vm452, %v328, 0
      %v1978 = vsel %vm456, %v400, 0
      %1980 = vmatprep.subr.mxu0 0.0
      %1981 = vmatpush1.msra.mxu0 %v1978
      %1982 = vmatprep.subr.mxu0 0.0
      %1983 = vmatpush1.msra.mxu0 0.0
      %1984 = vmatprep.subr.mxu0 0.0
      %1985 = vmatpush1.msra.mxu0 0.0
      %1986 = vmatprep.subr.mxu0 0.0
      %1987 = vmatpush1.msra.mxu0 0.0
      %1988 = vmatprep.subr.mxu0 0.0
      %1989 = vmatpush1.msra.mxu0 0.0
      %1990 = vmatprep.subr.mxu0 0.0
      %1991 = vmatpush1.msra.mxu0 0.0
      %1992 = vmatprep.subr.mxu0 0.0
      %1993 = vmatpush1.msra.mxu0 0.0
      %1994 = vmatprep.subr.mxu0 0.0
      %1995 = vmatpush1.msra.mxu0 0.0
      %1996 = vmatprep.subr.mxu0 0.0
      %1997 = vmatpush1.msra.mxu0 0.0
      %1998 = vmatprep.subr.mxu0 0.0
      %1999 = vmatpush1.msra.mxu0 0.0
      %2000 = vmatprep.subr.mxu0 0.0
      %2001 = vmatpush1.msra.mxu0 0.0
      %2002 = vmatprep.subr.mxu0 0.0
      %2003 = vmatpush1.msra.mxu0 0.0
      %2004 = vmatprep.subr.mxu0 0.0
      %2005 = vmatpush1.msra.mxu0 0.0
      %2006 = vmatprep.subr.mxu0 0.0
      %2007 = vmatpush1.msra.mxu0 0.0
      %2008 = vmatprep.subr.mxu0 0.0
      %2009 = vmatpush1.msra.mxu0 0.0
      %2010 = vmatprep.subr.mxu0 0.0
      %2011 = vmatpush1.msra.mxu0 0.0
      %2012 = vmatprep.subr.mxu0 0.0
      %2013 = vmatpush1.msra.mxu0 0.0
      %2014 = vmatprep.subr.mxu0 0.0
      %2015 = vmatpush1.msra.mxu0 0.0
      %2016 = vmatprep.subr.mxu0 0.0
      %2017 = vmatpush1.msra.mxu0 0.0
      %2018 = vmatprep.subr.mxu0 0.0
      %2019 = vmatpush1.msra.mxu0 0.0
      %2020 = vmatprep.subr.mxu0 0.0
      %2021 = vmatpush1.msra.mxu0 0.0
      %2022 = vmatprep.subr.mxu0 0.0
      %2023 = vmatpush1.msra.mxu0 0.0
      %2024 = vmatprep.subr.mxu0 0.0
      %2025 = vmatpush1.msra.mxu0 0.0
      %2026 = vmatprep.subr.mxu0 0.0
      %2027 = vmatpush1.msra.mxu0 0.0
      %2028 = vmatprep.subr.mxu0 0.0
      %2029 = vmatpush1.msra.mxu0 0.0
      %2030 = vmatprep.subr.mxu0 0.0
      %2031 = vmatpush1.msra.mxu0 0.0
      %2032 = vmatprep.subr.mxu0 0.0
      %2033 = vmatpush1.msra.mxu0 0.0
      %2034 = vmatprep.subr.mxu0 0.0
      %2035 = vmatpush1.msra.mxu0 0.0
      %2036 = vmatprep.subr.mxu0 0.0
      %2037 = vmatpush1.msra.mxu0 0.0
      %2038 = vmatprep.subr.mxu0 0.0
      %2039 = vmatpush1.msra.mxu0 0.0
      %2040 = vmatprep.subr.mxu0 0.0
      %2041 = vmatpush1.msra.mxu0 0.0
      %2042 = vmatprep.subr.mxu0 0.0
      %2043 = vmatpush1.msra.mxu0 0.0
      %2044 = vmatprep.mubr.f32.mxu0 0.0
      %2045 = vmatmul.mubr.f32.gmra.mrb[0].mxu0 %v1975
      %v2046 = vpop.f32.mrb[0].mxu0
      %v2047 = vadd.f32 0.0, %v2046
      %v2048 = vpop.f32.mrb[0].mxu0
      %2049 = vdwg.mxu0
      %v2051 = vsel %vm452, %v329, 0
      %v2054 = vsel %vm456, %v401, 0
      %2056 = vmatprep.subr.mxu0 0.0
      %2057 = vmatpush1.msra.mxu0 %v2054
      %2058 = vmatprep.subr.mxu0 0.0
      %2059 = vmatpush1.msra.mxu0 0.0
      %2060 = vmatprep.subr.mxu0 0.0
      %2061 = vmatpush1.msra.mxu0 0.0
      %2062 = vmatprep.subr.mxu0 0.0
      %2063 = vmatpush1.msra.mxu0 0.0
      %2064 = vmatprep.subr.mxu0 0.0
      %2065 = vmatpush1.msra.mxu0 0.0
      %2066 = vmatprep.subr.mxu0 0.0
      %2067 = vmatpush1.msra.mxu0 0.0
      %2068 = vmatprep.subr.mxu0 0.0
      %2069 = vmatpush1.msra.mxu0 0.0
      %2070 = vmatprep.subr.mxu0 0.0
      %2071 = vmatpush1.msra.mxu0 0.0
      %2072 = vmatprep.subr.mxu0 0.0
      %2073 = vmatpush1.msra.mxu0 0.0
      %2074 = vmatprep.subr.mxu0 0.0
      %2075 = vmatpush1.msra.mxu0 0.0
      %2076 = vmatprep.subr.mxu0 0.0
      %2077 = vmatpush1.msra.mxu0 0.0
      %2078 = vmatprep.subr.mxu0 0.0
      %2079 = vmatpush1.msra.mxu0 0.0
      %2080 = vmatprep.subr.mxu0 0.0
      %2081 = vmatpush1.msra.mxu0 0.0
      %2082 = vmatprep.subr.mxu0 0.0
      %2083 = vmatpush1.msra.mxu0 0.0
      %2084 = vmatprep.subr.mxu0 0.0
      %2085 = vmatpush1.msra.mxu0 0.0
      %2086 = vmatprep.subr.mxu0 0.0
      %2087 = vmatpush1.msra.mxu0 0.0
      %2088 = vmatprep.subr.mxu0 0.0
      %2089 = vmatpush1.msra.mxu0 0.0
      %2090 = vmatprep.subr.mxu0 0.0
      %2091 = vmatpush1.msra.mxu0 0.0
      %2092 = vmatprep.subr.mxu0 0.0
      %2093 = vmatpush1.msra.mxu0 0.0
      %2094 = vmatprep.subr.mxu0 0.0
      %2095 = vmatpush1.msra.mxu0 0.0
      %2096 = vmatprep.subr.mxu0 0.0
      %2097 = vmatpush1.msra.mxu0 0.0
      %2098 = vmatprep.subr.mxu0 0.0
      %2099 = vmatpush1.msra.mxu0 0.0
      %2100 = vmatprep.subr.mxu0 0.0
      %2101 = vmatpush1.msra.mxu0 0.0
      %2102 = vmatprep.subr.mxu0 0.0
      %2103 = vmatpush1.msra.mxu0 0.0
      %2104 = vmatprep.subr.mxu0 0.0
      %2105 = vmatpush1.msra.mxu0 0.0
      %2106 = vmatprep.subr.mxu0 0.0
      %2107 = vmatpush1.msra.mxu0 0.0
      %2108 = vmatprep.subr.mxu0 0.0
      %2109 = vmatpush1.msra.mxu0 0.0
      %2110 = vmatprep.subr.mxu0 0.0
      %2111 = vmatpush1.msra.mxu0 0.0
      %2112 = vmatprep.subr.mxu0 0.0
      %2113 = vmatpush1.msra.mxu0 0.0
      %2114 = vmatprep.subr.mxu0 0.0
      %2115 = vmatpush1.msra.mxu0 0.0
      %2116 = vmatprep.subr.mxu0 0.0
      %2117 = vmatpush1.msra.mxu0 0.0
      %2118 = vmatprep.subr.mxu0 0.0
      %2119 = vmatpush1.msra.mxu0 0.0
      %2120 = vmatprep.mubr.f32.mxu0 0.0
      %2121 = vmatmul.mubr.f32.gmra.mrb[0].mxu0 %v2051
      %v2122 = vpop.f32.mrb[0].mxu0
      %v2123 = vadd.f32 0.0, %v2122
      %v2124 = vpop.f32.mrb[0].mxu0
      %2125 = vdwg.mxu0
      %v2127 = vsel %vm452, %v330, 0
      %v2130 = vsel %vm456, %v402, 0
      %2132 = vmatprep.subr.mxu0 0.0
      %2133 = vmatpush1.msra.mxu0 %v2130
      %2134 = vmatprep.subr.mxu0 0.0
      %2135 = vmatpush1.msra.mxu0 0.0
      %2136 = vmatprep.subr.mxu0 0.0
      %2137 = vmatpush1.msra.mxu0 0.0
      %2138 = vmatprep.subr.mxu0 0.0
      %2139 = vmatpush1.msra.mxu0 0.0
      %2140 = vmatprep.subr.mxu0 0.0
      %2141 = vmatpush1.msra.mxu0 0.0
      %2142 = vmatprep.subr.mxu0 0.0
      %2143 = vmatpush1.msra.mxu0 0.0
      %2144 = vmatprep.subr.mxu0 0.0
      %2145 = vmatpush1.msra.mxu0 0.0
      %2146 = vmatprep.subr.mxu0 0.0
      %2147 = vmatpush1.msra.mxu0 0.0
      %2148 = vmatprep.subr.mxu0 0.0
      %2149 = vmatpush1.msra.mxu0 0.0
      %2150 = vmatprep.subr.mxu0 0.0
      %2151 = vmatpush1.msra.mxu0 0.0
      %2152 = vmatprep.subr.mxu0 0.0
      %2153 = vmatpush1.msra.mxu0 0.0
      %2154 = vmatprep.subr.mxu0 0.0
      %2155 = vmatpush1.msra.mxu0 0.0
      %2156 = vmatprep.subr.mxu0 0.0
      %2157 = vmatpush1.msra.mxu0 0.0
      %2158 = vmatprep.subr.mxu0 0.0
      %2159 = vmatpush1.msra.mxu0 0.0
      %2160 = vmatprep.subr.mxu0 0.0
      %2161 = vmatpush1.msra.mxu0 0.0
      %2162 = vmatprep.subr.mxu0 0.0
      %2163 = vmatpush1.msra.mxu0 0.0
      %2164 = vmatprep.subr.mxu0 0.0
      %2165 = vmatpush1.msra.mxu0 0.0
      %2166 = vmatprep.subr.mxu0 0.0
      %2167 = vmatpush1.msra.mxu0 0.0
      %2168 = vmatprep.subr.mxu0 0.0
      %2169 = vmatpush1.msra.mxu0 0.0
      %2170 = vmatprep.subr.mxu0 0.0
      %2171 = vmatpush1.msra.mxu0 0.0
      %2172 = vmatprep.subr.mxu0 0.0
      %2173 = vmatpush1.msra.mxu0 0.0
      %2174 = vmatprep.subr.mxu0 0.0
      %2175 = vmatpush1.msra.mxu0 0.0
      %2176 = vmatprep.subr.mxu0 0.0
      %2177 = vmatpush1.msra.mxu0 0.0
      %2178 = vmatprep.subr.mxu0 0.0
      %2179 = vmatpush1.msra.mxu0 0.0
      %2180 = vmatprep.subr.mxu0 0.0
      %2181 = vmatpush1.msra.mxu0 0.0
      %2182 = vmatprep.subr.mxu0 0.0
      %2183 = vmatpush1.msra.mxu0 0.0
      %2184 = vmatprep.subr.mxu0 0.0
      %2185 = vmatpush1.msra.mxu0 0.0
      %2186 = vmatprep.subr.mxu0 0.0
      %2187 = vmatpush1.msra.mxu0 0.0
      %2188 = vmatprep.subr.mxu0 0.0
      %2189 = vmatpush1.msra.mxu0 0.0
      %2190 = vmatprep.subr.mxu0 0.0
      %2191 = vmatpush1.msra.mxu0 0.0
      %2192 = vmatprep.subr.mxu0 0.0
      %2193 = vmatpush1.msra.mxu0 0.0
      %2194 = vmatprep.subr.mxu0 0.0
      %2195 = vmatpush1.msra.mxu0 0.0
      %2196 = vmatprep.mubr.f32.mxu0 0.0
      %2197 = vmatmul.mubr.f32.gmra.mrb[0].mxu0 %v2127
      %v2198 = vpop.f32.mrb[0].mxu0
      %v2199 = vadd.f32 0.0, %v2198
      %v2200 = vpop.f32.mrb[0].mxu0
      %2201 = vdwg.mxu0
      %v2203 = vsel %vm452, %v331, 0
      %v2206 = vsel %vm456, %v403, 0
      %2208 = vmatprep.subr.mxu0 0.0
      %2209 = vmatpush1.msra.mxu0 %v2206
      %2210 = vmatprep.subr.mxu0 0.0
      %2211 = vmatpush1.msra.mxu0 0.0
      %2212 = vmatprep.subr.mxu0 0.0
      %2213 = vmatpush1.msra.mxu0 0.0
      %2214 = vmatprep.subr.mxu0 0.0
      %2215 = vmatpush1.msra.mxu0 0.0
      %2216 = vmatprep.subr.mxu0 0.0
      %2217 = vmatpush1.msra.mxu0 0.0
      %2218 = vmatprep.subr.mxu0 0.0
      %2219 = vmatpush1.msra.mxu0 0.0
      %2220 = vmatprep.subr.mxu0 0.0
      %2221 = vmatpush1.msra.mxu0 0.0
      %2222 = vmatprep.subr.mxu0 0.0
      %2223 = vmatpush1.msra.mxu0 0.0
      %2224 = vmatprep.subr.mxu0 0.0
      %2225 = vmatpush1.msra.mxu0 0.0
      %2226 = vmatprep.subr.mxu0 0.0
      %2227 = vmatpush1.msra.mxu0 0.0
      %2228 = vmatprep.subr.mxu0 0.0
      %2229 = vmatpush1.msra.mxu0 0.0
      %2230 = vmatprep.subr.mxu0 0.0
      %2231 = vmatpush1.msra.mxu0 0.0
      %2232 = vmatprep.subr.mxu0 0.0
      %2233 = vmatpush1.msra.mxu0 0.0
      %2234 = vmatprep.subr.mxu0 0.0
      %2235 = vmatpush1.msra.mxu0 0.0
      %2236 = vmatprep.subr.mxu0 0.0
      %2237 = vmatpush1.msra.mxu0 0.0
      %2238 = vmatprep.subr.mxu0 0.0
      %2239 = vmatpush1.msra.mxu0 0.0
      %2240 = vmatprep.subr.mxu0 0.0
      %2241 = vmatpush1.msra.mxu0 0.0
      %2242 = vmatprep.subr.mxu0 0.0
      %2243 = vmatpush1.msra.mxu0 0.0
      %2244 = vmatprep.subr.mxu0 0.0
      %2245 = vmatpush1.msra.mxu0 0.0
      %2246 = vmatprep.subr.mxu0 0.0
      %2247 = vmatpush1.msra.mxu0 0.0
      %2248 = vmatprep.subr.mxu0 0.0
      %2249 = vmatpush1.msra.mxu0 0.0
      %2250 = vmatprep.subr.mxu0 0.0
      %2251 = vmatpush1.msra.mxu0 0.0
      %2252 = vmatprep.subr.mxu0 0.0
      %2253 = vmatpush1.msra.mxu0 0.0
      %2254 = vmatprep.subr.mxu0 0.0
      %2255 = vmatpush1.msra.mxu0 0.0
      %2256 = vmatprep.subr.mxu0 0.0
      %2257 = vmatpush1.msra.mxu0 0.0
      %2258 = vmatprep.subr.mxu0 0.0
      %2259 = vmatpush1.msra.mxu0 0.0
      %2260 = vmatprep.subr.mxu0 0.0
      %2261 = vmatpush1.msra.mxu0 0.0
      %2262 = vmatprep.subr.mxu0 0.0
      %2263 = vmatpush1.msra.mxu0 0.0
      %2264 = vmatprep.subr.mxu0 0.0
      %2265 = vmatpush1.msra.mxu0 0.0
      %2266 = vmatprep.subr.mxu0 0.0
      %2267 = vmatpush1.msra.mxu0 0.0
      %2268 = vmatprep.subr.mxu0 0.0
      %2269 = vmatpush1.msra.mxu0 0.0
      %2270 = vmatprep.subr.mxu0 0.0
      %2271 = vmatpush1.msra.mxu0 0.0
      %2272 = vmatprep.mubr.f32.mxu0 0.0
      %2273 = vmatmul.mubr.f32.gmra.mrb[0].mxu0 %v2203
      %v2274 = vpop.f32.mrb[0].mxu0
      %v2275 = vadd.f32 0.0, %v2274
      %v2276 = vpop.f32.mrb[0].mxu0
      %2277 = vdwg.mxu0
      %v2279 = vsel %vm452, %v332, 0
      %v2282 = vsel %vm456, %v428, 0
      %2284 = vmatprep.subr.mxu0 0.0
      %2285 = vmatpush1.msra.mxu0 %v2282
      %2286 = vmatprep.subr.mxu0 0.0
      %2287 = vmatpush1.msra.mxu0 0.0
      %2288 = vmatprep.subr.mxu0 0.0
      %2289 = vmatpush1.msra.mxu0 0.0
      %2290 = vmatprep.subr.mxu0 0.0
      %2291 = vmatpush1.msra.mxu0 0.0
      %2292 = vmatprep.subr.mxu0 0.0
      %2293 = vmatpush1.msra.mxu0 0.0
      %2294 = vmatprep.subr.mxu0 0.0
      %2295 = vmatpush1.msra.mxu0 0.0
      %2296 = vmatprep.subr.mxu0 0.0
      %2297 = vmatpush1.msra.mxu0 0.0
      %2298 = vmatprep.subr.mxu0 0.0
      %2299 = vmatpush1.msra.mxu0 0.0
      %2300 = vmatprep.subr.mxu0 0.0
      %2301 = vmatpush1.msra.mxu0 0.0
      %2302 = vmatprep.subr.mxu0 0.0
      %2303 = vmatpush1.msra.mxu0 0.0
      %2304 = vmatprep.subr.mxu0 0.0
      %2305 = vmatpush1.msra.mxu0 0.0
      %2306 = vmatprep.subr.mxu0 0.0
      %2307 = vmatpush1.msra.mxu0 0.0
      %2308 = vmatprep.subr.mxu0 0.0
      %2309 = vmatpush1.msra.mxu0 0.0
      %2310 = vmatprep.subr.mxu0 0.0
      %2311 = vmatpush1.msra.mxu0 0.0
      %2312 = vmatprep.subr.mxu0 0.0
      %2313 = vmatpush1.msra.mxu0 0.0
      %2314 = vmatprep.subr.mxu0 0.0
      %2315 = vmatpush1.msra.mxu0 0.0
      %2316 = vmatprep.subr.mxu0 0.0
      %2317 = vmatpush1.msra.mxu0 0.0
      %2318 = vmatprep.subr.mxu0 0.0
      %2319 = vmatpush1.msra.mxu0 0.0
      %2320 = vmatprep.subr.mxu0 0.0
      %2321 = vmatpush1.msra.mxu0 0.0
      %2322 = vmatprep.subr.mxu0 0.0
      %2323 = vmatpush1.msra.mxu0 0.0
      %2324 = vmatprep.subr.mxu0 0.0
      %2325 = vmatpush1.msra.mxu0 0.0
      %2326 = vmatprep.subr.mxu0 0.0
      %2327 = vmatpush1.msra.mxu0 0.0
      %2328 = vmatprep.subr.mxu0 0.0
      %2329 = vmatpush1.msra.mxu0 0.0
      %2330 = vmatprep.subr.mxu0 0.0
      %2331 = vmatpush1.msra.mxu0 0.0
      %2332 = vmatprep.subr.mxu0 0.0
      %2333 = vmatpush1.msra.mxu0 0.0
      %2334 = vmatprep.subr.mxu0 0.0
      %2335 = vmatpush1.msra.mxu0 0.0
      %2336 = vmatprep.subr.mxu0 0.0
      %2337 = vmatpush1.msra.mxu0 0.0
      %2338 = vmatprep.subr.mxu0 0.0
      %2339 = vmatpush1.msra.mxu0 0.0
      %2340 = vmatprep.subr.mxu0 0.0
      %2341 = vmatpush1.msra.mxu0 0.0
      %2342 = vmatprep.subr.mxu0 0.0
      %2343 = vmatpush1.msra.mxu0 0.0
      %2344 = vmatprep.subr.mxu0 0.0
      %2345 = vmatpush1.msra.mxu0 0.0
      %2346 = vmatprep.subr.mxu0 0.0
      %2347 = vmatpush1.msra.mxu0 0.0
      %2348 = vmatprep.mubr.f32.mxu0 0.0
      %2349 = vmatmul.mubr.f32.gmra.mrb[0].mxu0 %v2279
      %v2350 = vpop.f32.mrb[0].mxu0
      %v2351 = vadd.f32 0.0, %v2350
      %v2352 = vpop.f32.mrb[0].mxu0
      %2353 = vdwg.mxu0
      %v2355 = vsel %vm452, %v333, 0
      %v2358 = vsel %vm456, %v429, 0
      %2360 = vmatprep.subr.mxu0 0.0
      %2361 = vmatpush1.msra.mxu0 %v2358
      %2362 = vmatprep.subr.mxu0 0.0
      %2363 = vmatpush1.msra.mxu0 0.0
      %2364 = vmatprep.subr.mxu0 0.0
      %2365 = vmatpush1.msra.mxu0 0.0
      %2366 = vmatprep.subr.mxu0 0.0
      %2367 = vmatpush1.msra.mxu0 0.0
      %2368 = vmatprep.subr.mxu0 0.0
      %2369 = vmatpush1.msra.mxu0 0.0
      %2370 = vmatprep.subr.mxu0 0.0
      %2371 = vmatpush1.msra.mxu0 0.0
      %2372 = vmatprep.subr.mxu0 0.0
      %2373 = vmatpush1.msra.mxu0 0.0
      %2374 = vmatprep.subr.mxu0 0.0
      %2375 = vmatpush1.msra.mxu0 0.0
      %2376 = vmatprep.subr.mxu0 0.0
      %2377 = vmatpush1.msra.mxu0 0.0
      %2378 = vmatprep.subr.mxu0 0.0
      %2379 = vmatpush1.msra.mxu0 0.0
      %2380 = vmatprep.subr.mxu0 0.0
      %2381 = vmatpush1.msra.mxu0 0.0
      %2382 = vmatprep.subr.mxu0 0.0
      %2383 = vmatpush1.msra.mxu0 0.0
      %2384 = vmatprep.subr.mxu0 0.0
      %2385 = vmatpush1.msra.mxu0 0.0
      %2386 = vmatprep.subr.mxu0 0.0
      %2387 = vmatpush1.msra.mxu0 0.0
      %2388 = vmatprep.subr.mxu0 0.0
      %2389 = vmatpush1.msra.mxu0 0.0
      %2390 = vmatprep.subr.mxu0 0.0
      %2391 = vmatpush1.msra.mxu0 0.0
      %2392 = vmatprep.subr.mxu0 0.0
      %2393 = vmatpush1.msra.mxu0 0.0
      %2394 = vmatprep.subr.mxu0 0.0
      %2395 = vmatpush1.msra.mxu0 0.0
      %2396 = vmatprep.subr.mxu0 0.0
      %2397 = vmatpush1.msra.mxu0 0.0
      %2398 = vmatprep.subr.mxu0 0.0
      %2399 = vmatpush1.msra.mxu0 0.0
      %2400 = vmatprep.subr.mxu0 0.0
      %2401 = vmatpush1.msra.mxu0 0.0
      %2402 = vmatprep.subr.mxu0 0.0
      %2403 = vmatpush1.msra.mxu0 0.0
      %2404 = vmatprep.subr.mxu0 0.0
      %2405 = vmatpush1.msra.mxu0 0.0
      %2406 = vmatprep.subr.mxu0 0.0
      %2407 = vmatpush1.msra.mxu0 0.0
      %2408 = vmatprep.subr.mxu0 0.0
      %2409 = vmatpush1.msra.mxu0 0.0
      %2410 = vmatprep.subr.mxu0 0.0
      %2411 = vmatpush1.msra.mxu0 0.0
      %2412 = vmatprep.subr.mxu0 0.0
      %2413 = vmatpush1.msra.mxu0 0.0
      %2414 = vmatprep.subr.mxu0 0.0
      %2415 = vmatpush1.msra.mxu0 0.0
      %2416 = vmatprep.subr.mxu0 0.0
      %2417 = vmatpush1.msra.mxu0 0.0
      %2418 = vmatprep.subr.mxu0 0.0
      %2419 = vmatpush1.msra.mxu0 0.0
      %2420 = vmatprep.subr.mxu0 0.0
      %2421 = vmatpush1.msra.mxu0 0.0
      %2422 = vmatprep.subr.mxu0 0.0
      %2423 = vmatpush1.msra.mxu0 0.0
      %2424 = vmatprep.mubr.f32.mxu0 0.0
      %2425 = vmatmul.mubr.f32.gmra.mrb[0].mxu0 %v2355
      %v2426 = vpop.f32.mrb[0].mxu0
      %v2427 = vadd.f32 0.0, %v2426
      %v2428 = vpop.f32.mrb[0].mxu0
      %2429 = vdwg.mxu0
      %v2431 = vsel %vm452, %v334, 0
      %v2434 = vsel %vm456, %v430, 0
      %2436 = vmatprep.subr.mxu0 0.0
      %2437 = vmatpush1.msra.mxu0 %v2434
      %2438 = vmatprep.subr.mxu0 0.0
      %2439 = vmatpush1.msra.mxu0 0.0
      %2440 = vmatprep.subr.mxu0 0.0
      %2441 = vmatpush1.msra.mxu0 0.0
      %2442 = vmatprep.subr.mxu0 0.0
      %2443 = vmatpush1.msra.mxu0 0.0
      %2444 = vmatprep.subr.mxu0 0.0
      %2445 = vmatpush1.msra.mxu0 0.0
      %2446 = vmatprep.subr.mxu0 0.0
      %2447 = vmatpush1.msra.mxu0 0.0
      %2448 = vmatprep.subr.mxu0 0.0
      %2449 = vmatpush1.msra.mxu0 0.0
      %2450 = vmatprep.subr.mxu0 0.0
      %2451 = vmatpush1.msra.mxu0 0.0
      %2452 = vmatprep.subr.mxu0 0.0
      %2453 = vmatpush1.msra.mxu0 0.0
      %2454 = vmatprep.subr.mxu0 0.0
      %2455 = vmatpush1.msra.mxu0 0.0
      %2456 = vmatprep.subr.mxu0 0.0
      %2457 = vmatpush1.msra.mxu0 0.0
      %2458 = vmatprep.subr.mxu0 0.0
      %2459 = vmatpush1.msra.mxu0 0.0
      %2460 = vmatprep.subr.mxu0 0.0
      %2461 = vmatpush1.msra.mxu0 0.0
      %2462 = vmatprep.subr.mxu0 0.0
      %2463 = vmatpush1.msra.mxu0 0.0
      %2464 = vmatprep.subr.mxu0 0.0
      %2465 = vmatpush1.msra.mxu0 0.0
      %2466 = vmatprep.subr.mxu0 0.0
      %2467 = vmatpush1.msra.mxu0 0.0
      %2468 = vmatprep.subr.mxu0 0.0
      %2469 = vmatpush1.msra.mxu0 0.0
      %2470 = vmatprep.subr.mxu0 0.0
      %2471 = vmatpush1.msra.mxu0 0.0
      %2472 = vmatprep.subr.mxu0 0.0
      %2473 = vmatpush1.msra.mxu0 0.0
      %2474 = vmatprep.subr.mxu0 0.0
      %2475 = vmatpush1.msra.mxu0 0.0
      %2476 = vmatprep.subr.mxu0 0.0
      %2477 = vmatpush1.msra.mxu0 0.0
      %2478 = vmatprep.subr.mxu0 0.0
      %2479 = vmatpush1.msra.mxu0 0.0
      %2480 = vmatprep.subr.mxu0 0.0
      %2481 = vmatpush1.msra.mxu0 0.0
      %2482 = vmatprep.subr.mxu0 0.0
      %2483 = vmatpush1.msra.mxu0 0.0
      %2484 = vmatprep.subr.mxu0 0.0
      %2485 = vmatpush1.msra.mxu0 0.0
      %2486 = vmatprep.subr.mxu0 0.0
      %2487 = vmatpush1.msra.mxu0 0.0
      %2488 = vmatprep.subr.mxu0 0.0
      %2489 = vmatpush1.msra.mxu0 0.0
      %2490 = vmatprep.subr.mxu0 0.0
      %2491 = vmatpush1.msra.mxu0 0.0
      %2492 = vmatprep.subr.mxu0 0.0
      %2493 = vmatpush1.msra.mxu0 0.0
      %2494 = vmatprep.subr.mxu0 0.0
      %2495 = vmatpush1.msra.mxu0 0.0
      %2496 = vmatprep.subr.mxu0 0.0
      %2497 = vmatpush1.msra.mxu0 0.0
      %2498 = vmatprep.subr.mxu0 0.0
      %2499 = vmatpush1.msra.mxu0 0.0
      %2500 = vmatprep.mubr.f32.mxu0 0.0
      %2501 = vmatmul.mubr.f32.gmra.mrb[0].mxu0 %v2431
      %v2502 = vpop.f32.mrb[0].mxu0
      %v2503 = vadd.f32 0.0, %v2502
      %v2504 = vpop.f32.mrb[0].mxu0
      %2505 = vdwg.mxu0
      %v2507 = vsel %vm452, %v335, 0
      %v2510 = vsel %vm456, %v431, 0
      %2512 = vmatprep.subr.mxu0 0.0
      %2513 = vmatpush1.msra.mxu0 %v2510
      %2514 = vmatprep.subr.mxu0 0.0
      %2515 = vmatpush1.msra.mxu0 0.0
      %2516 = vmatprep.subr.mxu0 0.0
      %2517 = vmatpush1.msra.mxu0 0.0
      %2518 = vmatprep.subr.mxu0 0.0
      %2519 = vmatpush1.msra.mxu0 0.0
      %2520 = vmatprep.subr.mxu0 0.0
      %2521 = vmatpush1.msra.mxu0 0.0
      %2522 = vmatprep.subr.mxu0 0.0
      %2523 = vmatpush1.msra.mxu0 0.0
      %2524 = vmatprep.subr.mxu0 0.0
      %2525 = vmatpush1.msra.mxu0 0.0
      %2526 = vmatprep.subr.mxu0 0.0
      %2527 = vmatpush1.msra.mxu0 0.0
      %2528 = vmatprep.subr.mxu0 0.0
      %2529 = vmatpush1.msra.mxu0 0.0
      %2530 = vmatprep.subr.mxu0 0.0
      %2531 = vmatpush1.msra.mxu0 0.0
      %2532 = vmatprep.subr.mxu0 0.0
      %2533 = vmatpush1.msra.mxu0 0.0
      %2534 = vmatprep.subr.mxu0 0.0
      %2535 = vmatpush1.msra.mxu0 0.0
      %2536 = vmatprep.subr.mxu0 0.0
      %2537 = vmatpush1.msra.mxu0 0.0
      %2538 = vmatprep.subr.mxu0 0.0
      %2539 = vmatpush1.msra.mxu0 0.0
      %2540 = vmatprep.subr.mxu0 0.0
      %2541 = vmatpush1.msra.mxu0 0.0
      %2542 = vmatprep.subr.mxu0 0.0
      %2543 = vmatpush1.msra.mxu0 0.0
      %2544 = vmatprep.subr.mxu0 0.0
      %2545 = vmatpush1.msra.mxu0 0.0
      %2546 = vmatprep.subr.mxu0 0.0
      %2547 = vmatpush1.msra.mxu0 0.0
      %2548 = vmatprep.subr.mxu0 0.0
      %2549 = vmatpush1.msra.mxu0 0.0
      %2550 = vmatprep.subr.mxu0 0.0
      %2551 = vmatpush1.msra.mxu0 0.0
      %2552 = vmatprep.subr.mxu0 0.0
      %2553 = vmatpush1.msra.mxu0 0.0
      %2554 = vmatprep.subr.mxu0 0.0
      %2555 = vmatpush1.msra.mxu0 0.0
      %2556 = vmatprep.subr.mxu0 0.0
      %2557 = vmatpush1.msra.mxu0 0.0
      %2558 = vmatprep.subr.mxu0 0.0
      %2559 = vmatpush1.msra.mxu0 0.0
      %2560 = vmatprep.subr.mxu0 0.0
      %2561 = vmatpush1.msra.mxu0 0.0
      %2562 = vmatprep.subr.mxu0 0.0
      %2563 = vmatpush1.msra.mxu0 0.0
      %2564 = vmatprep.subr.mxu0 0.0
      %2565 = vmatpush1.msra.mxu0 0.0
      %2566 = vmatprep.subr.mxu0 0.0
      %2567 = vmatpush1.msra.mxu0 0.0
      %2568 = vmatprep.subr.mxu0 0.0
      %2569 = vmatpush1.msra.mxu0 0.0
      %2570 = vmatprep.subr.mxu0 0.0
      %2571 = vmatpush1.msra.mxu0 0.0
      %2572 = vmatprep.subr.mxu0 0.0
      %2573 = vmatpush1.msra.mxu0 0.0
      %2574 = vmatprep.subr.mxu0 0.0
      %2575 = vmatpush1.msra.mxu0 0.0
      %2576 = vmatprep.mubr.f32.mxu0 0.0
      %2577 = vmatmul.mubr.f32.gmra.mrb[0].mxu0 %v2507
      %v2578 = vpop.f32.mrb[0].mxu0
      %v2579 = vadd.f32 0.0, %v2578
      %v2580 = vpop.f32.mrb[0].mxu0
      %2581 = vdwg.mxu0
      %v2583 = vsel %vm452, %v336, 0
      %v2586 = vsel %vm456, %v432, 0
      %2588 = vmatprep.subr.mxu0 0.0
      %2589 = vmatpush1.msra.mxu0 %v2586
      %2590 = vmatprep.subr.mxu0 0.0
      %2591 = vmatpush1.msra.mxu0 0.0
      %2592 = vmatprep.subr.mxu0 0.0
      %2593 = vmatpush1.msra.mxu0 0.0
      %2594 = vmatprep.subr.mxu0 0.0
      %2595 = vmatpush1.msra.mxu0 0.0
      %2596 = vmatprep.subr.mxu0 0.0
      %2597 = vmatpush1.msra.mxu0 0.0
      %2598 = vmatprep.subr.mxu0 0.0
      %2599 = vmatpush1.msra.mxu0 0.0
      %2600 = vmatprep.subr.mxu0 0.0
      %2601 = vmatpush1.msra.mxu0 0.0
      %2602 = vmatprep.subr.mxu0 0.0
      %2603 = vmatpush1.msra.mxu0 0.0
      %2604 = vmatprep.subr.mxu0 0.0
      %2605 = vmatpush1.msra.mxu0 0.0
      %2606 = vmatprep.subr.mxu0 0.0
      %2607 = vmatpush1.msra.mxu0 0.0
      %2608 = vmatprep.subr.mxu0 0.0
      %2609 = vmatpush1.msra.mxu0 0.0
      %2610 = vmatprep.subr.mxu0 0.0
      %2611 = vmatpush1.msra.mxu0 0.0
      %2612 = vmatprep.subr.mxu0 0.0
      %2613 = vmatpush1.msra.mxu0 0.0
      %2614 = vmatprep.subr.mxu0 0.0
      %2615 = vmatpush1.msra.mxu0 0.0
      %2616 = vmatprep.subr.mxu0 0.0
      %2617 = vmatpush1.msra.mxu0 0.0
      %2618 = vmatprep.subr.mxu0 0.0
      %2619 = vmatpush1.msra.mxu0 0.0
      %2620 = vmatprep.subr.mxu0 0.0
      %2621 = vmatpush1.msra.mxu0 0.0
      %2622 = vmatprep.subr.mxu0 0.0
      %2623 = vmatpush1.msra.mxu0 0.0
      %2624 = vmatprep.subr.mxu0 0.0
      %2625 = vmatpush1.msra.mxu0 0.0
      %2626 = vmatprep.subr.mxu0 0.0
      %2627 = vmatpush1.msra.mxu0 0.0
      %2628 = vmatprep.subr.mxu0 0.0
      %2629 = vmatpush1.msra.mxu0 0.0
      %2630 = vmatprep.subr.mxu0 0.0
      %2631 = vmatpush1.msra.mxu0 0.0
      %2632 = vmatprep.subr.mxu0 0.0
      %2633 = vmatpush1.msra.mxu0 0.0
      %2634 = vmatprep.subr.mxu0 0.0
      %2635 = vmatpush1.msra.mxu0 0.0
      %2636 = vmatprep.subr.mxu0 0.0
      %2637 = vmatpush1.msra.mxu0 0.0
      %2638 = vmatprep.subr.mxu0 0.0
      %2639 = vmatpush1.msra.mxu0 0.0
      %2640 = vmatprep.subr.mxu0 0.0
      %2641 = vmatpush1.msra.mxu0 0.0
      %2642 = vmatprep.subr.mxu0 0.0
      %2643 = vmatpush1.msra.mxu0 0.0
      %2644 = vmatprep.subr.mxu0 0.0
      %2645 = vmatpush1.msra.mxu0 0.0
      %2646 = vmatprep.subr.mxu0 0.0
      %2647 = vmatpush1.msra.mxu0 0.0
      %2648 = vmatprep.subr.mxu0 0.0
      %2649 = vmatpush1.msra.mxu0 0.0
      %2650 = vmatprep.subr.mxu0 0.0
      %2651 = vmatpush1.msra.mxu0 0.0
      %2652 = vmatprep.mubr.f32.mxu0 0.0
      %2653 = vmatmul.mubr.f32.gmra.mrb[0].mxu0 %v2583
      %v2654 = vpop.f32.mrb[0].mxu0
      %v2655 = vadd.f32 0.0, %v2654
      %v2656 = vpop.f32.mrb[0].mxu0
      %2657 = vdwg.mxu0
      %v2659 = vsel %vm452, %v337, 0
      %v2662 = vsel %vm456, %v433, 0
      %2664 = vmatprep.subr.mxu0 0.0
      %2665 = vmatpush1.msra.mxu0 %v2662
      %2666 = vmatprep.subr.mxu0 0.0
      %2667 = vmatpush1.msra.mxu0 0.0
      %2668 = vmatprep.subr.mxu0 0.0
      %2669 = vmatpush1.msra.mxu0 0.0
      %2670 = vmatprep.subr.mxu0 0.0
      %2671 = vmatpush1.msra.mxu0 0.0
      %2672 = vmatprep.subr.mxu0 0.0
      %2673 = vmatpush1.msra.mxu0 0.0
      %2674 = vmatprep.subr.mxu0 0.0
      %2675 = vmatpush1.msra.mxu0 0.0
      %2676 = vmatprep.subr.mxu0 0.0
      %2677 = vmatpush1.msra.mxu0 0.0
      %2678 = vmatprep.subr.mxu0 0.0
      %2679 = vmatpush1.msra.mxu0 0.0
      %2680 = vmatprep.subr.mxu0 0.0
      %2681 = vmatpush1.msra.mxu0 0.0
      %2682 = vmatprep.subr.mxu0 0.0
      %2683 = vmatpush1.msra.mxu0 0.0
      %2684 = vmatprep.subr.mxu0 0.0
      %2685 = vmatpush1.msra.mxu0 0.0
      %2686 = vmatprep.subr.mxu0 0.0
      %2687 = vmatpush1.msra.mxu0 0.0
      %2688 = vmatprep.subr.mxu0 0.0
      %2689 = vmatpush1.msra.mxu0 0.0
      %2690 = vmatprep.subr.mxu0 0.0
      %2691 = vmatpush1.msra.mxu0 0.0
      %2692 = vmatprep.subr.mxu0 0.0
      %2693 = vmatpush1.msra.mxu0 0.0
      %2694 = vmatprep.subr.mxu0 0.0
      %2695 = vmatpush1.msra.mxu0 0.0
      %2696 = vmatprep.subr.mxu0 0.0
      %2697 = vmatpush1.msra.mxu0 0.0
      %2698 = vmatprep.subr.mxu0 0.0
      %2699 = vmatpush1.msra.mxu0 0.0
      %2700 = vmatprep.subr.mxu0 0.0
      %2701 = vmatpush1.msra.mxu0 0.0
      %2702 = vmatprep.subr.mxu0 0.0
      %2703 = vmatpush1.msra.mxu0 0.0
      %2704 = vmatprep.subr.mxu0 0.0
      %2705 = vmatpush1.msra.mxu0 0.0
      %2706 = vmatprep.subr.mxu0 0.0
      %2707 = vmatpush1.msra.mxu0 0.0
      %2708 = vmatprep.subr.mxu0 0.0
      %2709 = vmatpush1.msra.mxu0 0.0
      %2710 = vmatprep.subr.mxu0 0.0
      %2711 = vmatpush1.msra.mxu0 0.0
      %2712 = vmatprep.subr.mxu0 0.0
      %2713 = vmatpush1.msra.mxu0 0.0
      %2714 = vmatprep.subr.mxu0 0.0
      %2715 = vmatpush1.msra.mxu0 0.0
      %2716 = vmatprep.subr.mxu0 0.0
      %2717 = vmatpush1.msra.mxu0 0.0
      %2718 = vmatprep.subr.mxu0 0.0
      %2719 = vmatpush1.msra.mxu0 0.0
      %2720 = vmatprep.subr.mxu0 0.0
      %2721 = vmatpush1.msra.mxu0 0.0
      %2722 = vmatprep.subr.mxu0 0.0
      %2723 = vmatpush1.msra.mxu0 0.0
      %2724 = vmatprep.subr.mxu0 0.0
      %2725 = vmatpush1.msra.mxu0 0.0
      %2726 = vmatprep.subr.mxu0 0.0
      %2727 = vmatpush1.msra.mxu0 0.0
      %2728 = vmatprep.mubr.f32.mxu0 0.0
      %2729 = vmatmul.mubr.f32.gmra.mrb[0].mxu0 %v2659
      %v2730 = vpop.f32.mrb[0].mxu0
      %v2731 = vadd.f32 0.0, %v2730
      %v2732 = vpop.f32.mrb[0].mxu0
      %2733 = vdwg.mxu0
      %v2735 = vsel %vm452, %v338, 0
      %v2738 = vsel %vm456, %v434, 0
      %2740 = vmatprep.subr.mxu0 0.0
      %2741 = vmatpush1.msra.mxu0 %v2738
      %2742 = vmatprep.subr.mxu0 0.0
      %2743 = vmatpush1.msra.mxu0 0.0
      %2744 = vmatprep.subr.mxu0 0.0
      %2745 = vmatpush1.msra.mxu0 0.0
      %2746 = vmatprep.subr.mxu0 0.0
      %2747 = vmatpush1.msra.mxu0 0.0
      %2748 = vmatprep.subr.mxu0 0.0
      %2749 = vmatpush1.msra.mxu0 0.0
      %2750 = vmatprep.subr.mxu0 0.0
      %2751 = vmatpush1.msra.mxu0 0.0
      %2752 = vmatprep.subr.mxu0 0.0
      %2753 = vmatpush1.msra.mxu0 0.0
      %2754 = vmatprep.subr.mxu0 0.0
      %2755 = vmatpush1.msra.mxu0 0.0
      %2756 = vmatprep.subr.mxu0 0.0
      %2757 = vmatpush1.msra.mxu0 0.0
      %2758 = vmatprep.subr.mxu0 0.0
      %2759 = vmatpush1.msra.mxu0 0.0
      %2760 = vmatprep.subr.mxu0 0.0
      %2761 = vmatpush1.msra.mxu0 0.0
      %2762 = vmatprep.subr.mxu0 0.0
      %2763 = vmatpush1.msra.mxu0 0.0
      %2764 = vmatprep.subr.mxu0 0.0
      %2765 = vmatpush1.msra.mxu0 0.0
      %2766 = vmatprep.subr.mxu0 0.0
      %2767 = vmatpush1.msra.mxu0 0.0
      %2768 = vmatprep.subr.mxu0 0.0
      %2769 = vmatpush1.msra.mxu0 0.0
      %2770 = vmatprep.subr.mxu0 0.0
      %2771 = vmatpush1.msra.mxu0 0.0
      %2772 = vmatprep.subr.mxu0 0.0
      %2773 = vmatpush1.msra.mxu0 0.0
      %2774 = vmatprep.subr.mxu0 0.0
      %2775 = vmatpush1.msra.mxu0 0.0
      %2776 = vmatprep.subr.mxu0 0.0
      %2777 = vmatpush1.msra.mxu0 0.0
      %2778 = vmatprep.subr.mxu0 0.0
      %2779 = vmatpush1.msra.mxu0 0.0
      %2780 = vmatprep.subr.mxu0 0.0
      %2781 = vmatpush1.msra.mxu0 0.0
      %2782 = vmatprep.subr.mxu0 0.0
      %2783 = vmatpush1.msra.mxu0 0.0
      %2784 = vmatprep.subr.mxu0 0.0
      %2785 = vmatpush1.msra.mxu0 0.0
      %2786 = vmatprep.subr.mxu0 0.0
      %2787 = vmatpush1.msra.mxu0 0.0
      %2788 = vmatprep.subr.mxu0 0.0
      %2789 = vmatpush1.msra.mxu0 0.0
      %2790 = vmatprep.subr.mxu0 0.0
      %2791 = vmatpush1.msra.mxu0 0.0
      %2792 = vmatprep.subr.mxu0 0.0
      %2793 = vmatpush1.msra.mxu0 0.0
      %2794 = vmatprep.subr.mxu0 0.0
      %2795 = vmatpush1.msra.mxu0 0.0
      %2796 = vmatprep.subr.mxu0 0.0
      %2797 = vmatpush1.msra.mxu0 0.0
      %2798 = vmatprep.subr.mxu0 0.0
      %2799 = vmatpush1.msra.mxu0 0.0
      %2800 = vmatprep.subr.mxu0 0.0
      %2801 = vmatpush1.msra.mxu0 0.0
      %2802 = vmatprep.subr.mxu0 0.0
      %2803 = vmatpush1.msra.mxu0 0.0
      %2804 = vmatprep.mubr.f32.mxu0 0.0
      %2805 = vmatmul.mubr.f32.gmra.mrb[0].mxu0 %v2735
      %v2806 = vpop.f32.mrb[0].mxu0
      %v2807 = vadd.f32 0.0, %v2806
      %v2808 = vpop.f32.mrb[0].mxu0
      %2809 = vdwg.mxu0
      %v2811 = vsel %vm452, %v339, 0
      %v2814 = vsel %vm456, %v435, 0
      %2816 = vmatprep.subr.mxu0 0.0
      %2817 = vmatpush1.msra.mxu0 %v2814
      %2818 = vmatprep.subr.mxu0 0.0
      %2819 = vmatpush1.msra.mxu0 0.0
      %2820 = vmatprep.subr.mxu0 0.0
      %2821 = vmatpush1.msra.mxu0 0.0
      %2822 = vmatprep.subr.mxu0 0.0
      %2823 = vmatpush1.msra.mxu0 0.0
      %2824 = vmatprep.subr.mxu0 0.0
      %2825 = vmatpush1.msra.mxu0 0.0
      %2826 = vmatprep.subr.mxu0 0.0
      %2827 = vmatpush1.msra.mxu0 0.0
      %2828 = vmatprep.subr.mxu0 0.0
      %2829 = vmatpush1.msra.mxu0 0.0
      %2830 = vmatprep.subr.mxu0 0.0
      %2831 = vmatpush1.msra.mxu0 0.0
      %2832 = vmatprep.subr.mxu0 0.0
      %2833 = vmatpush1.msra.mxu0 0.0
      %2834 = vmatprep.subr.mxu0 0.0
      %2835 = vmatpush1.msra.mxu0 0.0
      %2836 = vmatprep.subr.mxu0 0.0
      %2837 = vmatpush1.msra.mxu0 0.0
      %2838 = vmatprep.subr.mxu0 0.0
      %2839 = vmatpush1.msra.mxu0 0.0
      %2840 = vmatprep.subr.mxu0 0.0
      %2841 = vmatpush1.msra.mxu0 0.0
      %2842 = vmatprep.subr.mxu0 0.0
      %2843 = vmatpush1.msra.mxu0 0.0
      %2844 = vmatprep.subr.mxu0 0.0
      %2845 = vmatpush1.msra.mxu0 0.0
      %2846 = vmatprep.subr.mxu0 0.0
      %2847 = vmatpush1.msra.mxu0 0.0
      %2848 = vmatprep.subr.mxu0 0.0
      %2849 = vmatpush1.msra.mxu0 0.0
      %2850 = vmatprep.subr.mxu0 0.0
      %2851 = vmatpush1.msra.mxu0 0.0
      %2852 = vmatprep.subr.mxu0 0.0
      %2853 = vmatpush1.msra.mxu0 0.0
      %2854 = vmatprep.subr.mxu0 0.0
      %2855 = vmatpush1.msra.mxu0 0.0
      %2856 = vmatprep.subr.mxu0 0.0
      %2857 = vmatpush1.msra.mxu0 0.0
      %2858 = vmatprep.subr.mxu0 0.0
      %2859 = vmatpush1.msra.mxu0 0.0
      %2860 = vmatprep.subr.mxu0 0.0
      %2861 = vmatpush1.msra.mxu0 0.0
      %2862 = vmatprep.subr.mxu0 0.0
      %2863 = vmatpush1.msra.mxu0 0.0
      %2864 = vmatprep.subr.mxu0 0.0
      %2865 = vmatpush1.msra.mxu0 0.0
      %2866 = vmatprep.subr.mxu0 0.0
      %2867 = vmatpush1.msra.mxu0 0.0
      %2868 = vmatprep.subr.mxu0 0.0
      %2869 = vmatpush1.msra.mxu0 0.0
      %2870 = vmatprep.subr.mxu0 0.0
      %2871 = vmatpush1.msra.mxu0 0.0
      %2872 = vmatprep.subr.mxu0 0.0
      %2873 = vmatpush1.msra.mxu0 0.0
      %2874 = vmatprep.subr.mxu0 0.0
      %2875 = vmatpush1.msra.mxu0 0.0
      %2876 = vmatprep.subr.mxu0 0.0
      %2877 = vmatpush1.msra.mxu0 0.0
      %2878 = vmatprep.subr.mxu0 0.0
      %2879 = vmatpush1.msra.mxu0 0.0
      %2880 = vmatprep.mubr.f32.mxu0 0.0
      %2881 = vmatmul.mubr.f32.gmra.mrb[0].mxu0 %v2811
      %v2882 = vpop.f32.mrb[0].mxu0
      %v2883 = vadd.f32 0.0, %v2882
      %v2884 = vpop.f32.mrb[0].mxu0
      %2885 = vdwg.mxu0
      %v2887 = vsel %vm452, %v340, 0
      %v2890 = vsel %vm456, %v436, 0
      %2892 = vmatprep.subr.mxu0 0.0
      %2893 = vmatpush1.msra.mxu0 %v2890
      %2894 = vmatprep.subr.mxu0 0.0
      %2895 = vmatpush1.msra.mxu0 0.0
      %2896 = vmatprep.subr.mxu0 0.0
      %2897 = vmatpush1.msra.mxu0 0.0
      %2898 = vmatprep.subr.mxu0 0.0
      %2899 = vmatpush1.msra.mxu0 0.0
      %2900 = vmatprep.subr.mxu0 0.0
      %2901 = vmatpush1.msra.mxu0 0.0
      %2902 = vmatprep.subr.mxu0 0.0
      %2903 = vmatpush1.msra.mxu0 0.0
      %2904 = vmatprep.subr.mxu0 0.0
      %2905 = vmatpush1.msra.mxu0 0.0
      %2906 = vmatprep.subr.mxu0 0.0
      %2907 = vmatpush1.msra.mxu0 0.0
      %2908 = vmatprep.subr.mxu0 0.0
      %2909 = vmatpush1.msra.mxu0 0.0
      %2910 = vmatprep.subr.mxu0 0.0
      %2911 = vmatpush1.msra.mxu0 0.0
      %2912 = vmatprep.subr.mxu0 0.0
      %2913 = vmatpush1.msra.mxu0 0.0
      %2914 = vmatprep.subr.mxu0 0.0
      %2915 = vmatpush1.msra.mxu0 0.0
      %2916 = vmatprep.subr.mxu0 0.0
      %2917 = vmatpush1.msra.mxu0 0.0
      %2918 = vmatprep.subr.mxu0 0.0
      %2919 = vmatpush1.msra.mxu0 0.0
      %2920 = vmatprep.subr.mxu0 0.0
      %2921 = vmatpush1.msra.mxu0 0.0
      %2922 = vmatprep.subr.mxu0 0.0
      %2923 = vmatpush1.msra.mxu0 0.0
      %2924 = vmatprep.subr.mxu0 0.0
      %2925 = vmatpush1.msra.mxu0 0.0
      %2926 = vmatprep.subr.mxu0 0.0
      %2927 = vmatpush1.msra.mxu0 0.0
      %2928 = vmatprep.subr.mxu0 0.0
      %2929 = vmatpush1.msra.mxu0 0.0
      %2930 = vmatprep.subr.mxu0 0.0
      %2931 = vmatpush1.msra.mxu0 0.0
      %2932 = vmatprep.subr.mxu0 0.0
      %2933 = vmatpush1.msra.mxu0 0.0
      %2934 = vmatprep.subr.mxu0 0.0
      %2935 = vmatpush1.msra.mxu0 0.0
      %2936 = vmatprep.subr.mxu0 0.0
      %2937 = vmatpush1.msra.mxu0 0.0
      %2938 = vmatprep.subr.mxu0 0.0
      %2939 = vmatpush1.msra.mxu0 0.0
      %2940 = vmatprep.subr.mxu0 0.0
      %2941 = vmatpush1.msra.mxu0 0.0
      %2942 = vmatprep.subr.mxu0 0.0
      %2943 = vmatpush1.msra.mxu0 0.0
      %2944 = vmatprep.subr.mxu0 0.0
      %2945 = vmatpush1.msra.mxu0 0.0
      %2946 = vmatprep.subr.mxu0 0.0
      %2947 = vmatpush1.msra.mxu0 0.0
      %2948 = vmatprep.subr.mxu0 0.0
      %2949 = vmatpush1.msra.mxu0 0.0
      %2950 = vmatprep.subr.mxu0 0.0
      %2951 = vmatpush1.msra.mxu0 0.0
      %2952 = vmatprep.subr.mxu0 0.0
      %2953 = vmatpush1.msra.mxu0 0.0
      %2954 = vmatprep.subr.mxu0 0.0
      %2955 = vmatpush1.msra.mxu0 0.0
      %2956 = vmatprep.mubr.f32.mxu0 0.0
      %2957 = vmatmul.mubr.f32.gmra.mrb[0].mxu0 %v2887
      %v2958 = vpop.f32.mrb[0].mxu0
      %v2959 = vadd.f32 0.0, %v2958
      %v2960 = vpop.f32.mrb[0].mxu0
      %2961 = vdwg.mxu0
      %v2963 = vsel %vm452, %v341, 0
      %v2966 = vsel %vm456, %v437, 0
      %2968 = vmatprep.subr.mxu0 0.0
      %2969 = vmatpush1.msra.mxu0 %v2966
      %2970 = vmatprep.subr.mxu0 0.0
      %2971 = vmatpush1.msra.mxu0 0.0
      %2972 = vmatprep.subr.mxu0 0.0
      %2973 = vmatpush1.msra.mxu0 0.0
      %2974 = vmatprep.subr.mxu0 0.0
      %2975 = vmatpush1.msra.mxu0 0.0
      %2976 = vmatprep.subr.mxu0 0.0
      %2977 = vmatpush1.msra.mxu0 0.0
      %2978 = vmatprep.subr.mxu0 0.0
      %2979 = vmatpush1.msra.mxu0 0.0
      %2980 = vmatprep.subr.mxu0 0.0
      %2981 = vmatpush1.msra.mxu0 0.0
      %2982 = vmatprep.subr.mxu0 0.0
      %2983 = vmatpush1.msra.mxu0 0.0
      %2984 = vmatprep.subr.mxu0 0.0
      %2985 = vmatpush1.msra.mxu0 0.0
      %2986 = vmatprep.subr.mxu0 0.0
      %2987 = vmatpush1.msra.mxu0 0.0
      %2988 = vmatprep.subr.mxu0 0.0
      %2989 = vmatpush1.msra.mxu0 0.0
      %2990 = vmatprep.subr.mxu0 0.0
      %2991 = vmatpush1.msra.mxu0 0.0
      %2992 = vmatprep.subr.mxu0 0.0
      %2993 = vmatpush1.msra.mxu0 0.0
      %2994 = vmatprep.subr.mxu0 0.0
      %2995 = vmatpush1.msra.mxu0 0.0
      %2996 = vmatprep.subr.mxu0 0.0
      %2997 = vmatpush1.msra.mxu0 0.0
      %2998 = vmatprep.subr.mxu0 0.0
      %2999 = vmatpush1.msra.mxu0 0.0
      %3000 = vmatprep.subr.mxu0 0.0
      %3001 = vmatpush1.msra.mxu0 0.0
      %3002 = vmatprep.subr.mxu0 0.0
      %3003 = vmatpush1.msra.mxu0 0.0
      %3004 = vmatprep.subr.mxu0 0.0
      %3005 = vmatpush1.msra.mxu0 0.0
      %3006 = vmatprep.subr.mxu0 0.0
      %3007 = vmatpush1.msra.mxu0 0.0
      %3008 = vmatprep.subr.mxu0 0.0
      %3009 = vmatpush1.msra.mxu0 0.0
      %3010 = vmatprep.subr.mxu0 0.0
      %3011 = vmatpush1.msra.mxu0 0.0
      %3012 = vmatprep.subr.mxu0 0.0
      %3013 = vmatpush1.msra.mxu0 0.0
      %3014 = vmatprep.subr.mxu0 0.0
      %3015 = vmatpush1.msra.mxu0 0.0
      %3016 = vmatprep.subr.mxu0 0.0
      %3017 = vmatpush1.msra.mxu0 0.0
      %3018 = vmatprep.subr.mxu0 0.0
      %3019 = vmatpush1.msra.mxu0 0.0
      %3020 = vmatprep.subr.mxu0 0.0
      %3021 = vmatpush1.msra.mxu0 0.0
      %3022 = vmatprep.subr.mxu0 0.0
      %3023 = vmatpush1.msra.mxu0 0.0
      %3024 = vmatprep.subr.mxu0 0.0
      %3025 = vmatpush1.msra.mxu0 0.0
      %3026 = vmatprep.subr.mxu0 0.0
      %3027 = vmatpush1.msra.mxu0 0.0
      %3028 = vmatprep.subr.mxu0 0.0
      %3029 = vmatpush1.msra.mxu0 0.0
      %3030 = vmatprep.subr.mxu0 0.0
      %3031 = vmatpush1.msra.mxu0 0.0
      %3032 = vmatprep.mubr.f32.mxu0 0.0
      %3033 = vmatmul.mubr.f32.gmra.mrb[0].mxu0 %v2963
      %v3034 = vpop.f32.mrb[0].mxu0
      %v3035 = vadd.f32 0.0, %v3034
      %v3036 = vpop.f32.mrb[0].mxu0
      %3037 = vdwg.mxu0
      %v3039 = vsel %vm452, %v342, 0
      %v3042 = vsel %vm456, %v438, 0
      %3044 = vmatprep.subr.mxu0 0.0
      %3045 = vmatpush1.msra.mxu0 %v3042
      %3046 = vmatprep.subr.mxu0 0.0
      %3047 = vmatpush1.msra.mxu0 0.0
      %3048 = vmatprep.subr.mxu0 0.0
      %3049 = vmatpush1.msra.mxu0 0.0
      %3050 = vmatprep.subr.mxu0 0.0
      %3051 = vmatpush1.msra.mxu0 0.0
      %3052 = vmatprep.subr.mxu0 0.0
      %3053 = vmatpush1.msra.mxu0 0.0
      %3054 = vmatprep.subr.mxu0 0.0
      %3055 = vmatpush1.msra.mxu0 0.0
      %3056 = vmatprep.subr.mxu0 0.0
      %3057 = vmatpush1.msra.mxu0 0.0
      %3058 = vmatprep.subr.mxu0 0.0
      %3059 = vmatpush1.msra.mxu0 0.0
      %3060 = vmatprep.subr.mxu0 0.0
      %3061 = vmatpush1.msra.mxu0 0.0
      %3062 = vmatprep.subr.mxu0 0.0
      %3063 = vmatpush1.msra.mxu0 0.0
      %3064 = vmatprep.subr.mxu0 0.0
      %3065 = vmatpush1.msra.mxu0 0.0
      %3066 = vmatprep.subr.mxu0 0.0
      %3067 = vmatpush1.msra.mxu0 0.0
      %3068 = vmatprep.subr.mxu0 0.0
      %3069 = vmatpush1.msra.mxu0 0.0
      %3070 = vmatprep.subr.mxu0 0.0
      %3071 = vmatpush1.msra.mxu0 0.0
      %3072 = vmatprep.subr.mxu0 0.0
      %3073 = vmatpush1.msra.mxu0 0.0
      %3074 = vmatprep.subr.mxu0 0.0
      %3075 = vmatpush1.msra.mxu0 0.0
      %3076 = vmatprep.subr.mxu0 0.0
      %3077 = vmatpush1.msra.mxu0 0.0
      %3078 = vmatprep.subr.mxu0 0.0
      %3079 = vmatpush1.msra.mxu0 0.0
      %3080 = vmatprep.subr.mxu0 0.0
      %3081 = vmatpush1.msra.mxu0 0.0
      %3082 = vmatprep.subr.mxu0 0.0
      %3083 = vmatpush1.msra.mxu0 0.0
      %3084 = vmatprep.subr.mxu0 0.0
      %3085 = vmatpush1.msra.mxu0 0.0
      %3086 = vmatprep.subr.mxu0 0.0
      %3087 = vmatpush1.msra.mxu0 0.0
      %3088 = vmatprep.subr.mxu0 0.0
      %3089 = vmatpush1.msra.mxu0 0.0
      %3090 = vmatprep.subr.mxu0 0.0
      %3091 = vmatpush1.msra.mxu0 0.0
      %3092 = vmatprep.subr.mxu0 0.0
      %3093 = vmatpush1.msra.mxu0 0.0
      %3094 = vmatprep.subr.mxu0 0.0
      %3095 = vmatpush1.msra.mxu0 0.0
      %3096 = vmatprep.subr.mxu0 0.0
      %3097 = vmatpush1.msra.mxu0 0.0
      %3098 = vmatprep.subr.mxu0 0.0
      %3099 = vmatpush1.msra.mxu0 0.0
      %3100 = vmatprep.subr.mxu0 0.0
      %3101 = vmatpush1.msra.mxu0 0.0
      %3102 = vmatprep.subr.mxu0 0.0
      %3103 = vmatpush1.msra.mxu0 0.0
      %3104 = vmatprep.subr.mxu0 0.0
      %3105 = vmatpush1.msra.mxu0 0.0
      %3106 = vmatprep.subr.mxu0 0.0
      %3107 = vmatpush1.msra.mxu0 0.0
      %3108 = vmatprep.mubr.f32.mxu0 0.0
      %3109 = vmatmul.mubr.f32.gmra.mrb[0].mxu0 %v3039
      %v3110 = vpop.f32.mrb[0].mxu0
      %v3111 = vadd.f32 0.0, %v3110
      %v3112 = vpop.f32.mrb[0].mxu0
      %3113 = vdwg.mxu0
      %v3115 = vsel %vm452, %v343, 0
      %v3118 = vsel %vm456, %v439, 0
      %3120 = vmatprep.subr.mxu0 0.0
      %3121 = vmatpush1.msra.mxu0 %v3118
      %3122 = vmatprep.subr.mxu0 0.0
      %3123 = vmatpush1.msra.mxu0 0.0
      %3124 = vmatprep.subr.mxu0 0.0
      %3125 = vmatpush1.msra.mxu0 0.0
      %3126 = vmatprep.subr.mxu0 0.0
      %3127 = vmatpush1.msra.mxu0 0.0
      %3128 = vmatprep.subr.mxu0 0.0
      %3129 = vmatpush1.msra.mxu0 0.0
      %3130 = vmatprep.subr.mxu0 0.0
      %3131 = vmatpush1.msra.mxu0 0.0
      %3132 = vmatprep.subr.mxu0 0.0
      %3133 = vmatpush1.msra.mxu0 0.0
      %3134 = vmatprep.subr.mxu0 0.0
      %3135 = vmatpush1.msra.mxu0 0.0
      %3136 = vmatprep.subr.mxu0 0.0
      %3137 = vmatpush1.msra.mxu0 0.0
      %3138 = vmatprep.subr.mxu0 0.0
      %3139 = vmatpush1.msra.mxu0 0.0
      %3140 = vmatprep.subr.mxu0 0.0
      %3141 = vmatpush1.msra.mxu0 0.0
      %3142 = vmatprep.subr.mxu0 0.0
      %3143 = vmatpush1.msra.mxu0 0.0
      %3144 = vmatprep.subr.mxu0 0.0
      %3145 = vmatpush1.msra.mxu0 0.0
      %3146 = vmatprep.subr.mxu0 0.0
      %3147 = vmatpush1.msra.mxu0 0.0
      %3148 = vmatprep.subr.mxu0 0.0
      %3149 = vmatpush1.msra.mxu0 0.0
      %3150 = vmatprep.subr.mxu0 0.0
      %3151 = vmatpush1.msra.mxu0 0.0
      %3152 = vmatprep.subr.mxu0 0.0
      %3153 = vmatpush1.msra.mxu0 0.0
      %3154 = vmatprep.subr.mxu0 0.0
      %3155 = vmatpush1.msra.mxu0 0.0
      %3156 = vmatprep.subr.mxu0 0.0
      %3157 = vmatpush1.msra.mxu0 0.0
      %3158 = vmatprep.subr.mxu0 0.0
      %3159 = vmatpush1.msra.mxu0 0.0
      %3160 = vmatprep.subr.mxu0 0.0
      %3161 = vmatpush1.msra.mxu0 0.0
      %3162 = vmatprep.subr.mxu0 0.0
      %3163 = vmatpush1.msra.mxu0 0.0
      %3164 = vmatprep.subr.mxu0 0.0
      %3165 = vmatpush1.msra.mxu0 0.0
      %3166 = vmatprep.subr.mxu0 0.0
      %3167 = vmatpush1.msra.mxu0 0.0
      %3168 = vmatprep.subr.mxu0 0.0
      %3169 = vmatpush1.msra.mxu0 0.0
      %3170 = vmatprep.subr.mxu0 0.0
      %3171 = vmatpush1.msra.mxu0 0.0
      %3172 = vmatprep.subr.mxu0 0.0
      %3173 = vmatpush1.msra.mxu0 0.0
      %3174 = vmatprep.subr.mxu0 0.0
      %3175 = vmatpush1.msra.mxu0 0.0
      %3176 = vmatprep.subr.mxu0 0.0
      %3177 = vmatpush1.msra.mxu0 0.0
      %3178 = vmatprep.subr.mxu0 0.0
      %3179 = vmatpush1.msra.mxu0 0.0
      %3180 = vmatprep.subr.mxu0 0.0
      %3181 = vmatpush1.msra.mxu0 0.0
      %3182 = vmatprep.subr.mxu0 0.0
      %3183 = vmatpush1.msra.mxu0 0.0
      %3184 = vmatprep.mubr.f32.mxu0 0.0
      %3185 = vmatmul.mubr.f32.gmra.mrb[0].mxu0 %v3115
      %v3186 = vpop.f32.mrb[0].mxu0
      %v3187 = vadd.f32 0.0, %v3186
      %v3188 = vpop.f32.mrb[0].mxu0
      %3189 = vdwg.mxu0
      %v3191 = vsel %vm452, %v344, 0
      %v3194 = vsel %vm456, %v440, 0
      %3196 = vmatprep.subr.mxu0 0.0
      %3197 = vmatpush1.msra.mxu0 %v3194
      %3198 = vmatprep.subr.mxu0 0.0
      %3199 = vmatpush1.msra.mxu0 0.0
      %3200 = vmatprep.subr.mxu0 0.0
      %3201 = vmatpush1.msra.mxu0 0.0
      %3202 = vmatprep.subr.mxu0 0.0
      %3203 = vmatpush1.msra.mxu0 0.0
      %3204 = vmatprep.subr.mxu0 0.0
      %3205 = vmatpush1.msra.mxu0 0.0
      %3206 = vmatprep.subr.mxu0 0.0
      %3207 = vmatpush1.msra.mxu0 0.0
      %3208 = vmatprep.subr.mxu0 0.0
      %3209 = vmatpush1.msra.mxu0 0.0
      %3210 = vmatprep.subr.mxu0 0.0
      %3211 = vmatpush1.msra.mxu0 0.0
      %3212 = vmatprep.subr.mxu0 0.0
      %3213 = vmatpush1.msra.mxu0 0.0
      %3214 = vmatprep.subr.mxu0 0.0
      %3215 = vmatpush1.msra.mxu0 0.0
      %3216 = vmatprep.subr.mxu0 0.0
      %3217 = vmatpush1.msra.mxu0 0.0
      %3218 = vmatprep.subr.mxu0 0.0
      %3219 = vmatpush1.msra.mxu0 0.0
      %3220 = vmatprep.subr.mxu0 0.0
      %3221 = vmatpush1.msra.mxu0 0.0
      %3222 = vmatprep.subr.mxu0 0.0
      %3223 = vmatpush1.msra.mxu0 0.0
      %3224 = vmatprep.subr.mxu0 0.0
      %3225 = vmatpush1.msra.mxu0 0.0
      %3226 = vmatprep.subr.mxu0 0.0
      %3227 = vmatpush1.msra.mxu0 0.0
      %3228 = vmatprep.subr.mxu0 0.0
      %3229 = vmatpush1.msra.mxu0 0.0
      %3230 = vmatprep.subr.mxu0 0.0
      %3231 = vmatpush1.msra.mxu0 0.0
      %3232 = vmatprep.subr.mxu0 0.0
      %3233 = vmatpush1.msra.mxu0 0.0
      %3234 = vmatprep.subr.mxu0 0.0
      %3235 = vmatpush1.msra.mxu0 0.0
      %3236 = vmatprep.subr.mxu0 0.0
      %3237 = vmatpush1.msra.mxu0 0.0
      %3238 = vmatprep.subr.mxu0 0.0
      %3239 = vmatpush1.msra.mxu0 0.0
      %3240 = vmatprep.subr.mxu0 0.0
      %3241 = vmatpush1.msra.mxu0 0.0
      %3242 = vmatprep.subr.mxu0 0.0
      %3243 = vmatpush1.msra.mxu0 0.0
      %3244 = vmatprep.subr.mxu0 0.0
      %3245 = vmatpush1.msra.mxu0 0.0
      %3246 = vmatprep.subr.mxu0 0.0
      %3247 = vmatpush1.msra.mxu0 0.0
      %3248 = vmatprep.subr.mxu0 0.0
      %3249 = vmatpush1.msra.mxu0 0.0
      %3250 = vmatprep.subr.mxu0 0.0
      %3251 = vmatpush1.msra.mxu0 0.0
      %3252 = vmatprep.subr.mxu0 0.0
      %3253 = vmatpush1.msra.mxu0 0.0
      %3254 = vmatprep.subr.mxu0 0.0
      %3255 = vmatpush1.msra.mxu0 0.0
      %3256 = vmatprep.subr.mxu0 0.0
      %3257 = vmatpush1.msra.mxu0 0.0
      %3258 = vmatprep.subr.mxu0 0.0
      %3259 = vmatpush1.msra.mxu0 0.0
      %3260 = vmatprep.mubr.f32.mxu0 0.0
      %3261 = vmatmul.mubr.f32.gmra.mrb[0].mxu0 %v3191
      %v3262 = vpop.f32.mrb[0].mxu0
      %v3263 = vadd.f32 0.0, %v3262
      %v3264 = vpop.f32.mrb[0].mxu0
      %3265 = vdwg.mxu0
      %v3267 = vsel %vm452, %v345, 0
      %v3270 = vsel %vm456, %v441, 0
      %3272 = vmatprep.subr.mxu0 0.0
      %3273 = vmatpush1.msra.mxu0 %v3270
      %3274 = vmatprep.subr.mxu0 0.0
      %3275 = vmatpush1.msra.mxu0 0.0
      %3276 = vmatprep.subr.mxu0 0.0
      %3277 = vmatpush1.msra.mxu0 0.0
      %3278 = vmatprep.subr.mxu0 0.0
      %3279 = vmatpush1.msra.mxu0 0.0
      %3280 = vmatprep.subr.mxu0 0.0
      %3281 = vmatpush1.msra.mxu0 0.0
      %3282 = vmatprep.subr.mxu0 0.0
      %3283 = vmatpush1.msra.mxu0 0.0
      %3284 = vmatprep.subr.mxu0 0.0
      %3285 = vmatpush1.msra.mxu0 0.0
      %3286 = vmatprep.subr.mxu0 0.0
      %3287 = vmatpush1.msra.mxu0 0.0
      %3288 = vmatprep.subr.mxu0 0.0
      %3289 = vmatpush1.msra.mxu0 0.0
      %3290 = vmatprep.subr.mxu0 0.0
      %3291 = vmatpush1.msra.mxu0 0.0
      %3292 = vmatprep.subr.mxu0 0.0
      %3293 = vmatpush1.msra.mxu0 0.0
      %3294 = vmatprep.subr.mxu0 0.0
      %3295 = vmatpush1.msra.mxu0 0.0
      %3296 = vmatprep.subr.mxu0 0.0
      %3297 = vmatpush1.msra.mxu0 0.0
      %3298 = vmatprep.subr.mxu0 0.0
      %3299 = vmatpush1.msra.mxu0 0.0
      %3300 = vmatprep.subr.mxu0 0.0
      %3301 = vmatpush1.msra.mxu0 0.0
      %3302 = vmatprep.subr.mxu0 0.0
      %3303 = vmatpush1.msra.mxu0 0.0
      %3304 = vmatprep.subr.mxu0 0.0
      %3305 = vmatpush1.msra.mxu0 0.0
      %3306 = vmatprep.subr.mxu0 0.0
      %3307 = vmatpush1.msra.mxu0 0.0
      %3308 = vmatprep.subr.mxu0 0.0
      %3309 = vmatpush1.msra.mxu0 0.0
      %3310 = vmatprep.subr.mxu0 0.0
      %3311 = vmatpush1.msra.mxu0 0.0
      %3312 = vmatprep.subr.mxu0 0.0
      %3313 = vmatpush1.msra.mxu0 0.0
      %3314 = vmatprep.subr.mxu0 0.0
      %3315 = vmatpush1.msra.mxu0 0.0
      %3316 = vmatprep.subr.mxu0 0.0
      %3317 = vmatpush1.msra.mxu0 0.0
      %3318 = vmatprep.subr.mxu0 0.0
      %3319 = vmatpush1.msra.mxu0 0.0
      %3320 = vmatprep.subr.mxu0 0.0
      %3321 = vmatpush1.msra.mxu0 0.0
      %3322 = vmatprep.subr.mxu0 0.0
      %3323 = vmatpush1.msra.mxu0 0.0
      %3324 = vmatprep.subr.mxu0 0.0
      %3325 = vmatpush1.msra.mxu0 0.0
      %3326 = vmatprep.subr.mxu0 0.0
      %3327 = vmatpush1.msra.mxu0 0.0
      %3328 = vmatprep.subr.mxu0 0.0
      %3329 = vmatpush1.msra.mxu0 0.0
      %3330 = vmatprep.subr.mxu0 0.0
      %3331 = vmatpush1.msra.mxu0 0.0
      %3332 = vmatprep.subr.mxu0 0.0
      %3333 = vmatpush1.msra.mxu0 0.0
      %3334 = vmatprep.subr.mxu0 0.0
      %3335 = vmatpush1.msra.mxu0 0.0
      %3336 = vmatprep.mubr.f32.mxu0 0.0
      %3337 = vmatmul.mubr.f32.gmra.mrb[0].mxu0 %v3267
      %v3338 = vpop.f32.mrb[0].mxu0
      %v3339 = vadd.f32 0.0, %v3338
      %v3340 = vpop.f32.mrb[0].mxu0
      %3341 = vdwg.mxu0
      %v3343 = vsel %vm452, %v346, 0
      %v3346 = vsel %vm456, %v442, 0
      %3348 = vmatprep.subr.mxu0 0.0
      %3349 = vmatpush1.msra.mxu0 %v3346
      %3350 = vmatprep.subr.mxu0 0.0
      %3351 = vmatpush1.msra.mxu0 0.0
      %3352 = vmatprep.subr.mxu0 0.0
      %3353 = vmatpush1.msra.mxu0 0.0
      %3354 = vmatprep.subr.mxu0 0.0
      %3355 = vmatpush1.msra.mxu0 0.0
      %3356 = vmatprep.subr.mxu0 0.0
      %3357 = vmatpush1.msra.mxu0 0.0
      %3358 = vmatprep.subr.mxu0 0.0
      %3359 = vmatpush1.msra.mxu0 0.0
      %3360 = vmatprep.subr.mxu0 0.0
      %3361 = vmatpush1.msra.mxu0 0.0
      %3362 = vmatprep.subr.mxu0 0.0
      %3363 = vmatpush1.msra.mxu0 0.0
      %3364 = vmatprep.subr.mxu0 0.0
      %3365 = vmatpush1.msra.mxu0 0.0
      %3366 = vmatprep.subr.mxu0 0.0
      %3367 = vmatpush1.msra.mxu0 0.0
      %3368 = vmatprep.subr.mxu0 0.0
      %3369 = vmatpush1.msra.mxu0 0.0
      %3370 = vmatprep.subr.mxu0 0.0
      %3371 = vmatpush1.msra.mxu0 0.0
      %3372 = vmatprep.subr.mxu0 0.0
      %3373 = vmatpush1.msra.mxu0 0.0
      %3374 = vmatprep.subr.mxu0 0.0
      %3375 = vmatpush1.msra.mxu0 0.0
      %3376 = vmatprep.subr.mxu0 0.0
      %3377 = vmatpush1.msra.mxu0 0.0
      %3378 = vmatprep.subr.mxu0 0.0
      %3379 = vmatpush1.msra.mxu0 0.0
      %3380 = vmatprep.subr.mxu0 0.0
      %3381 = vmatpush1.msra.mxu0 0.0
      %3382 = vmatprep.subr.mxu0 0.0
      %3383 = vmatpush1.msra.mxu0 0.0
      %3384 = vmatprep.subr.mxu0 0.0
      %3385 = vmatpush1.msra.mxu0 0.0
      %3386 = vmatprep.subr.mxu0 0.0
      %3387 = vmatpush1.msra.mxu0 0.0
      %3388 = vmatprep.subr.mxu0 0.0
      %3389 = vmatpush1.msra.mxu0 0.0
      %3390 = vmatprep.subr.mxu0 0.0
      %3391 = vmatpush1.msra.mxu0 0.0
      %3392 = vmatprep.subr.mxu0 0.0
      %3393 = vmatpush1.msra.mxu0 0.0
      %3394 = vmatprep.subr.mxu0 0.0
      %3395 = vmatpush1.msra.mxu0 0.0
      %3396 = vmatprep.subr.mxu0 0.0
      %3397 = vmatpush1.msra.mxu0 0.0
      %3398 = vmatprep.subr.mxu0 0.0
      %3399 = vmatpush1.msra.mxu0 0.0
      %3400 = vmatprep.subr.mxu0 0.0
      %3401 = vmatpush1.msra.mxu0 0.0
      %3402 = vmatprep.subr.mxu0 0.0
      %3403 = vmatpush1.msra.mxu0 0.0
      %3404 = vmatprep.subr.mxu0 0.0
      %3405 = vmatpush1.msra.mxu0 0.0
      %3406 = vmatprep.subr.mxu0 0.0
      %3407 = vmatpush1.msra.mxu0 0.0
      %3408 = vmatprep.subr.mxu0 0.0
      %3409 = vmatpush1.msra.mxu0 0.0
      %3410 = vmatprep.subr.mxu0 0.0
      %3411 = vmatpush1.msra.mxu0 0.0
      %3412 = vmatprep.mubr.f32.mxu0 0.0
      %3413 = vmatmul.mubr.f32.gmra.mrb[0].mxu0 %v3343
      %v3414 = vpop.f32.mrb[0].mxu0
      %v3415 = vadd.f32 0.0, %v3414
      %v3416 = vpop.f32.mrb[0].mxu0
      %3417 = vdwg.mxu0
      %v3419 = vsel %vm452, %v347, 0
      %v3422 = vsel %vm456, %v443, 0
      %3424 = vmatprep.subr.mxu0 0.0
      %3425 = vmatpush1.msra.mxu0 %v3422
      %3426 = vmatprep.subr.mxu0 0.0
      %3427 = vmatpush1.msra.mxu0 0.0
      %3428 = vmatprep.subr.mxu0 0.0
      %3429 = vmatpush1.msra.mxu0 0.0
      %3430 = vmatprep.subr.mxu0 0.0
      %3431 = vmatpush1.msra.mxu0 0.0
      %3432 = vmatprep.subr.mxu0 0.0
      %3433 = vmatpush1.msra.mxu0 0.0
      %3434 = vmatprep.subr.mxu0 0.0
      %3435 = vmatpush1.msra.mxu0 0.0
      %3436 = vmatprep.subr.mxu0 0.0
      %3437 = vmatpush1.msra.mxu0 0.0
      %3438 = vmatprep.subr.mxu0 0.0
      %3439 = vmatpush1.msra.mxu0 0.0
      %3440 = vmatprep.subr.mxu0 0.0
      %3441 = vmatpush1.msra.mxu0 0.0
      %3442 = vmatprep.subr.mxu0 0.0
      %3443 = vmatpush1.msra.mxu0 0.0
      %3444 = vmatprep.subr.mxu0 0.0
      %3445 = vmatpush1.msra.mxu0 0.0
      %3446 = vmatprep.subr.mxu0 0.0
      %3447 = vmatpush1.msra.mxu0 0.0
      %3448 = vmatprep.subr.mxu0 0.0
      %3449 = vmatpush1.msra.mxu0 0.0
      %3450 = vmatprep.subr.mxu0 0.0
      %3451 = vmatpush1.msra.mxu0 0.0
      %3452 = vmatprep.subr.mxu0 0.0
      %3453 = vmatpush1.msra.mxu0 0.0
      %3454 = vmatprep.subr.mxu0 0.0
      %3455 = vmatpush1.msra.mxu0 0.0
      %3456 = vmatprep.subr.mxu0 0.0
      %3457 = vmatpush1.msra.mxu0 0.0
      %3458 = vmatprep.subr.mxu0 0.0
      %3459 = vmatpush1.msra.mxu0 0.0
      %3460 = vmatprep.subr.mxu0 0.0
      %3461 = vmatpush1.msra.mxu0 0.0
      %3462 = vmatprep.subr.mxu0 0.0
      %3463 = vmatpush1.msra.mxu0 0.0
      %3464 = vmatprep.subr.mxu0 0.0
      %3465 = vmatpush1.msra.mxu0 0.0
      %3466 = vmatprep.subr.mxu0 0.0
      %3467 = vmatpush1.msra.mxu0 0.0
      %3468 = vmatprep.subr.mxu0 0.0
      %3469 = vmatpush1.msra.mxu0 0.0
      %3470 = vmatprep.subr.mxu0 0.0
      %3471 = vmatpush1.msra.mxu0 0.0
      %3472 = vmatprep.subr.mxu0 0.0
      %3473 = vmatpush1.msra.mxu0 0.0
      %3474 = vmatprep.subr.mxu0 0.0
      %3475 = vmatpush1.msra.mxu0 0.0
      %3476 = vmatprep.subr.mxu0 0.0
      %3477 = vmatpush1.msra.mxu0 0.0
      %3478 = vmatprep.subr.mxu0 0.0
      %3479 = vmatpush1.msra.mxu0 0.0
      %3480 = vmatprep.subr.mxu0 0.0
      %3481 = vmatpush1.msra.mxu0 0.0
      %3482 = vmatprep.subr.mxu0 0.0
      %3483 = vmatpush1.msra.mxu0 0.0
      %3484 = vmatprep.subr.mxu0 0.0
      %3485 = vmatpush1.msra.mxu0 0.0
      %3486 = vmatprep.subr.mxu0 0.0
      %3487 = vmatpush1.msra.mxu0 0.0
      %3488 = vmatprep.mubr.f32.mxu0 0.0
      %3489 = vmatmul.mubr.f32.gmra.mrb[0].mxu0 %v3419
      %v3490 = vpop.f32.mrb[0].mxu0
      %v3491 = vadd.f32 0.0, %v3490
      %v3492 = vpop.f32.mrb[0].mxu0
      %3493 = vdwg.mxu0
      %v3495 = vsel %vm452, %v348, 0
      %v3498 = vsel %vm456, %v444, 0
      %3500 = vmatprep.subr.mxu0 0.0
      %3501 = vmatpush1.msra.mxu0 %v3498
      %3502 = vmatprep.subr.mxu0 0.0
      %3503 = vmatpush1.msra.mxu0 0.0
      %3504 = vmatprep.subr.mxu0 0.0
      %3505 = vmatpush1.msra.mxu0 0.0
      %3506 = vmatprep.subr.mxu0 0.0
      %3507 = vmatpush1.msra.mxu0 0.0
      %3508 = vmatprep.subr.mxu0 0.0
      %3509 = vmatpush1.msra.mxu0 0.0
      %3510 = vmatprep.subr.mxu0 0.0
      %3511 = vmatpush1.msra.mxu0 0.0
      %3512 = vmatprep.subr.mxu0 0.0
      %3513 = vmatpush1.msra.mxu0 0.0
      %3514 = vmatprep.subr.mxu0 0.0
      %3515 = vmatpush1.msra.mxu0 0.0
      %3516 = vmatprep.subr.mxu0 0.0
      %3517 = vmatpush1.msra.mxu0 0.0
      %3518 = vmatprep.subr.mxu0 0.0
      %3519 = vmatpush1.msra.mxu0 0.0
      %3520 = vmatprep.subr.mxu0 0.0
      %3521 = vmatpush1.msra.mxu0 0.0
      %3522 = vmatprep.subr.mxu0 0.0
      %3523 = vmatpush1.msra.mxu0 0.0
      %3524 = vmatprep.subr.mxu0 0.0
      %3525 = vmatpush1.msra.mxu0 0.0
      %3526 = vmatprep.subr.mxu0 0.0
      %3527 = vmatpush1.msra.mxu0 0.0
      %3528 = vmatprep.subr.mxu0 0.0
      %3529 = vmatpush1.msra.mxu0 0.0
      %3530 = vmatprep.subr.mxu0 0.0
      %3531 = vmatpush1.msra.mxu0 0.0
      %3532 = vmatprep.subr.mxu0 0.0
      %3533 = vmatpush1.msra.mxu0 0.0
      %3534 = vmatprep.subr.mxu0 0.0
      %3535 = vmatpush1.msra.mxu0 0.0
      %3536 = vmatprep.subr.mxu0 0.0
      %3537 = vmatpush1.msra.mxu0 0.0
      %3538 = vmatprep.subr.mxu0 0.0
      %3539 = vmatpush1.msra.mxu0 0.0
      %3540 = vmatprep.subr.mxu0 0.0
      %3541 = vmatpush1.msra.mxu0 0.0
      %3542 = vmatprep.subr.mxu0 0.0
      %3543 = vmatpush1.msra.mxu0 0.0
      %3544 = vmatprep.subr.mxu0 0.0
      %3545 = vmatpush1.msra.mxu0 0.0
      %3546 = vmatprep.subr.mxu0 0.0
      %3547 = vmatpush1.msra.mxu0 0.0
      %3548 = vmatprep.subr.mxu0 0.0
      %3549 = vmatpush1.msra.mxu0 0.0
      %3550 = vmatprep.subr.mxu0 0.0
      %3551 = vmatpush1.msra.mxu0 0.0
      %3552 = vmatprep.subr.mxu0 0.0
      %3553 = vmatpush1.msra.mxu0 0.0
      %3554 = vmatprep.subr.mxu0 0.0
      %3555 = vmatpush1.msra.mxu0 0.0
      %3556 = vmatprep.subr.mxu0 0.0
      %3557 = vmatpush1.msra.mxu0 0.0
      %3558 = vmatprep.subr.mxu0 0.0
      %3559 = vmatpush1.msra.mxu0 0.0
      %3560 = vmatprep.subr.mxu0 0.0
      %3561 = vmatpush1.msra.mxu0 0.0
      %3562 = vmatprep.subr.mxu0 0.0
      %3563 = vmatpush1.msra.mxu0 0.0
      %3564 = vmatprep.mubr.f32.mxu0 0.0
      %3565 = vmatmul.mubr.f32.gmra.mrb[0].mxu0 %v3495
      %v3566 = vpop.f32.mrb[0].mxu0
      %v3567 = vadd.f32 0.0, %v3566
      %v3568 = vpop.f32.mrb[0].mxu0
      %3569 = vdwg.mxu0
      %v3571 = vsel %vm452, %v349, 0
      %v3574 = vsel %vm456, %v445, 0
      %3576 = vmatprep.subr.mxu0 0.0
      %3577 = vmatpush1.msra.mxu0 %v3574
      %3578 = vmatprep.subr.mxu0 0.0
      %3579 = vmatpush1.msra.mxu0 0.0
      %3580 = vmatprep.subr.mxu0 0.0
      %3581 = vmatpush1.msra.mxu0 0.0
      %3582 = vmatprep.subr.mxu0 0.0
      %3583 = vmatpush1.msra.mxu0 0.0
      %3584 = vmatprep.subr.mxu0 0.0
      %3585 = vmatpush1.msra.mxu0 0.0
      %3586 = vmatprep.subr.mxu0 0.0
      %3587 = vmatpush1.msra.mxu0 0.0
      %3588 = vmatprep.subr.mxu0 0.0
      %3589 = vmatpush1.msra.mxu0 0.0
      %3590 = vmatprep.subr.mxu0 0.0
      %3591 = vmatpush1.msra.mxu0 0.0
      %3592 = vmatprep.subr.mxu0 0.0
      %3593 = vmatpush1.msra.mxu0 0.0
      %3594 = vmatprep.subr.mxu0 0.0
      %3595 = vmatpush1.msra.mxu0 0.0
      %3596 = vmatprep.subr.mxu0 0.0
      %3597 = vmatpush1.msra.mxu0 0.0
      %3598 = vmatprep.subr.mxu0 0.0
      %3599 = vmatpush1.msra.mxu0 0.0
      %3600 = vmatprep.subr.mxu0 0.0
      %3601 = vmatpush1.msra.mxu0 0.0
      %3602 = vmatprep.subr.mxu0 0.0
      %3603 = vmatpush1.msra.mxu0 0.0
      %3604 = vmatprep.subr.mxu0 0.0
      %3605 = vmatpush1.msra.mxu0 0.0
      %3606 = vmatprep.subr.mxu0 0.0
      %3607 = vmatpush1.msra.mxu0 0.0
      %3608 = vmatprep.subr.mxu0 0.0
      %3609 = vmatpush1.msra.mxu0 0.0
      %3610 = vmatprep.subr.mxu0 0.0
      %3611 = vmatpush1.msra.mxu0 0.0
      %3612 = vmatprep.subr.mxu0 0.0
      %3613 = vmatpush1.msra.mxu0 0.0
      %3614 = vmatprep.subr.mxu0 0.0
      %3615 = vmatpush1.msra.mxu0 0.0
      %3616 = vmatprep.subr.mxu0 0.0
      %3617 = vmatpush1.msra.mxu0 0.0
      %3618 = vmatprep.subr.mxu0 0.0
      %3619 = vmatpush1.msra.mxu0 0.0
      %3620 = vmatprep.subr.mxu0 0.0
      %3621 = vmatpush1.msra.mxu0 0.0
      %3622 = vmatprep.subr.mxu0 0.0
      %3623 = vmatpush1.msra.mxu0 0.0
      %3624 = vmatprep.subr.mxu0 0.0
      %3625 = vmatpush1.msra.mxu0 0.0
      %3626 = vmatprep.subr.mxu0 0.0
      %3627 = vmatpush1.msra.mxu0 0.0
      %3628 = vmatprep.subr.mxu0 0.0
      %3629 = vmatpush1.msra.mxu0 0.0
      %3630 = vmatprep.subr.mxu0 0.0
      %3631 = vmatpush1.msra.mxu0 0.0
      %3632 = vmatprep.subr.mxu0 0.0
      %3633 = vmatpush1.msra.mxu0 0.0
      %3634 = vmatprep.subr.mxu0 0.0
      %3635 = vmatpush1.msra.mxu0 0.0
      %3636 = vmatprep.subr.mxu0 0.0
      %3637 = vmatpush1.msra.mxu0 0.0
      %3638 = vmatprep.subr.mxu0 0.0
      %3639 = vmatpush1.msra.mxu0 0.0
      %3640 = vmatprep.mubr.f32.mxu0 0.0
      %3641 = vmatmul.mubr.f32.gmra.mrb[0].mxu0 %v3571
      %v3642 = vpop.f32.mrb[0].mxu0
      %v3643 = vadd.f32 0.0, %v3642
      %v3644 = vpop.f32.mrb[0].mxu0
      %3645 = vdwg.mxu0
      %v3647 = vsel %vm452, %v350, 0
      %v3650 = vsel %vm456, %v446, 0
      %3652 = vmatprep.subr.mxu0 0.0
      %3653 = vmatpush1.msra.mxu0 %v3650
      %3654 = vmatprep.subr.mxu0 0.0
      %3655 = vmatpush1.msra.mxu0 0.0
      %3656 = vmatprep.subr.mxu0 0.0
      %3657 = vmatpush1.msra.mxu0 0.0
      %3658 = vmatprep.subr.mxu0 0.0
      %3659 = vmatpush1.msra.mxu0 0.0
      %3660 = vmatprep.subr.mxu0 0.0
      %3661 = vmatpush1.msra.mxu0 0.0
      %3662 = vmatprep.subr.mxu0 0.0
      %3663 = vmatpush1.msra.mxu0 0.0
      %3664 = vmatprep.subr.mxu0 0.0
      %3665 = vmatpush1.msra.mxu0 0.0
      %3666 = vmatprep.subr.mxu0 0.0
      %3667 = vmatpush1.msra.mxu0 0.0
      %3668 = vmatprep.subr.mxu0 0.0
      %3669 = vmatpush1.msra.mxu0 0.0
      %3670 = vmatprep.subr.mxu0 0.0
      %3671 = vmatpush1.msra.mxu0 0.0
      %3672 = vmatprep.subr.mxu0 0.0
      %3673 = vmatpush1.msra.mxu0 0.0
      %3674 = vmatprep.subr.mxu0 0.0
      %3675 = vmatpush1.msra.mxu0 0.0
      %3676 = vmatprep.subr.mxu0 0.0
      %3677 = vmatpush1.msra.mxu0 0.0
      %3678 = vmatprep.subr.mxu0 0.0
      %3679 = vmatpush1.msra.mxu0 0.0
      %3680 = vmatprep.subr.mxu0 0.0
      %3681 = vmatpush1.msra.mxu0 0.0
      %3682 = vmatprep.subr.mxu0 0.0
      %3683 = vmatpush1.msra.mxu0 0.0
      %3684 = vmatprep.subr.mxu0 0.0
      %3685 = vmatpush1.msra.mxu0 0.0
      %3686 = vmatprep.subr.mxu0 0.0
      %3687 = vmatpush1.msra.mxu0 0.0
      %3688 = vmatprep.subr.mxu0 0.0
      %3689 = vmatpush1.msra.mxu0 0.0
      %3690 = vmatprep.subr.mxu0 0.0
      %3691 = vmatpush1.msra.mxu0 0.0
      %3692 = vmatprep.subr.mxu0 0.0
      %3693 = vmatpush1.msra.mxu0 0.0
      %3694 = vmatprep.subr.mxu0 0.0
      %3695 = vmatpush1.msra.mxu0 0.0
      %3696 = vmatprep.subr.mxu0 0.0
      %3697 = vmatpush1.msra.mxu0 0.0
      %3698 = vmatprep.subr.mxu0 0.0
      %3699 = vmatpush1.msra.mxu0 0.0
      %3700 = vmatprep.subr.mxu0 0.0
      %3701 = vmatpush1.msra.mxu0 0.0
      %3702 = vmatprep.subr.mxu0 0.0
      %3703 = vmatpush1.msra.mxu0 0.0
      %3704 = vmatprep.subr.mxu0 0.0
      %3705 = vmatpush1.msra.mxu0 0.0
      %3706 = vmatprep.subr.mxu0 0.0
      %3707 = vmatpush1.msra.mxu0 0.0
      %3708 = vmatprep.subr.mxu0 0.0
      %3709 = vmatpush1.msra.mxu0 0.0
      %3710 = vmatprep.subr.mxu0 0.0
      %3711 = vmatpush1.msra.mxu0 0.0
      %3712 = vmatprep.subr.mxu0 0.0
      %3713 = vmatpush1.msra.mxu0 0.0
      %3714 = vmatprep.subr.mxu0 0.0
      %3715 = vmatpush1.msra.mxu0 0.0
      %3716 = vmatprep.mubr.f32.mxu0 0.0
      %3717 = vmatmul.mubr.f32.gmra.mrb[0].mxu0 %v3647
      %v3718 = vpop.f32.mrb[0].mxu0
      %v3719 = vadd.f32 0.0, %v3718
      %v3720 = vpop.f32.mrb[0].mxu0
      %3721 = vdwg.mxu0
      %v3723 = vsel %vm452, %v351, 0
      %v3726 = vsel %vm456, %v447, 0
      %3728 = vmatprep.subr.mxu0 0.0
      %3729 = vmatpush1.msra.mxu0 %v3726
      %3730 = vmatprep.subr.mxu0 0.0
      %3731 = vmatpush1.msra.mxu0 0.0
      %3732 = vmatprep.subr.mxu0 0.0
      %3733 = vmatpush1.msra.mxu0 0.0
      %3734 = vmatprep.subr.mxu0 0.0
      %3735 = vmatpush1.msra.mxu0 0.0
      %3736 = vmatprep.subr.mxu0 0.0
      %3737 = vmatpush1.msra.mxu0 0.0
      %3738 = vmatprep.subr.mxu0 0.0
      %3739 = vmatpush1.msra.mxu0 0.0
      %3740 = vmatprep.subr.mxu0 0.0
      %3741 = vmatpush1.msra.mxu0 0.0
      %3742 = vmatprep.subr.mxu0 0.0
      %3743 = vmatpush1.msra.mxu0 0.0
      %3744 = vmatprep.subr.mxu0 0.0
      %3745 = vmatpush1.msra.mxu0 0.0
      %3746 = vmatprep.subr.mxu0 0.0
      %3747 = vmatpush1.msra.mxu0 0.0
      %3748 = vmatprep.subr.mxu0 0.0
      %3749 = vmatpush1.msra.mxu0 0.0
      %3750 = vmatprep.subr.mxu0 0.0
      %3751 = vmatpush1.msra.mxu0 0.0
      %3752 = vmatprep.subr.mxu0 0.0
      %3753 = vmatpush1.msra.mxu0 0.0
      %3754 = vmatprep.subr.mxu0 0.0
      %3755 = vmatpush1.msra.mxu0 0.0
      %3756 = vmatprep.subr.mxu0 0.0
      %3757 = vmatpush1.msra.mxu0 0.0
      %3758 = vmatprep.subr.mxu0 0.0
      %3759 = vmatpush1.msra.mxu0 0.0
      %3760 = vmatprep.subr.mxu0 0.0
      %3761 = vmatpush1.msra.mxu0 0.0
      %3762 = vmatprep.subr.mxu0 0.0
      %3763 = vmatpush1.msra.mxu0 0.0
      %3764 = vmatprep.subr.mxu0 0.0
      %3765 = vmatpush1.msra.mxu0 0.0
      %3766 = vmatprep.subr.mxu0 0.0
      %3767 = vmatpush1.msra.mxu0 0.0
      %3768 = vmatprep.subr.mxu0 0.0
      %3769 = vmatpush1.msra.mxu0 0.0
      %3770 = vmatprep.subr.mxu0 0.0
      %3771 = vmatpush1.msra.mxu0 0.0
      %3772 = vmatprep.subr.mxu0 0.0
      %3773 = vmatpush1.msra.mxu0 0.0
      %3774 = vmatprep.subr.mxu0 0.0
      %3775 = vmatpush1.msra.mxu0 0.0
      %3776 = vmatprep.subr.mxu0 0.0
      %3777 = vmatpush1.msra.mxu0 0.0
      %3778 = vmatprep.subr.mxu0 0.0
      %3779 = vmatpush1.msra.mxu0 0.0
      %3780 = vmatprep.subr.mxu0 0.0
      %3781 = vmatpush1.msra.mxu0 0.0
      %3782 = vmatprep.subr.mxu0 0.0
      %3783 = vmatpush1.msra.mxu0 0.0
      %3784 = vmatprep.subr.mxu0 0.0
      %3785 = vmatpush1.msra.mxu0 0.0
      %3786 = vmatprep.subr.mxu0 0.0
      %3787 = vmatpush1.msra.mxu0 0.0
      %3788 = vmatprep.subr.mxu0 0.0
      %3789 = vmatpush1.msra.mxu0 0.0
      %3790 = vmatprep.subr.mxu0 0.0
      %3791 = vmatpush1.msra.mxu0 0.0
      %3792 = vmatprep.mubr.f32.mxu0 0.0
      %3793 = vmatmul.mubr.f32.gmra.mrb[0].mxu0 %v3723
      %v3794 = vpop.f32.mrb[0].mxu0
      %v3795 = vadd.f32 0.0, %v3794
      %v3796 = vpop.f32.mrb[0].mxu0
      %3797 = vdwg.mxu0
      %v3799 = vsel %vm452, %v352, 0
      %v3802 = vsel %vm456, %v448, 0
      %3804 = vmatprep.subr.mxu0 0.0
      %3805 = vmatpush1.msra.mxu0 %v3802
      %3806 = vmatprep.subr.mxu0 0.0
      %3807 = vmatpush1.msra.mxu0 0.0
      %3808 = vmatprep.subr.mxu0 0.0
      %3809 = vmatpush1.msra.mxu0 0.0
      %3810 = vmatprep.subr.mxu0 0.0
      %3811 = vmatpush1.msra.mxu0 0.0
      %3812 = vmatprep.subr.mxu0 0.0
      %3813 = vmatpush1.msra.mxu0 0.0
      %3814 = vmatprep.subr.mxu0 0.0
      %3815 = vmatpush1.msra.mxu0 0.0
      %3816 = vmatprep.subr.mxu0 0.0
      %3817 = vmatpush1.msra.mxu0 0.0
      %3818 = vmatprep.subr.mxu0 0.0
      %3819 = vmatpush1.msra.mxu0 0.0
      %3820 = vmatprep.subr.mxu0 0.0
      %3821 = vmatpush1.msra.mxu0 0.0
      %3822 = vmatprep.subr.mxu0 0.0
      %3823 = vmatpush1.msra.mxu0 0.0
      %3824 = vmatprep.subr.mxu0 0.0
      %3825 = vmatpush1.msra.mxu0 0.0
      %3826 = vmatprep.subr.mxu0 0.0
      %3827 = vmatpush1.msra.mxu0 0.0
      %3828 = vmatprep.subr.mxu0 0.0
      %3829 = vmatpush1.msra.mxu0 0.0
      %3830 = vmatprep.subr.mxu0 0.0
      %3831 = vmatpush1.msra.mxu0 0.0
      %3832 = vmatprep.subr.mxu0 0.0
      %3833 = vmatpush1.msra.mxu0 0.0
      %3834 = vmatprep.subr.mxu0 0.0
      %3835 = vmatpush1.msra.mxu0 0.0
      %3836 = vmatprep.subr.mxu0 0.0
      %3837 = vmatpush1.msra.mxu0 0.0
      %3838 = vmatprep.subr.mxu0 0.0
      %3839 = vmatpush1.msra.mxu0 0.0
      %3840 = vmatprep.subr.mxu0 0.0
      %3841 = vmatpush1.msra.mxu0 0.0
      %3842 = vmatprep.subr.mxu0 0.0
      %3843 = vmatpush1.msra.mxu0 0.0
      %3844 = vmatprep.subr.mxu0 0.0
      %3845 = vmatpush1.msra.mxu0 0.0
      %3846 = vmatprep.subr.mxu0 0.0
      %3847 = vmatpush1.msra.mxu0 0.0
      %3848 = vmatprep.subr.mxu0 0.0
      %3849 = vmatpush1.msra.mxu0 0.0
      %3850 = vmatprep.subr.mxu0 0.0
      %3851 = vmatpush1.msra.mxu0 0.0
      %3852 = vmatprep.subr.mxu0 0.0
      %3853 = vmatpush1.msra.mxu0 0.0
      %3854 = vmatprep.subr.mxu0 0.0
      %3855 = vmatpush1.msra.mxu0 0.0
      %3856 = vmatprep.subr.mxu0 0.0
      %3857 = vmatpush1.msra.mxu0 0.0
      %3858 = vmatprep.subr.mxu0 0.0
      %3859 = vmatpush1.msra.mxu0 0.0
      %3860 = vmatprep.subr.mxu0 0.0
      %3861 = vmatpush1.msra.mxu0 0.0
      %3862 = vmatprep.subr.mxu0 0.0
      %3863 = vmatpush1.msra.mxu0 0.0
      %3864 = vmatprep.subr.mxu0 0.0
      %3865 = vmatpush1.msra.mxu0 0.0
      %3866 = vmatprep.subr.mxu0 0.0
      %3867 = vmatpush1.msra.mxu0 0.0
      %3868 = vmatprep.mubr.f32.mxu0 0.0
      %3869 = vmatmul.mubr.f32.gmra.mrb[0].mxu0 %v3799
      %v3870 = vpop.f32.mrb[0].mxu0
      %v3871 = vadd.f32 0.0, %v3870
      %v3872 = vpop.f32.mrb[0].mxu0
      %3873 = vdwg.mxu0
      %v3875 = vsel %vm452, %v353, 0
      %v3878 = vsel %vm456, %v449, 0
      %3880 = vmatprep.subr.mxu0 0.0
      %3881 = vmatpush1.msra.mxu0 %v3878
      %3882 = vmatprep.subr.mxu0 0.0
      %3883 = vmatpush1.msra.mxu0 0.0
      %3884 = vmatprep.subr.mxu0 0.0
      %3885 = vmatpush1.msra.mxu0 0.0
      %3886 = vmatprep.subr.mxu0 0.0
      %3887 = vmatpush1.msra.mxu0 0.0
      %3888 = vmatprep.subr.mxu0 0.0
      %3889 = vmatpush1.msra.mxu0 0.0
      %3890 = vmatprep.subr.mxu0 0.0
      %3891 = vmatpush1.msra.mxu0 0.0
      %3892 = vmatprep.subr.mxu0 0.0
      %3893 = vmatpush1.msra.mxu0 0.0
      %3894 = vmatprep.subr.mxu0 0.0
      %3895 = vmatpush1.msra.mxu0 0.0
      %3896 = vmatprep.subr.mxu0 0.0
      %3897 = vmatpush1.msra.mxu0 0.0
      %3898 = vmatprep.subr.mxu0 0.0
      %3899 = vmatpush1.msra.mxu0 0.0
      %3900 = vmatprep.subr.mxu0 0.0
      %3901 = vmatpush1.msra.mxu0 0.0
      %3902 = vmatprep.subr.mxu0 0.0
      %3903 = vmatpush1.msra.mxu0 0.0
      %3904 = vmatprep.subr.mxu0 0.0
      %3905 = vmatpush1.msra.mxu0 0.0
      %3906 = vmatprep.subr.mxu0 0.0
      %3907 = vmatpush1.msra.mxu0 0.0
      %3908 = vmatprep.subr.mxu0 0.0
      %3909 = vmatpush1.msra.mxu0 0.0
      %3910 = vmatprep.subr.mxu0 0.0
      %3911 = vmatpush1.msra.mxu0 0.0
      %3912 = vmatprep.subr.mxu0 0.0
      %3913 = vmatpush1.msra.mxu0 0.0
      %3914 = vmatprep.subr.mxu0 0.0
      %3915 = vmatpush1.msra.mxu0 0.0
      %3916 = vmatprep.subr.mxu0 0.0
      %3917 = vmatpush1.msra.mxu0 0.0
      %3918 = vmatprep.subr.mxu0 0.0
      %3919 = vmatpush1.msra.mxu0 0.0
      %3920 = vmatprep.subr.mxu0 0.0
      %3921 = vmatpush1.msra.mxu0 0.0
      %3922 = vmatprep.subr.mxu0 0.0
      %3923 = vmatpush1.msra.mxu0 0.0
      %3924 = vmatprep.subr.mxu0 0.0
      %3925 = vmatpush1.msra.mxu0 0.0
      %3926 = vmatprep.subr.mxu0 0.0
      %3927 = vmatpush1.msra.mxu0 0.0
      %3928 = vmatprep.subr.mxu0 0.0
      %3929 = vmatpush1.msra.mxu0 0.0
      %3930 = vmatprep.subr.mxu0 0.0
      %3931 = vmatpush1.msra.mxu0 0.0
      %3932 = vmatprep.subr.mxu0 0.0
      %3933 = vmatpush1.msra.mxu0 0.0
      %3934 = vmatprep.subr.mxu0 0.0
      %3935 = vmatpush1.msra.mxu0 0.0
      %3936 = vmatprep.subr.mxu0 0.0
      %3937 = vmatpush1.msra.mxu0 0.0
      %3938 = vmatprep.subr.mxu0 0.0
      %3939 = vmatpush1.msra.mxu0 0.0
      %3940 = vmatprep.subr.mxu0 0.0
      %3941 = vmatpush1.msra.mxu0 0.0
      %3942 = vmatprep.subr.mxu0 0.0
      %3943 = vmatpush1.msra.mxu0 0.0
      %3944 = vmatprep.mubr.f32.mxu0 0.0
      %3945 = vmatmul.mubr.f32.gmra.mrb[0].mxu0 %v3875
      %v3946 = vpop.f32.mrb[0].mxu0
      %v3947 = vadd.f32 0.0, %v3946
      %v3948 = vpop.f32.mrb[0].mxu0
      %3949 = vdwg.mxu0
      %v3951 = vsel %vm452, %v354, 0
      %v3954 = vsel %vm456, %v450, 0
      %3956 = vmatprep.subr.mxu0 0.0
      %3957 = vmatpush1.msra.mxu0 %v3954
      %3958 = vmatprep.subr.mxu0 0.0
      %3959 = vmatpush1.msra.mxu0 0.0
      %3960 = vmatprep.subr.mxu0 0.0
      %3961 = vmatpush1.msra.mxu0 0.0
      %3962 = vmatprep.subr.mxu0 0.0
      %3963 = vmatpush1.msra.mxu0 0.0
      %3964 = vmatprep.subr.mxu0 0.0
      %3965 = vmatpush1.msra.mxu0 0.0
      %3966 = vmatprep.subr.mxu0 0.0
      %3967 = vmatpush1.msra.mxu0 0.0
      %3968 = vmatprep.subr.mxu0 0.0
      %3969 = vmatpush1.msra.mxu0 0.0
      %3970 = vmatprep.subr.mxu0 0.0
      %3971 = vmatpush1.msra.mxu0 0.0
      %3972 = vmatprep.subr.mxu0 0.0
      %3973 = vmatpush1.msra.mxu0 0.0
      %3974 = vmatprep.subr.mxu0 0.0
      %3975 = vmatpush1.msra.mxu0 0.0
      %3976 = vmatprep.subr.mxu0 0.0
      %3977 = vmatpush1.msra.mxu0 0.0
      %3978 = vmatprep.subr.mxu0 0.0
      %3979 = vmatpush1.msra.mxu0 0.0
      %3980 = vmatprep.subr.mxu0 0.0
      %3981 = vmatpush1.msra.mxu0 0.0
      %3982 = vmatprep.subr.mxu0 0.0
      %3983 = vmatpush1.msra.mxu0 0.0
      %3984 = vmatprep.subr.mxu0 0.0
      %3985 = vmatpush1.msra.mxu0 0.0
      %3986 = vmatprep.subr.mxu0 0.0
      %3987 = vmatpush1.msra.mxu0 0.0
      %3988 = vmatprep.subr.mxu0 0.0
      %3989 = vmatpush1.msra.mxu0 0.0
      %3990 = vmatprep.subr.mxu0 0.0
      %3991 = vmatpush1.msra.mxu0 0.0
      %3992 = vmatprep.subr.mxu0 0.0
      %3993 = vmatpush1.msra.mxu0 0.0
      %3994 = vmatprep.subr.mxu0 0.0
      %3995 = vmatpush1.msra.mxu0 0.0
      %3996 = vmatprep.subr.mxu0 0.0
      %3997 = vmatpush1.msra.mxu0 0.0
      %3998 = vmatprep.subr.mxu0 0.0
      %3999 = vmatpush1.msra.mxu0 0.0
      %4000 = vmatprep.subr.mxu0 0.0
      %4001 = vmatpush1.msra.mxu0 0.0
      %4002 = vmatprep.subr.mxu0 0.0
      %4003 = vmatpush1.msra.mxu0 0.0
      %4004 = vmatprep.subr.mxu0 0.0
      %4005 = vmatpush1.msra.mxu0 0.0
      %4006 = vmatprep.subr.mxu0 0.0
      %4007 = vmatpush1.msra.mxu0 0.0
      %4008 = vmatprep.subr.mxu0 0.0
      %4009 = vmatpush1.msra.mxu0 0.0
      %4010 = vmatprep.subr.mxu0 0.0
      %4011 = vmatpush1.msra.mxu0 0.0
      %4012 = vmatprep.subr.mxu0 0.0
      %4013 = vmatpush1.msra.mxu0 0.0
      %4014 = vmatprep.subr.mxu0 0.0
      %4015 = vmatpush1.msra.mxu0 0.0
      %4016 = vmatprep.subr.mxu0 0.0
      %4017 = vmatpush1.msra.mxu0 0.0
      %4018 = vmatprep.subr.mxu0 0.0
      %4019 = vmatpush1.msra.mxu0 0.0
      %4020 = vmatprep.mubr.f32.mxu0 0.0
      %4021 = vmatmul.mubr.f32.gmra.mrb[0].mxu0 %v3951
      %v4022 = vpop.f32.mrb[0].mxu0
      %v4023 = vadd.f32 0.0, %v4022
      %v4024 = vpop.f32.mrb[0].mxu0
      %4025 = vdwg.mxu0
      %v4027 = vsel %vm452, %v355, 0
      %v4030 = vsel %vm456, %v451, 0
      %4032 = vmatprep.subr.mxu0 0.0
      %4033 = vmatpush1.msra.mxu0 %v4030
      %4034 = vmatprep.subr.mxu0 0.0
      %4035 = vmatpush1.msra.mxu0 0.0
      %4036 = vmatprep.subr.mxu0 0.0
      %4037 = vmatpush1.msra.mxu0 0.0
      %4038 = vmatprep.subr.mxu0 0.0
      %4039 = vmatpush1.msra.mxu0 0.0
      %4040 = vmatprep.subr.mxu0 0.0
      %4041 = vmatpush1.msra.mxu0 0.0
      %4042 = vmatprep.subr.mxu0 0.0
      %4043 = vmatpush1.msra.mxu0 0.0
      %4044 = vmatprep.subr.mxu0 0.0
      %4045 = vmatpush1.msra.mxu0 0.0
      %4046 = vmatprep.subr.mxu0 0.0
      %4047 = vmatpush1.msra.mxu0 0.0
      %4048 = vmatprep.subr.mxu0 0.0
      %4049 = vmatpush1.msra.mxu0 0.0
      %4050 = vmatprep.subr.mxu0 0.0
      %4051 = vmatpush1.msra.mxu0 0.0
      %4052 = vmatprep.subr.mxu0 0.0
      %4053 = vmatpush1.msra.mxu0 0.0
      %4054 = vmatprep.subr.mxu0 0.0
      %4055 = vmatpush1.msra.mxu0 0.0
      %4056 = vmatprep.subr.mxu0 0.0
      %4057 = vmatpush1.msra.mxu0 0.0
      %4058 = vmatprep.subr.mxu0 0.0
      %4059 = vmatpush1.msra.mxu0 0.0
      %4060 = vmatprep.subr.mxu0 0.0
      %4061 = vmatpush1.msra.mxu0 0.0
      %4062 = vmatprep.subr.mxu0 0.0
      %4063 = vmatpush1.msra.mxu0 0.0
      %4064 = vmatprep.subr.mxu0 0.0
      %4065 = vmatpush1.msra.mxu0 0.0
      %4066 = vmatprep.subr.mxu0 0.0
      %4067 = vmatpush1.msra.mxu0 0.0
      %4068 = vmatprep.subr.mxu0 0.0
      %4069 = vmatpush1.msra.mxu0 0.0
      %4070 = vmatprep.subr.mxu0 0.0
      %4071 = vmatpush1.msra.mxu0 0.0
      %4072 = vmatprep.subr.mxu0 0.0
      %4073 = vmatpush1.msra.mxu0 0.0
      %4074 = vmatprep.subr.mxu0 0.0
      %4075 = vmatpush1.msra.mxu0 0.0
      %4076 = vmatprep.subr.mxu0 0.0
      %4077 = vmatpush1.msra.mxu0 0.0
      %4078 = vmatprep.subr.mxu0 0.0
      %4079 = vmatpush1.msra.mxu0 0.0
      %4080 = vmatprep.subr.mxu0 0.0
      %4081 = vmatpush1.msra.mxu0 0.0
      %4082 = vmatprep.subr.mxu0 0.0
      %4083 = vmatpush1.msra.mxu0 0.0
      %4084 = vmatprep.subr.mxu0 0.0
      %4085 = vmatpush1.msra.mxu0 0.0
      %4086 = vmatprep.subr.mxu0 0.0
      %4087 = vmatpush1.msra.mxu0 0.0
      %4088 = vmatprep.subr.mxu0 0.0
      %4089 = vmatpush1.msra.mxu0 0.0
      %4090 = vmatprep.subr.mxu0 0.0
      %4091 = vmatpush1.msra.mxu0 0.0
      %4092 = vmatprep.subr.mxu0 0.0
      %4093 = vmatpush1.msra.mxu0 0.0
      %4094 = vmatprep.subr.mxu0 0.0
      %4095 = vmatpush1.msra.mxu0 0.0
      %4096 = vmatprep.mubr.f32.mxu0 0.0
      %4097 = vmatmul.mubr.f32.gmra.mrb[0].mxu0 %v4027
      %v4098 = vpop.f32.mrb[0].mxu0
      %v4099 = vadd.f32 0.0, %v4098
      %v4100 = vpop.f32.mrb[0].mxu0
      %4101 = vdwg.mxu0
      %4102 = vmatprep.subr.mxu0 0.0
      %4103 = vmatpush1.msra.mxu0 %v458
      %4104 = vmatprep.subr.mxu0 0.0
      %4105 = vmatpush1.msra.mxu0 0.0
      %4106 = vmatprep.subr.mxu0 0.0
      %4107 = vmatpush1.msra.mxu0 0.0
      %4108 = vmatprep.subr.mxu0 0.0
      %4109 = vmatpush1.msra.mxu0 0.0
      %4110 = vmatprep.subr.mxu0 0.0
      %4111 = vmatpush1.msra.mxu0 0.0
      %4112 = vmatprep.subr.mxu0 0.0
      %4113 = vmatpush1.msra.mxu0 0.0
      %4114 = vmatprep.subr.mxu0 0.0
      %4115 = vmatpush1.msra.mxu0 0.0
      %4116 = vmatprep.subr.mxu0 0.0
      %4117 = vmatpush1.msra.mxu0 0.0
      %4118 = vmatprep.subr.mxu0 0.0
      %4119 = vmatpush1.msra.mxu0 0.0
      %4120 = vmatprep.subr.mxu0 0.0
      %4121 = vmatpush1.msra.mxu0 0.0
      %4122 = vmatprep.subr.mxu0 0.0
      %4123 = vmatpush1.msra.mxu0 0.0
      %4124 = vmatprep.subr.mxu0 0.0
      %4125 = vmatpush1.msra.mxu0 0.0
      %4126 = vmatprep.subr.mxu0 0.0
      %4127 = vmatpush1.msra.mxu0 0.0
      %4128 = vmatprep.subr.mxu0 0.0
      %4129 = vmatpush1.msra.mxu0 0.0
      %4130 = vmatprep.subr.mxu0 0.0
      %4131 = vmatpush1.msra.mxu0 0.0
      %4132 = vmatprep.subr.mxu0 0.0
      %4133 = vmatpush1.msra.mxu0 0.0
      %4134 = vmatprep.subr.mxu0 0.0
      %4135 = vmatpush1.msra.mxu0 0.0
      %4136 = vmatprep.subr.mxu0 0.0
      %4137 = vmatpush1.msra.mxu0 0.0
      %4138 = vmatprep.subr.mxu0 0.0
      %4139 = vmatpush1.msra.mxu0 0.0
      %4140 = vmatprep.subr.mxu0 0.0
      %4141 = vmatpush1.msra.mxu0 0.0
      %4142 = vmatprep.subr.mxu0 0.0
      %4143 = vmatpush1.msra.mxu0 0.0
      %4144 = vmatprep.subr.mxu0 0.0
      %4145 = vmatpush1.msra.mxu0 0.0
      %4146 = vmatprep.subr.mxu0 0.0
      %4147 = vmatpush1.msra.mxu0 0.0
      %4148 = vmatprep.subr.mxu0 0.0
      %4149 = vmatpush1.msra.mxu0 0.0
      %4150 = vmatprep.subr.mxu0 0.0
      %4151 = vmatpush1.msra.mxu0 0.0
      %4152 = vmatprep.subr.mxu0 0.0
      %4153 = vmatpush1.msra.mxu0 0.0
      %4154 = vmatprep.subr.mxu0 0.0
      %4155 = vmatpush1.msra.mxu0 0.0
      %4156 = vmatprep.subr.mxu0 0.0
      %4157 = vmatpush1.msra.mxu0 0.0
      %4158 = vmatprep.subr.mxu0 0.0
      %4159 = vmatpush1.msra.mxu0 0.0
      %4160 = vmatprep.subr.mxu0 0.0
      %4161 = vmatpush1.msra.mxu0 0.0
      %4162 = vmatprep.subr.mxu0 0.0
      %4163 = vmatpush1.msra.mxu0 0.0
      %4164 = vmatprep.subr.mxu0 0.0
      %4165 = vmatpush1.msra.mxu0 0.0
      %4166 = vmatprep.mubr.f32.mxu0 0.0
      %4167 = vmatmul.mubr.f32.gmra.mrb[0].mxu0 %v2279
      %v4168 = vpop.f32.mrb[0].mxu0
      %v4169 = vadd.f32 0.0, %v4168
      %v4170 = vpop.f32.mrb[0].mxu0
      %4171 = vdwg.mxu0
      %4172 = vmatprep.subr.mxu0 0.0
      %4173 = vmatpush1.msra.mxu0 %v534
      %4174 = vmatprep.subr.mxu0 0.0
      %4175 = vmatpush1.msra.mxu0 0.0
      %4176 = vmatprep.subr.mxu0 0.0
      %4177 = vmatpush1.msra.mxu0 0.0
      %4178 = vmatprep.subr.mxu0 0.0
      %4179 = vmatpush1.msra.mxu0 0.0
      %4180 = vmatprep.subr.mxu0 0.0
      %4181 = vmatpush1.msra.mxu0 0.0
      %4182 = vmatprep.subr.mxu0 0.0
      %4183 = vmatpush1.msra.mxu0 0.0
      %4184 = vmatprep.subr.mxu0 0.0
      %4185 = vmatpush1.msra.mxu0 0.0
      %4186 = vmatprep.subr.mxu0 0.0
      %4187 = vmatpush1.msra.mxu0 0.0
      %4188 = vmatprep.subr.mxu0 0.0
      %4189 = vmatpush1.msra.mxu0 0.0
      %4190 = vmatprep.subr.mxu0 0.0
      %4191 = vmatpush1.msra.mxu0 0.0
      %4192 = vmatprep.subr.mxu0 0.0
      %4193 = vmatpush1.msra.mxu0 0.0
      %4194 = vmatprep.subr.mxu0 0.0
      %4195 = vmatpush1.msra.mxu0 0.0
      %4196 = vmatprep.subr.mxu0 0.0
      %4197 = vmatpush1.msra.mxu0 0.0
      %4198 = vmatprep.subr.mxu0 0.0
      %4199 = vmatpush1.msra.mxu0 0.0
      %4200 = vmatprep.subr.mxu0 0.0
      %4201 = vmatpush1.msra.mxu0 0.0
      %4202 = vmatprep.subr.mxu0 0.0
      %4203 = vmatpush1.msra.mxu0 0.0
      %4204 = vmatprep.subr.mxu0 0.0
      %4205 = vmatpush1.msra.mxu0 0.0
      %4206 = vmatprep.subr.mxu0 0.0
      %4207 = vmatpush1.msra.mxu0 0.0
      %4208 = vmatprep.subr.mxu0 0.0
      %4209 = vmatpush1.msra.mxu0 0.0
      %4210 = vmatprep.subr.mxu0 0.0
      %4211 = vmatpush1.msra.mxu0 0.0
      %4212 = vmatprep.subr.mxu0 0.0
      %4213 = vmatpush1.msra.mxu0 0.0
      %4214 = vmatprep.subr.mxu0 0.0
      %4215 = vmatpush1.msra.mxu0 0.0
      %4216 = vmatprep.subr.mxu0 0.0
      %4217 = vmatpush1.msra.mxu0 0.0
      %4218 = vmatprep.subr.mxu0 0.0
      %4219 = vmatpush1.msra.mxu0 0.0
      %4220 = vmatprep.subr.mxu0 0.0
      %4221 = vmatpush1.msra.mxu0 0.0
      %4222 = vmatprep.subr.mxu0 0.0
      %4223 = vmatpush1.msra.mxu0 0.0
      %4224 = vmatprep.subr.mxu0 0.0
      %4225 = vmatpush1.msra.mxu0 0.0
      %4226 = vmatprep.subr.mxu0 0.0
      %4227 = vmatpush1.msra.mxu0 0.0
      %4228 = vmatprep.subr.mxu0 0.0
      %4229 = vmatpush1.msra.mxu0 0.0
      %4230 = vmatprep.subr.mxu0 0.0
      %4231 = vmatpush1.msra.mxu0 0.0
      %4232 = vmatprep.subr.mxu0 0.0
      %4233 = vmatpush1.msra.mxu0 0.0
      %4234 = vmatprep.subr.mxu0 0.0
      %4235 = vmatpush1.msra.mxu0 0.0
      %4236 = vmatprep.mubr.f32.mxu0 0.0
      %4237 = vmatmul.mubr.f32.gmra.mrb[0].mxu0 %v2355
      %v4238 = vpop.f32.mrb[0].mxu0
      %v4239 = vadd.f32 0.0, %v4238
      %v4240 = vpop.f32.mrb[0].mxu0
      %4241 = vdwg.mxu0
      %4242 = vmatprep.subr.mxu0 0.0
      %4243 = vmatpush1.msra.mxu0 %v610
      %4244 = vmatprep.subr.mxu0 0.0
      %4245 = vmatpush1.msra.mxu0 0.0
      %4246 = vmatprep.subr.mxu0 0.0
      %4247 = vmatpush1.msra.mxu0 0.0
      %4248 = vmatprep.subr.mxu0 0.0
      %4249 = vmatpush1.msra.mxu0 0.0
      %4250 = vmatprep.subr.mxu0 0.0
      %4251 = vmatpush1.msra.mxu0 0.0
      %4252 = vmatprep.subr.mxu0 0.0
      %4253 = vmatpush1.msra.mxu0 0.0
      %4254 = vmatprep.subr.mxu0 0.0
      %4255 = vmatpush1.msra.mxu0 0.0
      %4256 = vmatprep.subr.mxu0 0.0
      %4257 = vmatpush1.msra.mxu0 0.0
      %4258 = vmatprep.subr.mxu0 0.0
      %4259 = vmatpush1.msra.mxu0 0.0
      %4260 = vmatprep.subr.mxu0 0.0
      %4261 = vmatpush1.msra.mxu0 0.0
      %4262 = vmatprep.subr.mxu0 0.0
      %4263 = vmatpush1.msra.mxu0 0.0
      %4264 = vmatprep.subr.mxu0 0.0
      %4265 = vmatpush1.msra.mxu0 0.0
      %4266 = vmatprep.subr.mxu0 0.0
      %4267 = vmatpush1.msra.mxu0 0.0
      %4268 = vmatprep.subr.mxu0 0.0
      %4269 = vmatpush1.msra.mxu0 0.0
      %4270 = vmatprep.subr.mxu0 0.0
      %4271 = vmatpush1.msra.mxu0 0.0
      %4272 = vmatprep.subr.mxu0 0.0
      %4273 = vmatpush1.msra.mxu0 0.0
      %4274 = vmatprep.subr.mxu0 0.0
      %4275 = vmatpush1.msra.mxu0 0.0
      %4276 = vmatprep.subr.mxu0 0.0
      %4277 = vmatpush1.msra.mxu0 0.0
      %4278 = vmatprep.subr.mxu0 0.0
      %4279 = vmatpush1.msra.mxu0 0.0
      %4280 = vmatprep.subr.mxu0 0.0
      %4281 = vmatpush1.msra.mxu0 0.0
      %4282 = vmatprep.subr.mxu0 0.0
      %4283 = vmatpush1.msra.mxu0 0.0
      %4284 = vmatprep.subr.mxu0 0.0
      %4285 = vmatpush1.msra.mxu0 0.0
      %4286 = vmatprep.subr.mxu0 0.0
      %4287 = vmatpush1.msra.mxu0 0.0
      %4288 = vmatprep.subr.mxu0 0.0
      %4289 = vmatpush1.msra.mxu0 0.0
      %4290 = vmatprep.subr.mxu0 0.0
      %4291 = vmatpush1.msra.mxu0 0.0
      %4292 = vmatprep.subr.mxu0 0.0
      %4293 = vmatpush1.msra.mxu0 0.0
      %4294 = vmatprep.subr.mxu0 0.0
      %4295 = vmatpush1.msra.mxu0 0.0
      %4296 = vmatprep.subr.mxu0 0.0
      %4297 = vmatpush1.msra.mxu0 0.0
      %4298 = vmatprep.subr.mxu0 0.0
      %4299 = vmatpush1.msra.mxu0 0.0
      %4300 = vmatprep.subr.mxu0 0.0
      %4301 = vmatpush1.msra.mxu0 0.0
      %4302 = vmatprep.subr.mxu0 0.0
      %4303 = vmatpush1.msra.mxu0 0.0
      %4304 = vmatprep.subr.mxu0 0.0
      %4305 = vmatpush1.msra.mxu0 0.0
      %4306 = vmatprep.mubr.f32.mxu0 0.0
      %4307 = vmatmul.mubr.f32.gmra.mrb[0].mxu0 %v2431
      %v4308 = vpop.f32.mrb[0].mxu0
      %v4309 = vadd.f32 0.0, %v4308
      %v4310 = vpop.f32.mrb[0].mxu0
      %4311 = vdwg.mxu0
      %4312 = vmatprep.subr.mxu0 0.0
      %4313 = vmatpush1.msra.mxu0 %v686
      %4314 = vmatprep.subr.mxu0 0.0
      %4315 = vmatpush1.msra.mxu0 0.0
      %4316 = vmatprep.subr.mxu0 0.0
      %4317 = vmatpush1.msra.mxu0 0.0
      %4318 = vmatprep.subr.mxu0 0.0
      %4319 = vmatpush1.msra.mxu0 0.0
      %4320 = vmatprep.subr.mxu0 0.0
      %4321 = vmatpush1.msra.mxu0 0.0
      %4322 = vmatprep.subr.mxu0 0.0
      %4323 = vmatpush1.msra.mxu0 0.0
      %4324 = vmatprep.subr.mxu0 0.0
      %4325 = vmatpush1.msra.mxu0 0.0
      %4326 = vmatprep.subr.mxu0 0.0
      %4327 = vmatpush1.msra.mxu0 0.0
      %4328 = vmatprep.subr.mxu0 0.0
      %4329 = vmatpush1.msra.mxu0 0.0
      %4330 = vmatprep.subr.mxu0 0.0
      %4331 = vmatpush1.msra.mxu0 0.0
      %4332 = vmatprep.subr.mxu0 0.0
      %4333 = vmatpush1.msra.mxu0 0.0
      %4334 = vmatprep.subr.mxu0 0.0
      %4335 = vmatpush1.msra.mxu0 0.0
      %4336 = vmatprep.subr.mxu0 0.0
      %4337 = vmatpush1.msra.mxu0 0.0
      %4338 = vmatprep.subr.mxu0 0.0
      %4339 = vmatpush1.msra.mxu0 0.0
      %4340 = vmatprep.subr.mxu0 0.0
      %4341 = vmatpush1.msra.mxu0 0.0
      %4342 = vmatprep.subr.mxu0 0.0
      %4343 = vmatpush1.msra.mxu0 0.0
      %4344 = vmatprep.subr.mxu0 0.0
      %4345 = vmatpush1.msra.mxu0 0.0
      %4346 = vmatprep.subr.mxu0 0.0
      %4347 = vmatpush1.msra.mxu0 0.0
      %4348 = vmatprep.subr.mxu0 0.0
      %4349 = vmatpush1.msra.mxu0 0.0
      %4350 = vmatprep.subr.mxu0 0.0
      %4351 = vmatpush1.msra.mxu0 0.0
      %4352 = vmatprep.subr.mxu0 0.0
      %4353 = vmatpush1.msra.mxu0 0.0
      %4354 = vmatprep.subr.mxu0 0.0
      %4355 = vmatpush1.msra.mxu0 0.0
      %4356 = vmatprep.subr.mxu0 0.0
      %4357 = vmatpush1.msra.mxu0 0.0
      %4358 = vmatprep.subr.mxu0 0.0
      %4359 = vmatpush1.msra.mxu0 0.0
      %4360 = vmatprep.subr.mxu0 0.0
      %4361 = vmatpush1.msra.mxu0 0.0
      %4362 = vmatprep.subr.mxu0 0.0
      %4363 = vmatpush1.msra.mxu0 0.0
      %4364 = vmatprep.subr.mxu0 0.0
      %4365 = vmatpush1.msra.mxu0 0.0
      %4366 = vmatprep.subr.mxu0 0.0
      %4367 = vmatpush1.msra.mxu0 0.0
      %4368 = vmatprep.subr.mxu0 0.0
      %4369 = vmatpush1.msra.mxu0 0.0
      %4370 = vmatprep.subr.mxu0 0.0
      %4371 = vmatpush1.msra.mxu0 0.0
      %4372 = vmatprep.subr.mxu0 0.0
      %4373 = vmatpush1.msra.mxu0 0.0
      %4374 = vmatprep.subr.mxu0 0.0
      %4375 = vmatpush1.msra.mxu0 0.0
      %4376 = vmatprep.mubr.f32.mxu0 0.0
      %4377 = vmatmul.mubr.f32.gmra.mrb[0].mxu0 %v2507
      %v4378 = vpop.f32.mrb[0].mxu0
      %v4379 = vadd.f32 0.0, %v4378
      %v4380 = vpop.f32.mrb[0].mxu0
      %4381 = vdwg.mxu0
      %4382 = vmatprep.subr.mxu0 0.0
      %4383 = vmatpush1.msra.mxu0 %v762
      %4384 = vmatprep.subr.mxu0 0.0
      %4385 = vmatpush1.msra.mxu0 0.0
      %4386 = vmatprep.subr.mxu0 0.0
      %4387 = vmatpush1.msra.mxu0 0.0
      %4388 = vmatprep.subr.mxu0 0.0
      %4389 = vmatpush1.msra.mxu0 0.0
      %4390 = vmatprep.subr.mxu0 0.0
      %4391 = vmatpush1.msra.mxu0 0.0
      %4392 = vmatprep.subr.mxu0 0.0
      %4393 = vmatpush1.msra.mxu0 0.0
      %4394 = vmatprep.subr.mxu0 0.0
      %4395 = vmatpush1.msra.mxu0 0.0
      %4396 = vmatprep.subr.mxu0 0.0
      %4397 = vmatpush1.msra.mxu0 0.0
      %4398 = vmatprep.subr.mxu0 0.0
      %4399 = vmatpush1.msra.mxu0 0.0
      %4400 = vmatprep.subr.mxu0 0.0
      %4401 = vmatpush1.msra.mxu0 0.0
      %4402 = vmatprep.subr.mxu0 0.0
      %4403 = vmatpush1.msra.mxu0 0.0
      %4404 = vmatprep.subr.mxu0 0.0
      %4405 = vmatpush1.msra.mxu0 0.0
      %4406 = vmatprep.subr.mxu0 0.0
      %4407 = vmatpush1.msra.mxu0 0.0
      %4408 = vmatprep.subr.mxu0 0.0
      %4409 = vmatpush1.msra.mxu0 0.0
      %4410 = vmatprep.subr.mxu0 0.0
      %4411 = vmatpush1.msra.mxu0 0.0
      %4412 = vmatprep.subr.mxu0 0.0
      %4413 = vmatpush1.msra.mxu0 0.0
      %4414 = vmatprep.subr.mxu0 0.0
      %4415 = vmatpush1.msra.mxu0 0.0
      %4416 = vmatprep.subr.mxu0 0.0
      %4417 = vmatpush1.msra.mxu0 0.0
      %4418 = vmatprep.subr.mxu0 0.0
      %4419 = vmatpush1.msra.mxu0 0.0
      %4420 = vmatprep.subr.mxu0 0.0
      %4421 = vmatpush1.msra.mxu0 0.0
      %4422 = vmatprep.subr.mxu0 0.0
      %4423 = vmatpush1.msra.mxu0 0.0
      %4424 = vmatprep.subr.mxu0 0.0
      %4425 = vmatpush1.msra.mxu0 0.0
      %4426 = vmatprep.subr.mxu0 0.0
      %4427 = vmatpush1.msra.mxu0 0.0
      %4428 = vmatprep.subr.mxu0 0.0
      %4429 = vmatpush1.msra.mxu0 0.0
      %4430 = vmatprep.subr.mxu0 0.0
      %4431 = vmatpush1.msra.mxu0 0.0
      %4432 = vmatprep.subr.mxu0 0.0
      %4433 = vmatpush1.msra.mxu0 0.0
      %4434 = vmatprep.subr.mxu0 0.0
      %4435 = vmatpush1.msra.mxu0 0.0
      %4436 = vmatprep.subr.mxu0 0.0
      %4437 = vmatpush1.msra.mxu0 0.0
      %4438 = vmatprep.subr.mxu0 0.0
      %4439 = vmatpush1.msra.mxu0 0.0
      %4440 = vmatprep.subr.mxu0 0.0
      %4441 = vmatpush1.msra.mxu0 0.0
      %4442 = vmatprep.subr.mxu0 0.0
      %4443 = vmatpush1.msra.mxu0 0.0
      %4444 = vmatprep.subr.mxu0 0.0
      %4445 = vmatpush1.msra.mxu0 0.0
      %4446 = vmatprep.mubr.f32.mxu0 0.0
      %4447 = vmatmul.mubr.f32.gmra.mrb[0].mxu0 %v2583
      %v4448 = vpop.f32.mrb[0].mxu0
      %v4449 = vadd.f32 0.0, %v4448
      %v4450 = vpop.f32.mrb[0].mxu0
      %4451 = vdwg.mxu0
      %4452 = vmatprep.subr.mxu0 0.0
      %4453 = vmatpush1.msra.mxu0 %v838
      %4454 = vmatprep.subr.mxu0 0.0
      %4455 = vmatpush1.msra.mxu0 0.0
      %4456 = vmatprep.subr.mxu0 0.0
      %4457 = vmatpush1.msra.mxu0 0.0
      %4458 = vmatprep.subr.mxu0 0.0
      %4459 = vmatpush1.msra.mxu0 0.0
      %4460 = vmatprep.subr.mxu0 0.0
      %4461 = vmatpush1.msra.mxu0 0.0
      %4462 = vmatprep.subr.mxu0 0.0
      %4463 = vmatpush1.msra.mxu0 0.0
      %4464 = vmatprep.subr.mxu0 0.0
      %4465 = vmatpush1.msra.mxu0 0.0
      %4466 = vmatprep.subr.mxu0 0.0
      %4467 = vmatpush1.msra.mxu0 0.0
      %4468 = vmatprep.subr.mxu0 0.0
      %4469 = vmatpush1.msra.mxu0 0.0
      %4470 = vmatprep.subr.mxu0 0.0
      %4471 = vmatpush1.msra.mxu0 0.0
      %4472 = vmatprep.subr.mxu0 0.0
      %4473 = vmatpush1.msra.mxu0 0.0
      %4474 = vmatprep.subr.mxu0 0.0
      %4475 = vmatpush1.msra.mxu0 0.0
      %4476 = vmatprep.subr.mxu0 0.0
      %4477 = vmatpush1.msra.mxu0 0.0
      %4478 = vmatprep.subr.mxu0 0.0
      %4479 = vmatpush1.msra.mxu0 0.0
      %4480 = vmatprep.subr.mxu0 0.0
      %4481 = vmatpush1.msra.mxu0 0.0
      %4482 = vmatprep.subr.mxu0 0.0
      %4483 = vmatpush1.msra.mxu0 0.0
      %4484 = vmatprep.subr.mxu0 0.0
      %4485 = vmatpush1.msra.mxu0 0.0
      %4486 = vmatprep.subr.mxu0 0.0
      %4487 = vmatpush1.msra.mxu0 0.0
      %4488 = vmatprep.subr.mxu0 0.0
      %4489 = vmatpush1.msra.mxu0 0.0
      %4490 = vmatprep.subr.mxu0 0.0
      %4491 = vmatpush1.msra.mxu0 0.0
      %4492 = vmatprep.subr.mxu0 0.0
      %4493 = vmatpush1.msra.mxu0 0.0
      %4494 = vmatprep.subr.mxu0 0.0
      %4495 = vmatpush1.msra.mxu0 0.0
      %4496 = vmatprep.subr.mxu0 0.0
      %4497 = vmatpush1.msra.mxu0 0.0
      %4498 = vmatprep.subr.mxu0 0.0
      %4499 = vmatpush1.msra.mxu0 0.0
      %4500 = vmatprep.subr.mxu0 0.0
      %4501 = vmatpush1.msra.mxu0 0.0
      %4502 = vmatprep.subr.mxu0 0.0
      %4503 = vmatpush1.msra.mxu0 0.0
      %4504 = vmatprep.subr.mxu0 0.0
      %4505 = vmatpush1.msra.mxu0 0.0
      %4506 = vmatprep.subr.mxu0 0.0
      %4507 = vmatpush1.msra.mxu0 0.0
      %4508 = vmatprep.subr.mxu0 0.0
      %4509 = vmatpush1.msra.mxu0 0.0
      %4510 = vmatprep.subr.mxu0 0.0
      %4511 = vmatpush1.msra.mxu0 0.0
      %4512 = vmatprep.subr.mxu0 0.0
      %4513 = vmatpush1.msra.mxu0 0.0
      %4514 = vmatprep.subr.mxu0 0.0
      %4515 = vmatpush1.msra.mxu0 0.0
      %4516 = vmatprep.mubr.f32.mxu0 0.0
      %4517 = vmatmul.mubr.f32.gmra.mrb[0].mxu0 %v2659
      %v4518 = vpop.f32.mrb[0].mxu0
      %v4519 = vadd.f32 0.0, %v4518
      %v4520 = vpop.f32.mrb[0].mxu0
      %4521 = vdwg.mxu0
      %4522 = vmatprep.subr.mxu0 0.0
      %4523 = vmatpush1.msra.mxu0 %v914
      %4524 = vmatprep.subr.mxu0 0.0
      %4525 = vmatpush1.msra.mxu0 0.0
      %4526 = vmatprep.subr.mxu0 0.0
      %4527 = vmatpush1.msra.mxu0 0.0
      %4528 = vmatprep.subr.mxu0 0.0
      %4529 = vmatpush1.msra.mxu0 0.0
      %4530 = vmatprep.subr.mxu0 0.0
      %4531 = vmatpush1.msra.mxu0 0.0
      %4532 = vmatprep.subr.mxu0 0.0
      %4533 = vmatpush1.msra.mxu0 0.0
      %4534 = vmatprep.subr.mxu0 0.0
      %4535 = vmatpush1.msra.mxu0 0.0
      %4536 = vmatprep.subr.mxu0 0.0
      %4537 = vmatpush1.msra.mxu0 0.0
      %4538 = vmatprep.subr.mxu0 0.0
      %4539 = vmatpush1.msra.mxu0 0.0
      %4540 = vmatprep.subr.mxu0 0.0
      %4541 = vmatpush1.msra.mxu0 0.0
      %4542 = vmatprep.subr.mxu0 0.0
      %4543 = vmatpush1.msra.mxu0 0.0
      %4544 = vmatprep.subr.mxu0 0.0
      %4545 = vmatpush1.msra.mxu0 0.0
      %4546 = vmatprep.subr.mxu0 0.0
      %4547 = vmatpush1.msra.mxu0 0.0
      %4548 = vmatprep.subr.mxu0 0.0
      %4549 = vmatpush1.msra.mxu0 0.0
      %4550 = vmatprep.subr.mxu0 0.0
      %4551 = vmatpush1.msra.mxu0 0.0
      %4552 = vmatprep.subr.mxu0 0.0
      %4553 = vmatpush1.msra.mxu0 0.0
      %4554 = vmatprep.subr.mxu0 0.0
      %4555 = vmatpush1.msra.mxu0 0.0
      %4556 = vmatprep.subr.mxu0 0.0
      %4557 = vmatpush1.msra.mxu0 0.0
      %4558 = vmatprep.subr.mxu0 0.0
      %4559 = vmatpush1.msra.mxu0 0.0
      %4560 = vmatprep.subr.mxu0 0.0
      %4561 = vmatpush1.msra.mxu0 0.0
      %4562 = vmatprep.subr.mxu0 0.0
      %4563 = vmatpush1.msra.mxu0 0.0
      %4564 = vmatprep.subr.mxu0 0.0
      %4565 = vmatpush1.msra.mxu0 0.0
      %4566 = vmatprep.subr.mxu0 0.0
      %4567 = vmatpush1.msra.mxu0 0.0
      %4568 = vmatprep.subr.mxu0 0.0
      %4569 = vmatpush1.msra.mxu0 0.0
      %4570 = vmatprep.subr.mxu0 0.0
      %4571 = vmatpush1.msra.mxu0 0.0
      %4572 = vmatprep.subr.mxu0 0.0
      %4573 = vmatpush1.msra.mxu0 0.0
      %4574 = vmatprep.subr.mxu0 0.0
      %4575 = vmatpush1.msra.mxu0 0.0
      %4576 = vmatprep.subr.mxu0 0.0
      %4577 = vmatpush1.msra.mxu0 0.0
      %4578 = vmatprep.subr.mxu0 0.0
      %4579 = vmatpush1.msra.mxu0 0.0
      %4580 = vmatprep.subr.mxu0 0.0
      %4581 = vmatpush1.msra.mxu0 0.0
      %4582 = vmatprep.subr.mxu0 0.0
      %4583 = vmatpush1.msra.mxu0 0.0
      %4584 = vmatprep.subr.mxu0 0.0
      %4585 = vmatpush1.msra.mxu0 0.0
      %4586 = vmatprep.mubr.f32.mxu0 0.0
      %4587 = vmatmul.mubr.f32.gmra.mrb[0].mxu0 %v2735
      %v4588 = vpop.f32.mrb[0].mxu0
      %v4589 = vadd.f32 0.0, %v4588
      %v4590 = vpop.f32.mrb[0].mxu0
      %4591 = vdwg.mxu0
      %4592 = vmatprep.subr.mxu0 0.0
      %4593 = vmatpush1.msra.mxu0 %v990
      %4594 = vmatprep.subr.mxu0 0.0
      %4595 = vmatpush1.msra.mxu0 0.0
      %4596 = vmatprep.subr.mxu0 0.0
      %4597 = vmatpush1.msra.mxu0 0.0
      %4598 = vmatprep.subr.mxu0 0.0
      %4599 = vmatpush1.msra.mxu0 0.0
      %4600 = vmatprep.subr.mxu0 0.0
      %4601 = vmatpush1.msra.mxu0 0.0
      %4602 = vmatprep.subr.mxu0 0.0
      %4603 = vmatpush1.msra.mxu0 0.0
      %4604 = vmatprep.subr.mxu0 0.0
      %4605 = vmatpush1.msra.mxu0 0.0
      %4606 = vmatprep.subr.mxu0 0.0
      %4607 = vmatpush1.msra.mxu0 0.0
      %4608 = vmatprep.subr.mxu0 0.0
      %4609 = vmatpush1.msra.mxu0 0.0
      %4610 = vmatprep.subr.mxu0 0.0
      %4611 = vmatpush1.msra.mxu0 0.0
      %4612 = vmatprep.subr.mxu0 0.0
      %4613 = vmatpush1.msra.mxu0 0.0
      %4614 = vmatprep.subr.mxu0 0.0
      %4615 = vmatpush1.msra.mxu0 0.0
      %4616 = vmatprep.subr.mxu0 0.0
      %4617 = vmatpush1.msra.mxu0 0.0
      %4618 = vmatprep.subr.mxu0 0.0
      %4619 = vmatpush1.msra.mxu0 0.0
      %4620 = vmatprep.subr.mxu0 0.0
      %4621 = vmatpush1.msra.mxu0 0.0
      %4622 = vmatprep.subr.mxu0 0.0
      %4623 = vmatpush1.msra.mxu0 0.0
      %4624 = vmatprep.subr.mxu0 0.0
      %4625 = vmatpush1.msra.mxu0 0.0
      %4626 = vmatprep.subr.mxu0 0.0
      %4627 = vmatpush1.msra.mxu0 0.0
      %4628 = vmatprep.subr.mxu0 0.0
      %4629 = vmatpush1.msra.mxu0 0.0
      %4630 = vmatprep.subr.mxu0 0.0
      %4631 = vmatpush1.msra.mxu0 0.0
      %4632 = vmatprep.subr.mxu0 0.0
      %4633 = vmatpush1.msra.mxu0 0.0
      %4634 = vmatprep.subr.mxu0 0.0
      %4635 = vmatpush1.msra.mxu0 0.0
      %4636 = vmatprep.subr.mxu0 0.0
      %4637 = vmatpush1.msra.mxu0 0.0
      %4638 = vmatprep.subr.mxu0 0.0
      %4639 = vmatpush1.msra.mxu0 0.0
      %4640 = vmatprep.subr.mxu0 0.0
      %4641 = vmatpush1.msra.mxu0 0.0
      %4642 = vmatprep.subr.mxu0 0.0
      %4643 = vmatpush1.msra.mxu0 0.0
      %4644 = vmatprep.subr.mxu0 0.0
      %4645 = vmatpush1.msra.mxu0 0.0
      %4646 = vmatprep.subr.mxu0 0.0
      %4647 = vmatpush1.msra.mxu0 0.0
      %4648 = vmatprep.subr.mxu0 0.0
      %4649 = vmatpush1.msra.mxu0 0.0
      %4650 = vmatprep.subr.mxu0 0.0
      %4651 = vmatpush1.msra.mxu0 0.0
      %4652 = vmatprep.subr.mxu0 0.0
      %4653 = vmatpush1.msra.mxu0 0.0
      %4654 = vmatprep.subr.mxu0 0.0
      %4655 = vmatpush1.msra.mxu0 0.0
      %4656 = vmatprep.mubr.f32.mxu0 0.0
      %4657 = vmatmul.mubr.f32.gmra.mrb[0].mxu0 %v2811
      %v4658 = vpop.f32.mrb[0].mxu0
      %v4659 = vadd.f32 0.0, %v4658
      %v4660 = vpop.f32.mrb[0].mxu0
      %4661 = vdwg.mxu0
      %4662 = vmatprep.subr.mxu0 0.0
      %4663 = vmatpush1.msra.mxu0 %v1066
      %4664 = vmatprep.subr.mxu0 0.0
      %4665 = vmatpush1.msra.mxu0 0.0
      %4666 = vmatprep.subr.mxu0 0.0
      %4667 = vmatpush1.msra.mxu0 0.0
      %4668 = vmatprep.subr.mxu0 0.0
      %4669 = vmatpush1.msra.mxu0 0.0
      %4670 = vmatprep.subr.mxu0 0.0
      %4671 = vmatpush1.msra.mxu0 0.0
      %4672 = vmatprep.subr.mxu0 0.0
      %4673 = vmatpush1.msra.mxu0 0.0
      %4674 = vmatprep.subr.mxu0 0.0
      %4675 = vmatpush1.msra.mxu0 0.0
      %4676 = vmatprep.subr.mxu0 0.0
      %4677 = vmatpush1.msra.mxu0 0.0
      %4678 = vmatprep.subr.mxu0 0.0
      %4679 = vmatpush1.msra.mxu0 0.0
      %4680 = vmatprep.subr.mxu0 0.0
      %4681 = vmatpush1.msra.mxu0 0.0
      %4682 = vmatprep.subr.mxu0 0.0
      %4683 = vmatpush1.msra.mxu0 0.0
      %4684 = vmatprep.subr.mxu0 0.0
      %4685 = vmatpush1.msra.mxu0 0.0
      %4686 = vmatprep.subr.mxu0 0.0
      %4687 = vmatpush1.msra.mxu0 0.0
      %4688 = vmatprep.subr.mxu0 0.0
      %4689 = vmatpush1.msra.mxu0 0.0
      %4690 = vmatprep.subr.mxu0 0.0
      %4691 = vmatpush1.msra.mxu0 0.0
      %4692 = vmatprep.subr.mxu0 0.0
      %4693 = vmatpush1.msra.mxu0 0.0
      %4694 = vmatprep.subr.mxu0 0.0
      %4695 = vmatpush1.msra.mxu0 0.0
      %4696 = vmatprep.subr.mxu0 0.0
      %4697 = vmatpush1.msra.mxu0 0.0
      %4698 = vmatprep.subr.mxu0 0.0
      %4699 = vmatpush1.msra.mxu0 0.0
      %4700 = vmatprep.subr.mxu0 0.0
      %4701 = vmatpush1.msra.mxu0 0.0
      %4702 = vmatprep.subr.mxu0 0.0
      %4703 = vmatpush1.msra.mxu0 0.0
      %4704 = vmatprep.subr.mxu0 0.0
      %4705 = vmatpush1.msra.mxu0 0.0
      %4706 = vmatprep.subr.mxu0 0.0
      %4707 = vmatpush1.msra.mxu0 0.0
      %4708 = vmatprep.subr.mxu0 0.0
      %4709 = vmatpush1.msra.mxu0 0.0
      %4710 = vmatprep.subr.mxu0 0.0
      %4711 = vmatpush1.msra.mxu0 0.0
      %4712 = vmatprep.subr.mxu0 0.0
      %4713 = vmatpush1.msra.mxu0 0.0
      %4714 = vmatprep.subr.mxu0 0.0
      %4715 = vmatpush1.msra.mxu0 0.0
      %4716 = vmatprep.subr.mxu0 0.0
      %4717 = vmatpush1.msra.mxu0 0.0
      %4718 = vmatprep.subr.mxu0 0.0
      %4719 = vmatpush1.msra.mxu0 0.0
      %4720 = vmatprep.subr.mxu0 0.0
      %4721 = vmatpush1.msra.mxu0 0.0
      %4722 = vmatprep.subr.mxu0 0.0
      %4723 = vmatpush1.msra.mxu0 0.0
      %4724 = vmatprep.subr.mxu0 0.0
      %4725 = vmatpush1.msra.mxu0 0.0
      %4726 = vmatprep.mubr.f32.mxu0 0.0
      %4727 = vmatmul.mubr.f32.gmra.mrb[0].mxu0 %v2887
      %v4728 = vpop.f32.mrb[0].mxu0
      %v4729 = vadd.f32 0.0, %v4728
      %v4730 = vpop.f32.mrb[0].mxu0
      %4731 = vdwg.mxu0
      %4732 = vmatprep.subr.mxu0 0.0
      %4733 = vmatpush1.msra.mxu0 %v1142
      %4734 = vmatprep.subr.mxu0 0.0
      %4735 = vmatpush1.msra.mxu0 0.0
      %4736 = vmatprep.subr.mxu0 0.0
      %4737 = vmatpush1.msra.mxu0 0.0
      %4738 = vmatprep.subr.mxu0 0.0
      %4739 = vmatpush1.msra.mxu0 0.0
      %4740 = vmatprep.subr.mxu0 0.0
      %4741 = vmatpush1.msra.mxu0 0.0
      %4742 = vmatprep.subr.mxu0 0.0
      %4743 = vmatpush1.msra.mxu0 0.0
      %4744 = vmatprep.subr.mxu0 0.0
      %4745 = vmatpush1.msra.mxu0 0.0
      %4746 = vmatprep.subr.mxu0 0.0
      %4747 = vmatpush1.msra.mxu0 0.0
      %4748 = vmatprep.subr.mxu0 0.0
      %4749 = vmatpush1.msra.mxu0 0.0
      %4750 = vmatprep.subr.mxu0 0.0
      %4751 = vmatpush1.msra.mxu0 0.0
      %4752 = vmatprep.subr.mxu0 0.0
      %4753 = vmatpush1.msra.mxu0 0.0
      %4754 = vmatprep.subr.mxu0 0.0
      %4755 = vmatpush1.msra.mxu0 0.0
      %4756 = vmatprep.subr.mxu0 0.0
      %4757 = vmatpush1.msra.mxu0 0.0
      %4758 = vmatprep.subr.mxu0 0.0
      %4759 = vmatpush1.msra.mxu0 0.0
      %4760 = vmatprep.subr.mxu0 0.0
      %4761 = vmatpush1.msra.mxu0 0.0
      %4762 = vmatprep.subr.mxu0 0.0
      %4763 = vmatpush1.msra.mxu0 0.0
      %4764 = vmatprep.subr.mxu0 0.0
      %4765 = vmatpush1.msra.mxu0 0.0
      %4766 = vmatprep.subr.mxu0 0.0
      %4767 = vmatpush1.msra.mxu0 0.0
      %4768 = vmatprep.subr.mxu0 0.0
      %4769 = vmatpush1.msra.mxu0 0.0
      %4770 = vmatprep.subr.mxu0 0.0
      %4771 = vmatpush1.msra.mxu0 0.0
      %4772 = vmatprep.subr.mxu0 0.0
      %4773 = vmatpush1.msra.mxu0 0.0
      %4774 = vmatprep.subr.mxu0 0.0
      %4775 = vmatpush1.msra.mxu0 0.0
      %4776 = vmatprep.subr.mxu0 0.0
      %4777 = vmatpush1.msra.mxu0 0.0
      %4778 = vmatprep.subr.mxu0 0.0
      %4779 = vmatpush1.msra.mxu0 0.0
      %4780 = vmatprep.subr.mxu0 0.0
      %4781 = vmatpush1.msra.mxu0 0.0
      %4782 = vmatprep.subr.mxu0 0.0
      %4783 = vmatpush1.msra.mxu0 0.0
      %4784 = vmatprep.subr.mxu0 0.0
      %4785 = vmatpush1.msra.mxu0 0.0
      %4786 = vmatprep.subr.mxu0 0.0
      %4787 = vmatpush1.msra.mxu0 0.0
      %4788 = vmatprep.subr.mxu0 0.0
      %4789 = vmatpush1.msra.mxu0 0.0
      %4790 = vmatprep.subr.mxu0 0.0
      %4791 = vmatpush1.msra.mxu0 0.0
      %4792 = vmatprep.subr.mxu0 0.0
      %4793 = vmatpush1.msra.mxu0 0.0
      %4794 = vmatprep.subr.mxu0 0.0
      %4795 = vmatpush1.msra.mxu0 0.0
      %4796 = vmatprep.mubr.f32.mxu0 0.0
      %4797 = vmatmul.mubr.f32.gmra.mrb[0].mxu0 %v2963
      %v4798 = vpop.f32.mrb[0].mxu0
      %v4799 = vadd.f32 0.0, %v4798
      %v4800 = vpop.f32.mrb[0].mxu0
      %4801 = vdwg.mxu0
      %4802 = vmatprep.subr.mxu0 0.0
      %4803 = vmatpush1.msra.mxu0 %v1218
      %4804 = vmatprep.subr.mxu0 0.0
      %4805 = vmatpush1.msra.mxu0 0.0
      %4806 = vmatprep.subr.mxu0 0.0
      %4807 = vmatpush1.msra.mxu0 0.0
      %4808 = vmatprep.subr.mxu0 0.0
      %4809 = vmatpush1.msra.mxu0 0.0
      %4810 = vmatprep.subr.mxu0 0.0
      %4811 = vmatpush1.msra.mxu0 0.0
      %4812 = vmatprep.subr.mxu0 0.0
      %4813 = vmatpush1.msra.mxu0 0.0
      %4814 = vmatprep.subr.mxu0 0.0
      %4815 = vmatpush1.msra.mxu0 0.0
      %4816 = vmatprep.subr.mxu0 0.0
      %4817 = vmatpush1.msra.mxu0 0.0
      %4818 = vmatprep.subr.mxu0 0.0
      %4819 = vmatpush1.msra.mxu0 0.0
      %4820 = vmatprep.subr.mxu0 0.0
      %4821 = vmatpush1.msra.mxu0 0.0
      %4822 = vmatprep.subr.mxu0 0.0
      %4823 = vmatpush1.msra.mxu0 0.0
      %4824 = vmatprep.subr.mxu0 0.0
      %4825 = vmatpush1.msra.mxu0 0.0
      %4826 = vmatprep.subr.mxu0 0.0
      %4827 = vmatpush1.msra.mxu0 0.0
      %4828 = vmatprep.subr.mxu0 0.0
      %4829 = vmatpush1.msra.mxu0 0.0
      %4830 = vmatprep.subr.mxu0 0.0
      %4831 = vmatpush1.msra.mxu0 0.0
      %4832 = vmatprep.subr.mxu0 0.0
      %4833 = vmatpush1.msra.mxu0 0.0
      %4834 = vmatprep.subr.mxu0 0.0
      %4835 = vmatpush1.msra.mxu0 0.0
      %4836 = vmatprep.subr.mxu0 0.0
      %4837 = vmatpush1.msra.mxu0 0.0
      %4838 = vmatprep.subr.mxu0 0.0
      %4839 = vmatpush1.msra.mxu0 0.0
      %4840 = vmatprep.subr.mxu0 0.0
      %4841 = vmatpush1.msra.mxu0 0.0
      %4842 = vmatprep.subr.mxu0 0.0
      %4843 = vmatpush1.msra.mxu0 0.0
      %4844 = vmatprep.subr.mxu0 0.0
      %4845 = vmatpush1.msra.mxu0 0.0
      %4846 = vmatprep.subr.mxu0 0.0
      %4847 = vmatpush1.msra.mxu0 0.0
      %4848 = vmatprep.subr.mxu0 0.0
      %4849 = vmatpush1.msra.mxu0 0.0
      %4850 = vmatprep.subr.mxu0 0.0
      %4851 = vmatpush1.msra.mxu0 0.0
      %4852 = vmatprep.subr.mxu0 0.0
      %4853 = vmatpush1.msra.mxu0 0.0
      %4854 = vmatprep.subr.mxu0 0.0
      %4855 = vmatpush1.msra.mxu0 0.0
      %4856 = vmatprep.subr.mxu0 0.0
      %4857 = vmatpush1.msra.mxu0 0.0
      %4858 = vmatprep.subr.mxu0 0.0
      %4859 = vmatpush1.msra.mxu0 0.0
      %4860 = vmatprep.subr.mxu0 0.0
      %4861 = vmatpush1.msra.mxu0 0.0
      %4862 = vmatprep.subr.mxu0 0.0
      %4863 = vmatpush1.msra.mxu0 0.0
      %4864 = vmatprep.subr.mxu0 0.0
      %4865 = vmatpush1.msra.mxu0 0.0
      %4866 = vmatprep.mubr.f32.mxu0 0.0
      %4867 = vmatmul.mubr.f32.gmra.mrb[0].mxu0 %v3039
      %v4868 = vpop.f32.mrb[0].mxu0
      %v4869 = vadd.f32 0.0, %v4868
      %v4870 = vpop.f32.mrb[0].mxu0
      %4871 = vdwg.mxu0
      %4872 = vmatprep.subr.mxu0 0.0
      %4873 = vmatpush1.msra.mxu0 %v1294
      %4874 = vmatprep.subr.mxu0 0.0
      %4875 = vmatpush1.msra.mxu0 0.0
      %4876 = vmatprep.subr.mxu0 0.0
      %4877 = vmatpush1.msra.mxu0 0.0
      %4878 = vmatprep.subr.mxu0 0.0
      %4879 = vmatpush1.msra.mxu0 0.0
      %4880 = vmatprep.subr.mxu0 0.0
      %4881 = vmatpush1.msra.mxu0 0.0
      %4882 = vmatprep.subr.mxu0 0.0
      %4883 = vmatpush1.msra.mxu0 0.0
      %4884 = vmatprep.subr.mxu0 0.0
      %4885 = vmatpush1.msra.mxu0 0.0
      %4886 = vmatprep.subr.mxu0 0.0
      %4887 = vmatpush1.msra.mxu0 0.0
      %4888 = vmatprep.subr.mxu0 0.0
      %4889 = vmatpush1.msra.mxu0 0.0
      %4890 = vmatprep.subr.mxu0 0.0
      %4891 = vmatpush1.msra.mxu0 0.0
      %4892 = vmatprep.subr.mxu0 0.0
      %4893 = vmatpush1.msra.mxu0 0.0
      %4894 = vmatprep.subr.mxu0 0.0
      %4895 = vmatpush1.msra.mxu0 0.0
      %4896 = vmatprep.subr.mxu0 0.0
      %4897 = vmatpush1.msra.mxu0 0.0
      %4898 = vmatprep.subr.mxu0 0.0
      %4899 = vmatpush1.msra.mxu0 0.0
      %4900 = vmatprep.subr.mxu0 0.0
      %4901 = vmatpush1.msra.mxu0 0.0
      %4902 = vmatprep.subr.mxu0 0.0
      %4903 = vmatpush1.msra.mxu0 0.0
      %4904 = vmatprep.subr.mxu0 0.0
      %4905 = vmatpush1.msra.mxu0 0.0
      %4906 = vmatprep.subr.mxu0 0.0
      %4907 = vmatpush1.msra.mxu0 0.0
      %4908 = vmatprep.subr.mxu0 0.0
      %4909 = vmatpush1.msra.mxu0 0.0
      %4910 = vmatprep.subr.mxu0 0.0
      %4911 = vmatpush1.msra.mxu0 0.0
      %4912 = vmatprep.subr.mxu0 0.0
      %4913 = vmatpush1.msra.mxu0 0.0
      %4914 = vmatprep.subr.mxu0 0.0
      %4915 = vmatpush1.msra.mxu0 0.0
      %4916 = vmatprep.subr.mxu0 0.0
      %4917 = vmatpush1.msra.mxu0 0.0
      %4918 = vmatprep.subr.mxu0 0.0
      %4919 = vmatpush1.msra.mxu0 0.0
      %4920 = vmatprep.subr.mxu0 0.0
      %4921 = vmatpush1.msra.mxu0 0.0
      %4922 = vmatprep.subr.mxu0 0.0
      %4923 = vmatpush1.msra.mxu0 0.0
      %4924 = vmatprep.subr.mxu0 0.0
      %4925 = vmatpush1.msra.mxu0 0.0
      %4926 = vmatprep.subr.mxu0 0.0
      %4927 = vmatpush1.msra.mxu0 0.0
      %4928 = vmatprep.subr.mxu0 0.0
      %4929 = vmatpush1.msra.mxu0 0.0
      %4930 = vmatprep.subr.mxu0 0.0
      %4931 = vmatpush1.msra.mxu0 0.0
      %4932 = vmatprep.subr.mxu0 0.0
      %4933 = vmatpush1.msra.mxu0 0.0
      %4934 = vmatprep.subr.mxu0 0.0
      %4935 = vmatpush1.msra.mxu0 0.0
      %4936 = vmatprep.mubr.f32.mxu0 0.0
      %4937 = vmatmul.mubr.f32.gmra.mrb[0].mxu0 %v3115
      %v4938 = vpop.f32.mrb[0].mxu0
      %v4939 = vadd.f32 0.0, %v4938
      %v4940 = vpop.f32.mrb[0].mxu0
      %4941 = vdwg.mxu0
      %4942 = vmatprep.subr.mxu0 0.0
      %4943 = vmatpush1.msra.mxu0 %v1370
      %4944 = vmatprep.subr.mxu0 0.0
      %4945 = vmatpush1.msra.mxu0 0.0
      %4946 = vmatprep.subr.mxu0 0.0
      %4947 = vmatpush1.msra.mxu0 0.0
      %4948 = vmatprep.subr.mxu0 0.0
      %4949 = vmatpush1.msra.mxu0 0.0
      %4950 = vmatprep.subr.mxu0 0.0
      %4951 = vmatpush1.msra.mxu0 0.0
      %4952 = vmatprep.subr.mxu0 0.0
      %4953 = vmatpush1.msra.mxu0 0.0
      %4954 = vmatprep.subr.mxu0 0.0
      %4955 = vmatpush1.msra.mxu0 0.0
      %4956 = vmatprep.subr.mxu0 0.0
      %4957 = vmatpush1.msra.mxu0 0.0
      %4958 = vmatprep.subr.mxu0 0.0
      %4959 = vmatpush1.msra.mxu0 0.0
      %4960 = vmatprep.subr.mxu0 0.0
      %4961 = vmatpush1.msra.mxu0 0.0
      %4962 = vmatprep.subr.mxu0 0.0
      %4963 = vmatpush1.msra.mxu0 0.0
      %4964 = vmatprep.subr.mxu0 0.0
      %4965 = vmatpush1.msra.mxu0 0.0
      %4966 = vmatprep.subr.mxu0 0.0
      %4967 = vmatpush1.msra.mxu0 0.0
      %4968 = vmatprep.subr.mxu0 0.0
      %4969 = vmatpush1.msra.mxu0 0.0
      %4970 = vmatprep.subr.mxu0 0.0
      %4971 = vmatpush1.msra.mxu0 0.0
      %4972 = vmatprep.subr.mxu0 0.0
      %4973 = vmatpush1.msra.mxu0 0.0
      %4974 = vmatprep.subr.mxu0 0.0
      %4975 = vmatpush1.msra.mxu0 0.0
      %4976 = vmatprep.subr.mxu0 0.0
      %4977 = vmatpush1.msra.mxu0 0.0
      %4978 = vmatprep.subr.mxu0 0.0
      %4979 = vmatpush1.msra.mxu0 0.0
      %4980 = vmatprep.subr.mxu0 0.0
      %4981 = vmatpush1.msra.mxu0 0.0
      %4982 = vmatprep.subr.mxu0 0.0
      %4983 = vmatpush1.msra.mxu0 0.0
      %4984 = vmatprep.subr.mxu0 0.0
      %4985 = vmatpush1.msra.mxu0 0.0
      %4986 = vmatprep.subr.mxu0 0.0
      %4987 = vmatpush1.msra.mxu0 0.0
      %4988 = vmatprep.subr.mxu0 0.0
      %4989 = vmatpush1.msra.mxu0 0.0
      %4990 = vmatprep.subr.mxu0 0.0
      %4991 = vmatpush1.msra.mxu0 0.0
      %4992 = vmatprep.subr.mxu0 0.0
      %4993 = vmatpush1.msra.mxu0 0.0
      %4994 = vmatprep.subr.mxu0 0.0
      %4995 = vmatpush1.msra.mxu0 0.0
      %4996 = vmatprep.subr.mxu0 0.0
      %4997 = vmatpush1.msra.mxu0 0.0
      %4998 = vmatprep.subr.mxu0 0.0
      %4999 = vmatpush1.msra.mxu0 0.0
      %5000 = vmatprep.subr.mxu0 0.0
      %5001 = vmatpush1.msra.mxu0 0.0
      %5002 = vmatprep.subr.mxu0 0.0
      %5003 = vmatpush1.msra.mxu0 0.0
      %5004 = vmatprep.subr.mxu0 0.0
      %5005 = vmatpush1.msra.mxu0 0.0
      %5006 = vmatprep.mubr.f32.mxu0 0.0
      %5007 = vmatmul.mubr.f32.gmra.mrb[0].mxu0 %v3191
      %v5008 = vpop.f32.mrb[0].mxu0
      %v5009 = vadd.f32 0.0, %v5008
      %v5010 = vpop.f32.mrb[0].mxu0
      %5011 = vdwg.mxu0
      %5012 = vmatprep.subr.mxu0 0.0
      %5013 = vmatpush1.msra.mxu0 %v1446
      %5014 = vmatprep.subr.mxu0 0.0
      %5015 = vmatpush1.msra.mxu0 0.0
      %5016 = vmatprep.subr.mxu0 0.0
      %5017 = vmatpush1.msra.mxu0 0.0
      %5018 = vmatprep.subr.mxu0 0.0
      %5019 = vmatpush1.msra.mxu0 0.0
      %5020 = vmatprep.subr.mxu0 0.0
      %5021 = vmatpush1.msra.mxu0 0.0
      %5022 = vmatprep.subr.mxu0 0.0
      %5023 = vmatpush1.msra.mxu0 0.0
      %5024 = vmatprep.subr.mxu0 0.0
      %5025 = vmatpush1.msra.mxu0 0.0
      %5026 = vmatprep.subr.mxu0 0.0
      %5027 = vmatpush1.msra.mxu0 0.0
      %5028 = vmatprep.subr.mxu0 0.0
      %5029 = vmatpush1.msra.mxu0 0.0
      %5030 = vmatprep.subr.mxu0 0.0
      %5031 = vmatpush1.msra.mxu0 0.0
      %5032 = vmatprep.subr.mxu0 0.0
      %5033 = vmatpush1.msra.mxu0 0.0
      %5034 = vmatprep.subr.mxu0 0.0
      %5035 = vmatpush1.msra.mxu0 0.0
      %5036 = vmatprep.subr.mxu0 0.0
      %5037 = vmatpush1.msra.mxu0 0.0
      %5038 = vmatprep.subr.mxu0 0.0
      %5039 = vmatpush1.msra.mxu0 0.0
      %5040 = vmatprep.subr.mxu0 0.0
      %5041 = vmatpush1.msra.mxu0 0.0
      %5042 = vmatprep.subr.mxu0 0.0
      %5043 = vmatpush1.msra.mxu0 0.0
      %5044 = vmatprep.subr.mxu0 0.0
      %5045 = vmatpush1.msra.mxu0 0.0
      %5046 = vmatprep.subr.mxu0 0.0
      %5047 = vmatpush1.msra.mxu0 0.0
      %5048 = vmatprep.subr.mxu0 0.0
      %5049 = vmatpush1.msra.mxu0 0.0
      %5050 = vmatprep.subr.mxu0 0.0
      %5051 = vmatpush1.msra.mxu0 0.0
      %5052 = vmatprep.subr.mxu0 0.0
      %5053 = vmatpush1.msra.mxu0 0.0
      %5054 = vmatprep.subr.mxu0 0.0
      %5055 = vmatpush1.msra.mxu0 0.0
      %5056 = vmatprep.subr.mxu0 0.0
      %5057 = vmatpush1.msra.mxu0 0.0
      %5058 = vmatprep.subr.mxu0 0.0
      %5059 = vmatpush1.msra.mxu0 0.0
      %5060 = vmatprep.subr.mxu0 0.0
      %5061 = vmatpush1.msra.mxu0 0.0
      %5062 = vmatprep.subr.mxu0 0.0
      %5063 = vmatpush1.msra.mxu0 0.0
      %5064 = vmatprep.subr.mxu0 0.0
      %5065 = vmatpush1.msra.mxu0 0.0
      %5066 = vmatprep.subr.mxu0 0.0
      %5067 = vmatpush1.msra.mxu0 0.0
      %5068 = vmatprep.subr.mxu0 0.0
      %5069 = vmatpush1.msra.mxu0 0.0
      %5070 = vmatprep.subr.mxu0 0.0
      %5071 = vmatpush1.msra.mxu0 0.0
      %5072 = vmatprep.subr.mxu0 0.0
      %5073 = vmatpush1.msra.mxu0 0.0
      %5074 = vmatprep.subr.mxu0 0.0
      %5075 = vmatpush1.msra.mxu0 0.0
      %5076 = vmatprep.mubr.f32.mxu0 0.0
      %5077 = vmatmul.mubr.f32.gmra.mrb[0].mxu0 %v3267
      %v5078 = vpop.f32.mrb[0].mxu0
      %v5079 = vadd.f32 0.0, %v5078
      %v5080 = vpop.f32.mrb[0].mxu0
      %5081 = vdwg.mxu0
      %5082 = vmatprep.subr.mxu0 0.0
      %5083 = vmatpush1.msra.mxu0 %v1522
      %5084 = vmatprep.subr.mxu0 0.0
      %5085 = vmatpush1.msra.mxu0 0.0
      %5086 = vmatprep.subr.mxu0 0.0
      %5087 = vmatpush1.msra.mxu0 0.0
      %5088 = vmatprep.subr.mxu0 0.0
      %5089 = vmatpush1.msra.mxu0 0.0
      %5090 = vmatprep.subr.mxu0 0.0
      %5091 = vmatpush1.msra.mxu0 0.0
      %5092 = vmatprep.subr.mxu0 0.0
      %5093 = vmatpush1.msra.mxu0 0.0
      %5094 = vmatprep.subr.mxu0 0.0
      %5095 = vmatpush1.msra.mxu0 0.0
      %5096 = vmatprep.subr.mxu0 0.0
      %5097 = vmatpush1.msra.mxu0 0.0
      %5098 = vmatprep.subr.mxu0 0.0
      %5099 = vmatpush1.msra.mxu0 0.0
      %5100 = vmatprep.subr.mxu0 0.0
      %5101 = vmatpush1.msra.mxu0 0.0
      %5102 = vmatprep.subr.mxu0 0.0
      %5103 = vmatpush1.msra.mxu0 0.0
      %5104 = vmatprep.subr.mxu0 0.0
      %5105 = vmatpush1.msra.mxu0 0.0
      %5106 = vmatprep.subr.mxu0 0.0
      %5107 = vmatpush1.msra.mxu0 0.0
      %5108 = vmatprep.subr.mxu0 0.0
      %5109 = vmatpush1.msra.mxu0 0.0
      %5110 = vmatprep.subr.mxu0 0.0
      %5111 = vmatpush1.msra.mxu0 0.0
      %5112 = vmatprep.subr.mxu0 0.0
      %5113 = vmatpush1.msra.mxu0 0.0
      %5114 = vmatprep.subr.mxu0 0.0
      %5115 = vmatpush1.msra.mxu0 0.0
      %5116 = vmatprep.subr.mxu0 0.0
      %5117 = vmatpush1.msra.mxu0 0.0
      %5118 = vmatprep.subr.mxu0 0.0
      %5119 = vmatpush1.msra.mxu0 0.0
      %5120 = vmatprep.subr.mxu0 0.0
      %5121 = vmatpush1.msra.mxu0 0.0
      %5122 = vmatprep.subr.mxu0 0.0
      %5123 = vmatpush1.msra.mxu0 0.0
      %5124 = vmatprep.subr.mxu0 0.0
      %5125 = vmatpush1.msra.mxu0 0.0
      %5126 = vmatprep.subr.mxu0 0.0
      %5127 = vmatpush1.msra.mxu0 0.0
      %5128 = vmatprep.subr.mxu0 0.0
      %5129 = vmatpush1.msra.mxu0 0.0
      %5130 = vmatprep.subr.mxu0 0.0
      %5131 = vmatpush1.msra.mxu0 0.0
      %5132 = vmatprep.subr.mxu0 0.0
      %5133 = vmatpush1.msra.mxu0 0.0
      %5134 = vmatprep.subr.mxu0 0.0
      %5135 = vmatpush1.msra.mxu0 0.0
      %5136 = vmatprep.subr.mxu0 0.0
      %5137 = vmatpush1.msra.mxu0 0.0
      %5138 = vmatprep.subr.mxu0 0.0
      %5139 = vmatpush1.msra.mxu0 0.0
      %5140 = vmatprep.subr.mxu0 0.0
      %5141 = vmatpush1.msra.mxu0 0.0
      %5142 = vmatprep.subr.mxu0 0.0
      %5143 = vmatpush1.msra.mxu0 0.0
      %5144 = vmatprep.subr.mxu0 0.0
      %5145 = vmatpush1.msra.mxu0 0.0
      %5146 = vmatprep.mubr.f32.mxu0 0.0
      %5147 = vmatmul.mubr.f32.gmra.mrb[0].mxu0 %v3343
      %v5148 = vpop.f32.mrb[0].mxu0
      %v5149 = vadd.f32 0.0, %v5148
      %v5150 = vpop.f32.mrb[0].mxu0
      %5151 = vdwg.mxu0
      %5152 = vmatprep.subr.mxu0 0.0
      %5153 = vmatpush1.msra.mxu0 %v1598
      %5154 = vmatprep.subr.mxu0 0.0
      %5155 = vmatpush1.msra.mxu0 0.0
      %5156 = vmatprep.subr.mxu0 0.0
      %5157 = vmatpush1.msra.mxu0 0.0
      %5158 = vmatprep.subr.mxu0 0.0
      %5159 = vmatpush1.msra.mxu0 0.0
      %5160 = vmatprep.subr.mxu0 0.0
      %5161 = vmatpush1.msra.mxu0 0.0
      %5162 = vmatprep.subr.mxu0 0.0
      %5163 = vmatpush1.msra.mxu0 0.0
      %5164 = vmatprep.subr.mxu0 0.0
      %5165 = vmatpush1.msra.mxu0 0.0
      %5166 = vmatprep.subr.mxu0 0.0
      %5167 = vmatpush1.msra.mxu0 0.0
      %5168 = vmatprep.subr.mxu0 0.0
      %5169 = vmatpush1.msra.mxu0 0.0
      %5170 = vmatprep.subr.mxu0 0.0
      %5171 = vmatpush1.msra.mxu0 0.0
      %5172 = vmatprep.subr.mxu0 0.0
      %5173 = vmatpush1.msra.mxu0 0.0
      %5174 = vmatprep.subr.mxu0 0.0
      %5175 = vmatpush1.msra.mxu0 0.0
      %5176 = vmatprep.subr.mxu0 0.0
      %5177 = vmatpush1.msra.mxu0 0.0
      %5178 = vmatprep.subr.mxu0 0.0
      %5179 = vmatpush1.msra.mxu0 0.0
      %5180 = vmatprep.subr.mxu0 0.0
      %5181 = vmatpush1.msra.mxu0 0.0
      %5182 = vmatprep.subr.mxu0 0.0
      %5183 = vmatpush1.msra.mxu0 0.0
      %5184 = vmatprep.subr.mxu0 0.0
      %5185 = vmatpush1.msra.mxu0 0.0
      %5186 = vmatprep.subr.mxu0 0.0
      %5187 = vmatpush1.msra.mxu0 0.0
      %5188 = vmatprep.subr.mxu0 0.0
      %5189 = vmatpush1.msra.mxu0 0.0
      %5190 = vmatprep.subr.mxu0 0.0
      %5191 = vmatpush1.msra.mxu0 0.0
      %5192 = vmatprep.subr.mxu0 0.0
      %5193 = vmatpush1.msra.mxu0 0.0
      %5194 = vmatprep.subr.mxu0 0.0
      %5195 = vmatpush1.msra.mxu0 0.0
      %5196 = vmatprep.subr.mxu0 0.0
      %5197 = vmatpush1.msra.mxu0 0.0
      %5198 = vmatprep.subr.mxu0 0.0
      %5199 = vmatpush1.msra.mxu0 0.0
      %5200 = vmatprep.subr.mxu0 0.0
      %5201 = vmatpush1.msra.mxu0 0.0
      %5202 = vmatprep.subr.mxu0 0.0
      %5203 = vmatpush1.msra.mxu0 0.0
      %5204 = vmatprep.subr.mxu0 0.0
      %5205 = vmatpush1.msra.mxu0 0.0
      %5206 = vmatprep.subr.mxu0 0.0
      %5207 = vmatpush1.msra.mxu0 0.0
      %5208 = vmatprep.subr.mxu0 0.0
      %5209 = vmatpush1.msra.mxu0 0.0
      %5210 = vmatprep.subr.mxu0 0.0
      %5211 = vmatpush1.msra.mxu0 0.0
      %5212 = vmatprep.subr.mxu0 0.0
      %5213 = vmatpush1.msra.mxu0 0.0
      %5214 = vmatprep.subr.mxu0 0.0
      %5215 = vmatpush1.msra.mxu0 0.0
      %5216 = vmatprep.mubr.f32.mxu0 0.0
      %5217 = vmatmul.mubr.f32.gmra.mrb[0].mxu0 %v3419
      %v5218 = vpop.f32.mrb[0].mxu0
      %v5219 = vadd.f32 0.0, %v5218
      %v5220 = vpop.f32.mrb[0].mxu0
      %5221 = vdwg.mxu0
      %5222 = vmatprep.subr.mxu0 0.0
      %5223 = vmatpush1.msra.mxu0 %v1674
      %5224 = vmatprep.subr.mxu0 0.0
      %5225 = vmatpush1.msra.mxu0 0.0
      %5226 = vmatprep.subr.mxu0 0.0
      %5227 = vmatpush1.msra.mxu0 0.0
      %5228 = vmatprep.subr.mxu0 0.0
      %5229 = vmatpush1.msra.mxu0 0.0
      %5230 = vmatprep.subr.mxu0 0.0
      %5231 = vmatpush1.msra.mxu0 0.0
      %5232 = vmatprep.subr.mxu0 0.0
      %5233 = vmatpush1.msra.mxu0 0.0
      %5234 = vmatprep.subr.mxu0 0.0
      %5235 = vmatpush1.msra.mxu0 0.0
      %5236 = vmatprep.subr.mxu0 0.0
      %5237 = vmatpush1.msra.mxu0 0.0
      %5238 = vmatprep.subr.mxu0 0.0
      %5239 = vmatpush1.msra.mxu0 0.0
      %5240 = vmatprep.subr.mxu0 0.0
      %5241 = vmatpush1.msra.mxu0 0.0
      %5242 = vmatprep.subr.mxu0 0.0
      %5243 = vmatpush1.msra.mxu0 0.0
      %5244 = vmatprep.subr.mxu0 0.0
      %5245 = vmatpush1.msra.mxu0 0.0
      %5246 = vmatprep.subr.mxu0 0.0
      %5247 = vmatpush1.msra.mxu0 0.0
      %5248 = vmatprep.subr.mxu0 0.0
      %5249 = vmatpush1.msra.mxu0 0.0
      %5250 = vmatprep.subr.mxu0 0.0
      %5251 = vmatpush1.msra.mxu0 0.0
      %5252 = vmatprep.subr.mxu0 0.0
      %5253 = vmatpush1.msra.mxu0 0.0
      %5254 = vmatprep.subr.mxu0 0.0
      %5255 = vmatpush1.msra.mxu0 0.0
      %5256 = vmatprep.subr.mxu0 0.0
      %5257 = vmatpush1.msra.mxu0 0.0
      %5258 = vmatprep.subr.mxu0 0.0
      %5259 = vmatpush1.msra.mxu0 0.0
      %5260 = vmatprep.subr.mxu0 0.0
      %5261 = vmatpush1.msra.mxu0 0.0
      %5262 = vmatprep.subr.mxu0 0.0
      %5263 = vmatpush1.msra.mxu0 0.0
      %5264 = vmatprep.subr.mxu0 0.0
      %5265 = vmatpush1.msra.mxu0 0.0
      %5266 = vmatprep.subr.mxu0 0.0
      %5267 = vmatpush1.msra.mxu0 0.0
      %5268 = vmatprep.subr.mxu0 0.0
      %5269 = vmatpush1.msra.mxu0 0.0
      %5270 = vmatprep.subr.mxu0 0.0
      %5271 = vmatpush1.msra.mxu0 0.0
      %5272 = vmatprep.subr.mxu0 0.0
      %5273 = vmatpush1.msra.mxu0 0.0
      %5274 = vmatprep.subr.mxu0 0.0
      %5275 = vmatpush1.msra.mxu0 0.0
      %5276 = vmatprep.subr.mxu0 0.0
      %5277 = vmatpush1.msra.mxu0 0.0
      %5278 = vmatprep.subr.mxu0 0.0
      %5279 = vmatpush1.msra.mxu0 0.0
      %5280 = vmatprep.subr.mxu0 0.0
      %5281 = vmatpush1.msra.mxu0 0.0
      %5282 = vmatprep.subr.mxu0 0.0
      %5283 = vmatpush1.msra.mxu0 0.0
      %5284 = vmatprep.subr.mxu0 0.0
      %5285 = vmatpush1.msra.mxu0 0.0
      %5286 = vmatprep.mubr.f32.mxu0 0.0
      %5287 = vmatmul.mubr.f32.gmra.mrb[0].mxu0 %v3495
      %v5288 = vpop.f32.mrb[0].mxu0
      %v5289 = vadd.f32 0.0, %v5288
      %v5290 = vpop.f32.mrb[0].mxu0
      %5291 = vdwg.mxu0
      %5292 = vmatprep.subr.mxu0 0.0
      %5293 = vmatpush1.msra.mxu0 %v1750
      %5294 = vmatprep.subr.mxu0 0.0
      %5295 = vmatpush1.msra.mxu0 0.0
      %5296 = vmatprep.subr.mxu0 0.0
      %5297 = vmatpush1.msra.mxu0 0.0
      %5298 = vmatprep.subr.mxu0 0.0
      %5299 = vmatpush1.msra.mxu0 0.0
      %5300 = vmatprep.subr.mxu0 0.0
      %5301 = vmatpush1.msra.mxu0 0.0
      %5302 = vmatprep.subr.mxu0 0.0
      %5303 = vmatpush1.msra.mxu0 0.0
      %5304 = vmatprep.subr.mxu0 0.0
      %5305 = vmatpush1.msra.mxu0 0.0
      %5306 = vmatprep.subr.mxu0 0.0
      %5307 = vmatpush1.msra.mxu0 0.0
      %5308 = vmatprep.subr.mxu0 0.0
      %5309 = vmatpush1.msra.mxu0 0.0
      %5310 = vmatprep.subr.mxu0 0.0
      %5311 = vmatpush1.msra.mxu0 0.0
      %5312 = vmatprep.subr.mxu0 0.0
      %5313 = vmatpush1.msra.mxu0 0.0
      %5314 = vmatprep.subr.mxu0 0.0
      %5315 = vmatpush1.msra.mxu0 0.0
      %5316 = vmatprep.subr.mxu0 0.0
      %5317 = vmatpush1.msra.mxu0 0.0
      %5318 = vmatprep.subr.mxu0 0.0
      %5319 = vmatpush1.msra.mxu0 0.0
      %5320 = vmatprep.subr.mxu0 0.0
      %5321 = vmatpush1.msra.mxu0 0.0
      %5322 = vmatprep.subr.mxu0 0.0
      %5323 = vmatpush1.msra.mxu0 0.0
      %5324 = vmatprep.subr.mxu0 0.0
      %5325 = vmatpush1.msra.mxu0 0.0
      %5326 = vmatprep.subr.mxu0 0.0
      %5327 = vmatpush1.msra.mxu0 0.0
      %5328 = vmatprep.subr.mxu0 0.0
      %5329 = vmatpush1.msra.mxu0 0.0
      %5330 = vmatprep.subr.mxu0 0.0
      %5331 = vmatpush1.msra.mxu0 0.0
      %5332 = vmatprep.subr.mxu0 0.0
      %5333 = vmatpush1.msra.mxu0 0.0
      %5334 = vmatprep.subr.mxu0 0.0
      %5335 = vmatpush1.msra.mxu0 0.0
      %5336 = vmatprep.subr.mxu0 0.0
      %5337 = vmatpush1.msra.mxu0 0.0
      %5338 = vmatprep.subr.mxu0 0.0
      %5339 = vmatpush1.msra.mxu0 0.0
      %5340 = vmatprep.subr.mxu0 0.0
      %5341 = vmatpush1.msra.mxu0 0.0
      %5342 = vmatprep.subr.mxu0 0.0
      %5343 = vmatpush1.msra.mxu0 0.0
      %5344 = vmatprep.subr.mxu0 0.0
      %5345 = vmatpush1.msra.mxu0 0.0
      %5346 = vmatprep.subr.mxu0 0.0
      %5347 = vmatpush1.msra.mxu0 0.0
      %5348 = vmatprep.subr.mxu0 0.0
      %5349 = vmatpush1.msra.mxu0 0.0
      %5350 = vmatprep.subr.mxu0 0.0
      %5351 = vmatpush1.msra.mxu0 0.0
      %5352 = vmatprep.subr.mxu0 0.0
      %5353 = vmatpush1.msra.mxu0 0.0
      %5354 = vmatprep.subr.mxu0 0.0
      %5355 = vmatpush1.msra.mxu0 0.0
      %5356 = vmatprep.mubr.f32.mxu0 0.0
      %5357 = vmatmul.mubr.f32.gmra.mrb[0].mxu0 %v3571
      %v5358 = vpop.f32.mrb[0].mxu0
      %v5359 = vadd.f32 0.0, %v5358
      %v5360 = vpop.f32.mrb[0].mxu0
      %5361 = vdwg.mxu0
      %5362 = vmatprep.subr.mxu0 0.0
      %5363 = vmatpush1.msra.mxu0 %v1826
      %5364 = vmatprep.subr.mxu0 0.0
      %5365 = vmatpush1.msra.mxu0 0.0
      %5366 = vmatprep.subr.mxu0 0.0
      %5367 = vmatpush1.msra.mxu0 0.0
      %5368 = vmatprep.subr.mxu0 0.0
      %5369 = vmatpush1.msra.mxu0 0.0
      %5370 = vmatprep.subr.mxu0 0.0
      %5371 = vmatpush1.msra.mxu0 0.0
      %5372 = vmatprep.subr.mxu0 0.0
      %5373 = vmatpush1.msra.mxu0 0.0
      %5374 = vmatprep.subr.mxu0 0.0
      %5375 = vmatpush1.msra.mxu0 0.0
      %5376 = vmatprep.subr.mxu0 0.0
      %5377 = vmatpush1.msra.mxu0 0.0
      %5378 = vmatprep.subr.mxu0 0.0
      %5379 = vmatpush1.msra.mxu0 0.0
      %5380 = vmatprep.subr.mxu0 0.0
      %5381 = vmatpush1.msra.mxu0 0.0
      %5382 = vmatprep.subr.mxu0 0.0
      %5383 = vmatpush1.msra.mxu0 0.0
      %5384 = vmatprep.subr.mxu0 0.0
      %5385 = vmatpush1.msra.mxu0 0.0
      %5386 = vmatprep.subr.mxu0 0.0
      %5387 = vmatpush1.msra.mxu0 0.0
      %5388 = vmatprep.subr.mxu0 0.0
      %5389 = vmatpush1.msra.mxu0 0.0
      %5390 = vmatprep.subr.mxu0 0.0
      %5391 = vmatpush1.msra.mxu0 0.0
      %5392 = vmatprep.subr.mxu0 0.0
      %5393 = vmatpush1.msra.mxu0 0.0
      %5394 = vmatprep.subr.mxu0 0.0
      %5395 = vmatpush1.msra.mxu0 0.0
      %5396 = vmatprep.subr.mxu0 0.0
      %5397 = vmatpush1.msra.mxu0 0.0
      %5398 = vmatprep.subr.mxu0 0.0
      %5399 = vmatpush1.msra.mxu0 0.0
      %5400 = vmatprep.subr.mxu0 0.0
      %5401 = vmatpush1.msra.mxu0 0.0
      %5402 = vmatprep.subr.mxu0 0.0
      %5403 = vmatpush1.msra.mxu0 0.0
      %5404 = vmatprep.subr.mxu0 0.0
      %5405 = vmatpush1.msra.mxu0 0.0
      %5406 = vmatprep.subr.mxu0 0.0
      %5407 = vmatpush1.msra.mxu0 0.0
      %5408 = vmatprep.subr.mxu0 0.0
      %5409 = vmatpush1.msra.mxu0 0.0
      %5410 = vmatprep.subr.mxu0 0.0
      %5411 = vmatpush1.msra.mxu0 0.0
      %5412 = vmatprep.subr.mxu0 0.0
      %5413 = vmatpush1.msra.mxu0 0.0
      %5414 = vmatprep.subr.mxu0 0.0
      %5415 = vmatpush1.msra.mxu0 0.0
      %5416 = vmatprep.subr.mxu0 0.0
      %5417 = vmatpush1.msra.mxu0 0.0
      %5418 = vmatprep.subr.mxu0 0.0
      %5419 = vmatpush1.msra.mxu0 0.0
      %5420 = vmatprep.subr.mxu0 0.0
      %5421 = vmatpush1.msra.mxu0 0.0
      %5422 = vmatprep.subr.mxu0 0.0
      %5423 = vmatpush1.msra.mxu0 0.0
      %5424 = vmatprep.subr.mxu0 0.0
      %5425 = vmatpush1.msra.mxu0 0.0
      %5426 = vmatprep.mubr.f32.mxu0 0.0
      %5427 = vmatmul.mubr.f32.gmra.mrb[0].mxu0 %v3647
      %v5428 = vpop.f32.mrb[0].mxu0
      %v5429 = vadd.f32 0.0, %v5428
      %v5430 = vpop.f32.mrb[0].mxu0
      %5431 = vdwg.mxu0
      %5432 = vmatprep.subr.mxu0 0.0
      %5433 = vmatpush1.msra.mxu0 %v1902
      %5434 = vmatprep.subr.mxu0 0.0
      %5435 = vmatpush1.msra.mxu0 0.0
      %5436 = vmatprep.subr.mxu0 0.0
      %5437 = vmatpush1.msra.mxu0 0.0
      %5438 = vmatprep.subr.mxu0 0.0
      %5439 = vmatpush1.msra.mxu0 0.0
      %5440 = vmatprep.subr.mxu0 0.0
      %5441 = vmatpush1.msra.mxu0 0.0
      %5442 = vmatprep.subr.mxu0 0.0
      %5443 = vmatpush1.msra.mxu0 0.0
      %5444 = vmatprep.subr.mxu0 0.0
      %5445 = vmatpush1.msra.mxu0 0.0
      %5446 = vmatprep.subr.mxu0 0.0
      %5447 = vmatpush1.msra.mxu0 0.0
      %5448 = vmatprep.subr.mxu0 0.0
      %5449 = vmatpush1.msra.mxu0 0.0
      %5450 = vmatprep.subr.mxu0 0.0
      %5451 = vmatpush1.msra.mxu0 0.0
      %5452 = vmatprep.subr.mxu0 0.0
      %5453 = vmatpush1.msra.mxu0 0.0
      %5454 = vmatprep.subr.mxu0 0.0
      %5455 = vmatpush1.msra.mxu0 0.0
      %5456 = vmatprep.subr.mxu0 0.0
      %5457 = vmatpush1.msra.mxu0 0.0
      %5458 = vmatprep.subr.mxu0 0.0
      %5459 = vmatpush1.msra.mxu0 0.0
      %5460 = vmatprep.subr.mxu0 0.0
      %5461 = vmatpush1.msra.mxu0 0.0
      %5462 = vmatprep.subr.mxu0 0.0
      %5463 = vmatpush1.msra.mxu0 0.0
      %5464 = vmatprep.subr.mxu0 0.0
      %5465 = vmatpush1.msra.mxu0 0.0
      %5466 = vmatprep.subr.mxu0 0.0
      %5467 = vmatpush1.msra.mxu0 0.0
      %5468 = vmatprep.subr.mxu0 0.0
      %5469 = vmatpush1.msra.mxu0 0.0
      %5470 = vmatprep.subr.mxu0 0.0
      %5471 = vmatpush1.msra.mxu0 0.0
      %5472 = vmatprep.subr.mxu0 0.0
      %5473 = vmatpush1.msra.mxu0 0.0
      %5474 = vmatprep.subr.mxu0 0.0
      %5475 = vmatpush1.msra.mxu0 0.0
      %5476 = vmatprep.subr.mxu0 0.0
      %5477 = vmatpush1.msra.mxu0 0.0
      %5478 = vmatprep.subr.mxu0 0.0
      %5479 = vmatpush1.msra.mxu0 0.0
      %5480 = vmatprep.subr.mxu0 0.0
      %5481 = vmatpush1.msra.mxu0 0.0
      %5482 = vmatprep.subr.mxu0 0.0
      %5483 = vmatpush1.msra.mxu0 0.0
      %5484 = vmatprep.subr.mxu0 0.0
      %5485 = vmatpush1.msra.mxu0 0.0
      %5486 = vmatprep.subr.mxu0 0.0
      %5487 = vmatpush1.msra.mxu0 0.0
      %5488 = vmatprep.subr.mxu0 0.0
      %5489 = vmatpush1.msra.mxu0 0.0
      %5490 = vmatprep.subr.mxu0 0.0
      %5491 = vmatpush1.msra.mxu0 0.0
      %5492 = vmatprep.subr.mxu0 0.0
      %5493 = vmatpush1.msra.mxu0 0.0
      %5494 = vmatprep.subr.mxu0 0.0
      %5495 = vmatpush1.msra.mxu0 0.0
      %5496 = vmatprep.mubr.f32.mxu0 0.0
      %5497 = vmatmul.mubr.f32.gmra.mrb[0].mxu0 %v3723
      %v5498 = vpop.f32.mrb[0].mxu0
      %v5499 = vadd.f32 0.0, %v5498
      %v5500 = vpop.f32.mrb[0].mxu0
      %5501 = vdwg.mxu0
      %5502 = vmatprep.subr.mxu0 0.0
      %5503 = vmatpush1.msra.mxu0 %v1978
      %5504 = vmatprep.subr.mxu0 0.0
      %5505 = vmatpush1.msra.mxu0 0.0
      %5506 = vmatprep.subr.mxu0 0.0
      %5507 = vmatpush1.msra.mxu0 0.0
      %5508 = vmatprep.subr.mxu0 0.0
      %5509 = vmatpush1.msra.mxu0 0.0
      %5510 = vmatprep.subr.mxu0 0.0
      %5511 = vmatpush1.msra.mxu0 0.0
      %5512 = vmatprep.subr.mxu0 0.0
      %5513 = vmatpush1.msra.mxu0 0.0
      %5514 = vmatprep.subr.mxu0 0.0
      %5515 = vmatpush1.msra.mxu0 0.0
      %5516 = vmatprep.subr.mxu0 0.0
      %5517 = vmatpush1.msra.mxu0 0.0
      %5518 = vmatprep.subr.mxu0 0.0
      %5519 = vmatpush1.msra.mxu0 0.0
      %5520 = vmatprep.subr.mxu0 0.0
      %5521 = vmatpush1.msra.mxu0 0.0
      %5522 = vmatprep.subr.mxu0 0.0
      %5523 = vmatpush1.msra.mxu0 0.0
      %5524 = vmatprep.subr.mxu0 0.0
      %5525 = vmatpush1.msra.mxu0 0.0
      %5526 = vmatprep.subr.mxu0 0.0
      %5527 = vmatpush1.msra.mxu0 0.0
      %5528 = vmatprep.subr.mxu0 0.0
      %5529 = vmatpush1.msra.mxu0 0.0
      %5530 = vmatprep.subr.mxu0 0.0
      %5531 = vmatpush1.msra.mxu0 0.0
      %5532 = vmatprep.subr.mxu0 0.0
      %5533 = vmatpush1.msra.mxu0 0.0
      %5534 = vmatprep.subr.mxu0 0.0
      %5535 = vmatpush1.msra.mxu0 0.0
      %5536 = vmatprep.subr.mxu0 0.0
      %5537 = vmatpush1.msra.mxu0 0.0
      %5538 = vmatprep.subr.mxu0 0.0
      %5539 = vmatpush1.msra.mxu0 0.0
      %5540 = vmatprep.subr.mxu0 0.0
      %5541 = vmatpush1.msra.mxu0 0.0
      %5542 = vmatprep.subr.mxu0 0.0
      %5543 = vmatpush1.msra.mxu0 0.0
      %5544 = vmatprep.subr.mxu0 0.0
      %5545 = vmatpush1.msra.mxu0 0.0
      %5546 = vmatprep.subr.mxu0 0.0
      %5547 = vmatpush1.msra.mxu0 0.0
      %5548 = vmatprep.subr.mxu0 0.0
      %5549 = vmatpush1.msra.mxu0 0.0
      %5550 = vmatprep.subr.mxu0 0.0
      %5551 = vmatpush1.msra.mxu0 0.0
      %5552 = vmatprep.subr.mxu0 0.0
      %5553 = vmatpush1.msra.mxu0 0.0
      %5554 = vmatprep.subr.mxu0 0.0
      %5555 = vmatpush1.msra.mxu0 0.0
      %5556 = vmatprep.subr.mxu0 0.0
      %5557 = vmatpush1.msra.mxu0 0.0
      %5558 = vmatprep.subr.mxu0 0.0
      %5559 = vmatpush1.msra.mxu0 0.0
      %5560 = vmatprep.subr.mxu0 0.0
      %5561 = vmatpush1.msra.mxu0 0.0
      %5562 = vmatprep.subr.mxu0 0.0
      %5563 = vmatpush1.msra.mxu0 0.0
      %5564 = vmatprep.subr.mxu0 0.0
      %5565 = vmatpush1.msra.mxu0 0.0
      %5566 = vmatprep.mubr.f32.mxu0 0.0
      %5567 = vmatmul.mubr.f32.gmra.mrb[0].mxu0 %v3799
      %v5568 = vpop.f32.mrb[0].mxu0
      %v5569 = vadd.f32 0.0, %v5568
      %v5570 = vpop.f32.mrb[0].mxu0
      %5571 = vdwg.mxu0
      %5572 = vmatprep.subr.mxu0 0.0
      %5573 = vmatpush1.msra.mxu0 %v2054
      %5574 = vmatprep.subr.mxu0 0.0
      %5575 = vmatpush1.msra.mxu0 0.0
      %5576 = vmatprep.subr.mxu0 0.0
      %5577 = vmatpush1.msra.mxu0 0.0
      %5578 = vmatprep.subr.mxu0 0.0
      %5579 = vmatpush1.msra.mxu0 0.0
      %5580 = vmatprep.subr.mxu0 0.0
      %5581 = vmatpush1.msra.mxu0 0.0
      %5582 = vmatprep.subr.mxu0 0.0
      %5583 = vmatpush1.msra.mxu0 0.0
      %5584 = vmatprep.subr.mxu0 0.0
      %5585 = vmatpush1.msra.mxu0 0.0
      %5586 = vmatprep.subr.mxu0 0.0
      %5587 = vmatpush1.msra.mxu0 0.0
      %5588 = vmatprep.subr.mxu0 0.0
      %5589 = vmatpush1.msra.mxu0 0.0
      %5590 = vmatprep.subr.mxu0 0.0
      %5591 = vmatpush1.msra.mxu0 0.0
      %5592 = vmatprep.subr.mxu0 0.0
      %5593 = vmatpush1.msra.mxu0 0.0
      %5594 = vmatprep.subr.mxu0 0.0
      %5595 = vmatpush1.msra.mxu0 0.0
      %5596 = vmatprep.subr.mxu0 0.0
      %5597 = vmatpush1.msra.mxu0 0.0
      %5598 = vmatprep.subr.mxu0 0.0
      %5599 = vmatpush1.msra.mxu0 0.0
      %5600 = vmatprep.subr.mxu0 0.0
      %5601 = vmatpush1.msra.mxu0 0.0
      %5602 = vmatprep.subr.mxu0 0.0
      %5603 = vmatpush1.msra.mxu0 0.0
      %5604 = vmatprep.subr.mxu0 0.0
      %5605 = vmatpush1.msra.mxu0 0.0
      %5606 = vmatprep.subr.mxu0 0.0
      %5607 = vmatpush1.msra.mxu0 0.0
      %5608 = vmatprep.subr.mxu0 0.0
      %5609 = vmatpush1.msra.mxu0 0.0
      %5610 = vmatprep.subr.mxu0 0.0
      %5611 = vmatpush1.msra.mxu0 0.0
      %5612 = vmatprep.subr.mxu0 0.0
      %5613 = vmatpush1.msra.mxu0 0.0
      %5614 = vmatprep.subr.mxu0 0.0
      %5615 = vmatpush1.msra.mxu0 0.0
      %5616 = vmatprep.subr.mxu0 0.0
      %5617 = vmatpush1.msra.mxu0 0.0
      %5618 = vmatprep.subr.mxu0 0.0
      %5619 = vmatpush1.msra.mxu0 0.0
      %5620 = vmatprep.subr.mxu0 0.0
      %5621 = vmatpush1.msra.mxu0 0.0
      %5622 = vmatprep.subr.mxu0 0.0
      %5623 = vmatpush1.msra.mxu0 0.0
      %5624 = vmatprep.subr.mxu0 0.0
      %5625 = vmatpush1.msra.mxu0 0.0
      %5626 = vmatprep.subr.mxu0 0.0
      %5627 = vmatpush1.msra.mxu0 0.0
      %5628 = vmatprep.subr.mxu0 0.0
      %5629 = vmatpush1.msra.mxu0 0.0
      %5630 = vmatprep.subr.mxu0 0.0
      %5631 = vmatpush1.msra.mxu0 0.0
      %5632 = vmatprep.subr.mxu0 0.0
      %5633 = vmatpush1.msra.mxu0 0.0
      %5634 = vmatprep.subr.mxu0 0.0
      %5635 = vmatpush1.msra.mxu0 0.0
      %5636 = vmatprep.mubr.f32.mxu0 0.0
      %5637 = vmatmul.mubr.f32.gmra.mrb[0].mxu0 %v3875
      %v5638 = vpop.f32.mrb[0].mxu0
      %v5639 = vadd.f32 0.0, %v5638
      %v5640 = vpop.f32.mrb[0].mxu0
      %5641 = vdwg.mxu0
      %5642 = vmatprep.subr.mxu0 0.0
      %5643 = vmatpush1.msra.mxu0 %v2130
      %5644 = vmatprep.subr.mxu0 0.0
      %5645 = vmatpush1.msra.mxu0 0.0
      %5646 = vmatprep.subr.mxu0 0.0
      %5647 = vmatpush1.msra.mxu0 0.0
      %5648 = vmatprep.subr.mxu0 0.0
      %5649 = vmatpush1.msra.mxu0 0.0
      %5650 = vmatprep.subr.mxu0 0.0
      %5651 = vmatpush1.msra.mxu0 0.0
      %5652 = vmatprep.subr.mxu0 0.0
      %5653 = vmatpush1.msra.mxu0 0.0
      %5654 = vmatprep.subr.mxu0 0.0
      %5655 = vmatpush1.msra.mxu0 0.0
      %5656 = vmatprep.subr.mxu0 0.0
      %5657 = vmatpush1.msra.mxu0 0.0
      %5658 = vmatprep.subr.mxu0 0.0
      %5659 = vmatpush1.msra.mxu0 0.0
      %5660 = vmatprep.subr.mxu0 0.0
      %5661 = vmatpush1.msra.mxu0 0.0
      %5662 = vmatprep.subr.mxu0 0.0
      %5663 = vmatpush1.msra.mxu0 0.0
      %5664 = vmatprep.subr.mxu0 0.0
      %5665 = vmatpush1.msra.mxu0 0.0
      %5666 = vmatprep.subr.mxu0 0.0
      %5667 = vmatpush1.msra.mxu0 0.0
      %5668 = vmatprep.subr.mxu0 0.0
      %5669 = vmatpush1.msra.mxu0 0.0
      %5670 = vmatprep.subr.mxu0 0.0
      %5671 = vmatpush1.msra.mxu0 0.0
      %5672 = vmatprep.subr.mxu0 0.0
      %5673 = vmatpush1.msra.mxu0 0.0
      %5674 = vmatprep.subr.mxu0 0.0
      %5675 = vmatpush1.msra.mxu0 0.0
      %5676 = vmatprep.subr.mxu0 0.0
      %5677 = vmatpush1.msra.mxu0 0.0
      %5678 = vmatprep.subr.mxu0 0.0
      %5679 = vmatpush1.msra.mxu0 0.0
      %5680 = vmatprep.subr.mxu0 0.0
      %5681 = vmatpush1.msra.mxu0 0.0
      %5682 = vmatprep.subr.mxu0 0.0
      %5683 = vmatpush1.msra.mxu0 0.0
      %5684 = vmatprep.subr.mxu0 0.0
      %5685 = vmatpush1.msra.mxu0 0.0
      %5686 = vmatprep.subr.mxu0 0.0
      %5687 = vmatpush1.msra.mxu0 0.0
      %5688 = vmatprep.subr.mxu0 0.0
      %5689 = vmatpush1.msra.mxu0 0.0
      %5690 = vmatprep.subr.mxu0 0.0
      %5691 = vmatpush1.msra.mxu0 0.0
      %5692 = vmatprep.subr.mxu0 0.0
      %5693 = vmatpush1.msra.mxu0 0.0
      %5694 = vmatprep.subr.mxu0 0.0
      %5695 = vmatpush1.msra.mxu0 0.0
      %5696 = vmatprep.subr.mxu0 0.0
      %5697 = vmatpush1.msra.mxu0 0.0
      %5698 = vmatprep.subr.mxu0 0.0
      %5699 = vmatpush1.msra.mxu0 0.0
      %5700 = vmatprep.subr.mxu0 0.0
      %5701 = vmatpush1.msra.mxu0 0.0
      %5702 = vmatprep.subr.mxu0 0.0
      %5703 = vmatpush1.msra.mxu0 0.0
      %5704 = vmatprep.subr.mxu0 0.0
      %5705 = vmatpush1.msra.mxu0 0.0
      %5706 = vmatprep.mubr.f32.mxu0 0.0
      %5707 = vmatmul.mubr.f32.gmra.mrb[0].mxu0 %v3951
      %v5708 = vpop.f32.mrb[0].mxu0
      %v5709 = vadd.f32 0.0, %v5708
      %v5710 = vpop.f32.mrb[0].mxu0
      %5711 = vdwg.mxu0
      %5712 = vmatprep.subr.mxu0 0.0
      %5713 = vmatpush1.msra.mxu0 %v2206
      %5714 = vmatprep.subr.mxu0 0.0
      %5715 = vmatpush1.msra.mxu0 0.0
      %5716 = vmatprep.subr.mxu0 0.0
      %5717 = vmatpush1.msra.mxu0 0.0
      %5718 = vmatprep.subr.mxu0 0.0
      %5719 = vmatpush1.msra.mxu0 0.0
      %5720 = vmatprep.subr.mxu0 0.0
      %5721 = vmatpush1.msra.mxu0 0.0
      %5722 = vmatprep.subr.mxu0 0.0
      %5723 = vmatpush1.msra.mxu0 0.0
      %5724 = vmatprep.subr.mxu0 0.0
      %5725 = vmatpush1.msra.mxu0 0.0
      %5726 = vmatprep.subr.mxu0 0.0
      %5727 = vmatpush1.msra.mxu0 0.0
      %5728 = vmatprep.subr.mxu0 0.0
      %5729 = vmatpush1.msra.mxu0 0.0
      %5730 = vmatprep.subr.mxu0 0.0
      %5731 = vmatpush1.msra.mxu0 0.0
      %5732 = vmatprep.subr.mxu0 0.0
      %5733 = vmatpush1.msra.mxu0 0.0
      %5734 = vmatprep.subr.mxu0 0.0
      %5735 = vmatpush1.msra.mxu0 0.0
      %5736 = vmatprep.subr.mxu0 0.0
      %5737 = vmatpush1.msra.mxu0 0.0
      %5738 = vmatprep.subr.mxu0 0.0
      %5739 = vmatpush1.msra.mxu0 0.0
      %5740 = vmatprep.subr.mxu0 0.0
      %5741 = vmatpush1.msra.mxu0 0.0
      %5742 = vmatprep.subr.mxu0 0.0
      %5743 = vmatpush1.msra.mxu0 0.0
      %5744 = vmatprep.subr.mxu0 0.0
      %5745 = vmatpush1.msra.mxu0 0.0
      %5746 = vmatprep.subr.mxu0 0.0
      %5747 = vmatpush1.msra.mxu0 0.0
      %5748 = vmatprep.subr.mxu0 0.0
      %5749 = vmatpush1.msra.mxu0 0.0
      %5750 = vmatprep.subr.mxu0 0.0
      %5751 = vmatpush1.msra.mxu0 0.0
      %5752 = vmatprep.subr.mxu0 0.0
      %5753 = vmatpush1.msra.mxu0 0.0
      %5754 = vmatprep.subr.mxu0 0.0
      %5755 = vmatpush1.msra.mxu0 0.0
      %5756 = vmatprep.subr.mxu0 0.0
      %5757 = vmatpush1.msra.mxu0 0.0
      %5758 = vmatprep.subr.mxu0 0.0
      %5759 = vmatpush1.msra.mxu0 0.0
      %5760 = vmatprep.subr.mxu0 0.0
      %5761 = vmatpush1.msra.mxu0 0.0
      %5762 = vmatprep.subr.mxu0 0.0
      %5763 = vmatpush1.msra.mxu0 0.0
      %5764 = vmatprep.subr.mxu0 0.0
      %5765 = vmatpush1.msra.mxu0 0.0
      %5766 = vmatprep.subr.mxu0 0.0
      %5767 = vmatpush1.msra.mxu0 0.0
      %5768 = vmatprep.subr.mxu0 0.0
      %5769 = vmatpush1.msra.mxu0 0.0
      %5770 = vmatprep.subr.mxu0 0.0
      %5771 = vmatpush1.msra.mxu0 0.0
      %5772 = vmatprep.subr.mxu0 0.0
      %5773 = vmatpush1.msra.mxu0 0.0
      %5774 = vmatprep.subr.mxu0 0.0
      %5775 = vmatpush1.msra.mxu0 0.0
      %5776 = vmatprep.mubr.f32.mxu0 0.0
      %5777 = vmatmul.mubr.f32.gmra.mrb[0].mxu0 %v4027
      %v5778 = vpop.f32.mrb[0].mxu0
      %v5779 = vadd.f32 0.0, %v5778
      %v5780 = vpop.f32.mrb[0].mxu0
      %5781 = vdwg.mxu0
      %v5782 = vsub.f32 %v527, %v2351
      %v5783 = vsub.f32 %v603, %v2427
      %v5784 = vsub.f32 %v679, %v2503
      %v5785 = vsub.f32 %v755, %v2579
      %v5786 = vsub.f32 %v831, %v2655
      %v5787 = vsub.f32 %v907, %v2731
      %v5788 = vsub.f32 %v983, %v2807
      %v5789 = vsub.f32 %v1059, %v2883
      %v5790 = vsub.f32 %v1135, %v2959
      %v5791 = vsub.f32 %v1211, %v3035
      %v5792 = vsub.f32 %v1287, %v3111
      %v5793 = vsub.f32 %v1363, %v3187
      %v5794 = vsub.f32 %v1439, %v3263
      %v5795 = vsub.f32 %v1515, %v3339
      %v5796 = vsub.f32 %v1591, %v3415
      %v5797 = vsub.f32 %v1667, %v3491
      %v5798 = vsub.f32 %v1743, %v3567
      %v5799 = vsub.f32 %v1819, %v3643
      %v5800 = vsub.f32 %v1895, %v3719
      %v5801 = vsub.f32 %v1971, %v3795
      %v5802 = vsub.f32 %v2047, %v3871
      %v5803 = vsub.f32 %v2123, %v3947
      %v5804 = vsub.f32 %v2199, %v4023
      %v5805 = vsub.f32 %v2275, %v4099
      %vm5806 = vcmask 25600
      %5807 = vst.msk [vmem:[%s300] sm:$0x3] %vm5806, %v5782
      %5808 = vst.msk [vmem:[%s300 + $0x2] sm:$0x3] %vm5806, %v5783
      %5809 = vst.msk [vmem:[%s300 + $0x4] sm:$0x3] %vm5806, %v5784
      %5810 = vst.msk [vmem:[%s300 + $0x6] sm:$0x3] %vm5806, %v5785
      %5811 = vst.msk [vmem:[%s300 + $0x8] sm:$0x3] %vm5806, %v5786
      %5812 = vst.msk [vmem:[%s300 + $0xa] sm:$0x3] %vm5806, %v5787
      %5813 = vst.msk [vmem:[%s300 + $0xc] sm:$0x3] %vm5806, %v5788
      %5814 = vst.msk [vmem:[%s300 + $0xe] sm:$0x3] %vm5806, %v5789
      %5815 = vst.msk [vmem:[%s300 + $0x10] sm:$0x3] %vm5806, %v5790
      %5816 = vst.msk [vmem:[%s300 + $0x12] sm:$0x3] %vm5806, %v5791
      %5817 = vst.msk [vmem:[%s300 + $0x14] sm:$0x3] %vm5806, %v5792
      %5818 = vst.msk [vmem:[%s300 + $0x16] sm:$0x3] %vm5806, %v5793
      %5819 = vst.msk [vmem:[%s300 + $0x18] sm:$0x3] %vm5806, %v5794
      %5820 = vst.msk [vmem:[%s300 + $0x1a] sm:$0x3] %vm5806, %v5795
      %5821 = vst.msk [vmem:[%s300 + $0x1c] sm:$0x3] %vm5806, %v5796
      %5822 = vst.msk [vmem:[%s300 + $0x1e] sm:$0x3] %vm5806, %v5797
      %5823 = vst.msk [vmem:[%s300 + $0x20] sm:$0x3] %vm5806, %v5798
      %5824 = vst.msk [vmem:[%s300 + $0x22] sm:$0x3] %vm5806, %v5799
      %5825 = vst.msk [vmem:[%s300 + $0x24] sm:$0x3] %vm5806, %v5800
      %5826 = vst.msk [vmem:[%s300 + $0x26] sm:$0x3] %vm5806, %v5801
      %5827 = vst.msk [vmem:[%s300 + $0x28] sm:$0x3] %vm5806, %v5802
      %5828 = vst.msk [vmem:[%s300 + $0x2a] sm:$0x3] %vm5806, %v5803
      %5829 = vst.msk [vmem:[%s300 + $0x2c] sm:$0x3] %vm5806, %v5804
      %5830 = vst.msk [vmem:[%s300 + $0x2e] sm:$0x3] %vm5806, %v5805
      %5831 = vmatprep.subr.mxu0 0.0
      %5832 = vmatpush1.msra.mxu0 %v2282
      %5833 = vmatprep.subr.mxu0 0.0
      %5834 = vmatpush1.msra.mxu0 0.0
      %5835 = vmatprep.subr.mxu0 0.0
      %5836 = vmatpush1.msra.mxu0 0.0
      %5837 = vmatprep.subr.mxu0 0.0
      %5838 = vmatpush1.msra.mxu0 0.0
      %5839 = vmatprep.subr.mxu0 0.0
      %5840 = vmatpush1.msra.mxu0 0.0
      %5841 = vmatprep.subr.mxu0 0.0
      %5842 = vmatpush1.msra.mxu0 0.0
      %5843 = vmatprep.subr.mxu0 0.0
      %5844 = vmatpush1.msra.mxu0 0.0
      %5845 = vmatprep.subr.mxu0 0.0
      %5846 = vmatpush1.msra.mxu0 0.0
      %5847 = vmatprep.subr.mxu0 0.0
      %5848 = vmatpush1.msra.mxu0 0.0
      %5849 = vmatprep.subr.mxu0 0.0
      %5850 = vmatpush1.msra.mxu0 0.0
      %5851 = vmatprep.subr.mxu0 0.0
      %5852 = vmatpush1.msra.mxu0 0.0
      %5853 = vmatprep.subr.mxu0 0.0
      %5854 = vmatpush1.msra.mxu0 0.0
      %5855 = vmatprep.subr.mxu0 0.0
      %5856 = vmatpush1.msra.mxu0 0.0
      %5857 = vmatprep.subr.mxu0 0.0
      %5858 = vmatpush1.msra.mxu0 0.0
      %5859 = vmatprep.subr.mxu0 0.0
      %5860 = vmatpush1.msra.mxu0 0.0
      %5861 = vmatprep.subr.mxu0 0.0
      %5862 = vmatpush1.msra.mxu0 0.0
      %5863 = vmatprep.subr.mxu0 0.0
      %5864 = vmatpush1.msra.mxu0 0.0
      %5865 = vmatprep.subr.mxu0 0.0
      %5866 = vmatpush1.msra.mxu0 0.0
      %5867 = vmatprep.subr.mxu0 0.0
      %5868 = vmatpush1.msra.mxu0 0.0
      %5869 = vmatprep.subr.mxu0 0.0
      %5870 = vmatpush1.msra.mxu0 0.0
      %5871 = vmatprep.subr.mxu0 0.0
      %5872 = vmatpush1.msra.mxu0 0.0
      %5873 = vmatprep.subr.mxu0 0.0
      %5874 = vmatpush1.msra.mxu0 0.0
      %5875 = vmatprep.subr.mxu0 0.0
      %5876 = vmatpush1.msra.mxu0 0.0
      %5877 = vmatprep.subr.mxu0 0.0
      %5878 = vmatpush1.msra.mxu0 0.0
      %5879 = vmatprep.subr.mxu0 0.0
      %5880 = vmatpush1.msra.mxu0 0.0
      %5881 = vmatprep.subr.mxu0 0.0
      %5882 = vmatpush1.msra.mxu0 0.0
      %5883 = vmatprep.subr.mxu0 0.0
      %5884 = vmatpush1.msra.mxu0 0.0
      %5885 = vmatprep.subr.mxu0 0.0
      %5886 = vmatpush1.msra.mxu0 0.0
      %5887 = vmatprep.subr.mxu0 0.0
      %5888 = vmatpush1.msra.mxu0 0.0
      %5889 = vmatprep.subr.mxu0 0.0
      %5890 = vmatpush1.msra.mxu0 0.0
      %5891 = vmatprep.subr.mxu0 0.0
      %5892 = vmatpush1.msra.mxu0 0.0
      %5893 = vmatprep.subr.mxu0 0.0
      %5894 = vmatpush1.msra.mxu0 0.0
      %5895 = vmatprep.mubr.f32.mxu0 0.0
      %5896 = vmatmul.mubr.f32.gmra.mrb[0].mxu0 %v454
      %v5897 = vpop.f32.mrb[0].mxu0
      %v5898 = vadd.f32 %v4169, %v5897
      %v5899 = vpop.f32.mrb[0].mxu0
      %5900 = vdwg.mxu0
      %5901 = vmatprep.subr.mxu0 0.0
      %5902 = vmatpush1.msra.mxu0 %v2358
      %5903 = vmatprep.subr.mxu0 0.0
      %5904 = vmatpush1.msra.mxu0 0.0
      %5905 = vmatprep.subr.mxu0 0.0
      %5906 = vmatpush1.msra.mxu0 0.0
      %5907 = vmatprep.subr.mxu0 0.0
      %5908 = vmatpush1.msra.mxu0 0.0
      %5909 = vmatprep.subr.mxu0 0.0
      %5910 = vmatpush1.msra.mxu0 0.0
      %5911 = vmatprep.subr.mxu0 0.0
      %5912 = vmatpush1.msra.mxu0 0.0
      %5913 = vmatprep.subr.mxu0 0.0
      %5914 = vmatpush1.msra.mxu0 0.0
      %5915 = vmatprep.subr.mxu0 0.0
      %5916 = vmatpush1.msra.mxu0 0.0
      %5917 = vmatprep.subr.mxu0 0.0
      %5918 = vmatpush1.msra.mxu0 0.0
      %5919 = vmatprep.subr.mxu0 0.0
      %5920 = vmatpush1.msra.mxu0 0.0
      %5921 = vmatprep.subr.mxu0 0.0
      %5922 = vmatpush1.msra.mxu0 0.0
      %5923 = vmatprep.subr.mxu0 0.0
      %5924 = vmatpush1.msra.mxu0 0.0
      %5925 = vmatprep.subr.mxu0 0.0
      %5926 = vmatpush1.msra.mxu0 0.0
      %5927 = vmatprep.subr.mxu0 0.0
      %5928 = vmatpush1.msra.mxu0 0.0
      %5929 = vmatprep.subr.mxu0 0.0
      %5930 = vmatpush1.msra.mxu0 0.0
      %5931 = vmatprep.subr.mxu0 0.0
      %5932 = vmatpush1.msra.mxu0 0.0
      %5933 = vmatprep.subr.mxu0 0.0
      %5934 = vmatpush1.msra.mxu0 0.0
      %5935 = vmatprep.subr.mxu0 0.0
      %5936 = vmatpush1.msra.mxu0 0.0
      %5937 = vmatprep.subr.mxu0 0.0
      %5938 = vmatpush1.msra.mxu0 0.0
      %5939 = vmatprep.subr.mxu0 0.0
      %5940 = vmatpush1.msra.mxu0 0.0
      %5941 = vmatprep.subr.mxu0 0.0
      %5942 = vmatpush1.msra.mxu0 0.0
      %5943 = vmatprep.subr.mxu0 0.0
      %5944 = vmatpush1.msra.mxu0 0.0
      %5945 = vmatprep.subr.mxu0 0.0
      %5946 = vmatpush1.msra.mxu0 0.0
      %5947 = vmatprep.subr.mxu0 0.0
      %5948 = vmatpush1.msra.mxu0 0.0
      %5949 = vmatprep.subr.mxu0 0.0
      %5950 = vmatpush1.msra.mxu0 0.0
      %5951 = vmatprep.subr.mxu0 0.0
      %5952 = vmatpush1.msra.mxu0 0.0
      %5953 = vmatprep.subr.mxu0 0.0
      %5954 = vmatpush1.msra.mxu0 0.0
      %5955 = vmatprep.subr.mxu0 0.0
      %5956 = vmatpush1.msra.mxu0 0.0
      %5957 = vmatprep.subr.mxu0 0.0
      %5958 = vmatpush1.msra.mxu0 0.0
      %5959 = vmatprep.subr.mxu0 0.0
      %5960 = vmatpush1.msra.mxu0 0.0
      %5961 = vmatprep.subr.mxu0 0.0
      %5962 = vmatpush1.msra.mxu0 0.0
      %5963 = vmatprep.subr.mxu0 0.0
      %5964 = vmatpush1.msra.mxu0 0.0
      %5965 = vmatprep.mubr.f32.mxu0 0.0
      %5966 = vmatmul.mubr.f32.gmra.mrb[0].mxu0 %v531
      %v5967 = vpop.f32.mrb[0].mxu0
      %v5968 = vadd.f32 %v4239, %v5967
      %v5969 = vpop.f32.mrb[0].mxu0
      %5970 = vdwg.mxu0
      %5971 = vmatprep.subr.mxu0 0.0
      %5972 = vmatpush1.msra.mxu0 %v2434
      %5973 = vmatprep.subr.mxu0 0.0
      %5974 = vmatpush1.msra.mxu0 0.0
      %5975 = vmatprep.subr.mxu0 0.0
      %5976 = vmatpush1.msra.mxu0 0.0
      %5977 = vmatprep.subr.mxu0 0.0
      %5978 = vmatpush1.msra.mxu0 0.0
      %5979 = vmatprep.subr.mxu0 0.0
      %5980 = vmatpush1.msra.mxu0 0.0
      %5981 = vmatprep.subr.mxu0 0.0
      %5982 = vmatpush1.msra.mxu0 0.0
      %5983 = vmatprep.subr.mxu0 0.0
      %5984 = vmatpush1.msra.mxu0 0.0
      %5985 = vmatprep.subr.mxu0 0.0
      %5986 = vmatpush1.msra.mxu0 0.0
      %5987 = vmatprep.subr.mxu0 0.0
      %5988 = vmatpush1.msra.mxu0 0.0
      %5989 = vmatprep.subr.mxu0 0.0
      %5990 = vmatpush1.msra.mxu0 0.0
      %5991 = vmatprep.subr.mxu0 0.0
      %5992 = vmatpush1.msra.mxu0 0.0
      %5993 = vmatprep.subr.mxu0 0.0
      %5994 = vmatpush1.msra.mxu0 0.0
      %5995 = vmatprep.subr.mxu0 0.0
      %5996 = vmatpush1.msra.mxu0 0.0
      %5997 = vmatprep.subr.mxu0 0.0
      %5998 = vmatpush1.msra.mxu0 0.0
      %5999 = vmatprep.subr.mxu0 0.0
      %6000 = vmatpush1.msra.mxu0 0.0
      %6001 = vmatprep.subr.mxu0 0.0
      %6002 = vmatpush1.msra.mxu0 0.0
      %6003 = vmatprep.subr.mxu0 0.0
      %6004 = vmatpush1.msra.mxu0 0.0
      %6005 = vmatprep.subr.mxu0 0.0
      %6006 = vmatpush1.msra.mxu0 0.0
      %6007 = vmatprep.subr.mxu0 0.0
      %6008 = vmatpush1.msra.mxu0 0.0
      %6009 = vmatprep.subr.mxu0 0.0
      %6010 = vmatpush1.msra.mxu0 0.0
      %6011 = vmatprep.subr.mxu0 0.0
      %6012 = vmatpush1.msra.mxu0 0.0
      %6013 = vmatprep.subr.mxu0 0.0
      %6014 = vmatpush1.msra.mxu0 0.0
      %6015 = vmatprep.subr.mxu0 0.0
      %6016 = vmatpush1.msra.mxu0 0.0
      %6017 = vmatprep.subr.mxu0 0.0
      %6018 = vmatpush1.msra.mxu0 0.0
      %6019 = vmatprep.subr.mxu0 0.0
      %6020 = vmatpush1.msra.mxu0 0.0
      %6021 = vmatprep.subr.mxu0 0.0
      %6022 = vmatpush1.msra.mxu0 0.0
      %6023 = vmatprep.subr.mxu0 0.0
      %6024 = vmatpush1.msra.mxu0 0.0
      %6025 = vmatprep.subr.mxu0 0.0
      %6026 = vmatpush1.msra.mxu0 0.0
      %6027 = vmatprep.subr.mxu0 0.0
      %6028 = vmatpush1.msra.mxu0 0.0
      %6029 = vmatprep.subr.mxu0 0.0
      %6030 = vmatpush1.msra.mxu0 0.0
      %6031 = vmatprep.subr.mxu0 0.0
      %6032 = vmatpush1.msra.mxu0 0.0
      %6033 = vmatprep.subr.mxu0 0.0
      %6034 = vmatpush1.msra.mxu0 0.0
      %6035 = vmatprep.mubr.f32.mxu0 0.0
      %6036 = vmatmul.mubr.f32.gmra.mrb[0].mxu0 %v607
      %v6037 = vpop.f32.mrb[0].mxu0
      %v6038 = vadd.f32 %v4309, %v6037
      %v6039 = vpop.f32.mrb[0].mxu0
      %6040 = vdwg.mxu0
      %6041 = vmatprep.subr.mxu0 0.0
      %6042 = vmatpush1.msra.mxu0 %v2510
      %6043 = vmatprep.subr.mxu0 0.0
      %6044 = vmatpush1.msra.mxu0 0.0
      %6045 = vmatprep.subr.mxu0 0.0
      %6046 = vmatpush1.msra.mxu0 0.0
      %6047 = vmatprep.subr.mxu0 0.0
      %6048 = vmatpush1.msra.mxu0 0.0
      %6049 = vmatprep.subr.mxu0 0.0
      %6050 = vmatpush1.msra.mxu0 0.0
      %6051 = vmatprep.subr.mxu0 0.0
      %6052 = vmatpush1.msra.mxu0 0.0
      %6053 = vmatprep.subr.mxu0 0.0
      %6054 = vmatpush1.msra.mxu0 0.0
      %6055 = vmatprep.subr.mxu0 0.0
      %6056 = vmatpush1.msra.mxu0 0.0
      %6057 = vmatprep.subr.mxu0 0.0
      %6058 = vmatpush1.msra.mxu0 0.0
      %6059 = vmatprep.subr.mxu0 0.0
      %6060 = vmatpush1.msra.mxu0 0.0
      %6061 = vmatprep.subr.mxu0 0.0
      %6062 = vmatpush1.msra.mxu0 0.0
      %6063 = vmatprep.subr.mxu0 0.0
      %6064 = vmatpush1.msra.mxu0 0.0
      %6065 = vmatprep.subr.mxu0 0.0
      %6066 = vmatpush1.msra.mxu0 0.0
      %6067 = vmatprep.subr.mxu0 0.0
      %6068 = vmatpush1.msra.mxu0 0.0
      %6069 = vmatprep.subr.mxu0 0.0
      %6070 = vmatpush1.msra.mxu0 0.0
      %6071 = vmatprep.subr.mxu0 0.0
      %6072 = vmatpush1.msra.mxu0 0.0
      %6073 = vmatprep.subr.mxu0 0.0
      %6074 = vmatpush1.msra.mxu0 0.0
      %6075 = vmatprep.subr.mxu0 0.0
      %6076 = vmatpush1.msra.mxu0 0.0
      %6077 = vmatprep.subr.mxu0 0.0
      %6078 = vmatpush1.msra.mxu0 0.0
      %6079 = vmatprep.subr.mxu0 0.0
      %6080 = vmatpush1.msra.mxu0 0.0
      %6081 = vmatprep.subr.mxu0 0.0
      %6082 = vmatpush1.msra.mxu0 0.0
      %6083 = vmatprep.subr.mxu0 0.0
      %6084 = vmatpush1.msra.mxu0 0.0
      %6085 = vmatprep.subr.mxu0 0.0
      %6086 = vmatpush1.msra.mxu0 0.0
      %6087 = vmatprep.subr.mxu0 0.0
      %6088 = vmatpush1.msra.mxu0 0.0
      %6089 = vmatprep.subr.mxu0 0.0
      %6090 = vmatpush1.msra.mxu0 0.0
      %6091 = vmatprep.subr.mxu0 0.0
      %6092 = vmatpush1.msra.mxu0 0.0
      %6093 = vmatprep.subr.mxu0 0.0
      %6094 = vmatpush1.msra.mxu0 0.0
      %6095 = vmatprep.subr.mxu0 0.0
      %6096 = vmatpush1.msra.mxu0 0.0
      %6097 = vmatprep.subr.mxu0 0.0
      %6098 = vmatpush1.msra.mxu0 0.0
      %6099 = vmatprep.subr.mxu0 0.0
      %6100 = vmatpush1.msra.mxu0 0.0
      %6101 = vmatprep.subr.mxu0 0.0
      %6102 = vmatpush1.msra.mxu0 0.0
      %6103 = vmatprep.subr.mxu0 0.0
      %6104 = vmatpush1.msra.mxu0 0.0
      %6105 = vmatprep.mubr.f32.mxu0 0.0
      %6106 = vmatmul.mubr.f32.gmra.mrb[0].mxu0 %v683
      %v6107 = vpop.f32.mrb[0].mxu0
      %v6108 = vadd.f32 %v4379, %v6107
      %v6109 = vpop.f32.mrb[0].mxu0
      %6110 = vdwg.mxu0
      %6111 = vmatprep.subr.mxu0 0.0
      %6112 = vmatpush1.msra.mxu0 %v2586
      %6113 = vmatprep.subr.mxu0 0.0
      %6114 = vmatpush1.msra.mxu0 0.0
      %6115 = vmatprep.subr.mxu0 0.0
      %6116 = vmatpush1.msra.mxu0 0.0
      %6117 = vmatprep.subr.mxu0 0.0
      %6118 = vmatpush1.msra.mxu0 0.0
      %6119 = vmatprep.subr.mxu0 0.0
      %6120 = vmatpush1.msra.mxu0 0.0
      %6121 = vmatprep.subr.mxu0 0.0
      %6122 = vmatpush1.msra.mxu0 0.0
      %6123 = vmatprep.subr.mxu0 0.0
      %6124 = vmatpush1.msra.mxu0 0.0
      %6125 = vmatprep.subr.mxu0 0.0
      %6126 = vmatpush1.msra.mxu0 0.0
      %6127 = vmatprep.subr.mxu0 0.0
      %6128 = vmatpush1.msra.mxu0 0.0
      %6129 = vmatprep.subr.mxu0 0.0
      %6130 = vmatpush1.msra.mxu0 0.0
      %6131 = vmatprep.subr.mxu0 0.0
      %6132 = vmatpush1.msra.mxu0 0.0
      %6133 = vmatprep.subr.mxu0 0.0
      %6134 = vmatpush1.msra.mxu0 0.0
      %6135 = vmatprep.subr.mxu0 0.0
      %6136 = vmatpush1.msra.mxu0 0.0
      %6137 = vmatprep.subr.mxu0 0.0
      %6138 = vmatpush1.msra.mxu0 0.0
      %6139 = vmatprep.subr.mxu0 0.0
      %6140 = vmatpush1.msra.mxu0 0.0
      %6141 = vmatprep.subr.mxu0 0.0
      %6142 = vmatpush1.msra.mxu0 0.0
      %6143 = vmatprep.subr.mxu0 0.0
      %6144 = vmatpush1.msra.mxu0 0.0
      %6145 = vmatprep.subr.mxu0 0.0
      %6146 = vmatpush1.msra.mxu0 0.0
      %6147 = vmatprep.subr.mxu0 0.0
      %6148 = vmatpush1.msra.mxu0 0.0
      %6149 = vmatprep.subr.mxu0 0.0
      %6150 = vmatpush1.msra.mxu0 0.0
      %6151 = vmatprep.subr.mxu0 0.0
      %6152 = vmatpush1.msra.mxu0 0.0
      %6153 = vmatprep.subr.mxu0 0.0
      %6154 = vmatpush1.msra.mxu0 0.0
      %6155 = vmatprep.subr.mxu0 0.0
      %6156 = vmatpush1.msra.mxu0 0.0
      %6157 = vmatprep.subr.mxu0 0.0
      %6158 = vmatpush1.msra.mxu0 0.0
      %6159 = vmatprep.subr.mxu0 0.0
      %6160 = vmatpush1.msra.mxu0 0.0
      %6161 = vmatprep.subr.mxu0 0.0
      %6162 = vmatpush1.msra.mxu0 0.0
      %6163 = vmatprep.subr.mxu0 0.0
      %6164 = vmatpush1.msra.mxu0 0.0
      %6165 = vmatprep.subr.mxu0 0.0
      %6166 = vmatpush1.msra.mxu0 0.0
      %6167 = vmatprep.subr.mxu0 0.0
      %6168 = vmatpush1.msra.mxu0 0.0
      %6169 = vmatprep.subr.mxu0 0.0
      %6170 = vmatpush1.msra.mxu0 0.0
      %6171 = vmatprep.subr.mxu0 0.0
      %6172 = vmatpush1.msra.mxu0 0.0
      %6173 = vmatprep.subr.mxu0 0.0
      %6174 = vmatpush1.msra.mxu0 0.0
      %6175 = vmatprep.mubr.f32.mxu0 0.0
      %6176 = vmatmul.mubr.f32.gmra.mrb[0].mxu0 %v759
      %v6177 = vpop.f32.mrb[0].mxu0
      %v6178 = vadd.f32 %v4449, %v6177
      %v6179 = vpop.f32.mrb[0].mxu0
      %6180 = vdwg.mxu0
      %6181 = vmatprep.subr.mxu0 0.0
      %6182 = vmatpush1.msra.mxu0 %v2662
      %6183 = vmatprep.subr.mxu0 0.0
      %6184 = vmatpush1.msra.mxu0 0.0
      %6185 = vmatprep.subr.mxu0 0.0
      %6186 = vmatpush1.msra.mxu0 0.0
      %6187 = vmatprep.subr.mxu0 0.0
      %6188 = vmatpush1.msra.mxu0 0.0
      %6189 = vmatprep.subr.mxu0 0.0
      %6190 = vmatpush1.msra.mxu0 0.0
      %6191 = vmatprep.subr.mxu0 0.0
      %6192 = vmatpush1.msra.mxu0 0.0
      %6193 = vmatprep.subr.mxu0 0.0
      %6194 = vmatpush1.msra.mxu0 0.0
      %6195 = vmatprep.subr.mxu0 0.0
      %6196 = vmatpush1.msra.mxu0 0.0
      %6197 = vmatprep.subr.mxu0 0.0
      %6198 = vmatpush1.msra.mxu0 0.0
      %6199 = vmatprep.subr.mxu0 0.0
      %6200 = vmatpush1.msra.mxu0 0.0
      %6201 = vmatprep.subr.mxu0 0.0
      %6202 = vmatpush1.msra.mxu0 0.0
      %6203 = vmatprep.subr.mxu0 0.0
      %6204 = vmatpush1.msra.mxu0 0.0
      %6205 = vmatprep.subr.mxu0 0.0
      %6206 = vmatpush1.msra.mxu0 0.0
      %6207 = vmatprep.subr.mxu0 0.0
      %6208 = vmatpush1.msra.mxu0 0.0
      %6209 = vmatprep.subr.mxu0 0.0
      %6210 = vmatpush1.msra.mxu0 0.0
      %6211 = vmatprep.subr.mxu0 0.0
      %6212 = vmatpush1.msra.mxu0 0.0
      %6213 = vmatprep.subr.mxu0 0.0
      %6214 = vmatpush1.msra.mxu0 0.0
      %6215 = vmatprep.subr.mxu0 0.0
      %6216 = vmatpush1.msra.mxu0 0.0
      %6217 = vmatprep.subr.mxu0 0.0
      %6218 = vmatpush1.msra.mxu0 0.0
      %6219 = vmatprep.subr.mxu0 0.0
      %6220 = vmatpush1.msra.mxu0 0.0
      %6221 = vmatprep.subr.mxu0 0.0
      %6222 = vmatpush1.msra.mxu0 0.0
      %6223 = vmatprep.subr.mxu0 0.0
      %6224 = vmatpush1.msra.mxu0 0.0
      %6225 = vmatprep.subr.mxu0 0.0
      %6226 = vmatpush1.msra.mxu0 0.0
      %6227 = vmatprep.subr.mxu0 0.0
      %6228 = vmatpush1.msra.mxu0 0.0
      %6229 = vmatprep.subr.mxu0 0.0
      %6230 = vmatpush1.msra.mxu0 0.0
      %6231 = vmatprep.subr.mxu0 0.0
      %6232 = vmatpush1.msra.mxu0 0.0
      %6233 = vmatprep.subr.mxu0 0.0
      %6234 = vmatpush1.msra.mxu0 0.0
      %6235 = vmatprep.subr.mxu0 0.0
      %6236 = vmatpush1.msra.mxu0 0.0
      %6237 = vmatprep.subr.mxu0 0.0
      %6238 = vmatpush1.msra.mxu0 0.0
      %6239 = vmatprep.subr.mxu0 0.0
      %6240 = vmatpush1.msra.mxu0 0.0
      %6241 = vmatprep.subr.mxu0 0.0
      %6242 = vmatpush1.msra.mxu0 0.0
      %6243 = vmatprep.subr.mxu0 0.0
      %6244 = vmatpush1.msra.mxu0 0.0
      %6245 = vmatprep.mubr.f32.mxu0 0.0
      %6246 = vmatmul.mubr.f32.gmra.mrb[0].mxu0 %v835
      %v6247 = vpop.f32.mrb[0].mxu0
      %v6248 = vadd.f32 %v4519, %v6247
      %v6249 = vpop.f32.mrb[0].mxu0
      %6250 = vdwg.mxu0
      %6251 = vmatprep.subr.mxu0 0.0
      %6252 = vmatpush1.msra.mxu0 %v2738
      %6253 = vmatprep.subr.mxu0 0.0
      %6254 = vmatpush1.msra.mxu0 0.0
      %6255 = vmatprep.subr.mxu0 0.0
      %6256 = vmatpush1.msra.mxu0 0.0
      %6257 = vmatprep.subr.mxu0 0.0
      %6258 = vmatpush1.msra.mxu0 0.0
      %6259 = vmatprep.subr.mxu0 0.0
      %6260 = vmatpush1.msra.mxu0 0.0
      %6261 = vmatprep.subr.mxu0 0.0
      %6262 = vmatpush1.msra.mxu0 0.0
      %6263 = vmatprep.subr.mxu0 0.0
      %6264 = vmatpush1.msra.mxu0 0.0
      %6265 = vmatprep.subr.mxu0 0.0
      %6266 = vmatpush1.msra.mxu0 0.0
      %6267 = vmatprep.subr.mxu0 0.0
      %6268 = vmatpush1.msra.mxu0 0.0
      %6269 = vmatprep.subr.mxu0 0.0
      %6270 = vmatpush1.msra.mxu0 0.0
      %6271 = vmatprep.subr.mxu0 0.0
      %6272 = vmatpush1.msra.mxu0 0.0
      %6273 = vmatprep.subr.mxu0 0.0
      %6274 = vmatpush1.msra.mxu0 0.0
      %6275 = vmatprep.subr.mxu0 0.0
      %6276 = vmatpush1.msra.mxu0 0.0
      %6277 = vmatprep.subr.mxu0 0.0
      %6278 = vmatpush1.msra.mxu0 0.0
      %6279 = vmatprep.subr.mxu0 0.0
      %6280 = vmatpush1.msra.mxu0 0.0
      %6281 = vmatprep.subr.mxu0 0.0
      %6282 = vmatpush1.msra.mxu0 0.0
      %6283 = vmatprep.subr.mxu0 0.0
      %6284 = vmatpush1.msra.mxu0 0.0
      %6285 = vmatprep.subr.mxu0 0.0
      %6286 = vmatpush1.msra.mxu0 0.0
      %6287 = vmatprep.subr.mxu0 0.0
      %6288 = vmatpush1.msra.mxu0 0.0
      %6289 = vmatprep.subr.mxu0 0.0
      %6290 = vmatpush1.msra.mxu0 0.0
      %6291 = vmatprep.subr.mxu0 0.0
      %6292 = vmatpush1.msra.mxu0 0.0
      %6293 = vmatprep.subr.mxu0 0.0
      %6294 = vmatpush1.msra.mxu0 0.0
      %6295 = vmatprep.subr.mxu0 0.0
      %6296 = vmatpush1.msra.mxu0 0.0
      %6297 = vmatprep.subr.mxu0 0.0
      %6298 = vmatpush1.msra.mxu0 0.0
      %6299 = vmatprep.subr.mxu0 0.0
      %6300 = vmatpush1.msra.mxu0 0.0
      %6301 = vmatprep.subr.mxu0 0.0
      %6302 = vmatpush1.msra.mxu0 0.0
      %6303 = vmatprep.subr.mxu0 0.0
      %6304 = vmatpush1.msra.mxu0 0.0
      %6305 = vmatprep.subr.mxu0 0.0
      %6306 = vmatpush1.msra.mxu0 0.0
      %6307 = vmatprep.subr.mxu0 0.0
      %6308 = vmatpush1.msra.mxu0 0.0
      %6309 = vmatprep.subr.mxu0 0.0
      %6310 = vmatpush1.msra.mxu0 0.0
      %6311 = vmatprep.subr.mxu0 0.0
      %6312 = vmatpush1.msra.mxu0 0.0
      %6313 = vmatprep.subr.mxu0 0.0
      %6314 = vmatpush1.msra.mxu0 0.0
      %6315 = vmatprep.mubr.f32.mxu0 0.0
      %6316 = vmatmul.mubr.f32.gmra.mrb[0].mxu0 %v911
      %v6317 = vpop.f32.mrb[0].mxu0
      %v6318 = vadd.f32 %v4589, %v6317
      %v6319 = vpop.f32.mrb[0].mxu0
      %6320 = vdwg.mxu0
      %6321 = vmatprep.subr.mxu0 0.0
      %6322 = vmatpush1.msra.mxu0 %v2814
      %6323 = vmatprep.subr.mxu0 0.0
      %6324 = vmatpush1.msra.mxu0 0.0
      %6325 = vmatprep.subr.mxu0 0.0
      %6326 = vmatpush1.msra.mxu0 0.0
      %6327 = vmatprep.subr.mxu0 0.0
      %6328 = vmatpush1.msra.mxu0 0.0
      %6329 = vmatprep.subr.mxu0 0.0
      %6330 = vmatpush1.msra.mxu0 0.0
      %6331 = vmatprep.subr.mxu0 0.0
      %6332 = vmatpush1.msra.mxu0 0.0
      %6333 = vmatprep.subr.mxu0 0.0
      %6334 = vmatpush1.msra.mxu0 0.0
      %6335 = vmatprep.subr.mxu0 0.0
      %6336 = vmatpush1.msra.mxu0 0.0
      %6337 = vmatprep.subr.mxu0 0.0
      %6338 = vmatpush1.msra.mxu0 0.0
      %6339 = vmatprep.subr.mxu0 0.0
      %6340 = vmatpush1.msra.mxu0 0.0
      %6341 = vmatprep.subr.mxu0 0.0
      %6342 = vmatpush1.msra.mxu0 0.0
      %6343 = vmatprep.subr.mxu0 0.0
      %6344 = vmatpush1.msra.mxu0 0.0
      %6345 = vmatprep.subr.mxu0 0.0
      %6346 = vmatpush1.msra.mxu0 0.0
      %6347 = vmatprep.subr.mxu0 0.0
      %6348 = vmatpush1.msra.mxu0 0.0
      %6349 = vmatprep.subr.mxu0 0.0
      %6350 = vmatpush1.msra.mxu0 0.0
      %6351 = vmatprep.subr.mxu0 0.0
      %6352 = vmatpush1.msra.mxu0 0.0
      %6353 = vmatprep.subr.mxu0 0.0
      %6354 = vmatpush1.msra.mxu0 0.0
      %6355 = vmatprep.subr.mxu0 0.0
      %6356 = vmatpush1.msra.mxu0 0.0
      %6357 = vmatprep.subr.mxu0 0.0
      %6358 = vmatpush1.msra.mxu0 0.0
      %6359 = vmatprep.subr.mxu0 0.0
      %6360 = vmatpush1.msra.mxu0 0.0
      %6361 = vmatprep.subr.mxu0 0.0
      %6362 = vmatpush1.msra.mxu0 0.0
      %6363 = vmatprep.subr.mxu0 0.0
      %6364 = vmatpush1.msra.mxu0 0.0
      %6365 = vmatprep.subr.mxu0 0.0
      %6366 = vmatpush1.msra.mxu0 0.0
      %6367 = vmatprep.subr.mxu0 0.0
      %6368 = vmatpush1.msra.mxu0 0.0
      %6369 = vmatprep.subr.mxu0 0.0
      %6370 = vmatpush1.msra.mxu0 0.0
      %6371 = vmatprep.subr.mxu0 0.0
      %6372 = vmatpush1.msra.mxu0 0.0
      %6373 = vmatprep.subr.mxu0 0.0
      %6374 = vmatpush1.msra.mxu0 0.0
      %6375 = vmatprep.subr.mxu0 0.0
      %6376 = vmatpush1.msra.mxu0 0.0
      %6377 = vmatprep.subr.mxu0 0.0
      %6378 = vmatpush1.msra.mxu0 0.0
      %6379 = vmatprep.subr.mxu0 0.0
      %6380 = vmatpush1.msra.mxu0 0.0
      %6381 = vmatprep.subr.mxu0 0.0
      %6382 = vmatpush1.msra.mxu0 0.0
      %6383 = vmatprep.subr.mxu0 0.0
      %6384 = vmatpush1.msra.mxu0 0.0
      %6385 = vmatprep.mubr.f32.mxu0 0.0
      %6386 = vmatmul.mubr.f32.gmra.mrb[0].mxu0 %v987
      %v6387 = vpop.f32.mrb[0].mxu0
      %v6388 = vadd.f32 %v4659, %v6387
      %v6389 = vpop.f32.mrb[0].mxu0
      %6390 = vdwg.mxu0
      %6391 = vmatprep.subr.mxu0 0.0
      %6392 = vmatpush1.msra.mxu0 %v2890
      %6393 = vmatprep.subr.mxu0 0.0
      %6394 = vmatpush1.msra.mxu0 0.0
      %6395 = vmatprep.subr.mxu0 0.0
      %6396 = vmatpush1.msra.mxu0 0.0
      %6397 = vmatprep.subr.mxu0 0.0
      %6398 = vmatpush1.msra.mxu0 0.0
      %6399 = vmatprep.subr.mxu0 0.0
      %6400 = vmatpush1.msra.mxu0 0.0
      %6401 = vmatprep.subr.mxu0 0.0
      %6402 = vmatpush1.msra.mxu0 0.0
      %6403 = vmatprep.subr.mxu0 0.0
      %6404 = vmatpush1.msra.mxu0 0.0
      %6405 = vmatprep.subr.mxu0 0.0
      %6406 = vmatpush1.msra.mxu0 0.0
      %6407 = vmatprep.subr.mxu0 0.0
      %6408 = vmatpush1.msra.mxu0 0.0
      %6409 = vmatprep.subr.mxu0 0.0
      %6410 = vmatpush1.msra.mxu0 0.0
      %6411 = vmatprep.subr.mxu0 0.0
      %6412 = vmatpush1.msra.mxu0 0.0
      %6413 = vmatprep.subr.mxu0 0.0
      %6414 = vmatpush1.msra.mxu0 0.0
      %6415 = vmatprep.subr.mxu0 0.0
      %6416 = vmatpush1.msra.mxu0 0.0
      %6417 = vmatprep.subr.mxu0 0.0
      %6418 = vmatpush1.msra.mxu0 0.0
      %6419 = vmatprep.subr.mxu0 0.0
      %6420 = vmatpush1.msra.mxu0 0.0
      %6421 = vmatprep.subr.mxu0 0.0
      %6422 = vmatpush1.msra.mxu0 0.0
      %6423 = vmatprep.subr.mxu0 0.0
      %6424 = vmatpush1.msra.mxu0 0.0
      %6425 = vmatprep.subr.mxu0 0.0
      %6426 = vmatpush1.msra.mxu0 0.0
      %6427 = vmatprep.subr.mxu0 0.0
      %6428 = vmatpush1.msra.mxu0 0.0
      %6429 = vmatprep.subr.mxu0 0.0
      %6430 = vmatpush1.msra.mxu0 0.0
      %6431 = vmatprep.subr.mxu0 0.0
      %6432 = vmatpush1.msra.mxu0 0.0
      %6433 = vmatprep.subr.mxu0 0.0
      %6434 = vmatpush1.msra.mxu0 0.0
      %6435 = vmatprep.subr.mxu0 0.0
      %6436 = vmatpush1.msra.mxu0 0.0
      %6437 = vmatprep.subr.mxu0 0.0
      %6438 = vmatpush1.msra.mxu0 0.0
      %6439 = vmatprep.subr.mxu0 0.0
      %6440 = vmatpush1.msra.mxu0 0.0
      %6441 = vmatprep.subr.mxu0 0.0
      %6442 = vmatpush1.msra.mxu0 0.0
      %6443 = vmatprep.subr.mxu0 0.0
      %6444 = vmatpush1.msra.mxu0 0.0
      %6445 = vmatprep.subr.mxu0 0.0
      %6446 = vmatpush1.msra.mxu0 0.0
      %6447 = vmatprep.subr.mxu0 0.0
      %6448 = vmatpush1.msra.mxu0 0.0
      %6449 = vmatprep.subr.mxu0 0.0
      %6450 = vmatpush1.msra.mxu0 0.0
      %6451 = vmatprep.subr.mxu0 0.0
      %6452 = vmatpush1.msra.mxu0 0.0
      %6453 = vmatprep.subr.mxu0 0.0
      %6454 = vmatpush1.msra.mxu0 0.0
      %6455 = vmatprep.mubr.f32.mxu0 0.0
      %6456 = vmatmul.mubr.f32.gmra.mrb[0].mxu0 %v1063
      %v6457 = vpop.f32.mrb[0].mxu0
      %v6458 = vadd.f32 %v4729, %v6457
      %v6459 = vpop.f32.mrb[0].mxu0
      %6460 = vdwg.mxu0
      %6461 = vmatprep.subr.mxu0 0.0
      %6462 = vmatpush1.msra.mxu0 %v2966
      %6463 = vmatprep.subr.mxu0 0.0
      %6464 = vmatpush1.msra.mxu0 0.0
      %6465 = vmatprep.subr.mxu0 0.0
      %6466 = vmatpush1.msra.mxu0 0.0
      %6467 = vmatprep.subr.mxu0 0.0
      %6468 = vmatpush1.msra.mxu0 0.0
      %6469 = vmatprep.subr.mxu0 0.0
      %6470 = vmatpush1.msra.mxu0 0.0
      %6471 = vmatprep.subr.mxu0 0.0
      %6472 = vmatpush1.msra.mxu0 0.0
      %6473 = vmatprep.subr.mxu0 0.0
      %6474 = vmatpush1.msra.mxu0 0.0
      %6475 = vmatprep.subr.mxu0 0.0
      %6476 = vmatpush1.msra.mxu0 0.0
      %6477 = vmatprep.subr.mxu0 0.0
      %6478 = vmatpush1.msra.mxu0 0.0
      %6479 = vmatprep.subr.mxu0 0.0
      %6480 = vmatpush1.msra.mxu0 0.0
      %6481 = vmatprep.subr.mxu0 0.0
      %6482 = vmatpush1.msra.mxu0 0.0
      %6483 = vmatprep.subr.mxu0 0.0
      %6484 = vmatpush1.msra.mxu0 0.0
      %6485 = vmatprep.subr.mxu0 0.0
      %6486 = vmatpush1.msra.mxu0 0.0
      %6487 = vmatprep.subr.mxu0 0.0
      %6488 = vmatpush1.msra.mxu0 0.0
      %6489 = vmatprep.subr.mxu0 0.0
      %6490 = vmatpush1.msra.mxu0 0.0
      %6491 = vmatprep.subr.mxu0 0.0
      %6492 = vmatpush1.msra.mxu0 0.0
      %6493 = vmatprep.subr.mxu0 0.0
      %6494 = vmatpush1.msra.mxu0 0.0
      %6495 = vmatprep.subr.mxu0 0.0
      %6496 = vmatpush1.msra.mxu0 0.0
      %6497 = vmatprep.subr.mxu0 0.0
      %6498 = vmatpush1.msra.mxu0 0.0
      %6499 = vmatprep.subr.mxu0 0.0
      %6500 = vmatpush1.msra.mxu0 0.0
      %6501 = vmatprep.subr.mxu0 0.0
      %6502 = vmatpush1.msra.mxu0 0.0
      %6503 = vmatprep.subr.mxu0 0.0
      %6504 = vmatpush1.msra.mxu0 0.0
      %6505 = vmatprep.subr.mxu0 0.0
      %6506 = vmatpush1.msra.mxu0 0.0
      %6507 = vmatprep.subr.mxu0 0.0
      %6508 = vmatpush1.msra.mxu0 0.0
      %6509 = vmatprep.subr.mxu0 0.0
      %6510 = vmatpush1.msra.mxu0 0.0
      %6511 = vmatprep.subr.mxu0 0.0
      %6512 = vmatpush1.msra.mxu0 0.0
      %6513 = vmatprep.subr.mxu0 0.0
      %6514 = vmatpush1.msra.mxu0 0.0
      %6515 = vmatprep.subr.mxu0 0.0
      %6516 = vmatpush1.msra.mxu0 0.0
      %6517 = vmatprep.subr.mxu0 0.0
      %6518 = vmatpush1.msra.mxu0 0.0
      %6519 = vmatprep.subr.mxu0 0.0
      %6520 = vmatpush1.msra.mxu0 0.0
      %6521 = vmatprep.subr.mxu0 0.0
      %6522 = vmatpush1.msra.mxu0 0.0
      %6523 = vmatprep.subr.mxu0 0.0
      %6524 = vmatpush1.msra.mxu0 0.0
      %6525 = vmatprep.mubr.f32.mxu0 0.0
      %6526 = vmatmul.mubr.f32.gmra.mrb[0].mxu0 %v1139
      %v6527 = vpop.f32.mrb[0].mxu0
      %v6528 = vadd.f32 %v4799, %v6527
      %v6529 = vpop.f32.mrb[0].mxu0
      %6530 = vdwg.mxu0
      %6531 = vmatprep.subr.mxu0 0.0
      %6532 = vmatpush1.msra.mxu0 %v3042
      %6533 = vmatprep.subr.mxu0 0.0
      %6534 = vmatpush1.msra.mxu0 0.0
      %6535 = vmatprep.subr.mxu0 0.0
      %6536 = vmatpush1.msra.mxu0 0.0
      %6537 = vmatprep.subr.mxu0 0.0
      %6538 = vmatpush1.msra.mxu0 0.0
      %6539 = vmatprep.subr.mxu0 0.0
      %6540 = vmatpush1.msra.mxu0 0.0
      %6541 = vmatprep.subr.mxu0 0.0
      %6542 = vmatpush1.msra.mxu0 0.0
      %6543 = vmatprep.subr.mxu0 0.0
      %6544 = vmatpush1.msra.mxu0 0.0
      %6545 = vmatprep.subr.mxu0 0.0
      %6546 = vmatpush1.msra.mxu0 0.0
      %6547 = vmatprep.subr.mxu0 0.0
      %6548 = vmatpush1.msra.mxu0 0.0
      %6549 = vmatprep.subr.mxu0 0.0
      %6550 = vmatpush1.msra.mxu0 0.0
      %6551 = vmatprep.subr.mxu0 0.0
      %6552 = vmatpush1.msra.mxu0 0.0
      %6553 = vmatprep.subr.mxu0 0.0
      %6554 = vmatpush1.msra.mxu0 0.0
      %6555 = vmatprep.subr.mxu0 0.0
      %6556 = vmatpush1.msra.mxu0 0.0
      %6557 = vmatprep.subr.mxu0 0.0
      %6558 = vmatpush1.msra.mxu0 0.0
      %6559 = vmatprep.subr.mxu0 0.0
      %6560 = vmatpush1.msra.mxu0 0.0
      %6561 = vmatprep.subr.mxu0 0.0
      %6562 = vmatpush1.msra.mxu0 0.0
      %6563 = vmatprep.subr.mxu0 0.0
      %6564 = vmatpush1.msra.mxu0 0.0
      %6565 = vmatprep.subr.mxu0 0.0
      %6566 = vmatpush1.msra.mxu0 0.0
      %6567 = vmatprep.subr.mxu0 0.0
      %6568 = vmatpush1.msra.mxu0 0.0
      %6569 = vmatprep.subr.mxu0 0.0
      %6570 = vmatpush1.msra.mxu0 0.0
      %6571 = vmatprep.subr.mxu0 0.0
      %6572 = vmatpush1.msra.mxu0 0.0
      %6573 = vmatprep.subr.mxu0 0.0
      %6574 = vmatpush1.msra.mxu0 0.0
      %6575 = vmatprep.subr.mxu0 0.0
      %6576 = vmatpush1.msra.mxu0 0.0
      %6577 = vmatprep.subr.mxu0 0.0
      %6578 = vmatpush1.msra.mxu0 0.0
      %6579 = vmatprep.subr.mxu0 0.0
      %6580 = vmatpush1.msra.mxu0 0.0
      %6581 = vmatprep.subr.mxu0 0.0
      %6582 = vmatpush1.msra.mxu0 0.0
      %6583 = vmatprep.subr.mxu0 0.0
      %6584 = vmatpush1.msra.mxu0 0.0
      %6585 = vmatprep.subr.mxu0 0.0
      %6586 = vmatpush1.msra.mxu0 0.0
      %6587 = vmatprep.subr.mxu0 0.0
      %6588 = vmatpush1.msra.mxu0 0.0
      %6589 = vmatprep.subr.mxu0 0.0
      %6590 = vmatpush1.msra.mxu0 0.0
      %6591 = vmatprep.subr.mxu0 0.0
      %6592 = vmatpush1.msra.mxu0 0.0
      %6593 = vmatprep.subr.mxu0 0.0
      %6594 = vmatpush1.msra.mxu0 0.0
      %6595 = vmatprep.mubr.f32.mxu0 0.0
      %6596 = vmatmul.mubr.f32.gmra.mrb[0].mxu0 %v1215
      %v6597 = vpop.f32.mrb[0].mxu0
      %v6598 = vadd.f32 %v4869, %v6597
      %v6599 = vpop.f32.mrb[0].mxu0
      %6600 = vdwg.mxu0
      %6601 = vmatprep.subr.mxu0 0.0
      %6602 = vmatpush1.msra.mxu0 %v3118
      %6603 = vmatprep.subr.mxu0 0.0
      %6604 = vmatpush1.msra.mxu0 0.0
      %6605 = vmatprep.subr.mxu0 0.0
      %6606 = vmatpush1.msra.mxu0 0.0
      %6607 = vmatprep.subr.mxu0 0.0
      %6608 = vmatpush1.msra.mxu0 0.0
      %6609 = vmatprep.subr.mxu0 0.0
      %6610 = vmatpush1.msra.mxu0 0.0
      %6611 = vmatprep.subr.mxu0 0.0
      %6612 = vmatpush1.msra.mxu0 0.0
      %6613 = vmatprep.subr.mxu0 0.0
      %6614 = vmatpush1.msra.mxu0 0.0
      %6615 = vmatprep.subr.mxu0 0.0
      %6616 = vmatpush1.msra.mxu0 0.0
      %6617 = vmatprep.subr.mxu0 0.0
      %6618 = vmatpush1.msra.mxu0 0.0
      %6619 = vmatprep.subr.mxu0 0.0
      %6620 = vmatpush1.msra.mxu0 0.0
      %6621 = vmatprep.subr.mxu0 0.0
      %6622 = vmatpush1.msra.mxu0 0.0
      %6623 = vmatprep.subr.mxu0 0.0
      %6624 = vmatpush1.msra.mxu0 0.0
      %6625 = vmatprep.subr.mxu0 0.0
      %6626 = vmatpush1.msra.mxu0 0.0
      %6627 = vmatprep.subr.mxu0 0.0
      %6628 = vmatpush1.msra.mxu0 0.0
      %6629 = vmatprep.subr.mxu0 0.0
      %6630 = vmatpush1.msra.mxu0 0.0
      %6631 = vmatprep.subr.mxu0 0.0
      %6632 = vmatpush1.msra.mxu0 0.0
      %6633 = vmatprep.subr.mxu0 0.0
      %6634 = vmatpush1.msra.mxu0 0.0
      %6635 = vmatprep.subr.mxu0 0.0
      %6636 = vmatpush1.msra.mxu0 0.0
      %6637 = vmatprep.subr.mxu0 0.0
      %6638 = vmatpush1.msra.mxu0 0.0
      %6639 = vmatprep.subr.mxu0 0.0
      %6640 = vmatpush1.msra.mxu0 0.0
      %6641 = vmatprep.subr.mxu0 0.0
      %6642 = vmatpush1.msra.mxu0 0.0
      %6643 = vmatprep.subr.mxu0 0.0
      %6644 = vmatpush1.msra.mxu0 0.0
      %6645 = vmatprep.subr.mxu0 0.0
      %6646 = vmatpush1.msra.mxu0 0.0
      %6647 = vmatprep.subr.mxu0 0.0
      %6648 = vmatpush1.msra.mxu0 0.0
      %6649 = vmatprep.subr.mxu0 0.0
      %6650 = vmatpush1.msra.mxu0 0.0
      %6651 = vmatprep.subr.mxu0 0.0
      %6652 = vmatpush1.msra.mxu0 0.0
      %6653 = vmatprep.subr.mxu0 0.0
      %6654 = vmatpush1.msra.mxu0 0.0
      %6655 = vmatprep.subr.mxu0 0.0
      %6656 = vmatpush1.msra.mxu0 0.0
      %6657 = vmatprep.subr.mxu0 0.0
      %6658 = vmatpush1.msra.mxu0 0.0
      %6659 = vmatprep.subr.mxu0 0.0
      %6660 = vmatpush1.msra.mxu0 0.0
      %6661 = vmatprep.subr.mxu0 0.0
      %6662 = vmatpush1.msra.mxu0 0.0
      %6663 = vmatprep.subr.mxu0 0.0
      %6664 = vmatpush1.msra.mxu0 0.0
      %6665 = vmatprep.mubr.f32.mxu0 0.0
      %6666 = vmatmul.mubr.f32.gmra.mrb[0].mxu0 %v1291
      %v6667 = vpop.f32.mrb[0].mxu0
      %v6668 = vadd.f32 %v4939, %v6667
      %v6669 = vpop.f32.mrb[0].mxu0
      %6670 = vdwg.mxu0
      %6671 = vmatprep.subr.mxu0 0.0
      %6672 = vmatpush1.msra.mxu0 %v3194
      %6673 = vmatprep.subr.mxu0 0.0
      %6674 = vmatpush1.msra.mxu0 0.0
      %6675 = vmatprep.subr.mxu0 0.0
      %6676 = vmatpush1.msra.mxu0 0.0
      %6677 = vmatprep.subr.mxu0 0.0
      %6678 = vmatpush1.msra.mxu0 0.0
      %6679 = vmatprep.subr.mxu0 0.0
      %6680 = vmatpush1.msra.mxu0 0.0
      %6681 = vmatprep.subr.mxu0 0.0
      %6682 = vmatpush1.msra.mxu0 0.0
      %6683 = vmatprep.subr.mxu0 0.0
      %6684 = vmatpush1.msra.mxu0 0.0
      %6685 = vmatprep.subr.mxu0 0.0
      %6686 = vmatpush1.msra.mxu0 0.0
      %6687 = vmatprep.subr.mxu0 0.0
      %6688 = vmatpush1.msra.mxu0 0.0
      %6689 = vmatprep.subr.mxu0 0.0
      %6690 = vmatpush1.msra.mxu0 0.0
      %6691 = vmatprep.subr.mxu0 0.0
      %6692 = vmatpush1.msra.mxu0 0.0
      %6693 = vmatprep.subr.mxu0 0.0
      %6694 = vmatpush1.msra.mxu0 0.0
      %6695 = vmatprep.subr.mxu0 0.0
      %6696 = vmatpush1.msra.mxu0 0.0
      %6697 = vmatprep.subr.mxu0 0.0
      %6698 = vmatpush1.msra.mxu0 0.0
      %6699 = vmatprep.subr.mxu0 0.0
      %6700 = vmatpush1.msra.mxu0 0.0
      %6701 = vmatprep.subr.mxu0 0.0
      %6702 = vmatpush1.msra.mxu0 0.0
      %6703 = vmatprep.subr.mxu0 0.0
      %6704 = vmatpush1.msra.mxu0 0.0
      %6705 = vmatprep.subr.mxu0 0.0
      %6706 = vmatpush1.msra.mxu0 0.0
      %6707 = vmatprep.subr.mxu0 0.0
      %6708 = vmatpush1.msra.mxu0 0.0
      %6709 = vmatprep.subr.mxu0 0.0
      %6710 = vmatpush1.msra.mxu0 0.0
      %6711 = vmatprep.subr.mxu0 0.0
      %6712 = vmatpush1.msra.mxu0 0.0
      %6713 = vmatprep.subr.mxu0 0.0
      %6714 = vmatpush1.msra.mxu0 0.0
      %6715 = vmatprep.subr.mxu0 0.0
      %6716 = vmatpush1.msra.mxu0 0.0
      %6717 = vmatprep.subr.mxu0 0.0
      %6718 = vmatpush1.msra.mxu0 0.0
      %6719 = vmatprep.subr.mxu0 0.0
      %6720 = vmatpush1.msra.mxu0 0.0
      %6721 = vmatprep.subr.mxu0 0.0
      %6722 = vmatpush1.msra.mxu0 0.0
      %6723 = vmatprep.subr.mxu0 0.0
      %6724 = vmatpush1.msra.mxu0 0.0
      %6725 = vmatprep.subr.mxu0 0.0
      %6726 = vmatpush1.msra.mxu0 0.0
      %6727 = vmatprep.subr.mxu0 0.0
      %6728 = vmatpush1.msra.mxu0 0.0
      %6729 = vmatprep.subr.mxu0 0.0
      %6730 = vmatpush1.msra.mxu0 0.0
      %6731 = vmatprep.subr.mxu0 0.0
      %6732 = vmatpush1.msra.mxu0 0.0
      %6733 = vmatprep.subr.mxu0 0.0
      %6734 = vmatpush1.msra.mxu0 0.0
      %6735 = vmatprep.mubr.f32.mxu0 0.0
      %6736 = vmatmul.mubr.f32.gmra.mrb[0].mxu0 %v1367
      %v6737 = vpop.f32.mrb[0].mxu0
      %v6738 = vadd.f32 %v5009, %v6737
      %v6739 = vpop.f32.mrb[0].mxu0
      %6740 = vdwg.mxu0
      %6741 = vmatprep.subr.mxu0 0.0
      %6742 = vmatpush1.msra.mxu0 %v3270
      %6743 = vmatprep.subr.mxu0 0.0
      %6744 = vmatpush1.msra.mxu0 0.0
      %6745 = vmatprep.subr.mxu0 0.0
      %6746 = vmatpush1.msra.mxu0 0.0
      %6747 = vmatprep.subr.mxu0 0.0
      %6748 = vmatpush1.msra.mxu0 0.0
      %6749 = vmatprep.subr.mxu0 0.0
      %6750 = vmatpush1.msra.mxu0 0.0
      %6751 = vmatprep.subr.mxu0 0.0
      %6752 = vmatpush1.msra.mxu0 0.0
      %6753 = vmatprep.subr.mxu0 0.0
      %6754 = vmatpush1.msra.mxu0 0.0
      %6755 = vmatprep.subr.mxu0 0.0
      %6756 = vmatpush1.msra.mxu0 0.0
      %6757 = vmatprep.subr.mxu0 0.0
      %6758 = vmatpush1.msra.mxu0 0.0
      %6759 = vmatprep.subr.mxu0 0.0
      %6760 = vmatpush1.msra.mxu0 0.0
      %6761 = vmatprep.subr.mxu0 0.0
      %6762 = vmatpush1.msra.mxu0 0.0
      %6763 = vmatprep.subr.mxu0 0.0
      %6764 = vmatpush1.msra.mxu0 0.0
      %6765 = vmatprep.subr.mxu0 0.0
      %6766 = vmatpush1.msra.mxu0 0.0
      %6767 = vmatprep.subr.mxu0 0.0
      %6768 = vmatpush1.msra.mxu0 0.0
      %6769 = vmatprep.subr.mxu0 0.0
      %6770 = vmatpush1.msra.mxu0 0.0
      %6771 = vmatprep.subr.mxu0 0.0
      %6772 = vmatpush1.msra.mxu0 0.0
      %6773 = vmatprep.subr.mxu0 0.0
      %6774 = vmatpush1.msra.mxu0 0.0
      %6775 = vmatprep.subr.mxu0 0.0
      %6776 = vmatpush1.msra.mxu0 0.0
      %6777 = vmatprep.subr.mxu0 0.0
      %6778 = vmatpush1.msra.mxu0 0.0
      %6779 = vmatprep.subr.mxu0 0.0
      %6780 = vmatpush1.msra.mxu0 0.0
      %6781 = vmatprep.subr.mxu0 0.0
      %6782 = vmatpush1.msra.mxu0 0.0
      %6783 = vmatprep.subr.mxu0 0.0
      %6784 = vmatpush1.msra.mxu0 0.0
      %6785 = vmatprep.subr.mxu0 0.0
      %6786 = vmatpush1.msra.mxu0 0.0
      %6787 = vmatprep.subr.mxu0 0.0
      %6788 = vmatpush1.msra.mxu0 0.0
      %6789 = vmatprep.subr.mxu0 0.0
      %6790 = vmatpush1.msra.mxu0 0.0
      %6791 = vmatprep.subr.mxu0 0.0
      %6792 = vmatpush1.msra.mxu0 0.0
      %6793 = vmatprep.subr.mxu0 0.0
      %6794 = vmatpush1.msra.mxu0 0.0
      %6795 = vmatprep.subr.mxu0 0.0
      %6796 = vmatpush1.msra.mxu0 0.0
      %6797 = vmatprep.subr.mxu0 0.0
      %6798 = vmatpush1.msra.mxu0 0.0
      %6799 = vmatprep.subr.mxu0 0.0
      %6800 = vmatpush1.msra.mxu0 0.0
      %6801 = vmatprep.subr.mxu0 0.0
      %6802 = vmatpush1.msra.mxu0 0.0
      %6803 = vmatprep.subr.mxu0 0.0
      %6804 = vmatpush1.msra.mxu0 0.0
      %6805 = vmatprep.mubr.f32.mxu0 0.0
      %6806 = vmatmul.mubr.f32.gmra.mrb[0].mxu0 %v1443
      %v6807 = vpop.f32.mrb[0].mxu0
      %v6808 = vadd.f32 %v5079, %v6807
      %v6809 = vpop.f32.mrb[0].mxu0
      %6810 = vdwg.mxu0
      %6811 = vmatprep.subr.mxu0 0.0
      %6812 = vmatpush1.msra.mxu0 %v3346
      %6813 = vmatprep.subr.mxu0 0.0
      %6814 = vmatpush1.msra.mxu0 0.0
      %6815 = vmatprep.subr.mxu0 0.0
      %6816 = vmatpush1.msra.mxu0 0.0
      %6817 = vmatprep.subr.mxu0 0.0
      %6818 = vmatpush1.msra.mxu0 0.0
      %6819 = vmatprep.subr.mxu0 0.0
      %6820 = vmatpush1.msra.mxu0 0.0
      %6821 = vmatprep.subr.mxu0 0.0
      %6822 = vmatpush1.msra.mxu0 0.0
      %6823 = vmatprep.subr.mxu0 0.0
      %6824 = vmatpush1.msra.mxu0 0.0
      %6825 = vmatprep.subr.mxu0 0.0
      %6826 = vmatpush1.msra.mxu0 0.0
      %6827 = vmatprep.subr.mxu0 0.0
      %6828 = vmatpush1.msra.mxu0 0.0
      %6829 = vmatprep.subr.mxu0 0.0
      %6830 = vmatpush1.msra.mxu0 0.0
      %6831 = vmatprep.subr.mxu0 0.0
      %6832 = vmatpush1.msra.mxu0 0.0
      %6833 = vmatprep.subr.mxu0 0.0
      %6834 = vmatpush1.msra.mxu0 0.0
      %6835 = vmatprep.subr.mxu0 0.0
      %6836 = vmatpush1.msra.mxu0 0.0
      %6837 = vmatprep.subr.mxu0 0.0
      %6838 = vmatpush1.msra.mxu0 0.0
      %6839 = vmatprep.subr.mxu0 0.0
      %6840 = vmatpush1.msra.mxu0 0.0
      %6841 = vmatprep.subr.mxu0 0.0
      %6842 = vmatpush1.msra.mxu0 0.0
      %6843 = vmatprep.subr.mxu0 0.0
      %6844 = vmatpush1.msra.mxu0 0.0
      %6845 = vmatprep.subr.mxu0 0.0
      %6846 = vmatpush1.msra.mxu0 0.0
      %6847 = vmatprep.subr.mxu0 0.0
      %6848 = vmatpush1.msra.mxu0 0.0
      %6849 = vmatprep.subr.mxu0 0.0
      %6850 = vmatpush1.msra.mxu0 0.0
      %6851 = vmatprep.subr.mxu0 0.0
      %6852 = vmatpush1.msra.mxu0 0.0
      %6853 = vmatprep.subr.mxu0 0.0
      %6854 = vmatpush1.msra.mxu0 0.0
      %6855 = vmatprep.subr.mxu0 0.0
      %6856 = vmatpush1.msra.mxu0 0.0
      %6857 = vmatprep.subr.mxu0 0.0
      %6858 = vmatpush1.msra.mxu0 0.0
      %6859 = vmatprep.subr.mxu0 0.0
      %6860 = vmatpush1.msra.mxu0 0.0
      %6861 = vmatprep.subr.mxu0 0.0
      %6862 = vmatpush1.msra.mxu0 0.0
      %6863 = vmatprep.subr.mxu0 0.0
      %6864 = vmatpush1.msra.mxu0 0.0
      %6865 = vmatprep.subr.mxu0 0.0
      %6866 = vmatpush1.msra.mxu0 0.0
      %6867 = vmatprep.subr.mxu0 0.0
      %6868 = vmatpush1.msra.mxu0 0.0
      %6869 = vmatprep.subr.mxu0 0.0
      %6870 = vmatpush1.msra.mxu0 0.0
      %6871 = vmatprep.subr.mxu0 0.0
      %6872 = vmatpush1.msra.mxu0 0.0
      %6873 = vmatprep.subr.mxu0 0.0
      %6874 = vmatpush1.msra.mxu0 0.0
      %6875 = vmatprep.mubr.f32.mxu0 0.0
      %6876 = vmatmul.mubr.f32.gmra.mrb[0].mxu0 %v1519
      %v6877 = vpop.f32.mrb[0].mxu0
      %v6878 = vadd.f32 %v5149, %v6877
      %v6879 = vpop.f32.mrb[0].mxu0
      %6880 = vdwg.mxu0
      %6881 = vmatprep.subr.mxu0 0.0
      %6882 = vmatpush1.msra.mxu0 %v3422
      %6883 = vmatprep.subr.mxu0 0.0
      %6884 = vmatpush1.msra.mxu0 0.0
      %6885 = vmatprep.subr.mxu0 0.0
      %6886 = vmatpush1.msra.mxu0 0.0
      %6887 = vmatprep.subr.mxu0 0.0
      %6888 = vmatpush1.msra.mxu0 0.0
      %6889 = vmatprep.subr.mxu0 0.0
      %6890 = vmatpush1.msra.mxu0 0.0
      %6891 = vmatprep.subr.mxu0 0.0
      %6892 = vmatpush1.msra.mxu0 0.0
      %6893 = vmatprep.subr.mxu0 0.0
      %6894 = vmatpush1.msra.mxu0 0.0
      %6895 = vmatprep.subr.mxu0 0.0
      %6896 = vmatpush1.msra.mxu0 0.0
      %6897 = vmatprep.subr.mxu0 0.0
      %6898 = vmatpush1.msra.mxu0 0.0
      %6899 = vmatprep.subr.mxu0 0.0
      %6900 = vmatpush1.msra.mxu0 0.0
      %6901 = vmatprep.subr.mxu0 0.0
      %6902 = vmatpush1.msra.mxu0 0.0
      %6903 = vmatprep.subr.mxu0 0.0
      %6904 = vmatpush1.msra.mxu0 0.0
      %6905 = vmatprep.subr.mxu0 0.0
      %6906 = vmatpush1.msra.mxu0 0.0
      %6907 = vmatprep.subr.mxu0 0.0
      %6908 = vmatpush1.msra.mxu0 0.0
      %6909 = vmatprep.subr.mxu0 0.0
      %6910 = vmatpush1.msra.mxu0 0.0
      %6911 = vmatprep.subr.mxu0 0.0
      %6912 = vmatpush1.msra.mxu0 0.0
      %6913 = vmatprep.subr.mxu0 0.0
      %6914 = vmatpush1.msra.mxu0 0.0
      %6915 = vmatprep.subr.mxu0 0.0
      %6916 = vmatpush1.msra.mxu0 0.0
      %6917 = vmatprep.subr.mxu0 0.0
      %6918 = vmatpush1.msra.mxu0 0.0
      %6919 = vmatprep.subr.mxu0 0.0
      %6920 = vmatpush1.msra.mxu0 0.0
      %6921 = vmatprep.subr.mxu0 0.0
      %6922 = vmatpush1.msra.mxu0 0.0
      %6923 = vmatprep.subr.mxu0 0.0
      %6924 = vmatpush1.msra.mxu0 0.0
      %6925 = vmatprep.subr.mxu0 0.0
      %6926 = vmatpush1.msra.mxu0 0.0
      %6927 = vmatprep.subr.mxu0 0.0
      %6928 = vmatpush1.msra.mxu0 0.0
      %6929 = vmatprep.subr.mxu0 0.0
      %6930 = vmatpush1.msra.mxu0 0.0
      %6931 = vmatprep.subr.mxu0 0.0
      %6932 = vmatpush1.msra.mxu0 0.0
      %6933 = vmatprep.subr.mxu0 0.0
      %6934 = vmatpush1.msra.mxu0 0.0
      %6935 = vmatprep.subr.mxu0 0.0
      %6936 = vmatpush1.msra.mxu0 0.0
      %6937 = vmatprep.subr.mxu0 0.0
      %6938 = vmatpush1.msra.mxu0 0.0
      %6939 = vmatprep.subr.mxu0 0.0
      %6940 = vmatpush1.msra.mxu0 0.0
      %6941 = vmatprep.subr.mxu0 0.0
      %6942 = vmatpush1.msra.mxu0 0.0
      %6943 = vmatprep.subr.mxu0 0.0
      %6944 = vmatpush1.msra.mxu0 0.0
      %6945 = vmatprep.mubr.f32.mxu0 0.0
      %6946 = vmatmul.mubr.f32.gmra.mrb[0].mxu0 %v1595
      %v6947 = vpop.f32.mrb[0].mxu0
      %v6948 = vadd.f32 %v5219, %v6947
      %v6949 = vpop.f32.mrb[0].mxu0
      %6950 = vdwg.mxu0
      %6951 = vmatprep.subr.mxu0 0.0
      %6952 = vmatpush1.msra.mxu0 %v3498
      %6953 = vmatprep.subr.mxu0 0.0
      %6954 = vmatpush1.msra.mxu0 0.0
      %6955 = vmatprep.subr.mxu0 0.0
      %6956 = vmatpush1.msra.mxu0 0.0
      %6957 = vmatprep.subr.mxu0 0.0
      %6958 = vmatpush1.msra.mxu0 0.0
      %6959 = vmatprep.subr.mxu0 0.0
      %6960 = vmatpush1.msra.mxu0 0.0
      %6961 = vmatprep.subr.mxu0 0.0
      %6962 = vmatpush1.msra.mxu0 0.0
      %6963 = vmatprep.subr.mxu0 0.0
      %6964 = vmatpush1.msra.mxu0 0.0
      %6965 = vmatprep.subr.mxu0 0.0
      %6966 = vmatpush1.msra.mxu0 0.0
      %6967 = vmatprep.subr.mxu0 0.0
      %6968 = vmatpush1.msra.mxu0 0.0
      %6969 = vmatprep.subr.mxu0 0.0
      %6970 = vmatpush1.msra.mxu0 0.0
      %6971 = vmatprep.subr.mxu0 0.0
      %6972 = vmatpush1.msra.mxu0 0.0
      %6973 = vmatprep.subr.mxu0 0.0
      %6974 = vmatpush1.msra.mxu0 0.0
      %6975 = vmatprep.subr.mxu0 0.0
      %6976 = vmatpush1.msra.mxu0 0.0
      %6977 = vmatprep.subr.mxu0 0.0
      %6978 = vmatpush1.msra.mxu0 0.0
      %6979 = vmatprep.subr.mxu0 0.0
      %6980 = vmatpush1.msra.mxu0 0.0
      %6981 = vmatprep.subr.mxu0 0.0
      %6982 = vmatpush1.msra.mxu0 0.0
      %6983 = vmatprep.subr.mxu0 0.0
      %6984 = vmatpush1.msra.mxu0 0.0
      %6985 = vmatprep.subr.mxu0 0.0
      %6986 = vmatpush1.msra.mxu0 0.0
      %6987 = vmatprep.subr.mxu0 0.0
      %6988 = vmatpush1.msra.mxu0 0.0
      %6989 = vmatprep.subr.mxu0 0.0
      %6990 = vmatpush1.msra.mxu0 0.0
      %6991 = vmatprep.subr.mxu0 0.0
      %6992 = vmatpush1.msra.mxu0 0.0
      %6993 = vmatprep.subr.mxu0 0.0
      %6994 = vmatpush1.msra.mxu0 0.0
      %6995 = vmatprep.subr.mxu0 0.0
      %6996 = vmatpush1.msra.mxu0 0.0
      %6997 = vmatprep.subr.mxu0 0.0
      %6998 = vmatpush1.msra.mxu0 0.0
      %6999 = vmatprep.subr.mxu0 0.0
      %7000 = vmatpush1.msra.mxu0 0.0
      %7001 = vmatprep.subr.mxu0 0.0
      %7002 = vmatpush1.msra.mxu0 0.0
      %7003 = vmatprep.subr.mxu0 0.0
      %7004 = vmatpush1.msra.mxu0 0.0
      %7005 = vmatprep.subr.mxu0 0.0
      %7006 = vmatpush1.msra.mxu0 0.0
      %7007 = vmatprep.subr.mxu0 0.0
      %7008 = vmatpush1.msra.mxu0 0.0
      %7009 = vmatprep.subr.mxu0 0.0
      %7010 = vmatpush1.msra.mxu0 0.0
      %7011 = vmatprep.subr.mxu0 0.0
      %7012 = vmatpush1.msra.mxu0 0.0
      %7013 = vmatprep.subr.mxu0 0.0
      %7014 = vmatpush1.msra.mxu0 0.0
      %7015 = vmatprep.mubr.f32.mxu0 0.0
      %7016 = vmatmul.mubr.f32.gmra.mrb[0].mxu0 %v1671
      %v7017 = vpop.f32.mrb[0].mxu0
      %v7018 = vadd.f32 %v5289, %v7017
      %v7019 = vpop.f32.mrb[0].mxu0
      %7020 = vdwg.mxu0
      %7021 = vmatprep.subr.mxu0 0.0
      %7022 = vmatpush1.msra.mxu0 %v3574
      %7023 = vmatprep.subr.mxu0 0.0
      %7024 = vmatpush1.msra.mxu0 0.0
      %7025 = vmatprep.subr.mxu0 0.0
      %7026 = vmatpush1.msra.mxu0 0.0
      %7027 = vmatprep.subr.mxu0 0.0
      %7028 = vmatpush1.msra.mxu0 0.0
      %7029 = vmatprep.subr.mxu0 0.0
      %7030 = vmatpush1.msra.mxu0 0.0
      %7031 = vmatprep.subr.mxu0 0.0
      %7032 = vmatpush1.msra.mxu0 0.0
      %7033 = vmatprep.subr.mxu0 0.0
      %7034 = vmatpush1.msra.mxu0 0.0
      %7035 = vmatprep.subr.mxu0 0.0
      %7036 = vmatpush1.msra.mxu0 0.0
      %7037 = vmatprep.subr.mxu0 0.0
      %7038 = vmatpush1.msra.mxu0 0.0
      %7039 = vmatprep.subr.mxu0 0.0
      %7040 = vmatpush1.msra.mxu0 0.0
      %7041 = vmatprep.subr.mxu0 0.0
      %7042 = vmatpush1.msra.mxu0 0.0
      %7043 = vmatprep.subr.mxu0 0.0
      %7044 = vmatpush1.msra.mxu0 0.0
      %7045 = vmatprep.subr.mxu0 0.0
      %7046 = vmatpush1.msra.mxu0 0.0
      %7047 = vmatprep.subr.mxu0 0.0
      %7048 = vmatpush1.msra.mxu0 0.0
      %7049 = vmatprep.subr.mxu0 0.0
      %7050 = vmatpush1.msra.mxu0 0.0
      %7051 = vmatprep.subr.mxu0 0.0
      %7052 = vmatpush1.msra.mxu0 0.0
      %7053 = vmatprep.subr.mxu0 0.0
      %7054 = vmatpush1.msra.mxu0 0.0
      %7055 = vmatprep.subr.mxu0 0.0
      %7056 = vmatpush1.msra.mxu0 0.0
      %7057 = vmatprep.subr.mxu0 0.0
      %7058 = vmatpush1.msra.mxu0 0.0
      %7059 = vmatprep.subr.mxu0 0.0
      %7060 = vmatpush1.msra.mxu0 0.0
      %7061 = vmatprep.subr.mxu0 0.0
      %7062 = vmatpush1.msra.mxu0 0.0
      %7063 = vmatprep.subr.mxu0 0.0
      %7064 = vmatpush1.msra.mxu0 0.0
      %7065 = vmatprep.subr.mxu0 0.0
      %7066 = vmatpush1.msra.mxu0 0.0
      %7067 = vmatprep.subr.mxu0 0.0
      %7068 = vmatpush1.msra.mxu0 0.0
      %7069 = vmatprep.subr.mxu0 0.0
      %7070 = vmatpush1.msra.mxu0 0.0
      %7071 = vmatprep.subr.mxu0 0.0
      %7072 = vmatpush1.msra.mxu0 0.0
      %7073 = vmatprep.subr.mxu0 0.0
      %7074 = vmatpush1.msra.mxu0 0.0
      %7075 = vmatprep.subr.mxu0 0.0
      %7076 = vmatpush1.msra.mxu0 0.0
      %7077 = vmatprep.subr.mxu0 0.0
      %7078 = vmatpush1.msra.mxu0 0.0
      %7079 = vmatprep.subr.mxu0 0.0
      %7080 = vmatpush1.msra.mxu0 0.0
      %7081 = vmatprep.subr.mxu0 0.0
      %7082 = vmatpush1.msra.mxu0 0.0
      %7083 = vmatprep.subr.mxu0 0.0
      %7084 = vmatpush1.msra.mxu0 0.0
      %7085 = vmatprep.mubr.f32.mxu0 0.0
      %7086 = vmatmul.mubr.f32.gmra.mrb[0].mxu0 %v1747
      %v7087 = vpop.f32.mrb[0].mxu0
      %v7088 = vadd.f32 %v5359, %v7087
      %v7089 = vpop.f32.mrb[0].mxu0
      %7090 = vdwg.mxu0
      %7091 = vmatprep.subr.mxu0 0.0
      %7092 = vmatpush1.msra.mxu0 %v3650
      %7093 = vmatprep.subr.mxu0 0.0
      %7094 = vmatpush1.msra.mxu0 0.0
      %7095 = vmatprep.subr.mxu0 0.0
      %7096 = vmatpush1.msra.mxu0 0.0
      %7097 = vmatprep.subr.mxu0 0.0
      %7098 = vmatpush1.msra.mxu0 0.0
      %7099 = vmatprep.subr.mxu0 0.0
      %7100 = vmatpush1.msra.mxu0 0.0
      %7101 = vmatprep.subr.mxu0 0.0
      %7102 = vmatpush1.msra.mxu0 0.0
      %7103 = vmatprep.subr.mxu0 0.0
      %7104 = vmatpush1.msra.mxu0 0.0
      %7105 = vmatprep.subr.mxu0 0.0
      %7106 = vmatpush1.msra.mxu0 0.0
      %7107 = vmatprep.subr.mxu0 0.0
      %7108 = vmatpush1.msra.mxu0 0.0
      %7109 = vmatprep.subr.mxu0 0.0
      %7110 = vmatpush1.msra.mxu0 0.0
      %7111 = vmatprep.subr.mxu0 0.0
      %7112 = vmatpush1.msra.mxu0 0.0
      %7113 = vmatprep.subr.mxu0 0.0
      %7114 = vmatpush1.msra.mxu0 0.0
      %7115 = vmatprep.subr.mxu0 0.0
      %7116 = vmatpush1.msra.mxu0 0.0
      %7117 = vmatprep.subr.mxu0 0.0
      %7118 = vmatpush1.msra.mxu0 0.0
      %7119 = vmatprep.subr.mxu0 0.0
      %7120 = vmatpush1.msra.mxu0 0.0
      %7121 = vmatprep.subr.mxu0 0.0
      %7122 = vmatpush1.msra.mxu0 0.0
      %7123 = vmatprep.subr.mxu0 0.0
      %7124 = vmatpush1.msra.mxu0 0.0
      %7125 = vmatprep.subr.mxu0 0.0
      %7126 = vmatpush1.msra.mxu0 0.0
      %7127 = vmatprep.subr.mxu0 0.0
      %7128 = vmatpush1.msra.mxu0 0.0
      %7129 = vmatprep.subr.mxu0 0.0
      %7130 = vmatpush1.msra.mxu0 0.0
      %7131 = vmatprep.subr.mxu0 0.0
      %7132 = vmatpush1.msra.mxu0 0.0
      %7133 = vmatprep.subr.mxu0 0.0
      %7134 = vmatpush1.msra.mxu0 0.0
      %7135 = vmatprep.subr.mxu0 0.0
      %7136 = vmatpush1.msra.mxu0 0.0
      %7137 = vmatprep.subr.mxu0 0.0
      %7138 = vmatpush1.msra.mxu0 0.0
      %7139 = vmatprep.subr.mxu0 0.0
      %7140 = vmatpush1.msra.mxu0 0.0
      %7141 = vmatprep.subr.mxu0 0.0
      %7142 = vmatpush1.msra.mxu0 0.0
      %7143 = vmatprep.subr.mxu0 0.0
      %7144 = vmatpush1.msra.mxu0 0.0
      %7145 = vmatprep.subr.mxu0 0.0
      %7146 = vmatpush1.msra.mxu0 0.0
      %7147 = vmatprep.subr.mxu0 0.0
      %7148 = vmatpush1.msra.mxu0 0.0
      %7149 = vmatprep.subr.mxu0 0.0
      %7150 = vmatpush1.msra.mxu0 0.0
      %7151 = vmatprep.subr.mxu0 0.0
      %7152 = vmatpush1.msra.mxu0 0.0
      %7153 = vmatprep.subr.mxu0 0.0
      %7154 = vmatpush1.msra.mxu0 0.0
      %7155 = vmatprep.mubr.f32.mxu0 0.0
      %7156 = vmatmul.mubr.f32.gmra.mrb[0].mxu0 %v1823
      %v7157 = vpop.f32.mrb[0].mxu0
      %v7158 = vadd.f32 %v5429, %v7157
      %v7159 = vpop.f32.mrb[0].mxu0
      %7160 = vdwg.mxu0
      %7161 = vmatprep.subr.mxu0 0.0
      %7162 = vmatpush1.msra.mxu0 %v3726
      %7163 = vmatprep.subr.mxu0 0.0
      %7164 = vmatpush1.msra.mxu0 0.0
      %7165 = vmatprep.subr.mxu0 0.0
      %7166 = vmatpush1.msra.mxu0 0.0
      %7167 = vmatprep.subr.mxu0 0.0
      %7168 = vmatpush1.msra.mxu0 0.0
      %7169 = vmatprep.subr.mxu0 0.0
      %7170 = vmatpush1.msra.mxu0 0.0
      %7171 = vmatprep.subr.mxu0 0.0
      %7172 = vmatpush1.msra.mxu0 0.0
      %7173 = vmatprep.subr.mxu0 0.0
      %7174 = vmatpush1.msra.mxu0 0.0
      %7175 = vmatprep.subr.mxu0 0.0
      %7176 = vmatpush1.msra.mxu0 0.0
      %7177 = vmatprep.subr.mxu0 0.0
      %7178 = vmatpush1.msra.mxu0 0.0
      %7179 = vmatprep.subr.mxu0 0.0
      %7180 = vmatpush1.msra.mxu0 0.0
      %7181 = vmatprep.subr.mxu0 0.0
      %7182 = vmatpush1.msra.mxu0 0.0
      %7183 = vmatprep.subr.mxu0 0.0
      %7184 = vmatpush1.msra.mxu0 0.0
      %7185 = vmatprep.subr.mxu0 0.0
      %7186 = vmatpush1.msra.mxu0 0.0
      %7187 = vmatprep.subr.mxu0 0.0
      %7188 = vmatpush1.msra.mxu0 0.0
      %7189 = vmatprep.subr.mxu0 0.0
      %7190 = vmatpush1.msra.mxu0 0.0
      %7191 = vmatprep.subr.mxu0 0.0
      %7192 = vmatpush1.msra.mxu0 0.0
      %7193 = vmatprep.subr.mxu0 0.0
      %7194 = vmatpush1.msra.mxu0 0.0
      %7195 = vmatprep.subr.mxu0 0.0
      %7196 = vmatpush1.msra.mxu0 0.0
      %7197 = vmatprep.subr.mxu0 0.0
      %7198 = vmatpush1.msra.mxu0 0.0
      %7199 = vmatprep.subr.mxu0 0.0
      %7200 = vmatpush1.msra.mxu0 0.0
      %7201 = vmatprep.subr.mxu0 0.0
      %7202 = vmatpush1.msra.mxu0 0.0
      %7203 = vmatprep.subr.mxu0 0.0
      %7204 = vmatpush1.msra.mxu0 0.0
      %7205 = vmatprep.subr.mxu0 0.0
      %7206 = vmatpush1.msra.mxu0 0.0
      %7207 = vmatprep.subr.mxu0 0.0
      %7208 = vmatpush1.msra.mxu0 0.0
      %7209 = vmatprep.subr.mxu0 0.0
      %7210 = vmatpush1.msra.mxu0 0.0
      %7211 = vmatprep.subr.mxu0 0.0
      %7212 = vmatpush1.msra.mxu0 0.0
      %7213 = vmatprep.subr.mxu0 0.0
      %7214 = vmatpush1.msra.mxu0 0.0
      %7215 = vmatprep.subr.mxu0 0.0
      %7216 = vmatpush1.msra.mxu0 0.0
      %7217 = vmatprep.subr.mxu0 0.0
      %7218 = vmatpush1.msra.mxu0 0.0
      %7219 = vmatprep.subr.mxu0 0.0
      %7220 = vmatpush1.msra.mxu0 0.0
      %7221 = vmatprep.subr.mxu0 0.0
      %7222 = vmatpush1.msra.mxu0 0.0
      %7223 = vmatprep.subr.mxu0 0.0
      %7224 = vmatpush1.msra.mxu0 0.0
      %7225 = vmatprep.mubr.f32.mxu0 0.0
      %7226 = vmatmul.mubr.f32.gmra.mrb[0].mxu0 %v1899
      %v7227 = vpop.f32.mrb[0].mxu0
      %v7228 = vadd.f32 %v5499, %v7227
      %v7229 = vpop.f32.mrb[0].mxu0
      %7230 = vdwg.mxu0
      %7231 = vmatprep.subr.mxu0 0.0
      %7232 = vmatpush1.msra.mxu0 %v3802
      %7233 = vmatprep.subr.mxu0 0.0
      %7234 = vmatpush1.msra.mxu0 0.0
      %7235 = vmatprep.subr.mxu0 0.0
      %7236 = vmatpush1.msra.mxu0 0.0
      %7237 = vmatprep.subr.mxu0 0.0
      %7238 = vmatpush1.msra.mxu0 0.0
      %7239 = vmatprep.subr.mxu0 0.0
      %7240 = vmatpush1.msra.mxu0 0.0
      %7241 = vmatprep.subr.mxu0 0.0
      %7242 = vmatpush1.msra.mxu0 0.0
      %7243 = vmatprep.subr.mxu0 0.0
      %7244 = vmatpush1.msra.mxu0 0.0
      %7245 = vmatprep.subr.mxu0 0.0
      %7246 = vmatpush1.msra.mxu0 0.0
      %7247 = vmatprep.subr.mxu0 0.0
      %7248 = vmatpush1.msra.mxu0 0.0
      %7249 = vmatprep.subr.mxu0 0.0
      %7250 = vmatpush1.msra.mxu0 0.0
      %7251 = vmatprep.subr.mxu0 0.0
      %7252 = vmatpush1.msra.mxu0 0.0
      %7253 = vmatprep.subr.mxu0 0.0
      %7254 = vmatpush1.msra.mxu0 0.0
      %7255 = vmatprep.subr.mxu0 0.0
      %7256 = vmatpush1.msra.mxu0 0.0
      %7257 = vmatprep.subr.mxu0 0.0
      %7258 = vmatpush1.msra.mxu0 0.0
      %7259 = vmatprep.subr.mxu0 0.0
      %7260 = vmatpush1.msra.mxu0 0.0
      %7261 = vmatprep.subr.mxu0 0.0
      %7262 = vmatpush1.msra.mxu0 0.0
      %7263 = vmatprep.subr.mxu0 0.0
      %7264 = vmatpush1.msra.mxu0 0.0
      %7265 = vmatprep.subr.mxu0 0.0
      %7266 = vmatpush1.msra.mxu0 0.0
      %7267 = vmatprep.subr.mxu0 0.0
      %7268 = vmatpush1.msra.mxu0 0.0
      %7269 = vmatprep.subr.mxu0 0.0
      %7270 = vmatpush1.msra.mxu0 0.0
      %7271 = vmatprep.subr.mxu0 0.0
      %7272 = vmatpush1.msra.mxu0 0.0
      %7273 = vmatprep.subr.mxu0 0.0
      %7274 = vmatpush1.msra.mxu0 0.0
      %7275 = vmatprep.subr.mxu0 0.0
      %7276 = vmatpush1.msra.mxu0 0.0
      %7277 = vmatprep.subr.mxu0 0.0
      %7278 = vmatpush1.msra.mxu0 0.0
      %7279 = vmatprep.subr.mxu0 0.0
      %7280 = vmatpush1.msra.mxu0 0.0
      %7281 = vmatprep.subr.mxu0 0.0
      %7282 = vmatpush1.msra.mxu0 0.0
      %7283 = vmatprep.subr.mxu0 0.0
      %7284 = vmatpush1.msra.mxu0 0.0
      %7285 = vmatprep.subr.mxu0 0.0
      %7286 = vmatpush1.msra.mxu0 0.0
      %7287 = vmatprep.subr.mxu0 0.0
      %7288 = vmatpush1.msra.mxu0 0.0
      %7289 = vmatprep.subr.mxu0 0.0
      %7290 = vmatpush1.msra.mxu0 0.0
      %7291 = vmatprep.subr.mxu0 0.0
      %7292 = vmatpush1.msra.mxu0 0.0
      %7293 = vmatprep.subr.mxu0 0.0
      %7294 = vmatpush1.msra.mxu0 0.0
      %7295 = vmatprep.mubr.f32.mxu0 0.0
      %7296 = vmatmul.mubr.f32.gmra.mrb[0].mxu0 %v1975
      %v7297 = vpop.f32.mrb[0].mxu0
      %v7298 = vadd.f32 %v5569, %v7297
      %v7299 = vpop.f32.mrb[0].mxu0
      %7300 = vdwg.mxu0
      %7301 = vmatprep.subr.mxu0 0.0
      %7302 = vmatpush1.msra.mxu0 %v3878
      %7303 = vmatprep.subr.mxu0 0.0
      %7304 = vmatpush1.msra.mxu0 0.0
      %7305 = vmatprep.subr.mxu0 0.0
      %7306 = vmatpush1.msra.mxu0 0.0
      %7307 = vmatprep.subr.mxu0 0.0
      %7308 = vmatpush1.msra.mxu0 0.0
      %7309 = vmatprep.subr.mxu0 0.0
      %7310 = vmatpush1.msra.mxu0 0.0
      %7311 = vmatprep.subr.mxu0 0.0
      %7312 = vmatpush1.msra.mxu0 0.0
      %7313 = vmatprep.subr.mxu0 0.0
      %7314 = vmatpush1.msra.mxu0 0.0
      %7315 = vmatprep.subr.mxu0 0.0
      %7316 = vmatpush1.msra.mxu0 0.0
      %7317 = vmatprep.subr.mxu0 0.0
      %7318 = vmatpush1.msra.mxu0 0.0
      %7319 = vmatprep.subr.mxu0 0.0
      %7320 = vmatpush1.msra.mxu0 0.0
      %7321 = vmatprep.subr.mxu0 0.0
      %7322 = vmatpush1.msra.mxu0 0.0
      %7323 = vmatprep.subr.mxu0 0.0
      %7324 = vmatpush1.msra.mxu0 0.0
      %7325 = vmatprep.subr.mxu0 0.0
      %7326 = vmatpush1.msra.mxu0 0.0
      %7327 = vmatprep.subr.mxu0 0.0
      %7328 = vmatpush1.msra.mxu0 0.0
      %7329 = vmatprep.subr.mxu0 0.0
      %7330 = vmatpush1.msra.mxu0 0.0
      %7331 = vmatprep.subr.mxu0 0.0
      %7332 = vmatpush1.msra.mxu0 0.0
      %7333 = vmatprep.subr.mxu0 0.0
      %7334 = vmatpush1.msra.mxu0 0.0
      %7335 = vmatprep.subr.mxu0 0.0
      %7336 = vmatpush1.msra.mxu0 0.0
      %7337 = vmatprep.subr.mxu0 0.0
      %7338 = vmatpush1.msra.mxu0 0.0
      %7339 = vmatprep.subr.mxu0 0.0
      %7340 = vmatpush1.msra.mxu0 0.0
      %7341 = vmatprep.subr.mxu0 0.0
      %7342 = vmatpush1.msra.mxu0 0.0
      %7343 = vmatprep.subr.mxu0 0.0
      %7344 = vmatpush1.msra.mxu0 0.0
      %7345 = vmatprep.subr.mxu0 0.0
      %7346 = vmatpush1.msra.mxu0 0.0
      %7347 = vmatprep.subr.mxu0 0.0
      %7348 = vmatpush1.msra.mxu0 0.0
      %7349 = vmatprep.subr.mxu0 0.0
      %7350 = vmatpush1.msra.mxu0 0.0
      %7351 = vmatprep.subr.mxu0 0.0
      %7352 = vmatpush1.msra.mxu0 0.0
      %7353 = vmatprep.subr.mxu0 0.0
      %7354 = vmatpush1.msra.mxu0 0.0
      %7355 = vmatprep.subr.mxu0 0.0
      %7356 = vmatpush1.msra.mxu0 0.0
      %7357 = vmatprep.subr.mxu0 0.0
      %7358 = vmatpush1.msra.mxu0 0.0
      %7359 = vmatprep.subr.mxu0 0.0
      %7360 = vmatpush1.msra.mxu0 0.0
      %7361 = vmatprep.subr.mxu0 0.0
      %7362 = vmatpush1.msra.mxu0 0.0
      %7363 = vmatprep.subr.mxu0 0.0
      %7364 = vmatpush1.msra.mxu0 0.0
      %7365 = vmatprep.mubr.f32.mxu0 0.0
      %7366 = vmatmul.mubr.f32.gmra.mrb[0].mxu0 %v2051
      %v7367 = vpop.f32.mrb[0].mxu0
      %v7368 = vadd.f32 %v5639, %v7367
      %v7369 = vpop.f32.mrb[0].mxu0
      %7370 = vdwg.mxu0
      %7371 = vmatprep.subr.mxu0 0.0
      %7372 = vmatpush1.msra.mxu0 %v3954
      %7373 = vmatprep.subr.mxu0 0.0
      %7374 = vmatpush1.msra.mxu0 0.0
      %7375 = vmatprep.subr.mxu0 0.0
      %7376 = vmatpush1.msra.mxu0 0.0
      %7377 = vmatprep.subr.mxu0 0.0
      %7378 = vmatpush1.msra.mxu0 0.0
      %7379 = vmatprep.subr.mxu0 0.0
      %7380 = vmatpush1.msra.mxu0 0.0
      %7381 = vmatprep.subr.mxu0 0.0
      %7382 = vmatpush1.msra.mxu0 0.0
      %7383 = vmatprep.subr.mxu0 0.0
      %7384 = vmatpush1.msra.mxu0 0.0
      %7385 = vmatprep.subr.mxu0 0.0
      %7386 = vmatpush1.msra.mxu0 0.0
      %7387 = vmatprep.subr.mxu0 0.0
      %7388 = vmatpush1.msra.mxu0 0.0
      %7389 = vmatprep.subr.mxu0 0.0
      %7390 = vmatpush1.msra.mxu0 0.0
      %7391 = vmatprep.subr.mxu0 0.0
      %7392 = vmatpush1.msra.mxu0 0.0
      %7393 = vmatprep.subr.mxu0 0.0
      %7394 = vmatpush1.msra.mxu0 0.0
      %7395 = vmatprep.subr.mxu0 0.0
      %7396 = vmatpush1.msra.mxu0 0.0
      %7397 = vmatprep.subr.mxu0 0.0
      %7398 = vmatpush1.msra.mxu0 0.0
      %7399 = vmatprep.subr.mxu0 0.0
      %7400 = vmatpush1.msra.mxu0 0.0
      %7401 = vmatprep.subr.mxu0 0.0
      %7402 = vmatpush1.msra.mxu0 0.0
      %7403 = vmatprep.subr.mxu0 0.0
      %7404 = vmatpush1.msra.mxu0 0.0
      %7405 = vmatprep.subr.mxu0 0.0
      %7406 = vmatpush1.msra.mxu0 0.0
      %7407 = vmatprep.subr.mxu0 0.0
      %7408 = vmatpush1.msra.mxu0 0.0
      %7409 = vmatprep.subr.mxu0 0.0
      %7410 = vmatpush1.msra.mxu0 0.0
      %7411 = vmatprep.subr.mxu0 0.0
      %7412 = vmatpush1.msra.mxu0 0.0
      %7413 = vmatprep.subr.mxu0 0.0
      %7414 = vmatpush1.msra.mxu0 0.0
      %7415 = vmatprep.subr.mxu0 0.0
      %7416 = vmatpush1.msra.mxu0 0.0
      %7417 = vmatprep.subr.mxu0 0.0
      %7418 = vmatpush1.msra.mxu0 0.0
      %7419 = vmatprep.subr.mxu0 0.0
      %7420 = vmatpush1.msra.mxu0 0.0
      %7421 = vmatprep.subr.mxu0 0.0
      %7422 = vmatpush1.msra.mxu0 0.0
      %7423 = vmatprep.subr.mxu0 0.0
      %7424 = vmatpush1.msra.mxu0 0.0
      %7425 = vmatprep.subr.mxu0 0.0
      %7426 = vmatpush1.msra.mxu0 0.0
      %7427 = vmatprep.subr.mxu0 0.0
      %7428 = vmatpush1.msra.mxu0 0.0
      %7429 = vmatprep.subr.mxu0 0.0
      %7430 = vmatpush1.msra.mxu0 0.0
      %7431 = vmatprep.subr.mxu0 0.0
      %7432 = vmatpush1.msra.mxu0 0.0
      %7433 = vmatprep.subr.mxu0 0.0
      %7434 = vmatpush1.msra.mxu0 0.0
      %7435 = vmatprep.mubr.f32.mxu0 0.0
      %7436 = vmatmul.mubr.f32.gmra.mrb[0].mxu0 %v2127
      %v7437 = vpop.f32.mrb[0].mxu0
      %v7438 = vadd.f32 %v5709, %v7437
      %v7439 = vpop.f32.mrb[0].mxu0
      %7440 = vdwg.mxu0
      %7441 = vmatprep.subr.mxu0 0.0
      %7442 = vmatpush1.msra.mxu0 %v4030
      %7443 = vmatprep.subr.mxu0 0.0
      %7444 = vmatpush1.msra.mxu0 0.0
      %7445 = vmatprep.subr.mxu0 0.0
      %7446 = vmatpush1.msra.mxu0 0.0
      %7447 = vmatprep.subr.mxu0 0.0
      %7448 = vmatpush1.msra.mxu0 0.0
      %7449 = vmatprep.subr.mxu0 0.0
      %7450 = vmatpush1.msra.mxu0 0.0
      %7451 = vmatprep.subr.mxu0 0.0
      %7452 = vmatpush1.msra.mxu0 0.0
      %7453 = vmatprep.subr.mxu0 0.0
      %7454 = vmatpush1.msra.mxu0 0.0
      %7455 = vmatprep.subr.mxu0 0.0
      %7456 = vmatpush1.msra.mxu0 0.0
      %7457 = vmatprep.subr.mxu0 0.0
      %7458 = vmatpush1.msra.mxu0 0.0
      %7459 = vmatprep.subr.mxu0 0.0
      %7460 = vmatpush1.msra.mxu0 0.0
      %7461 = vmatprep.subr.mxu0 0.0
      %7462 = vmatpush1.msra.mxu0 0.0
      %7463 = vmatprep.subr.mxu0 0.0
      %7464 = vmatpush1.msra.mxu0 0.0
      %7465 = vmatprep.subr.mxu0 0.0
      %7466 = vmatpush1.msra.mxu0 0.0
      %7467 = vmatprep.subr.mxu0 0.0
      %7468 = vmatpush1.msra.mxu0 0.0
      %7469 = vmatprep.subr.mxu0 0.0
      %7470 = vmatpush1.msra.mxu0 0.0
      %7471 = vmatprep.subr.mxu0 0.0
      %7472 = vmatpush1.msra.mxu0 0.0
      %7473 = vmatprep.subr.mxu0 0.0
      %7474 = vmatpush1.msra.mxu0 0.0
      %7475 = vmatprep.subr.mxu0 0.0
      %7476 = vmatpush1.msra.mxu0 0.0
      %7477 = vmatprep.subr.mxu0 0.0
      %7478 = vmatpush1.msra.mxu0 0.0
      %7479 = vmatprep.subr.mxu0 0.0
      %7480 = vmatpush1.msra.mxu0 0.0
      %7481 = vmatprep.subr.mxu0 0.0
      %7482 = vmatpush1.msra.mxu0 0.0
      %7483 = vmatprep.subr.mxu0 0.0
      %7484 = vmatpush1.msra.mxu0 0.0
      %7485 = vmatprep.subr.mxu0 0.0
      %7486 = vmatpush1.msra.mxu0 0.0
      %7487 = vmatprep.subr.mxu0 0.0
      %7488 = vmatpush1.msra.mxu0 0.0
      %7489 = vmatprep.subr.mxu0 0.0
      %7490 = vmatpush1.msra.mxu0 0.0
      %7491 = vmatprep.subr.mxu0 0.0
      %7492 = vmatpush1.msra.mxu0 0.0
      %7493 = vmatprep.subr.mxu0 0.0
      %7494 = vmatpush1.msra.mxu0 0.0
      %7495 = vmatprep.subr.mxu0 0.0
      %7496 = vmatpush1.msra.mxu0 0.0
      %7497 = vmatprep.subr.mxu0 0.0
      %7498 = vmatpush1.msra.mxu0 0.0
      %7499 = vmatprep.subr.mxu0 0.0
      %7500 = vmatpush1.msra.mxu0 0.0
      %7501 = vmatprep.subr.mxu0 0.0
      %7502 = vmatpush1.msra.mxu0 0.0
      %7503 = vmatprep.subr.mxu0 0.0
      %7504 = vmatpush1.msra.mxu0 0.0
      %7505 = vmatprep.mubr.f32.mxu0 0.0
      %7506 = vmatmul.mubr.f32.gmra.mrb[0].mxu0 %v2203
      %v7507 = vpop.f32.mrb[0].mxu0
      %v7508 = vadd.f32 %v5779, %v7507
      %v7509 = vpop.f32.mrb[0].mxu0
      %7510 = vdwg.mxu0
      %7511 = vst.msk [vmem:[%s306] sm:$0x3] %vm5806, %v5898
      %7512 = vst.msk [vmem:[%s306 + $0x2] sm:$0x3] %vm5806, %v5968
      %7513 = vst.msk [vmem:[%s306 + $0x4] sm:$0x3] %vm5806, %v6038
      %7514 = vst.msk [vmem:[%s306 + $0x6] sm:$0x3] %vm5806, %v6108
      %7515 = vst.msk [vmem:[%s306 + $0x8] sm:$0x3] %vm5806, %v6178
      %7516 = vst.msk [vmem:[%s306 + $0xa] sm:$0x3] %vm5806, %v6248
      %7517 = vst.msk [vmem:[%s306 + $0xc] sm:$0x3] %vm5806, %v6318
      %7518 = vst.msk [vmem:[%s306 + $0xe] sm:$0x3] %vm5806, %v6388
      %7519 = vst.msk [vmem:[%s306 + $0x10] sm:$0x3] %vm5806, %v6458
      %7520 = vst.msk [vmem:[%s306 + $0x12] sm:$0x3] %vm5806, %v6528
      %7521 = vst.msk [vmem:[%s306 + $0x14] sm:$0x3] %vm5806, %v6598
      %7522 = vst.msk [vmem:[%s306 + $0x16] sm:$0x3] %vm5806, %v6668
      %7523 = vst.msk [vmem:[%s306 + $0x18] sm:$0x3] %vm5806, %v6738
      %7524 = vst.msk [vmem:[%s306 + $0x1a] sm:$0x3] %vm5806, %v6808
      %7525 = vst.msk [vmem:[%s306 + $0x1c] sm:$0x3] %vm5806, %v6878
      %7526 = vst.msk [vmem:[%s306 + $0x1e] sm:$0x3] %vm5806, %v6948
      %7527 = vst.msk [vmem:[%s306 + $0x20] sm:$0x3] %vm5806, %v7018
      %7528 = vst.msk [vmem:[%s306 + $0x22] sm:$0x3] %vm5806, %v7088
      %7529 = vst.msk [vmem:[%s306 + $0x24] sm:$0x3] %vm5806, %v7158
      %7530 = vst.msk [vmem:[%s306 + $0x26] sm:$0x3] %vm5806, %v7228
      %7531 = vst.msk [vmem:[%s306 + $0x28] sm:$0x3] %vm5806, %v7298
      %7532 = vst.msk [vmem:[%s306 + $0x2a] sm:$0x3] %vm5806, %v7368
      %7533 = vst.msk [vmem:[%s306 + $0x2c] sm:$0x3] %vm5806, %v7438
      %7534 = vst.msk [vmem:[%s306 + $0x2e] sm:$0x3] %vm5806, %v7508
      %s7535 = smul.u32 24, %s17
      %p7536 = scmp.lt.s32.totalorder %s7535, 47
      %s7537 = scalar_select %p7536, %s7535, 47
      %s7538 = smul.addr %s7537, 2
      %s7539 = scalar_lea.vmem %s4, %s7538
      %s7540 = smul.u32 24, %s17
      %p7541 = scmp.lt.s32.totalorder %s7540, 47
      %s7542 = scalar_select %p7541, %s7540, 47
      %s7543 = smul.addr %s7542, 2
      %s7544 = scalar_lea.vmem %s5, %s7543
      // Predicated region
      $region37: #{tpu_custom_call.1} parent=35 // pred_check
        %p7545 = pneg %p139
      $region38: #{tpu_custom_call.1} parent=35 // pred_check_branch
        %7547 = sbr.rel (%p7545) target = $region40
      $region39: #{tpu_custom_call.1} parent=35 // pred_region
        %s7548 = smul.u32 24, %s17
      $region40: #{tpu_custom_call.1} parent=35 // pred_fallthru
        _
      // Predicated region
      $region41: #{tpu_custom_call.1} parent=35 // pred_check
        %p7549 = pneg %p165
      $region42: #{tpu_custom_call.1} parent=35 // pred_check_branch
        %7551 = sbr.rel (%p7549) target = $region44
      $region43: #{tpu_custom_call.1} parent=35 // pred_region
        %s7552 = smul.u32 24, %s17
      $region44: #{tpu_custom_call.1} parent=35 // pred_fallthru
        _
    $region36: #{tpu_custom_call.1} parent=5 // pred_fallthru
      _
    %p7553 = scmp.le.s32.totalorder 2, %s12
    // Predicated region
    $region45: #{tpu_custom_call.1} parent=5 // pred_check
      %p7554 = pneg %p7553
    $region46: #{tpu_custom_call.1} parent=5 // pred_check_branch
      %7556 = sbr.rel (%p7554) target = $region48
    $region47: #{tpu_custom_call.1} parent=5 // pred_region
      %s7557 = ssub.s32 %s12, 2
      // Predicated region
      $region49: #{tpu_custom_call.1} parent=47 // pred_check
        %p7558 = pneg %p145
      $region50: #{tpu_custom_call.1} parent=47 // pred_check_branch
        %7560 = sbr.rel (%p7558) target = $region52
      $region51: #{tpu_custom_call.1} parent=47 // pred_region
        %s7561 = smul.u32 24, %s18
        %p7562 = scmp.lt.s32.totalorder %s7561, 47
        %s7563 = scalar_select %p7562, %s7561, 47
        %s7564 = smul.addr %s7563, 2
        %s7565 = scalar_lea.vmem %s4, %s7564
      $region52: #{tpu_custom_call.1} parent=47 // pred_fallthru
        _
      // Predicated region
      $region53: #{tpu_custom_call.1} parent=47 // pred_check
        %p7566 = pneg %p171
      $region54: #{tpu_custom_call.1} parent=47 // pred_check_branch
        %7568 = sbr.rel (%p7566) target = $region56
      $region55: #{tpu_custom_call.1} parent=47 // pred_region
        %s7569 = smul.u32 24, %s18
        %p7570 = scmp.lt.s32.totalorder %s7569, 47
        %s7571 = scalar_select %p7570, %s7569, 47
        %s7572 = smul.addr %s7571, 2
        %s7573 = scalar_lea.vmem %s5, %s7572
      $region56: #{tpu_custom_call.1} parent=47 // pred_fallthru
        _
    $region48: #{tpu_custom_call.1} parent=5 // pred_fallthru
      _
  $region6: #{tpu_custom_call.1} parent=0 // loop_footer
    %s16 = sadd.s32 1, %s12
  $region7: #{tpu_custom_call.1} parent=0 // loop_footer_branch
    %11 = sbr.rel target = $region3
  $region8: #{tpu_custom_call.1} parent=0 // loop_exit
    _

</llo_original>
